<compile_context>
chip_gen: v7x
topology: tpu7x:2x2x1
jax: 0.10.0
libtpu: 0.0.40
codegen_flags: <defaults>
</compile_context>

<pallas_src>
import functools

import jax
import jax.numpy as jnp
from jax.experimental import pallas as pl
from jax.experimental.pallas import tpu as pltpu


# ----------------------------------------------------------------------------
# Deterministic synthetic parameters (torch layouts: OIHW conv weights).
# ----------------------------------------------------------------------------
def make_stem_params(key, in_ch=3, out_ch=64):
    ks = jax.random.split(key, 7)
    fan = in_ch * 7 * 7
    p = {}
    p["conv_w"] = jax.random.normal(ks[0], (out_ch, in_ch, 7, 7), jnp.float32) / jnp.sqrt(float(fan))
    p["bn_gamma"] = 1.0 + 0.1 * jax.random.normal(ks[1], (out_ch,), jnp.float32)
    p["bn_beta"] = 0.1 * jax.random.normal(ks[2], (out_ch,), jnp.float32)
    p["bn_mean"] = 0.1 * jax.random.normal(ks[3], (out_ch,), jnp.float32)
    p["bn_var"] = jax.random.uniform(ks[4], (out_ch,), jnp.float32, 0.5, 1.5)
    # PA: depthwise Conv2d(out_ch, out_ch, 3, padding=1, groups=out_ch) + bias
    p["pa_w"] = jax.random.normal(ks[5], (out_ch, 1, 3, 3), jnp.float32) / 3.0
    p["pa_b"] = 0.1 * jax.random.normal(ks[6], (out_ch,), jnp.float32)
    return p


# ----------------------------------------------------------------------------
# Geometry helpers
# ----------------------------------------------------------------------------
def _stem_geometry(H, W):
    K, S, P = 7, 2, 3
    Hc = (H + 2 * P - K) // S + 1          # conv output spatial
    Wc = (W + 2 * P - K) // S + 1
    Hp = (Hc + 2 * 1 - 3) // 2 + 1         # pooled output spatial
    Wp = (Wc + 2 * 1 - 3) // 2 + 1
    Kp = K + (K % 2)                       # pad odd kernel to even
    A = Kp // 2                            # row taps after 2x2 space-to-depth
    Hh, Wh = (H + 2 * P) // 2, (W + 2 * P) // 2
    assert (H + 2 * P) % 2 == 0 and (W + 2 * P) % 2 == 0
    assert Hh == Hc + A - 1 and Wh == Wc + A - 1
    return dict(K=K, S=S, P=P, Hc=Hc, Wc=Wc, Hp=Hp, Wp=Wp, Kp=Kp, A=A, Hh=Hh, Wh=Wh)


# ----------------------------------------------------------------------------
# One-time, input-independent weight preparation (call once per parameter set)
# ----------------------------------------------------------------------------
def prepare_stem_params(params, H, W, with_pos=True):
    geo = _stem_geometry(H, W)
    Cout, Cin, K, _ = params["conv_w"].shape
    A, Wc, Wh = geo["A"], geo["Wc"], geo["Wh"]
    Cs2d = 4 * Cin
    NK = Wh * Cs2d
    NKp = ((NK + 127) // 128) * 128        # pad contraction to lane multiple
    NL = Wc * Cout

    # conv weight -> banded (Toeplitz) matrix with BN scale folded in
    w8 = jnp.pad(params["conv_w"], ((0, 0), (0, 0), (0, geo["Kp"] - K), (0, geo["Kp"] - K)))
    w4 = jnp.transpose(w8.reshape(Cout, Cin, A, 2, A, 2), (2, 4, 3, 5, 1, 0))
    w4 = w4.reshape(A, A, Cs2d, Cout)                      # (a_row, a_col, ch, co)
    eps = 1e-5
    scale = params["bn_gamma"] * jax.lax.rsqrt(params["bn_var"] + eps)
    bn_bias = params["bn_beta"] - params["bn_mean"] * scale
    w4 = w4 * scale[None, None, None, :]
    blocks = [jnp.pad(w4, ((0, 0), (ox, Wh - A - ox), (0, 0), (0, 0))) for ox in range(Wc)]
    wband = jnp.stack(blocks, axis=3).reshape(A, NK, NL)   # (A, NK, NL)
    wband = jnp.pad(wband, ((0, 0), (0, NKp - NK), (0, 0)))
    prepared = {
        # fused-tap RHS: K index = a*NKp + k  (matches the wrapper's LHS concat)
        "wband": wband.reshape(A * NKp, NL).astype(jnp.bfloat16),
        "bias": jnp.tile(bn_bias, Wc).reshape(1, NL).astype(jnp.float32),
    }
    if with_pos:
        dw = jnp.transpose(params["pa_w"][:, 0], (1, 2, 0)).reshape(9, Cout)  # (ky*3+kx, co)
        prepared["dw"] = jnp.tile(dw, (1, Wc)).astype(jnp.float32)            # (9, NL)
        prepared["pab"] = jnp.tile(params["pa_b"], Wc).reshape(1, NL).astype(jnp.float32)
    return prepared


# ----------------------------------------------------------------------------
# Pallas kernel
# ----------------------------------------------------------------------------
def _build_kernel(NB, Hc, Hp, Cout, NL, with_pos):
    Ho = Hc - Hp                     # number of odd conv rows
    LC = 2 * Cout                    # interior lane offset (left zero border)
    NLP = NL + 4 * Cout              # padded lane width of the scratch
    R = Hc + 4                       # padded row count of the scratch
    e0, o0 = 1, Hp + 3               # even-row / odd-row regions in the scratch

    def kernel(*refs):
        if with_pos:
            x_ref, w_ref, bias_ref, dw_ref, pab_ref, out_ref, pad_ref = refs
        else:
            x_ref, w_ref, bias_ref, out_ref, pad_ref = refs

        # Zero only the border strips that are read as zeros, every step.
        # (Cheap; avoids any reliance on a program_id==0 init under megacore.)
        zlane = jnp.zeros((R, LC), jnp.float32)
        zrow = jnp.zeros((1, NLP), jnp.float32)
        for n in range(NB):
            pad_ref[n, :, 0:LC] = zlane
            pad_ref[n, :, LC + NL:NLP] = zlane
            for r in (0, Hp + 1, Hp + 2, R - 1):
                pad_ref[n, r:r + 1, :] = zrow

        # ---- 7x7/s2 conv + folded BN + ReLU: ONE fused MXU matmul ----------
        M = NB * Hc
        xv = x_ref[...].reshape(M, x_ref.shape[-1])            # bf16 (M, KF)
        acc = jnp.dot(xv, w_ref[...], preferred_element_type=jnp.float32)
        act = jnp.maximum(acc + bias_ref[...], 0.0)            # (M, NL) f32
        act = act.reshape(NB, Hc, NL)

        # Stash into the zero-bordered scratch: even conv rows (the only pool
        # centers the output needs) in the E region, odd conv rows in O.
        for n in range(NB):
            pad_ref[n, e0:e0 + Hp, LC:LC + NL] = act[n, :Hp]
            pad_ref[n, o0:o0 + Ho, LC:LC + NL] = act[n, Hp:]

        for n in range(NB):
            # ---- MaxPool 3x3 / s2 / pad 1, evaluated only at pooled rows ----
            # Zero borders are exact because act >= 0 after the ReLU.
            # Lane layout l = ox*Cout + co, so ox +- 1 is a +-Cout lane offset.
            m3 = pad_ref[n, e0:e0 + Hp, LC:LC + NL]            # center tap
            for r0, dxs in ((o0 - 1, (-1, 0, 1)),              # conv row 2*oy-1
                            (e0, (-1, 1)),                     # conv row 2*oy
                            (o0, (-1, 0, 1))):                 # conv row 2*oy+1
                for dx in dxs:
                    c0 = LC + dx * Cout
                    m3 = jnp.maximum(m3, pad_ref[n, r0:r0 + Hp, c0:c0 + NL])

            final = m3
            if with_pos:
                # PA: x * sigmoid(depthwise 3x3 conv(x) + b) on the pooled map.
                # Rows are already pooled-row compacted (+-1 row); columns stay
                # dense, so one pooled column is a +-2*Cout lane offset.  Odd
                # columns are junk and discarded by the wrapper; zero borders
                # match the Conv2d zero padding.
                pad_ref[n, e0:e0 + Hp, LC:LC + NL] = m3
                pre = jnp.zeros((Hp, NL), jnp.float32)
                for dy in (-1, 0, 1):
                    for dx in (-1, 0, 1):
                        r0 = e0 + dy
                        c0 = LC + 2 * Cout * dx
                        pre = pre + (pad_ref[n, r0:r0 + Hp, c0:c0 + NL]
                                     * dw_ref[(dy + 1) * 3 + (dx + 1), :])
                final = m3 * jax.nn.sigmoid(pre + pab_ref[...])

            out_ref[n] = final                                  # (Hp, NL), unmasked vst

    return kernel


def _pick_batch_fold(B, Hc, target_m=256):
    """Largest batch fold NB (divisor of B) with NB*Hc <= target_m, but keep
    >=2 grid steps (megacore) whenever that still allows M >= 128."""
    divisors = [d for d in range(1, B + 1) if B % d == 0]
    fits = [d for d in divisors if d * Hc <= target_m]
    nb = max(fits) if fits else 1
    if B // nb < 2:
        cand = [d for d in divisors if B // d >= 2 and d * Hc >= 128]
        if cand:
            nb = max(cand)
    return nb


# ----------------------------------------------------------------------------
# Wrapper: input-side layout plumbing + pallas_call
# ----------------------------------------------------------------------------
@functools.partial(jax.jit, static_argnames=("with_pos",))
def stem_forward_pallas(x_nchw, prepared, with_pos=True):
    x = x_nchw.astype(jnp.float32)
    B, Cin, H, W = x.shape
    geo = _stem_geometry(H, W)
    Hc, Wc, Hp, Wp = geo["Hc"], geo["Wc"], geo["Hp"], geo["Wp"]
    A, Hh, Wh, P = geo["A"], geo["Hh"], geo["Wh"], geo["P"]
    Cs2d = 4 * Cin
    NK = Wh * Cs2d
    NKp = ((NK + 127) // 128) * 128
    NL = prepared["bias"].shape[1]
    Cout = NL // Wc
    KF = A * NKp
    assert prepared["wband"].shape == (KF, NL)

    # Input plumbing: spatial zero-pad, 2x2 space-to-depth (stride-2 -> stride-1),
    # pad K to a lane multiple, fuse the A row taps along K, and reorder rows to
    # [even conv rows, odd conv rows] so the kernel can decimate for free.
    xp = jnp.pad(jnp.transpose(x, (0, 2, 3, 1)), ((0, 0), (P, P), (P, P), (0, 0)))
    xs = jnp.transpose(xp.reshape(B, Hh, 2, Wh, 2, Cin), (0, 1, 3, 2, 4, 5))
    x_flat = jnp.pad(xs.reshape(B, Hh, NK), ((0, 0), (0, 0), (0, NKp - NK)))
    x_win = jnp.concatenate([x_flat[:, a:a + Hc, :] for a in range(A)], axis=-1)
    x_taps = jnp.concatenate([x_win[:, 0::2, :], x_win[:, 1::2, :]], axis=1)
    x_taps = x_taps.astype(jnp.bfloat16)                        # (B, Hc, KF)

    NB = _pick_batch_fold(B, Hc)

    inputs = [x_taps, prepared["wband"], prepared["bias"]]
    in_specs = [pl.BlockSpec((NB, Hc, KF), lambda b: (b, 0, 0)),
                pl.BlockSpec((KF, NL), lambda b: (0, 0)),
                pl.BlockSpec((1, NL), lambda b: (0, 0))]
    if with_pos:
        inputs += [prepared["dw"], prepared["pab"]]
        in_specs += [pl.BlockSpec((9, NL), lambda b: (0, 0)),
                     pl.BlockSpec((1, NL), lambda b: (0, 0))]

    kernel = _build_kernel(NB, Hc, Hp, Cout, NL, with_pos)

    out_flat = pl.pallas_call(
        kernel,
        out_shape=jax.ShapeDtypeStruct((B, Hp, NL), jnp.float32),
        grid_spec=pltpu.PrefetchScalarGridSpec(
            num_scalar_prefetch=0,
            grid=(B // NB,),
            in_specs=in_specs,
            out_specs=pl.BlockSpec((NB, Hp, NL), lambda b: (b, 0, 0)),
            scratch_shapes=[pltpu.VMEM((NB, Hc + 4, NL + 4 * Cout), jnp.float32)]),
        compiler_params=pltpu.CompilerParams(
            dimension_semantics=("parallel",),        # megacore over batch blocks
            vmem_limit_bytes=32 * 1024 * 1024),
    )(*inputs)

    # Column decimation (even ox only) + back to NCHW: pure layout plumbing.
    out = out_flat.reshape(B, Hp, Wc, Cout)[:, :, ::2, :][:, :, :Wp, :]
    return jnp.transpose(out, (0, 3, 1, 2))


# ----------------------------------------------------------------------------
# Pure-JAX reference (mirrors the PyTorch forward, eval-mode BN)
# ----------------------------------------------------------------------------
def stem_forward_ref(x_nchw, params, with_pos=True):
    x = x_nchw.astype(jnp.float32)
    out = jax.lax.conv_general_dilated(
        x, params["conv_w"], window_strides=(2, 2), padding=((3, 3), (3, 3)),
        dimension_numbers=("NCHW", "OIHW", "NCHW"),
        precision=jax.lax.Precision.HIGHEST)
    scale = params["bn_gamma"] / jnp.sqrt(params["bn_var"] + 1e-5)
    bias = params["bn_beta"] - params["bn_mean"] * scale
    out = out * scale[None, :, None, None] + bias[None, :, None, None]
    out = jnp.maximum(out, 0.0)
    out = jax.lax.reduce_window(
        out, -jnp.inf, jax.lax.max,
        window_dimensions=(1, 1, 3, 3), window_strides=(1, 1, 2, 2),
        padding=((0, 0), (0, 0), (1, 1), (1, 1)))
    if with_pos:
        att = jax.lax.conv_general_dilated(
            out, params["pa_w"], window_strides=(1, 1), padding=((1, 1), (1, 1)),
            dimension_numbers=("NCHW", "OIHW", "NCHW"),
            feature_group_count=params["pa_w"].shape[0],
            precision=jax.lax.Precision.HIGHEST)
        att = att + params["pa_b"][None, :, None, None]
        out = out * jax.nn.sigmoid(att)
    return out


if __name__ == "__main__":
    key = jax.random.PRNGKey(0)
    kp, kx = jax.random.split(key)
    B, Cin, H, W, Cout = 2, 3, 32, 32, 64
    params = make_stem_params(kp, in_ch=Cin, out_ch=Cout)
    x = jax.random.normal(kx, (B, Cin, H, W), jnp.float32)

    # Full module incl. the optional PA positional branch.
    prepared = prepare_stem_params(params, H, W, with_pos=True)
    out = jax.block_until_ready(stem_forward_pallas(x, prepared, with_pos=True))
    ref = jax.block_until_ready(stem_forward_ref(x, params, with_pos=True))
    assert out.shape == ref.shape == (B, Cout, H // 4, W // 4), (out.shape, ref.shape)
    max_diff = float(jnp.max(jnp.abs(out - ref)))
    mean_diff = float(jnp.mean(jnp.abs(out - ref)))
    # Tolerance reflects bf16 MXU operands (with f32 accumulation) vs f32 ref.
    assert max_diff < 5e-2, f"with_pos=True mismatch: max abs diff = {max_diff}"
    assert mean_diff < 1e-2, f"with_pos=True mismatch: mean abs diff = {mean_diff}"

    # Default configuration (with_pos=False).
    prepared_np = prepare_stem_params(params, H, W, with_pos=False)
    out2 = jax.block_until_ready(stem_forward_pallas(x, prepared_np, with_pos=False))
    ref2 = jax.block_until_ready(stem_forward_ref(x, params, with_pos=False))
    max_diff2 = float(jnp.max(jnp.abs(out2 - ref2)))
    assert max_diff2 < 5e-2, f"with_pos=False mismatch: max abs diff = {max_diff2}"

    print("KERNEL_OK")
</pallas_src>

<mosaic_0001>
module attributes {stable_mosaic.version = 11 : i64} {
  func.func @kernel(%arg0: i32, %arg1: memref<2x16x1024xbf16, #tpu.memory_space<vmem>>, %arg2: memref<1024x1024xbf16, #tpu.memory_space<vmem>>, %arg3: memref<1x1024xf32, #tpu.memory_space<vmem>>, %arg4: memref<9x1024xf32, #tpu.memory_space<vmem>>, %arg5: memref<1x1024xf32, #tpu.memory_space<vmem>>, %arg6: memref<2x8x1024xf32, #tpu.memory_space<vmem>>, %arg7: memref<2x20x1280xf32, #tpu.memory_space<vmem>>) attributes {dimension_semantics = [#tpu.dimension_semantics<parallel>], iteration_bounds = array<i64: 1>, scalar_prefetch = 0 : i64, scratch_operands = 1 : i64, tpu.core_type = #tpu.core_type<tc>, window_params = [{transform_indices = @transform_0, window_bounds = array<i64: 2, 16, 1024>}, {pipeline_mode = #tpu.pipeline_mode<synchronous>, transform_indices = @transform_1, window_bounds = array<i64: 1024, 1024>}, {pipeline_mode = #tpu.pipeline_mode<synchronous>, transform_indices = @transform_2, window_bounds = array<i64: 1, 1024>}, {pipeline_mode = #tpu.pipeline_mode<synchronous>, transform_indices = @transform_3, window_bounds = array<i64: 9, 1024>}, {pipeline_mode = #tpu.pipeline_mode<synchronous>, transform_indices = @transform_4, window_bounds = array<i64: 1, 1024>}, {transform_indices = @transform_5, window_bounds = array<i64: 2, 8, 1024>}]} {
    %cst = arith.constant 0.000000e+00 : f32
    %0 = vector.broadcast %cst : f32 to vector<20x128xf32>
    %cst_0 = arith.constant 0.000000e+00 : f32
    %1 = vector.broadcast %cst_0 : f32 to vector<1x1280xf32>
    %c0 = arith.constant 0 : index
    %c0_1 = arith.constant 0 : index
    %c0_2 = arith.constant 0 : index
    %2 = vector.load %arg7[%c0, %c0_1, %c0_2] : memref<2x20x1280xf32, #tpu.memory_space<vmem>>, vector<1x20x128xf32>
    %3 = vector.shape_cast %2 : vector<1x20x128xf32> to vector<20x128xf32>
    %4 = vector.shape_cast %0 : vector<20x128xf32> to vector<1x20x128xf32>
    tpu.vector_store %arg7[%c0, %c0_1, %c0_2], %4 {strides = array<i32>} : memref<2x20x1280xf32, #tpu.memory_space<vmem>>, vector<1x20x128xf32>,
    %c0_3 = arith.constant 0 : index
    %c0_4 = arith.constant 0 : index
    %c1152 = arith.constant 1152 : index
    %5 = vector.load %arg7[%c0_3, %c0_4, %c1152] : memref<2x20x1280xf32, #tpu.memory_space<vmem>>, vector<1x20x128xf32>
    %6 = vector.shape_cast %5 : vector<1x20x128xf32> to vector<20x128xf32>
    %7 = vector.shape_cast %0 : vector<20x128xf32> to vector<1x20x128xf32>
    tpu.vector_store %arg7[%c0_3, %c0_4, %c1152], %7 {strides = array<i32>} : memref<2x20x1280xf32, #tpu.memory_space<vmem>>, vector<1x20x128xf32>,
    %c0_5 = arith.constant 0 : index
    %c0_6 = arith.constant 0 : index
    %c0_7 = arith.constant 0 : index
    %8 = vector.load %arg7[%c0_5, %c0_6, %c0_7] : memref<2x20x1280xf32, #tpu.memory_space<vmem>>, vector<1x1x1280xf32>
    %9 = vector.shape_cast %8 : vector<1x1x1280xf32> to vector<1x1280xf32>
    %10 = vector.shape_cast %1 : vector<1x1280xf32> to vector<1x1x1280xf32>
    tpu.vector_store %arg7[%c0_5, %c0_6, %c0_7], %10 {strides = array<i32>} : memref<2x20x1280xf32, #tpu.memory_space<vmem>>, vector<1x1x1280xf32>,
    %c0_8 = arith.constant 0 : index
    %c9 = arith.constant 9 : index
    %c0_9 = arith.constant 0 : index
    %11 = vector.load %arg7[%c0_8, %c9, %c0_9] : memref<2x20x1280xf32, #tpu.memory_space<vmem>>, vector<1x1x1280xf32>
    %12 = vector.shape_cast %11 : vector<1x1x1280xf32> to vector<1x1280xf32>
    %13 = vector.shape_cast %1 : vector<1x1280xf32> to vector<1x1x1280xf32>
    tpu.vector_store %arg7[%c0_8, %c9, %c0_9], %13 {strides = array<i32>} : memref<2x20x1280xf32, #tpu.memory_space<vmem>>, vector<1x1x1280xf32>,
    %c0_10 = arith.constant 0 : index
    %c10 = arith.constant 10 : index
    %c0_11 = arith.constant 0 : index
    %14 = vector.load %arg7[%c0_10, %c10, %c0_11] : memref<2x20x1280xf32, #tpu.memory_space<vmem>>, vector<1x1x1280xf32>
    %15 = vector.shape_cast %14 : vector<1x1x1280xf32> to vector<1x1280xf32>
    %16 = vector.shape_cast %1 : vector<1x1280xf32> to vector<1x1x1280xf32>
    tpu.vector_store %arg7[%c0_10, %c10, %c0_11], %16 {strides = array<i32>} : memref<2x20x1280xf32, #tpu.memory_space<vmem>>, vector<1x1x1280xf32>,
    %c0_12 = arith.constant 0 : index
    %c19 = arith.constant 19 : index
    %c0_13 = arith.constant 0 : index
    %17 = vector.load %arg7[%c0_12, %c19, %c0_13] : memref<2x20x1280xf32, #tpu.memory_space<vmem>>, vector<1x1x1280xf32>
    %18 = vector.shape_cast %17 : vector<1x1x1280xf32> to vector<1x1280xf32>
    %19 = vector.shape_cast %1 : vector<1x1280xf32> to vector<1x1x1280xf32>
    tpu.vector_store %arg7[%c0_12, %c19, %c0_13], %19 {strides = array<i32>} : memref<2x20x1280xf32, #tpu.memory_space<vmem>>, vector<1x1x1280xf32>,
    %c1 = arith.constant 1 : index
    %c0_14 = arith.constant 0 : index
    %c0_15 = arith.constant 0 : index
    %20 = vector.load %arg7[%c1, %c0_14, %c0_15] : memref<2x20x1280xf32, #tpu.memory_space<vmem>>, vector<1x20x128xf32>
    %21 = vector.shape_cast %20 : vector<1x20x128xf32> to vector<20x128xf32>
    %22 = vector.shape_cast %0 : vector<20x128xf32> to vector<1x20x128xf32>
    tpu.vector_store %arg7[%c1, %c0_14, %c0_15], %22 {strides = array<i32>} : memref<2x20x1280xf32, #tpu.memory_space<vmem>>, vector<1x20x128xf32>,
    %c1_16 = arith.constant 1 : index
    %c0_17 = arith.constant 0 : index
    %c1152_18 = arith.constant 1152 : index
    %23 = vector.load %arg7[%c1_16, %c0_17, %c1152_18] : memref<2x20x1280xf32, #tpu.memory_space<vmem>>, vector<1x20x128xf32>
    %24 = vector.shape_cast %23 : vector<1x20x128xf32> to vector<20x128xf32>
    %25 = vector.shape_cast %0 : vector<20x128xf32> to vector<1x20x128xf32>
    tpu.vector_store %arg7[%c1_16, %c0_17, %c1152_18], %25 {strides = array<i32>} : memref<2x20x1280xf32, #tpu.memory_space<vmem>>, vector<1x20x128xf32>,
    %c1_19 = arith.constant 1 : index
    %c0_20 = arith.constant 0 : index
    %c0_21 = arith.constant 0 : index
    %26 = vector.load %arg7[%c1_19, %c0_20, %c0_21] : memref<2x20x1280xf32, #tpu.memory_space<vmem>>, vector<1x1x1280xf32>
    %27 = vector.shape_cast %26 : vector<1x1x1280xf32> to vector<1x1280xf32>
    %28 = vector.shape_cast %1 : vector<1x1280xf32> to vector<1x1x1280xf32>
    tpu.vector_store %arg7[%c1_19, %c0_20, %c0_21], %28 {strides = array<i32>} : memref<2x20x1280xf32, #tpu.memory_space<vmem>>, vector<1x1x1280xf32>,
    %c1_22 = arith.constant 1 : index
    %c9_23 = arith.constant 9 : index
    %c0_24 = arith.constant 0 : index
    %29 = vector.load %arg7[%c1_22, %c9_23, %c0_24] : memref<2x20x1280xf32, #tpu.memory_space<vmem>>, vector<1x1x1280xf32>
    %30 = vector.shape_cast %29 : vector<1x1x1280xf32> to vector<1x1280xf32>
    %31 = vector.shape_cast %1 : vector<1x1280xf32> to vector<1x1x1280xf32>
    tpu.vector_store %arg7[%c1_22, %c9_23, %c0_24], %31 {strides = array<i32>} : memref<2x20x1280xf32, #tpu.memory_space<vmem>>, vector<1x1x1280xf32>,
    %c1_25 = arith.constant 1 : index
    %c10_26 = arith.constant 10 : index
    %c0_27 = arith.constant 0 : index
    %32 = vector.load %arg7[%c1_25, %c10_26, %c0_27] : memref<2x20x1280xf32, #tpu.memory_space<vmem>>, vector<1x1x1280xf32>
    %33 = vector.shape_cast %32 : vector<1x1x1280xf32> to vector<1x1280xf32>
    %34 = vector.shape_cast %1 : vector<1x1280xf32> to vector<1x1x1280xf32>
    tpu.vector_store %arg7[%c1_25, %c10_26, %c0_27], %34 {strides = array<i32>} : memref<2x20x1280xf32, #tpu.memory_space<vmem>>, vector<1x1x1280xf32>,
    %c1_28 = arith.constant 1 : index
    %c19_29 = arith.constant 19 : index
    %c0_30 = arith.constant 0 : index
    %35 = vector.load %arg7[%c1_28, %c19_29, %c0_30] : memref<2x20x1280xf32, #tpu.memory_space<vmem>>, vector<1x1x1280xf32>
    %36 = vector.shape_cast %35 : vector<1x1x1280xf32> to vector<1x1280xf32>
    %37 = vector.shape_cast %1 : vector<1x1280xf32> to vector<1x1x1280xf32>
    tpu.vector_store %arg7[%c1_28, %c19_29, %c0_30], %37 {strides = array<i32>} : memref<2x20x1280xf32, #tpu.memory_space<vmem>>, vector<1x1x1280xf32>,
    %c0_31 = arith.constant 0 : index
    %c0_32 = arith.constant 0 : index
    %c0_33 = arith.constant 0 : index
    %38 = vector.load %arg1[%c0_31, %c0_32, %c0_33] : memref<2x16x1024xbf16, #tpu.memory_space<vmem>>, vector<2x16x1024xbf16>
    %39 = vector.shape_cast %38 : vector<2x16x1024xbf16> to vector<32x1024xbf16>
    %c0_34 = arith.constant 0 : index
    %c0_35 = arith.constant 0 : index
    %40 = vector.load %arg2[%c0_34, %c0_35] : memref<1024x1024xbf16, #tpu.memory_space<vmem>>, vector<1024x1024xbf16>
    %cst_36 = arith.constant dense<0.000000e+00> : vector<32x1024xf32>
    %41 = tpu.matmul %39, %40, %cst_36 {dimension_numbers = #tpu.dot_dimension_numbers<[1], [0], [0], [1], [0, 0, 1, 1], [], []>} : vector<32x1024xbf16>, vector<1024x1024xbf16>, vector<32x1024xf32> -> vector<32x1024xf32>
    %c0_37 = arith.constant 0 : index
    %c0_38 = arith.constant 0 : index
    %42 = vector.load %arg3[%c0_37, %c0_38] : memref<1x1024xf32, #tpu.memory_space<vmem>>, vector<1x1024xf32>
    %43 = vector.broadcast %42 : vector<1x1024xf32> to vector<32x1024xf32>
    %44 = arith.addf %41, %43 : vector<32x1024xf32>
    %cst_39 = arith.constant 0.000000e+00 : f32
    %45 = vector.broadcast %cst_39 : f32 to vector<32x1024xf32>
    %46 = arith.maximumf %44, %45 : vector<32x1024xf32>
    %47 = vector.shape_cast %46 : vector<32x1024xf32> to vector<2x16x1024xf32>
    %48 = vector.extract_strided_slice %47 {offsets = [0, 0, 0], sizes = [1, 8, 1024], strides = [1, 1, 1]} : vector<2x16x1024xf32> to vector<1x8x1024xf32>
    %49 = vector.shape_cast %48 : vector<1x8x1024xf32> to vector<8x1024xf32>
    %c0_40 = arith.constant 0 : index
    %c1_41 = arith.constant 1 : index
    %c128 = arith.constant 128 : index
    %50 = vector.load %arg7[%c0_40, %c1_41, %c128] : memref<2x20x1280xf32, #tpu.memory_space<vmem>>, vector<1x8x1024xf32>
    %51 = vector.shape_cast %50 : vector<1x8x1024xf32> to vector<8x1024xf32>
    %52 = vector.shape_cast %49 : vector<8x1024xf32> to vector<1x8x1024xf32>
    tpu.vector_store %arg7[%c0_40, %c1_41, %c128], %52 {strides = array<i32>} : memref<2x20x1280xf32, #tpu.memory_space<vmem>>, vector<1x8x1024xf32>,
    %53 = vector.extract_strided_slice %47 {offsets = [0, 8, 0], sizes = [1, 8, 1024], strides = [1, 1, 1]} : vector<2x16x1024xf32> to vector<1x8x1024xf32>
    %54 = vector.shape_cast %53 : vector<1x8x1024xf32> to vector<8x1024xf32>
    %c0_42 = arith.constant 0 : index
    %c11 = arith.constant 11 : index
    %c128_43 = arith.constant 128 : index
    %55 = vector.load %arg7[%c0_42, %c11, %c128_43] : memref<2x20x1280xf32, #tpu.memory_space<vmem>>, vector<1x8x1024xf32>
    %56 = vector.shape_cast %55 : vector<1x8x1024xf32> to vector<8x1024xf32>
    %57 = vector.shape_cast %54 : vector<8x1024xf32> to vector<1x8x1024xf32>
    tpu.vector_store %arg7[%c0_42, %c11, %c128_43], %57 {strides = array<i32>} : memref<2x20x1280xf32, #tpu.memory_space<vmem>>, vector<1x8x1024xf32>,
    %58 = vector.extract_strided_slice %47 {offsets = [1, 0, 0], sizes = [1, 8, 1024], strides = [1, 1, 1]} : vector<2x16x1024xf32> to vector<1x8x1024xf32>
    %59 = vector.shape_cast %58 : vector<1x8x1024xf32> to vector<8x1024xf32>
    %c1_44 = arith.constant 1 : index
    %c1_45 = arith.constant 1 : index
    %c128_46 = arith.constant 128 : index
    %60 = vector.load %arg7[%c1_44, %c1_45, %c128_46] : memref<2x20x1280xf32, #tpu.memory_space<vmem>>, vector<1x8x1024xf32>
    %61 = vector.shape_cast %60 : vector<1x8x1024xf32> to vector<8x1024xf32>
    %62 = vector.shape_cast %59 : vector<8x1024xf32> to vector<1x8x1024xf32>
    tpu.vector_store %arg7[%c1_44, %c1_45, %c128_46], %62 {strides = array<i32>} : memref<2x20x1280xf32, #tpu.memory_space<vmem>>, vector<1x8x1024xf32>,
    %63 = vector.extract_strided_slice %47 {offsets = [1, 8, 0], sizes = [1, 8, 1024], strides = [1, 1, 1]} : vector<2x16x1024xf32> to vector<1x8x1024xf32>
    %64 = vector.shape_cast %63 : vector<1x8x1024xf32> to vector<8x1024xf32>
    %c1_47 = arith.constant 1 : index
    %c11_48 = arith.constant 11 : index
    %c128_49 = arith.constant 128 : index
    %65 = vector.load %arg7[%c1_47, %c11_48, %c128_49] : memref<2x20x1280xf32, #tpu.memory_space<vmem>>, vector<1x8x1024xf32>
    %66 = vector.shape_cast %65 : vector<1x8x1024xf32> to vector<8x1024xf32>
    %67 = vector.shape_cast %64 : vector<8x1024xf32> to vector<1x8x1024xf32>
    tpu.vector_store %arg7[%c1_47, %c11_48, %c128_49], %67 {strides = array<i32>} : memref<2x20x1280xf32, #tpu.memory_space<vmem>>, vector<1x8x1024xf32>,
    %c0_50 = arith.constant 0 : index
    %c1_51 = arith.constant 1 : index
    %c128_52 = arith.constant 128 : index
    %68 = vector.load %arg7[%c0_50, %c1_51, %c128_52] : memref<2x20x1280xf32, #tpu.memory_space<vmem>>, vector<1x8x1024xf32>
    %69 = vector.shape_cast %68 : vector<1x8x1024xf32> to vector<8x1024xf32>
    %c0_53 = arith.constant 0 : index
    %c10_54 = arith.constant 10 : index
    %c64 = arith.constant 64 : index
    %70 = vector.load %arg7[%c0_53, %c10_54, %c64] : memref<2x20x1280xf32, #tpu.memory_space<vmem>>, vector<1x8x1024xf32>
    %71 = vector.shape_cast %70 : vector<1x8x1024xf32> to vector<8x1024xf32>
    %72 = arith.maximumf %69, %71 : vector<8x1024xf32>
    %c0_55 = arith.constant 0 : index
    %c10_56 = arith.constant 10 : index
    %c128_57 = arith.constant 128 : index
    %73 = vector.load %arg7[%c0_55, %c10_56, %c128_57] : memref<2x20x1280xf32, #tpu.memory_space<vmem>>, vector<1x8x1024xf32>
    %74 = vector.shape_cast %73 : vector<1x8x1024xf32> to vector<8x1024xf32>
    %75 = arith.maximumf %72, %74 : vector<8x1024xf32>
    %c0_58 = arith.constant 0 : index
    %c10_59 = arith.constant 10 : index
    %c192 = arith.constant 192 : index
    %76 = vector.load %arg7[%c0_58, %c10_59, %c192] : memref<2x20x1280xf32, #tpu.memory_space<vmem>>, vector<1x8x1024xf32>
    %77 = vector.shape_cast %76 : vector<1x8x1024xf32> to vector<8x1024xf32>
    %78 = arith.maximumf %75, %77 : vector<8x1024xf32>
    %c0_60 = arith.constant 0 : index
    %c1_61 = arith.constant 1 : index
    %c64_62 = arith.constant 64 : index
    %79 = vector.load %arg7[%c0_60, %c1_61, %c64_62] : memref<2x20x1280xf32, #tpu.memory_space<vmem>>, vector<1x8x1024xf32>
    %80 = vector.shape_cast %79 : vector<1x8x1024xf32> to vector<8x1024xf32>
    %81 = arith.maximumf %78, %80 : vector<8x1024xf32>
    %c0_63 = arith.constant 0 : index
    %c1_64 = arith.constant 1 : index
    %c192_65 = arith.constant 192 : index
    %82 = vector.load %arg7[%c0_63, %c1_64, %c192_65] : memref<2x20x1280xf32, #tpu.memory_space<vmem>>, vector<1x8x1024xf32>
    %83 = vector.shape_cast %82 : vector<1x8x1024xf32> to vector<8x1024xf32>
    %84 = arith.maximumf %81, %83 : vector<8x1024xf32>
    %c0_66 = arith.constant 0 : index
    %c11_67 = arith.constant 11 : index
    %c64_68 = arith.constant 64 : index
    %85 = vector.load %arg7[%c0_66, %c11_67, %c64_68] : memref<2x20x1280xf32, #tpu.memory_space<vmem>>, vector<1x8x1024xf32>
    %86 = vector.shape_cast %85 : vector<1x8x1024xf32> to vector<8x1024xf32>
    %87 = arith.maximumf %84, %86 : vector<8x1024xf32>
    %c0_69 = arith.constant 0 : index
    %c11_70 = arith.constant 11 : index
    %c128_71 = arith.constant 128 : index
    %88 = vector.load %arg7[%c0_69, %c11_70, %c128_71] : memref<2x20x1280xf32, #tpu.memory_space<vmem>>, vector<1x8x1024xf32>
    %89 = vector.shape_cast %88 : vector<1x8x1024xf32> to vector<8x1024xf32>
    %90 = arith.maximumf %87, %89 : vector<8x1024xf32>
    %c0_72 = arith.constant 0 : index
    %c11_73 = arith.constant 11 : index
    %c192_74 = arith.constant 192 : index
    %91 = vector.load %arg7[%c0_72, %c11_73, %c192_74] : memref<2x20x1280xf32, #tpu.memory_space<vmem>>, vector<1x8x1024xf32>
    %92 = vector.shape_cast %91 : vector<1x8x1024xf32> to vector<8x1024xf32>
    %93 = arith.maximumf %90, %92 : vector<8x1024xf32>
    %c0_75 = arith.constant 0 : index
    %c1_76 = arith.constant 1 : index
    %c128_77 = arith.constant 128 : index
    %94 = vector.load %arg7[%c0_75, %c1_76, %c128_77] : memref<2x20x1280xf32, #tpu.memory_space<vmem>>, vector<1x8x1024xf32>
    %95 = vector.shape_cast %94 : vector<1x8x1024xf32> to vector<8x1024xf32>
    %96 = vector.shape_cast %93 : vector<8x1024xf32> to vector<1x8x1024xf32>
    tpu.vector_store %arg7[%c0_75, %c1_76, %c128_77], %96 {strides = array<i32>} : memref<2x20x1280xf32, #tpu.memory_space<vmem>>, vector<1x8x1024xf32>,
    %cst_78 = arith.constant 0.000000e+00 : f32
    %97 = vector.broadcast %cst_78 : f32 to vector<8x1024xf32>
    %c0_79 = arith.constant 0 : index
    %c0_80 = arith.constant 0 : index
    %c0_81 = arith.constant 0 : index
    %98 = vector.load %arg7[%c0_79, %c0_80, %c0_81] : memref<2x20x1280xf32, #tpu.memory_space<vmem>>, vector<1x8x1024xf32>
    %99 = vector.shape_cast %98 : vector<1x8x1024xf32> to vector<8x1024xf32>
    %c0_82 = arith.constant 0 : index
    %c0_83 = arith.constant 0 : index
    %100 = vector.load %arg4[%c0_82, %c0_83] : memref<9x1024xf32, #tpu.memory_space<vmem>>, vector<1x1024xf32>
    %101 = vector.shape_cast %100 : vector<1x1024xf32> to vector<1024xf32>
    %102 = vector.shape_cast %101 : vector<1024xf32> to vector<1x1024xf32>
    %103 = vector.broadcast %102 : vector<1x1024xf32> to vector<8x1024xf32>
    %104 = arith.mulf %99, %103 : vector<8x1024xf32>
    %105 = arith.addf %97, %104 : vector<8x1024xf32>
    %c0_84 = arith.constant 0 : index
    %c0_85 = arith.constant 0 : index
    %c128_86 = arith.constant 128 : index
    %106 = vector.load %arg7[%c0_84, %c0_85, %c128_86] : memref<2x20x1280xf32, #tpu.memory_space<vmem>>, vector<1x8x1024xf32>
    %107 = vector.shape_cast %106 : vector<1x8x1024xf32> to vector<8x1024xf32>
    %c1_87 = arith.constant 1 : index
    %c0_88 = arith.constant 0 : index
    %108 = vector.load %arg4[%c1_87, %c0_88] : memref<9x1024xf32, #tpu.memory_space<vmem>>, vector<1x1024xf32>
    %109 = vector.shape_cast %108 : vector<1x1024xf32> to vector<1024xf32>
    %110 = vector.shape_cast %109 : vector<1024xf32> to vector<1x1024xf32>
    %111 = vector.broadcast %110 : vector<1x1024xf32> to vector<8x1024xf32>
    %112 = arith.mulf %107, %111 : vector<8x1024xf32>
    %113 = arith.addf %105, %112 : vector<8x1024xf32>
    %c0_89 = arith.constant 0 : index
    %c0_90 = arith.constant 0 : index
    %c256 = arith.constant 256 : index
    %114 = vector.load %arg7[%c0_89, %c0_90, %c256] : memref<2x20x1280xf32, #tpu.memory_space<vmem>>, vector<1x8x1024xf32>
    %115 = vector.shape_cast %114 : vector<1x8x1024xf32> to vector<8x1024xf32>
    %c2 = arith.constant 2 : index
    %c0_91 = arith.constant 0 : index
    %116 = vector.load %arg4[%c2, %c0_91] : memref<9x1024xf32, #tpu.memory_space<vmem>>, vector<1x1024xf32>
    %117 = vector.shape_cast %116 : vector<1x1024xf32> to vector<1024xf32>
    %118 = vector.shape_cast %117 : vector<1024xf32> to vector<1x1024xf32>
    %119 = vector.broadcast %118 : vector<1x1024xf32> to vector<8x1024xf32>
    %120 = arith.mulf %115, %119 : vector<8x1024xf32>
    %121 = arith.addf %113, %120 : vector<8x1024xf32>
    %c0_92 = arith.constant 0 : index
    %c1_93 = arith.constant 1 : index
    %c0_94 = arith.constant 0 : index
    %122 = vector.load %arg7[%c0_92, %c1_93, %c0_94] : memref<2x20x1280xf32, #tpu.memory_space<vmem>>, vector<1x8x1024xf32>
    %123 = vector.shape_cast %122 : vector<1x8x1024xf32> to vector<8x1024xf32>
    %c3 = arith.constant 3 : index
    %c0_95 = arith.constant 0 : index
    %124 = vector.load %arg4[%c3, %c0_95] : memref<9x1024xf32, #tpu.memory_space<vmem>>, vector<1x1024xf32>
    %125 = vector.shape_cast %124 : vector<1x1024xf32> to vector<1024xf32>
    %126 = vector.shape_cast %125 : vector<1024xf32> to vector<1x1024xf32>
    %127 = vector.broadcast %126 : vector<1x1024xf32> to vector<8x1024xf32>
    %128 = arith.mulf %123, %127 : vector<8x1024xf32>
    %129 = arith.addf %121, %128 : vector<8x1024xf32>
    %c0_96 = arith.constant 0 : index
    %c1_97 = arith.constant 1 : index
    %c128_98 = arith.constant 128 : index
    %130 = vector.load %arg7[%c0_96, %c1_97, %c128_98] : memref<2x20x1280xf32, #tpu.memory_space<vmem>>, vector<1x8x1024xf32>
    %131 = vector.shape_cast %130 : vector<1x8x1024xf32> to vector<8x1024xf32>
    %c4 = arith.constant 4 : index
    %c0_99 = arith.constant 0 : index
    %132 = vector.load %arg4[%c4, %c0_99] : memref<9x1024xf32, #tpu.memory_space<vmem>>, vector<1x1024xf32>
    %133 = vector.shape_cast %132 : vector<1x1024xf32> to vector<1024xf32>
    %134 = vector.shape_cast %133 : vector<1024xf32> to vector<1x1024xf32>
    %135 = vector.broadcast %134 : vector<1x1024xf32> to vector<8x1024xf32>
    %136 = arith.mulf %131, %135 : vector<8x1024xf32>
    %137 = arith.addf %129, %136 : vector<8x1024xf32>
    %c0_100 = arith.constant 0 : index
    %c1_101 = arith.constant 1 : index
    %c256_102 = arith.constant 256 : index
    %138 = vector.load %arg7[%c0_100, %c1_101, %c256_102] : memref<2x20x1280xf32, #tpu.memory_space<vmem>>, vector<1x8x1024xf32>
    %139 = vector.shape_cast %138 : vector<1x8x1024xf32> to vector<8x1024xf32>
    %c5 = arith.constant 5 : index
    %c0_103 = arith.constant 0 : index
    %140 = vector.load %arg4[%c5, %c0_103] : memref<9x1024xf32, #tpu.memory_space<vmem>>, vector<1x1024xf32>
    %141 = vector.shape_cast %140 : vector<1x1024xf32> to vector<1024xf32>
    %142 = vector.shape_cast %141 : vector<1024xf32> to vector<1x1024xf32>
    %143 = vector.broadcast %142 : vector<1x1024xf32> to vector<8x1024xf32>
    %144 = arith.mulf %139, %143 : vector<8x1024xf32>
    %145 = arith.addf %137, %144 : vector<8x1024xf32>
    %c0_104 = arith.constant 0 : index
    %c2_105 = arith.constant 2 : index
    %c0_106 = arith.constant 0 : index
    %146 = vector.load %arg7[%c0_104, %c2_105, %c0_106] : memref<2x20x1280xf32, #tpu.memory_space<vmem>>, vector<1x8x1024xf32>
    %147 = vector.shape_cast %146 : vector<1x8x1024xf32> to vector<8x1024xf32>
    %c6 = arith.constant 6 : index
    %c0_107 = arith.constant 0 : index
    %148 = vector.load %arg4[%c6, %c0_107] : memref<9x1024xf32, #tpu.memory_space<vmem>>, vector<1x1024xf32>
    %149 = vector.shape_cast %148 : vector<1x1024xf32> to vector<1024xf32>
    %150 = vector.shape_cast %149 : vector<1024xf32> to vector<1x1024xf32>
    %151 = vector.broadcast %150 : vector<1x1024xf32> to vector<8x1024xf32>
    %152 = arith.mulf %147, %151 : vector<8x1024xf32>
    %153 = arith.addf %145, %152 : vector<8x1024xf32>
    %c0_108 = arith.constant 0 : index
    %c2_109 = arith.constant 2 : index
    %c128_110 = arith.constant 128 : index
    %154 = vector.load %arg7[%c0_108, %c2_109, %c128_110] : memref<2x20x1280xf32, #tpu.memory_space<vmem>>, vector<1x8x1024xf32>
    %155 = vector.shape_cast %154 : vector<1x8x1024xf32> to vector<8x1024xf32>
    %c7 = arith.constant 7 : index
    %c0_111 = arith.constant 0 : index
    %156 = vector.load %arg4[%c7, %c0_111] : memref<9x1024xf32, #tpu.memory_space<vmem>>, vector<1x1024xf32>
    %157 = vector.shape_cast %156 : vector<1x1024xf32> to vector<1024xf32>
    %158 = vector.shape_cast %157 : vector<1024xf32> to vector<1x1024xf32>
    %159 = vector.broadcast %158 : vector<1x1024xf32> to vector<8x1024xf32>
    %160 = arith.mulf %155, %159 : vector<8x1024xf32>
    %161 = arith.addf %153, %160 : vector<8x1024xf32>
    %c0_112 = arith.constant 0 : index
    %c2_113 = arith.constant 2 : index
    %c256_114 = arith.constant 256 : index
    %162 = vector.load %arg7[%c0_112, %c2_113, %c256_114] : memref<2x20x1280xf32, #tpu.memory_space<vmem>>, vector<1x8x1024xf32>
    %163 = vector.shape_cast %162 : vector<1x8x1024xf32> to vector<8x1024xf32>
    %c8 = arith.constant 8 : index
    %c0_115 = arith.constant 0 : index
    %164 = vector.load %arg4[%c8, %c0_115] : memref<9x1024xf32, #tpu.memory_space<vmem>>, vector<1x1024xf32>
    %165 = vector.shape_cast %164 : vector<1x1024xf32> to vector<1024xf32>
    %166 = vector.shape_cast %165 : vector<1024xf32> to vector<1x1024xf32>
    %167 = vector.broadcast %166 : vector<1x1024xf32> to vector<8x1024xf32>
    %168 = arith.mulf %163, %167 : vector<8x1024xf32>
    %169 = arith.addf %161, %168 : vector<8x1024xf32>
    %c0_116 = arith.constant 0 : index
    %c0_117 = arith.constant 0 : index
    %170 = vector.load %arg5[%c0_116, %c0_117] : memref<1x1024xf32, #tpu.memory_space<vmem>>, vector<1x1024xf32>
    %171 = vector.broadcast %170 : vector<1x1024xf32> to vector<8x1024xf32>
    %172 = arith.addf %169, %171 : vector<8x1024xf32>
    %173 = arith.negf %172 : vector<8x1024xf32>
    %174 = math.exp %173 : vector<8x1024xf32>
    %cst_118 = arith.constant 1.000000e+00 : f32
    %175 = vector.broadcast %cst_118 : f32 to vector<8x1024xf32>
    %176 = arith.addf %175, %174 : vector<8x1024xf32>
    %177 = arith.divf %175, %176 : vector<8x1024xf32>
    %178 = arith.mulf %93, %177 : vector<8x1024xf32>
    %c0_119 = arith.constant 0 : index
    %c0_120 = arith.constant 0 : index
    %c0_121 = arith.constant 0 : index
    %179 = vector.load %arg6[%c0_119, %c0_120, %c0_121] : memref<2x8x1024xf32, #tpu.memory_space<vmem>>, vector<1x8x1024xf32>
    %180 = vector.shape_cast %179 : vector<1x8x1024xf32> to vector<8x1024xf32>
    %181 = vector.shape_cast %178 : vector<8x1024xf32> to vector<1x8x1024xf32>
    tpu.vector_store %arg6[%c0_119, %c0_120, %c0_121], %181 {strides = array<i32>} : memref<2x8x1024xf32, #tpu.memory_space<vmem>>, vector<1x8x1024xf32>,
    %c1_122 = arith.constant 1 : index
    %c1_123 = arith.constant 1 : index
    %c128_124 = arith.constant 128 : index
    %182 = vector.load %arg7[%c1_122, %c1_123, %c128_124] : memref<2x20x1280xf32, #tpu.memory_space<vmem>>, vector<1x8x1024xf32>
    %183 = vector.shape_cast %182 : vector<1x8x1024xf32> to vector<8x1024xf32>
    %c1_125 = arith.constant 1 : index
    %c10_126 = arith.constant 10 : index
    %c64_127 = arith.constant 64 : index
    %184 = vector.load %arg7[%c1_125, %c10_126, %c64_127] : memref<2x20x1280xf32, #tpu.memory_space<vmem>>, vector<1x8x1024xf32>
    %185 = vector.shape_cast %184 : vector<1x8x1024xf32> to vector<8x1024xf32>
    %186 = arith.maximumf %183, %185 : vector<8x1024xf32>
    %c1_128 = arith.constant 1 : index
    %c10_129 = arith.constant 10 : index
    %c128_130 = arith.constant 128 : index
    %187 = vector.load %arg7[%c1_128, %c10_129, %c128_130] : memref<2x20x1280xf32, #tpu.memory_space<vmem>>, vector<1x8x1024xf32>
    %188 = vector.shape_cast %187 : vector<1x8x1024xf32> to vector<8x1024xf32>
    %189 = arith.maximumf %186, %188 : vector<8x1024xf32>
    %c1_131 = arith.constant 1 : index
    %c10_132 = arith.constant 10 : index
    %c192_133 = arith.constant 192 : index
    %190 = vector.load %arg7[%c1_131, %c10_132, %c192_133] : memref<2x20x1280xf32, #tpu.memory_space<vmem>>, vector<1x8x1024xf32>
    %191 = vector.shape_cast %190 : vector<1x8x1024xf32> to vector<8x1024xf32>
    %192 = arith.maximumf %189, %191 : vector<8x1024xf32>
    %c1_134 = arith.constant 1 : index
    %c1_135 = arith.constant 1 : index
    %c64_136 = arith.constant 64 : index
    %193 = vector.load %arg7[%c1_134, %c1_135, %c64_136] : memref<2x20x1280xf32, #tpu.memory_space<vmem>>, vector<1x8x1024xf32>
    %194 = vector.shape_cast %193 : vector<1x8x1024xf32> to vector<8x1024xf32>
    %195 = arith.maximumf %192, %194 : vector<8x1024xf32>
    %c1_137 = arith.constant 1 : index
    %c1_138 = arith.constant 1 : index
    %c192_139 = arith.constant 192 : index
    %196 = vector.load %arg7[%c1_137, %c1_138, %c192_139] : memref<2x20x1280xf32, #tpu.memory_space<vmem>>, vector<1x8x1024xf32>
    %197 = vector.shape_cast %196 : vector<1x8x1024xf32> to vector<8x1024xf32>
    %198 = arith.maximumf %195, %197 : vector<8x1024xf32>
    %c1_140 = arith.constant 1 : index
    %c11_141 = arith.constant 11 : index
    %c64_142 = arith.constant 64 : index
    %199 = vector.load %arg7[%c1_140, %c11_141, %c64_142] : memref<2x20x1280xf32, #tpu.memory_space<vmem>>, vector<1x8x1024xf32>
    %200 = vector.shape_cast %199 : vector<1x8x1024xf32> to vector<8x1024xf32>
    %201 = arith.maximumf %198, %200 : vector<8x1024xf32>
    %c1_143 = arith.constant 1 : index
    %c11_144 = arith.constant 11 : index
    %c128_145 = arith.constant 128 : index
    %202 = vector.load %arg7[%c1_143, %c11_144, %c128_145] : memref<2x20x1280xf32, #tpu.memory_space<vmem>>, vector<1x8x1024xf32>
    %203 = vector.shape_cast %202 : vector<1x8x1024xf32> to vector<8x1024xf32>
    %204 = arith.maximumf %201, %203 : vector<8x1024xf32>
    %c1_146 = arith.constant 1 : index
    %c11_147 = arith.constant 11 : index
    %c192_148 = arith.constant 192 : index
    %205 = vector.load %arg7[%c1_146, %c11_147, %c192_148] : memref<2x20x1280xf32, #tpu.memory_space<vmem>>, vector<1x8x1024xf32>
    %206 = vector.shape_cast %205 : vector<1x8x1024xf32> to vector<8x1024xf32>
    %207 = arith.maximumf %204, %206 : vector<8x1024xf32>
    %c1_149 = arith.constant 1 : index
    %c1_150 = arith.constant 1 : index
    %c128_151 = arith.constant 128 : index
    %208 = vector.load %arg7[%c1_149, %c1_150, %c128_151] : memref<2x20x1280xf32, #tpu.memory_space<vmem>>, vector<1x8x1024xf32>
    %209 = vector.shape_cast %208 : vector<1x8x1024xf32> to vector<8x1024xf32>
    %210 = vector.shape_cast %207 : vector<8x1024xf32> to vector<1x8x1024xf32>
    tpu.vector_store %arg7[%c1_149, %c1_150, %c128_151], %210 {strides = array<i32>} : memref<2x20x1280xf32, #tpu.memory_space<vmem>>, vector<1x8x1024xf32>,
    %cst_152 = arith.constant 0.000000e+00 : f32
    %211 = vector.broadcast %cst_152 : f32 to vector<8x1024xf32>
    %c1_153 = arith.constant 1 : index
    %c0_154 = arith.constant 0 : index
    %c0_155 = arith.constant 0 : index
    %212 = vector.load %arg7[%c1_153, %c0_154, %c0_155] : memref<2x20x1280xf32, #tpu.memory_space<vmem>>, vector<1x8x1024xf32>
    %213 = vector.shape_cast %212 : vector<1x8x1024xf32> to vector<8x1024xf32>
    %c0_156 = arith.constant 0 : index
    %c0_157 = arith.constant 0 : index
    %214 = vector.load %arg4[%c0_156, %c0_157] : memref<9x1024xf32, #tpu.memory_space<vmem>>, vector<1x1024xf32>
    %215 = vector.shape_cast %214 : vector<1x1024xf32> to vector<1024xf32>
    %216 = vector.shape_cast %215 : vector<1024xf32> to vector<1x1024xf32>
    %217 = vector.broadcast %216 : vector<1x1024xf32> to vector<8x1024xf32>
    %218 = arith.mulf %213, %217 : vector<8x1024xf32>
    %219 = arith.addf %211, %218 : vector<8x1024xf32>
    %c1_158 = arith.constant 1 : index
    %c0_159 = arith.constant 0 : index
    %c128_160 = arith.constant 128 : index
    %220 = vector.load %arg7[%c1_158, %c0_159, %c128_160] : memref<2x20x1280xf32, #tpu.memory_space<vmem>>, vector<1x8x1024xf32>
    %221 = vector.shape_cast %220 : vector<1x8x1024xf32> to vector<8x1024xf32>
    %c1_161 = arith.constant 1 : index
    %c0_162 = arith.constant 0 : index
    %222 = vector.load %arg4[%c1_161, %c0_162] : memref<9x1024xf32, #tpu.memory_space<vmem>>, vector<1x1024xf32>
    %223 = vector.shape_cast %222 : vector<1x1024xf32> to vector<1024xf32>
    %224 = vector.shape_cast %223 : vector<1024xf32> to vector<1x1024xf32>
    %225 = vector.broadcast %224 : vector<1x1024xf32> to vector<8x1024xf32>
    %226 = arith.mulf %221, %225 : vector<8x1024xf32>
    %227 = arith.addf %219, %226 : vector<8x1024xf32>
    %c1_163 = arith.constant 1 : index
    %c0_164 = arith.constant 0 : index
    %c256_165 = arith.constant 256 : index
    %228 = vector.load %arg7[%c1_163, %c0_164, %c256_165] : memref<2x20x1280xf32, #tpu.memory_space<vmem>>, vector<1x8x1024xf32>
    %229 = vector.shape_cast %228 : vector<1x8x1024xf32> to vector<8x1024xf32>
    %c2_166 = arith.constant 2 : index
    %c0_167 = arith.constant 0 : index
    %230 = vector.load %arg4[%c2_166, %c0_167] : memref<9x1024xf32, #tpu.memory_space<vmem>>, vector<1x1024xf32>
    %231 = vector.shape_cast %230 : vector<1x1024xf32> to vector<1024xf32>
    %232 = vector.shape_cast %231 : vector<1024xf32> to vector<1x1024xf32>
    %233 = vector.broadcast %232 : vector<1x1024xf32> to vector<8x1024xf32>
    %234 = arith.mulf %229, %233 : vector<8x1024xf32>
    %235 = arith.addf %227, %234 : vector<8x1024xf32>
    %c1_168 = arith.constant 1 : index
    %c1_169 = arith.constant 1 : index
    %c0_170 = arith.constant 0 : index
    %236 = vector.load %arg7[%c1_168, %c1_169, %c0_170] : memref<2x20x1280xf32, #tpu.memory_space<vmem>>, vector<1x8x1024xf32>
    %237 = vector.shape_cast %236 : vector<1x8x1024xf32> to vector<8x1024xf32>
    %c3_171 = arith.constant 3 : index
    %c0_172 = arith.constant 0 : index
    %238 = vector.load %arg4[%c3_171, %c0_172] : memref<9x1024xf32, #tpu.memory_space<vmem>>, vector<1x1024xf32>
    %239 = vector.shape_cast %238 : vector<1x1024xf32> to vector<1024xf32>
    %240 = vector.shape_cast %239 : vector<1024xf32> to vector<1x1024xf32>
    %241 = vector.broadcast %240 : vector<1x1024xf32> to vector<8x1024xf32>
    %242 = arith.mulf %237, %241 : vector<8x1024xf32>
    %243 = arith.addf %235, %242 : vector<8x1024xf32>
    %c1_173 = arith.constant 1 : index
    %c1_174 = arith.constant 1 : index
    %c128_175 = arith.constant 128 : index
    %244 = vector.load %arg7[%c1_173, %c1_174, %c128_175] : memref<2x20x1280xf32, #tpu.memory_space<vmem>>, vector<1x8x1024xf32>
    %245 = vector.shape_cast %244 : vector<1x8x1024xf32> to vector<8x1024xf32>
    %c4_176 = arith.constant 4 : index
    %c0_177 = arith.constant 0 : index
    %246 = vector.load %arg4[%c4_176, %c0_177] : memref<9x1024xf32, #tpu.memory_space<vmem>>, vector<1x1024xf32>
    %247 = vector.shape_cast %246 : vector<1x1024xf32> to vector<1024xf32>
    %248 = vector.shape_cast %247 : vector<1024xf32> to vector<1x1024xf32>
    %249 = vector.broadcast %248 : vector<1x1024xf32> to vector<8x1024xf32>
    %250 = arith.mulf %245, %249 : vector<8x1024xf32>
    %251 = arith.addf %243, %250 : vector<8x1024xf32>
    %c1_178 = arith.constant 1 : index
    %c1_179 = arith.constant 1 : index
    %c256_180 = arith.constant 256 : index
    %252 = vector.load %arg7[%c1_178, %c1_179, %c256_180] : memref<2x20x1280xf32, #tpu.memory_space<vmem>>, vector<1x8x1024xf32>
    %253 = vector.shape_cast %252 : vector<1x8x1024xf32> to vector<8x1024xf32>
    %c5_181 = arith.constant 5 : index
    %c0_182 = arith.constant 0 : index
    %254 = vector.load %arg4[%c5_181, %c0_182] : memref<9x1024xf32, #tpu.memory_space<vmem>>, vector<1x1024xf32>
    %255 = vector.shape_cast %254 : vector<1x1024xf32> to vector<1024xf32>
    %256 = vector.shape_cast %255 : vector<1024xf32> to vector<1x1024xf32>
    %257 = vector.broadcast %256 : vector<1x1024xf32> to vector<8x1024xf32>
    %258 = arith.mulf %253, %257 : vector<8x1024xf32>
    %259 = arith.addf %251, %258 : vector<8x1024xf32>
    %c1_183 = arith.constant 1 : index
    %c2_184 = arith.constant 2 : index
    %c0_185 = arith.constant 0 : index
    %260 = vector.load %arg7[%c1_183, %c2_184, %c0_185] : memref<2x20x1280xf32, #tpu.memory_space<vmem>>, vector<1x8x1024xf32>
    %261 = vector.shape_cast %260 : vector<1x8x1024xf32> to vector<8x1024xf32>
    %c6_186 = arith.constant 6 : index
    %c0_187 = arith.constant 0 : index
    %262 = vector.load %arg4[%c6_186, %c0_187] : memref<9x1024xf32, #tpu.memory_space<vmem>>, vector<1x1024xf32>
    %263 = vector.shape_cast %262 : vector<1x1024xf32> to vector<1024xf32>
    %264 = vector.shape_cast %263 : vector<1024xf32> to vector<1x1024xf32>
    %265 = vector.broadcast %264 : vector<1x1024xf32> to vector<8x1024xf32>
    %266 = arith.mulf %261, %265 : vector<8x1024xf32>
    %267 = arith.addf %259, %266 : vector<8x1024xf32>
    %c1_188 = arith.constant 1 : index
    %c2_189 = arith.constant 2 : index
    %c128_190 = arith.constant 128 : index
    %268 = vector.load %arg7[%c1_188, %c2_189, %c128_190] : memref<2x20x1280xf32, #tpu.memory_space<vmem>>, vector<1x8x1024xf32>
    %269 = vector.shape_cast %268 : vector<1x8x1024xf32> to vector<8x1024xf32>
    %c7_191 = arith.constant 7 : index
    %c0_192 = arith.constant 0 : index
    %270 = vector.load %arg4[%c7_191, %c0_192] : memref<9x1024xf32, #tpu.memory_space<vmem>>, vector<1x1024xf32>
    %271 = vector.shape_cast %270 : vector<1x1024xf32> to vector<1024xf32>
    %272 = vector.shape_cast %271 : vector<1024xf32> to vector<1x1024xf32>
    %273 = vector.broadcast %272 : vector<1x1024xf32> to vector<8x1024xf32>
    %274 = arith.mulf %269, %273 : vector<8x1024xf32>
    %275 = arith.addf %267, %274 : vector<8x1024xf32>
    %c1_193 = arith.constant 1 : index
    %c2_194 = arith.constant 2 : index
    %c256_195 = arith.constant 256 : index
    %276 = vector.load %arg7[%c1_193, %c2_194, %c256_195] : memref<2x20x1280xf32, #tpu.memory_space<vmem>>, vector<1x8x1024xf32>
    %277 = vector.shape_cast %276 : vector<1x8x1024xf32> to vector<8x1024xf32>
    %c8_196 = arith.constant 8 : index
    %c0_197 = arith.constant 0 : index
    %278 = vector.load %arg4[%c8_196, %c0_197] : memref<9x1024xf32, #tpu.memory_space<vmem>>, vector<1x1024xf32>
    %279 = vector.shape_cast %278 : vector<1x1024xf32> to vector<1024xf32>
    %280 = vector.shape_cast %279 : vector<1024xf32> to vector<1x1024xf32>
    %281 = vector.broadcast %280 : vector<1x1024xf32> to vector<8x1024xf32>
    %282 = arith.mulf %277, %281 : vector<8x1024xf32>
    %283 = arith.addf %275, %282 : vector<8x1024xf32>
    %c0_198 = arith.constant 0 : index
    %c0_199 = arith.constant 0 : index
    %284 = vector.load %arg5[%c0_198, %c0_199] : memref<1x1024xf32, #tpu.memory_space<vmem>>, vector<1x1024xf32>
    %285 = vector.broadcast %284 : vector<1x1024xf32> to vector<8x1024xf32>
    %286 = arith.addf %283, %285 : vector<8x1024xf32>
    %287 = arith.negf %286 : vector<8x1024xf32>
    %288 = math.exp %287 : vector<8x1024xf32>
    %cst_200 = arith.constant 1.000000e+00 : f32
    %289 = vector.broadcast %cst_200 : f32 to vector<8x1024xf32>
    %290 = arith.addf %289, %288 : vector<8x1024xf32>
    %291 = arith.divf %289, %290 : vector<8x1024xf32>
    %292 = arith.mulf %207, %291 : vector<8x1024xf32>
    %c1_201 = arith.constant 1 : index
    %c0_202 = arith.constant 0 : index
    %c0_203 = arith.constant 0 : index
    %293 = vector.load %arg6[%c1_201, %c0_202, %c0_203] : memref<2x8x1024xf32, #tpu.memory_space<vmem>>, vector<1x8x1024xf32>
    %294 = vector.shape_cast %293 : vector<1x8x1024xf32> to vector<8x1024xf32>
    %295 = vector.shape_cast %292 : vector<8x1024xf32> to vector<1x8x1024xf32>
    tpu.vector_store %arg6[%c1_201, %c0_202, %c0_203], %295 {strides = array<i32>} : memref<2x8x1024xf32, #tpu.memory_space<vmem>>, vector<1x8x1024xf32>,
    return
  }
  func.func @transform_0(%arg0: i32) -> (i32, i32, i32) {
    %c0_i32 = arith.constant 0 : i32
    %c0_i32_0 = arith.constant 0 : i32
    %c0_i32_1 = arith.constant 0 : i32
    return %arg0, %c0_i32, %c0_i32_0 : i32, i32, i32
  }
  func.func @transform_1(%arg0: i32) -> (i32, i32) {
    %c0_i32 = arith.constant 0 : i32
    %c0_i32_0 = arith.constant 0 : i32
    %c0_i32_1 = arith.constant 0 : i32
    return %c0_i32, %c0_i32_0 : i32, i32
  }
  func.func @transform_2(%arg0: i32) -> (i32, i32) {
    %c0_i32 = arith.constant 0 : i32
    %c0_i32_0 = arith.constant 0 : i32
    %c0_i32_1 = arith.constant 0 : i32
    return %c0_i32, %c0_i32_0 : i32, i32
  }
  func.func @transform_3(%arg0: i32) -> (i32, i32) {
    %c0_i32 = arith.constant 0 : i32
    %c0_i32_0 = arith.constant 0 : i32
    %c0_i32_1 = arith.constant 0 : i32
    return %c0_i32, %c0_i32_0 : i32, i32
  }
  func.func @transform_4(%arg0: i32) -> (i32, i32) {
    %c0_i32 = arith.constant 0 : i32
    %c0_i32_0 = arith.constant 0 : i32
    %c0_i32_1 = arith.constant 0 : i32
    return %c0_i32, %c0_i32_0 : i32, i32
  }
  func.func @transform_5(%arg0: i32) -> (i32, i32, i32) {
    %c0_i32 = arith.constant 0 : i32
    %c0_i32_0 = arith.constant 0 : i32
    %c0_i32_1 = arith.constant 0 : i32
    return %arg0, %c0_i32, %c0_i32_0 : i32, i32, i32
  }
}

</mosaic_0001>

<llo_original>
// kernel: stem_forward_pallas.1
$region0: #{stem_forward_pallas.1}
  #allocation0 [shape = 'u32[]', space=smem, size = 0x4, offset = 0x4, fixed_abs, tag = 'smem constant byte address 0x4 - core index']
  #allocation1 [shape = 'u32[144,128]{1,0:T(1,128)}', space=vmem, size = 0x12000, scoped, tag = 'internal scratch']
  #allocation2 [shape = 'f32[2,20,1280]{2,1,0:T(8,128)}', space=vmem, size = 0x3c000, scoped, tag = 'scratch operand']
  %s0 = inlined_call_operand.vmem [shape: bf16[2,16,1024], index: 0, kind: input, shape index: {}]
  %s1 = inlined_call_operand.vmem [shape: bf16[1024,1024], index: 1, kind: input, shape index: {}]
  %s2 = inlined_call_operand.vmem [shape: f32[1,1024], index: 2, kind: input, shape index: {}]
  %s3 = inlined_call_operand.vmem [shape: f32[9,1024], index: 3, kind: input, shape index: {}]
  %s4 = inlined_call_operand.vmem [shape: f32[1,1024], index: 4, kind: input, shape index: {}]
  %s5 = inlined_call_operand.vmem [shape: f32[2,8,1024], index: 5, kind: output, shape index: {}]
  %s6 = sld [smem:[#allocation0]]
  $region30: #{stem_forward_pallas.1} parent=0
    _
  %s8 = ssub.s32 1, %s6
  %s9 = scalar_select 0, %s8, %s6
  // Predicated region
  $region2: #{stem_forward_pallas.1} parent=0 // pred_check
    _
  $region3: #{stem_forward_pallas.1} parent=0 // pred_check_branch
    %11 = sbr.rel (0) target = $region5
  $region4: #{stem_forward_pallas.1} parent=0 // pred_region
    _
  $region5: #{stem_forward_pallas.1} parent=0 // pred_fallthru
    _
  // Predicated region
  $region6: #{stem_forward_pallas.1} parent=0 // pred_check
    _
  $region7: #{stem_forward_pallas.1} parent=0 // pred_check_branch
    %13 = sbr.rel (0) target = $region9
  $region8: #{stem_forward_pallas.1} parent=0 // pred_region
    _
  $region9: #{stem_forward_pallas.1} parent=0 // pred_fallthru
    _
  // Predicated region
  $region10: #{stem_forward_pallas.1} parent=0 // pred_check
    _
  $region11: #{stem_forward_pallas.1} parent=0 // pred_check_branch
    %15 = sbr.rel (0) target = $region13
  $region12: #{stem_forward_pallas.1} parent=0 // pred_region
    _
  $region13: #{stem_forward_pallas.1} parent=0 // pred_fallthru
    _
  // Predicated region
  $region14: #{stem_forward_pallas.1} parent=0 // pred_check
    _
  $region15: #{stem_forward_pallas.1} parent=0 // pred_check_branch
    %17 = sbr.rel (0) target = $region17
  $region16: #{stem_forward_pallas.1} parent=0 // pred_region
    _
  $region17: #{stem_forward_pallas.1} parent=0 // pred_fallthru
    _
  // Predicated region
  $region18: #{stem_forward_pallas.1} parent=0 // pred_check
    _
  $region19: #{stem_forward_pallas.1} parent=0 // pred_check_branch
    %19 = sbr.rel (0) target = $region21
  $region20: #{stem_forward_pallas.1} parent=0 // pred_region
    _
  $region21: #{stem_forward_pallas.1} parent=0 // pred_fallthru
    _
  %20 = vst [vmem:[#allocation2] sm:$0xff] 0.0
  %21 = vst [vmem:[#allocation2 + $0x50] sm:$0xff] 0.0
  %22 = vst [vmem:[#allocation2 + $0xa0] sm:$0xf] 0.0
  %23 = vst [vmem:[#allocation2 + $0x48] sm:$0xff] 0.0
  %24 = vst [vmem:[#allocation2 + $0x98] sm:$0xff] 0.0
  %25 = vst [vmem:[#allocation2 + $0xe8] sm:$0xf] 0.0
  %26 = vst [vmem:[#allocation2] ss:$8 sm:$0xf] 0.0
  %27 = vst [vmem:[#allocation2] ss:$8 sm:$0xf0] 0.0
  %v28 = vlaneseq
  %vm29 = vcmp.ge.s32.totalorder %v28, 0
  %vm30 = vcmp.lt.s32.totalorder %v28, 256
  %vm31 = vmand %vm29, %vm30
  %s32 = scalar_lea.vmem [#allocation2], 64
  %33 = vst.msk [vmem:[%s32] ss:$8 sm:$0x3] %vm31, 0.0
  %34 = vst.msk [vmem:[%s32] ss:$8 sm:$0x0] %vm31, 0.0
  %s35 = scalar_lea.vmem [#allocation2], 81
  %36 = vst [vmem:[%s35] ss:$8 sm:$0xf] 0.0
  %37 = vst [vmem:[%s35] ss:$8 sm:$0xf0] 0.0
  %s38 = scalar_lea.vmem [#allocation2], 145
  %39 = vst.msk [vmem:[%s38] ss:$8 sm:$0x3] %vm31, 0.0
  %40 = vst.msk [vmem:[%s38] ss:$8 sm:$0x0] %vm31, 0.0
  %s41 = scalar_lea.vmem [#allocation2], 82
  %42 = vst [vmem:[%s41] ss:$8 sm:$0xf] 0.0
  %43 = vst [vmem:[%s41] ss:$8 sm:$0xf0] 0.0
  %s44 = scalar_lea.vmem [#allocation2], 146
  %45 = vst.msk [vmem:[%s44] ss:$8 sm:$0x3] %vm31, 0.0
  %46 = vst.msk [vmem:[%s44] ss:$8 sm:$0x0] %vm31, 0.0
  %s47 = scalar_lea.vmem [#allocation2], 163
  %48 = vst [vmem:[%s47] ss:$8 sm:$0xf] 0.0
  %49 = vst [vmem:[%s47] ss:$8 sm:$0xf0] 0.0
  %s50 = scalar_lea.vmem [#allocation2], 227
  %51 = vst.msk [vmem:[%s50] ss:$8 sm:$0x3] %vm31, 0.0
  %52 = vst.msk [vmem:[%s50] ss:$8 sm:$0x0] %vm31, 0.0
  %s53 = scalar_lea.vmem [#allocation2], 240
  %54 = vst [vmem:[%s53] sm:$0xff] 0.0
  %55 = vst [vmem:[%s53 + $0x50] sm:$0xff] 0.0
  %56 = vst [vmem:[%s53 + $0xa0] sm:$0xf] 0.0
  %57 = vst [vmem:[%s53 + $0x48] sm:$0xff] 0.0
  %58 = vst [vmem:[%s53 + $0x98] sm:$0xff] 0.0
  %59 = vst [vmem:[%s53 + $0xe8] sm:$0xf] 0.0
  %60 = vst [vmem:[%s53] ss:$8 sm:$0xf] 0.0
  %61 = vst [vmem:[%s53] ss:$8 sm:$0xf0] 0.0
  %s62 = scalar_lea.vmem %s53, 64 [#allocation2]
  %63 = vst.msk [vmem:[%s62] ss:$8 sm:$0x3] %vm31, 0.0
  %64 = vst.msk [vmem:[%s62] ss:$8 sm:$0x0] %vm31, 0.0
  %s65 = scalar_lea.vmem %s53, 81 [#allocation2]
  %66 = vst [vmem:[%s65] ss:$8 sm:$0xf] 0.0
  %67 = vst [vmem:[%s65] ss:$8 sm:$0xf0] 0.0
  %s68 = scalar_lea.vmem %s53, 145 [#allocation2]
  %69 = vst.msk [vmem:[%s68] ss:$8 sm:$0x3] %vm31, 0.0
  %70 = vst.msk [vmem:[%s68] ss:$8 sm:$0x0] %vm31, 0.0
  %s71 = scalar_lea.vmem %s53, 82 [#allocation2]
  %72 = vst [vmem:[%s71] ss:$8 sm:$0xf] 0.0
  %73 = vst [vmem:[%s71] ss:$8 sm:$0xf0] 0.0
  %s74 = scalar_lea.vmem %s53, 146 [#allocation2]
  %75 = vst.msk [vmem:[%s74] ss:$8 sm:$0x3] %vm31, 0.0
  %76 = vst.msk [vmem:[%s74] ss:$8 sm:$0x0] %vm31, 0.0
  %s77 = scalar_lea.vmem %s53, 163 [#allocation2]
  %78 = vst [vmem:[%s77] ss:$8 sm:$0xf] 0.0
  %79 = vst [vmem:[%s77] ss:$8 sm:$0xf0] 0.0
  %s80 = scalar_lea.vmem %s53, 227 [#allocation2]
  %81 = vst.msk [vmem:[%s80] ss:$8 sm:$0x3] %vm31, 0.0
  %82 = vst.msk [vmem:[%s80] ss:$8 sm:$0x0] %vm31, 0.0
  %v83 = vld [vmem:[%s0] sm:$0xff]
  %v84 = vld [vmem:[%s0 + $0x8] sm:$0xff]
  %v85 = vld [vmem:[%s0 + $0x10] sm:$0xff]
  %v86 = vld [vmem:[%s0 + $0x18] sm:$0xff]
  %v87 = vld [vmem:[%s0 + $0x20] sm:$0xff]
  %v88 = vld [vmem:[%s0 + $0x28] sm:$0xff]
  %v89 = vld [vmem:[%s0 + $0x30] sm:$0xff]
  %v90 = vld [vmem:[%s0 + $0x38] sm:$0xff]
  %v91 = vld [vmem:[%s0 + $0x40] sm:$0xff]
  %v92 = vld [vmem:[%s0 + $0x48] sm:$0xff]
  %v93 = vld [vmem:[%s0 + $0x50] sm:$0xff]
  %v94 = vld [vmem:[%s0 + $0x58] sm:$0xff]
  %v95 = vld [vmem:[%s0 + $0x60] sm:$0xff]
  %v96 = vld [vmem:[%s0 + $0x68] sm:$0xff]
  %v97 = vld [vmem:[%s0 + $0x70] sm:$0xff]
  %v98 = vld [vmem:[%s0 + $0x78] sm:$0xff]
  %v99 = vld [vmem:[%s1] sm:$0xff]
  %v100 = vld [vmem:[%s1 + $0x8] sm:$0xff]
  %v101 = vld [vmem:[%s1 + $0x10] sm:$0xff]
  %v102 = vld [vmem:[%s1 + $0x18] sm:$0xff]
  %v103 = vld [vmem:[%s1 + $0x20] sm:$0xff]
  %v104 = vld [vmem:[%s1 + $0x28] sm:$0xff]
  %v105 = vld [vmem:[%s1 + $0x30] sm:$0xff]
  %v106 = vld [vmem:[%s1 + $0x38] sm:$0xff]
  %v107 = vld [vmem:[%s1 + $0x40] sm:$0xff]
  %v108 = vld [vmem:[%s1 + $0x48] sm:$0xff]
  %v109 = vld [vmem:[%s1 + $0x50] sm:$0xff]
  %v110 = vld [vmem:[%s1 + $0x58] sm:$0xff]
  %v111 = vld [vmem:[%s1 + $0x60] sm:$0xff]
  %v112 = vld [vmem:[%s1 + $0x68] sm:$0xff]
  %v113 = vld [vmem:[%s1 + $0x70] sm:$0xff]
  %v114 = vld [vmem:[%s1 + $0x78] sm:$0xff]
  %v115 = vld [vmem:[%s1 + $0x80] sm:$0xff]
  %v116 = vld [vmem:[%s1 + $0x88] sm:$0xff]
  %v117 = vld [vmem:[%s1 + $0x90] sm:$0xff]
  %v118 = vld [vmem:[%s1 + $0x98] sm:$0xff]
  %v119 = vld [vmem:[%s1 + $0xa0] sm:$0xff]
  %v120 = vld [vmem:[%s1 + $0xa8] sm:$0xff]
  %v121 = vld [vmem:[%s1 + $0xb0] sm:$0xff]
  %v122 = vld [vmem:[%s1 + $0xb8] sm:$0xff]
  %v123 = vld [vmem:[%s1 + $0xc0] sm:$0xff]
  %v124 = vld [vmem:[%s1 + $0xc8] sm:$0xff]
  %v125 = vld [vmem:[%s1 + $0xd0] sm:$0xff]
  %v126 = vld [vmem:[%s1 + $0xd8] sm:$0xff]
  %v127 = vld [vmem:[%s1 + $0xe0] sm:$0xff]
  %v128 = vld [vmem:[%s1 + $0xe8] sm:$0xff]
  %v129 = vld [vmem:[%s1 + $0xf0] sm:$0xff]
  %v130 = vld [vmem:[%s1 + $0xf8] sm:$0xff]
  %v131 = vld [vmem:[%s1 + $0x100] sm:$0xff]
  %v132 = vld [vmem:[%s1 + $0x108] sm:$0xff]
  %v133 = vld [vmem:[%s1 + $0x110] sm:$0xff]
  %v134 = vld [vmem:[%s1 + $0x118] sm:$0xff]
  %v135 = vld [vmem:[%s1 + $0x120] sm:$0xff]
  %v136 = vld [vmem:[%s1 + $0x128] sm:$0xff]
  %v137 = vld [vmem:[%s1 + $0x130] sm:$0xff]
  %v138 = vld [vmem:[%s1 + $0x138] sm:$0xff]
  %v139 = vld [vmem:[%s1 + $0x140] sm:$0xff]
  %v140 = vld [vmem:[%s1 + $0x148] sm:$0xff]
  %v141 = vld [vmem:[%s1 + $0x150] sm:$0xff]
  %v142 = vld [vmem:[%s1 + $0x158] sm:$0xff]
  %v143 = vld [vmem:[%s1 + $0x160] sm:$0xff]
  %v144 = vld [vmem:[%s1 + $0x168] sm:$0xff]
  %v145 = vld [vmem:[%s1 + $0x170] sm:$0xff]
  %v146 = vld [vmem:[%s1 + $0x178] sm:$0xff]
  %v147 = vld [vmem:[%s1 + $0x180] sm:$0xff]
  %v148 = vld [vmem:[%s1 + $0x188] sm:$0xff]
  %v149 = vld [vmem:[%s1 + $0x190] sm:$0xff]
  %v150 = vld [vmem:[%s1 + $0x198] sm:$0xff]
  %v151 = vld [vmem:[%s1 + $0x1a0] sm:$0xff]
  %v152 = vld [vmem:[%s1 + $0x1a8] sm:$0xff]
  %v153 = vld [vmem:[%s1 + $0x1b0] sm:$0xff]
  %v154 = vld [vmem:[%s1 + $0x1b8] sm:$0xff]
  %v155 = vld [vmem:[%s1 + $0x1c0] sm:$0xff]
  %v156 = vld [vmem:[%s1 + $0x1c8] sm:$0xff]
  %v157 = vld [vmem:[%s1 + $0x1d0] sm:$0xff]
  %v158 = vld [vmem:[%s1 + $0x1d8] sm:$0xff]
  %v159 = vld [vmem:[%s1 + $0x1e0] sm:$0xff]
  %v160 = vld [vmem:[%s1 + $0x1e8] sm:$0xff]
  %v161 = vld [vmem:[%s1 + $0x1f0] sm:$0xff]
  %v162 = vld [vmem:[%s1 + $0x1f8] sm:$0xff]
  %v163 = vld [vmem:[%s1 + $0x200] sm:$0xff]
  %v164 = vld [vmem:[%s1 + $0x208] sm:$0xff]
  %v165 = vld [vmem:[%s1 + $0x210] sm:$0xff]
  %v166 = vld [vmem:[%s1 + $0x218] sm:$0xff]
  %v167 = vld [vmem:[%s1 + $0x220] sm:$0xff]
  %v168 = vld [vmem:[%s1 + $0x228] sm:$0xff]
  %v169 = vld [vmem:[%s1 + $0x230] sm:$0xff]
  %v170 = vld [vmem:[%s1 + $0x238] sm:$0xff]
  %v171 = vld [vmem:[%s1 + $0x240] sm:$0xff]
  %v172 = vld [vmem:[%s1 + $0x248] sm:$0xff]
  %v173 = vld [vmem:[%s1 + $0x250] sm:$0xff]
  %v174 = vld [vmem:[%s1 + $0x258] sm:$0xff]
  %v175 = vld [vmem:[%s1 + $0x260] sm:$0xff]
  %v176 = vld [vmem:[%s1 + $0x268] sm:$0xff]
  %v177 = vld [vmem:[%s1 + $0x270] sm:$0xff]
  %v178 = vld [vmem:[%s1 + $0x278] sm:$0xff]
  %v179 = vld [vmem:[%s1 + $0x280] sm:$0xff]
  %v180 = vld [vmem:[%s1 + $0x288] sm:$0xff]
  %v181 = vld [vmem:[%s1 + $0x290] sm:$0xff]
  %v182 = vld [vmem:[%s1 + $0x298] sm:$0xff]
  %v183 = vld [vmem:[%s1 + $0x2a0] sm:$0xff]
  %v184 = vld [vmem:[%s1 + $0x2a8] sm:$0xff]
  %v185 = vld [vmem:[%s1 + $0x2b0] sm:$0xff]
  %v186 = vld [vmem:[%s1 + $0x2b8] sm:$0xff]
  %v187 = vld [vmem:[%s1 + $0x2c0] sm:$0xff]
  %v188 = vld [vmem:[%s1 + $0x2c8] sm:$0xff]
  %v189 = vld [vmem:[%s1 + $0x2d0] sm:$0xff]
  %v190 = vld [vmem:[%s1 + $0x2d8] sm:$0xff]
  %v191 = vld [vmem:[%s1 + $0x2e0] sm:$0xff]
  %v192 = vld [vmem:[%s1 + $0x2e8] sm:$0xff]
  %v193 = vld [vmem:[%s1 + $0x2f0] sm:$0xff]
  %v194 = vld [vmem:[%s1 + $0x2f8] sm:$0xff]
  %v195 = vld [vmem:[%s1 + $0x300] sm:$0xff]
  %v196 = vld [vmem:[%s1 + $0x308] sm:$0xff]
  %v197 = vld [vmem:[%s1 + $0x310] sm:$0xff]
  %v198 = vld [vmem:[%s1 + $0x318] sm:$0xff]
  %v199 = vld [vmem:[%s1 + $0x320] sm:$0xff]
  %v200 = vld [vmem:[%s1 + $0x328] sm:$0xff]
  %v201 = vld [vmem:[%s1 + $0x330] sm:$0xff]
  %v202 = vld [vmem:[%s1 + $0x338] sm:$0xff]
  %v203 = vld [vmem:[%s1 + $0x340] sm:$0xff]
  %v204 = vld [vmem:[%s1 + $0x348] sm:$0xff]
  %v205 = vld [vmem:[%s1 + $0x350] sm:$0xff]
  %v206 = vld [vmem:[%s1 + $0x358] sm:$0xff]
  %v207 = vld [vmem:[%s1 + $0x360] sm:$0xff]
  %v208 = vld [vmem:[%s1 + $0x368] sm:$0xff]
  %v209 = vld [vmem:[%s1 + $0x370] sm:$0xff]
  %v210 = vld [vmem:[%s1 + $0x378] sm:$0xff]
  %v211 = vld [vmem:[%s1 + $0x380] sm:$0xff]
  %v212 = vld [vmem:[%s1 + $0x388] sm:$0xff]
  %v213 = vld [vmem:[%s1 + $0x390] sm:$0xff]
  %v214 = vld [vmem:[%s1 + $0x398] sm:$0xff]
  %v215 = vld [vmem:[%s1 + $0x3a0] sm:$0xff]
  %v216 = vld [vmem:[%s1 + $0x3a8] sm:$0xff]
  %v217 = vld [vmem:[%s1 + $0x3b0] sm:$0xff]
  %v218 = vld [vmem:[%s1 + $0x3b8] sm:$0xff]
  %v219 = vld [vmem:[%s1 + $0x3c0] sm:$0xff]
  %v220 = vld [vmem:[%s1 + $0x3c8] sm:$0xff]
  %v221 = vld [vmem:[%s1 + $0x3d0] sm:$0xff]
  %v222 = vld [vmem:[%s1 + $0x3d8] sm:$0xff]
  %v223 = vld [vmem:[%s1 + $0x3e0] sm:$0xff]
  %v224 = vld [vmem:[%s1 + $0x3e8] sm:$0xff]
  %v225 = vld [vmem:[%s1 + $0x3f0] sm:$0xff]
  %v226 = vld [vmem:[%s1 + $0x3f8] sm:$0xff]
  %v227 = vld [vmem:[%s1 + $0x400] sm:$0xff]
  %v228 = vld [vmem:[%s1 + $0x408] sm:$0xff]
  %v229 = vld [vmem:[%s1 + $0x410] sm:$0xff]
  %v230 = vld [vmem:[%s1 + $0x418] sm:$0xff]
  %v231 = vld [vmem:[%s1 + $0x420] sm:$0xff]
  %v232 = vld [vmem:[%s1 + $0x428] sm:$0xff]
  %v233 = vld [vmem:[%s1 + $0x430] sm:$0xff]
  %v234 = vld [vmem:[%s1 + $0x438] sm:$0xff]
  %v235 = vld [vmem:[%s1 + $0x440] sm:$0xff]
  %v236 = vld [vmem:[%s1 + $0x448] sm:$0xff]
  %v237 = vld [vmem:[%s1 + $0x450] sm:$0xff]
  %v238 = vld [vmem:[%s1 + $0x458] sm:$0xff]
  %v239 = vld [vmem:[%s1 + $0x460] sm:$0xff]
  %v240 = vld [vmem:[%s1 + $0x468] sm:$0xff]
  %v241 = vld [vmem:[%s1 + $0x470] sm:$0xff]
  %v242 = vld [vmem:[%s1 + $0x478] sm:$0xff]
  %v243 = vld [vmem:[%s1 + $0x480] sm:$0xff]
  %v244 = vld [vmem:[%s1 + $0x488] sm:$0xff]
  %v245 = vld [vmem:[%s1 + $0x490] sm:$0xff]
  %v246 = vld [vmem:[%s1 + $0x498] sm:$0xff]
  %v247 = vld [vmem:[%s1 + $0x4a0] sm:$0xff]
  %v248 = vld [vmem:[%s1 + $0x4a8] sm:$0xff]
  %v249 = vld [vmem:[%s1 + $0x4b0] sm:$0xff]
  %v250 = vld [vmem:[%s1 + $0x4b8] sm:$0xff]
  %v251 = vld [vmem:[%s1 + $0x4c0] sm:$0xff]
  %v252 = vld [vmem:[%s1 + $0x4c8] sm:$0xff]
  %v253 = vld [vmem:[%s1 + $0x4d0] sm:$0xff]
  %v254 = vld [vmem:[%s1 + $0x4d8] sm:$0xff]
  %v255 = vld [vmem:[%s1 + $0x4e0] sm:$0xff]
  %v256 = vld [vmem:[%s1 + $0x4e8] sm:$0xff]
  %v257 = vld [vmem:[%s1 + $0x4f0] sm:$0xff]
  %v258 = vld [vmem:[%s1 + $0x4f8] sm:$0xff]
  %v259 = vld [vmem:[%s1 + $0x500] sm:$0xff]
  %v260 = vld [vmem:[%s1 + $0x508] sm:$0xff]
  %v261 = vld [vmem:[%s1 + $0x510] sm:$0xff]
  %v262 = vld [vmem:[%s1 + $0x518] sm:$0xff]
  %v263 = vld [vmem:[%s1 + $0x520] sm:$0xff]
  %v264 = vld [vmem:[%s1 + $0x528] sm:$0xff]
  %v265 = vld [vmem:[%s1 + $0x530] sm:$0xff]
  %v266 = vld [vmem:[%s1 + $0x538] sm:$0xff]
  %v267 = vld [vmem:[%s1 + $0x540] sm:$0xff]
  %v268 = vld [vmem:[%s1 + $0x548] sm:$0xff]
  %v269 = vld [vmem:[%s1 + $0x550] sm:$0xff]
  %v270 = vld [vmem:[%s1 + $0x558] sm:$0xff]
  %v271 = vld [vmem:[%s1 + $0x560] sm:$0xff]
  %v272 = vld [vmem:[%s1 + $0x568] sm:$0xff]
  %v273 = vld [vmem:[%s1 + $0x570] sm:$0xff]
  %v274 = vld [vmem:[%s1 + $0x578] sm:$0xff]
  %v275 = vld [vmem:[%s1 + $0x580] sm:$0xff]
  %v276 = vld [vmem:[%s1 + $0x588] sm:$0xff]
  %v277 = vld [vmem:[%s1 + $0x590] sm:$0xff]
  %v278 = vld [vmem:[%s1 + $0x598] sm:$0xff]
  %v279 = vld [vmem:[%s1 + $0x5a0] sm:$0xff]
  %v280 = vld [vmem:[%s1 + $0x5a8] sm:$0xff]
  %v281 = vld [vmem:[%s1 + $0x5b0] sm:$0xff]
  %v282 = vld [vmem:[%s1 + $0x5b8] sm:$0xff]
  %v283 = vld [vmem:[%s1 + $0x5c0] sm:$0xff]
  %v284 = vld [vmem:[%s1 + $0x5c8] sm:$0xff]
  %v285 = vld [vmem:[%s1 + $0x5d0] sm:$0xff]
  %v286 = vld [vmem:[%s1 + $0x5d8] sm:$0xff]
  %v287 = vld [vmem:[%s1 + $0x5e0] sm:$0xff]
  %v288 = vld [vmem:[%s1 + $0x5e8] sm:$0xff]
  %v289 = vld [vmem:[%s1 + $0x5f0] sm:$0xff]
  %v290 = vld [vmem:[%s1 + $0x5f8] sm:$0xff]
  %v291 = vld [vmem:[%s1 + $0x600] sm:$0xff]
  %v292 = vld [vmem:[%s1 + $0x608] sm:$0xff]
  %v293 = vld [vmem:[%s1 + $0x610] sm:$0xff]
  %v294 = vld [vmem:[%s1 + $0x618] sm:$0xff]
  %v295 = vld [vmem:[%s1 + $0x620] sm:$0xff]
  %v296 = vld [vmem:[%s1 + $0x628] sm:$0xff]
  %v297 = vld [vmem:[%s1 + $0x630] sm:$0xff]
  %v298 = vld [vmem:[%s1 + $0x638] sm:$0xff]
  %v299 = vld [vmem:[%s1 + $0x640] sm:$0xff]
  %v300 = vld [vmem:[%s1 + $0x648] sm:$0xff]
  %v301 = vld [vmem:[%s1 + $0x650] sm:$0xff]
  %v302 = vld [vmem:[%s1 + $0x658] sm:$0xff]
  %v303 = vld [vmem:[%s1 + $0x660] sm:$0xff]
  %v304 = vld [vmem:[%s1 + $0x668] sm:$0xff]
  %v305 = vld [vmem:[%s1 + $0x670] sm:$0xff]
  %v306 = vld [vmem:[%s1 + $0x678] sm:$0xff]
  %v307 = vld [vmem:[%s1 + $0x680] sm:$0xff]
  %v308 = vld [vmem:[%s1 + $0x688] sm:$0xff]
  %v309 = vld [vmem:[%s1 + $0x690] sm:$0xff]
  %v310 = vld [vmem:[%s1 + $0x698] sm:$0xff]
  %v311 = vld [vmem:[%s1 + $0x6a0] sm:$0xff]
  %v312 = vld [vmem:[%s1 + $0x6a8] sm:$0xff]
  %v313 = vld [vmem:[%s1 + $0x6b0] sm:$0xff]
  %v314 = vld [vmem:[%s1 + $0x6b8] sm:$0xff]
  %v315 = vld [vmem:[%s1 + $0x6c0] sm:$0xff]
  %v316 = vld [vmem:[%s1 + $0x6c8] sm:$0xff]
  %v317 = vld [vmem:[%s1 + $0x6d0] sm:$0xff]
  %v318 = vld [vmem:[%s1 + $0x6d8] sm:$0xff]
  %v319 = vld [vmem:[%s1 + $0x6e0] sm:$0xff]
  %v320 = vld [vmem:[%s1 + $0x6e8] sm:$0xff]
  %v321 = vld [vmem:[%s1 + $0x6f0] sm:$0xff]
  %v322 = vld [vmem:[%s1 + $0x6f8] sm:$0xff]
  %v323 = vld [vmem:[%s1 + $0x700] sm:$0xff]
  %v324 = vld [vmem:[%s1 + $0x708] sm:$0xff]
  %v325 = vld [vmem:[%s1 + $0x710] sm:$0xff]
  %v326 = vld [vmem:[%s1 + $0x718] sm:$0xff]
  %v327 = vld [vmem:[%s1 + $0x720] sm:$0xff]
  %v328 = vld [vmem:[%s1 + $0x728] sm:$0xff]
  %v329 = vld [vmem:[%s1 + $0x730] sm:$0xff]
  %v330 = vld [vmem:[%s1 + $0x738] sm:$0xff]
  %v331 = vld [vmem:[%s1 + $0x740] sm:$0xff]
  %v332 = vld [vmem:[%s1 + $0x748] sm:$0xff]
  %v333 = vld [vmem:[%s1 + $0x750] sm:$0xff]
  %v334 = vld [vmem:[%s1 + $0x758] sm:$0xff]
  %v335 = vld [vmem:[%s1 + $0x760] sm:$0xff]
  %v336 = vld [vmem:[%s1 + $0x768] sm:$0xff]
  %v337 = vld [vmem:[%s1 + $0x770] sm:$0xff]
  %v338 = vld [vmem:[%s1 + $0x778] sm:$0xff]
  %v339 = vld [vmem:[%s1 + $0x780] sm:$0xff]
  %v340 = vld [vmem:[%s1 + $0x788] sm:$0xff]
  %v341 = vld [vmem:[%s1 + $0x790] sm:$0xff]
  %v342 = vld [vmem:[%s1 + $0x798] sm:$0xff]
  %v343 = vld [vmem:[%s1 + $0x7a0] sm:$0xff]
  %v344 = vld [vmem:[%s1 + $0x7a8] sm:$0xff]
  %v345 = vld [vmem:[%s1 + $0x7b0] sm:$0xff]
  %v346 = vld [vmem:[%s1 + $0x7b8] sm:$0xff]
  %v347 = vld [vmem:[%s1 + $0x7c0] sm:$0xff]
  %v348 = vld [vmem:[%s1 + $0x7c8] sm:$0xff]
  %v349 = vld [vmem:[%s1 + $0x7d0] sm:$0xff]
  %v350 = vld [vmem:[%s1 + $0x7d8] sm:$0xff]
  %v351 = vld [vmem:[%s1 + $0x7e0] sm:$0xff]
  %v352 = vld [vmem:[%s1 + $0x7e8] sm:$0xff]
  %v353 = vld [vmem:[%s1 + $0x7f0] sm:$0xff]
  %v354 = vld [vmem:[%s1 + $0x7f8] sm:$0xff]
  %v355 = vld [vmem:[%s1 + $0x800] sm:$0xff]
  %v356 = vld [vmem:[%s1 + $0x808] sm:$0xff]
  %v357 = vld [vmem:[%s1 + $0x810] sm:$0xff]
  %v358 = vld [vmem:[%s1 + $0x818] sm:$0xff]
  %v359 = vld [vmem:[%s1 + $0x820] sm:$0xff]
  %v360 = vld [vmem:[%s1 + $0x828] sm:$0xff]
  %v361 = vld [vmem:[%s1 + $0x830] sm:$0xff]
  %v362 = vld [vmem:[%s1 + $0x838] sm:$0xff]
  %v363 = vld [vmem:[%s1 + $0x840] sm:$0xff]
  %v364 = vld [vmem:[%s1 + $0x848] sm:$0xff]
  %v365 = vld [vmem:[%s1 + $0x850] sm:$0xff]
  %v366 = vld [vmem:[%s1 + $0x858] sm:$0xff]
  %v367 = vld [vmem:[%s1 + $0x860] sm:$0xff]
  %v368 = vld [vmem:[%s1 + $0x868] sm:$0xff]
  %v369 = vld [vmem:[%s1 + $0x870] sm:$0xff]
  %v370 = vld [vmem:[%s1 + $0x878] sm:$0xff]
  %v371 = vld [vmem:[%s1 + $0x880] sm:$0xff]
  %v372 = vld [vmem:[%s1 + $0x888] sm:$0xff]
  %v373 = vld [vmem:[%s1 + $0x890] sm:$0xff]
  %v374 = vld [vmem:[%s1 + $0x898] sm:$0xff]
  %v375 = vld [vmem:[%s1 + $0x8a0] sm:$0xff]
  %v376 = vld [vmem:[%s1 + $0x8a8] sm:$0xff]
  %v377 = vld [vmem:[%s1 + $0x8b0] sm:$0xff]
  %v378 = vld [vmem:[%s1 + $0x8b8] sm:$0xff]
  %v379 = vld [vmem:[%s1 + $0x8c0] sm:$0xff]
  %v380 = vld [vmem:[%s1 + $0x8c8] sm:$0xff]
  %v381 = vld [vmem:[%s1 + $0x8d0] sm:$0xff]
  %v382 = vld [vmem:[%s1 + $0x8d8] sm:$0xff]
  %v383 = vld [vmem:[%s1 + $0x8e0] sm:$0xff]
  %v384 = vld [vmem:[%s1 + $0x8e8] sm:$0xff]
  %v385 = vld [vmem:[%s1 + $0x8f0] sm:$0xff]
  %v386 = vld [vmem:[%s1 + $0x8f8] sm:$0xff]
  %v387 = vld [vmem:[%s1 + $0x900] sm:$0xff]
  %v388 = vld [vmem:[%s1 + $0x908] sm:$0xff]
  %v389 = vld [vmem:[%s1 + $0x910] sm:$0xff]
  %v390 = vld [vmem:[%s1 + $0x918] sm:$0xff]
  %v391 = vld [vmem:[%s1 + $0x920] sm:$0xff]
  %v392 = vld [vmem:[%s1 + $0x928] sm:$0xff]
  %v393 = vld [vmem:[%s1 + $0x930] sm:$0xff]
  %v394 = vld [vmem:[%s1 + $0x938] sm:$0xff]
  %v395 = vld [vmem:[%s1 + $0x940] sm:$0xff]
  %v396 = vld [vmem:[%s1 + $0x948] sm:$0xff]
  %v397 = vld [vmem:[%s1 + $0x950] sm:$0xff]
  %v398 = vld [vmem:[%s1 + $0x958] sm:$0xff]
  %v399 = vld [vmem:[%s1 + $0x960] sm:$0xff]
  %v400 = vld [vmem:[%s1 + $0x968] sm:$0xff]
  %v401 = vld [vmem:[%s1 + $0x970] sm:$0xff]
  %v402 = vld [vmem:[%s1 + $0x978] sm:$0xff]
  %v403 = vld [vmem:[%s1 + $0x980] sm:$0xff]
  %v404 = vld [vmem:[%s1 + $0x988] sm:$0xff]
  %v405 = vld [vmem:[%s1 + $0x990] sm:$0xff]
  %v406 = vld [vmem:[%s1 + $0x998] sm:$0xff]
  %v407 = vld [vmem:[%s1 + $0x9a0] sm:$0xff]
  %v408 = vld [vmem:[%s1 + $0x9a8] sm:$0xff]
  %v409 = vld [vmem:[%s1 + $0x9b0] sm:$0xff]
  %v410 = vld [vmem:[%s1 + $0x9b8] sm:$0xff]
  %v411 = vld [vmem:[%s1 + $0x9c0] sm:$0xff]
  %v412 = vld [vmem:[%s1 + $0x9c8] sm:$0xff]
  %v413 = vld [vmem:[%s1 + $0x9d0] sm:$0xff]
  %v414 = vld [vmem:[%s1 + $0x9d8] sm:$0xff]
  %v415 = vld [vmem:[%s1 + $0x9e0] sm:$0xff]
  %v416 = vld [vmem:[%s1 + $0x9e8] sm:$0xff]
  %v417 = vld [vmem:[%s1 + $0x9f0] sm:$0xff]
  %v418 = vld [vmem:[%s1 + $0x9f8] sm:$0xff]
  %v419 = vld [vmem:[%s1 + $0xa00] sm:$0xff]
  %v420 = vld [vmem:[%s1 + $0xa08] sm:$0xff]
  %v421 = vld [vmem:[%s1 + $0xa10] sm:$0xff]
  %v422 = vld [vmem:[%s1 + $0xa18] sm:$0xff]
  %v423 = vld [vmem:[%s1 + $0xa20] sm:$0xff]
  %v424 = vld [vmem:[%s1 + $0xa28] sm:$0xff]
  %v425 = vld [vmem:[%s1 + $0xa30] sm:$0xff]
  %v426 = vld [vmem:[%s1 + $0xa38] sm:$0xff]
  %v427 = vld [vmem:[%s1 + $0xa40] sm:$0xff]
  %v428 = vld [vmem:[%s1 + $0xa48] sm:$0xff]
  %v429 = vld [vmem:[%s1 + $0xa50] sm:$0xff]
  %v430 = vld [vmem:[%s1 + $0xa58] sm:$0xff]
  %v431 = vld [vmem:[%s1 + $0xa60] sm:$0xff]
  %v432 = vld [vmem:[%s1 + $0xa68] sm:$0xff]
  %v433 = vld [vmem:[%s1 + $0xa70] sm:$0xff]
  %v434 = vld [vmem:[%s1 + $0xa78] sm:$0xff]
  %v435 = vld [vmem:[%s1 + $0xa80] sm:$0xff]
  %v436 = vld [vmem:[%s1 + $0xa88] sm:$0xff]
  %v437 = vld [vmem:[%s1 + $0xa90] sm:$0xff]
  %v438 = vld [vmem:[%s1 + $0xa98] sm:$0xff]
  %v439 = vld [vmem:[%s1 + $0xaa0] sm:$0xff]
  %v440 = vld [vmem:[%s1 + $0xaa8] sm:$0xff]
  %v441 = vld [vmem:[%s1 + $0xab0] sm:$0xff]
  %v442 = vld [vmem:[%s1 + $0xab8] sm:$0xff]
  %v443 = vld [vmem:[%s1 + $0xac0] sm:$0xff]
  %v444 = vld [vmem:[%s1 + $0xac8] sm:$0xff]
  %v445 = vld [vmem:[%s1 + $0xad0] sm:$0xff]
  %v446 = vld [vmem:[%s1 + $0xad8] sm:$0xff]
  %v447 = vld [vmem:[%s1 + $0xae0] sm:$0xff]
  %v448 = vld [vmem:[%s1 + $0xae8] sm:$0xff]
  %v449 = vld [vmem:[%s1 + $0xaf0] sm:$0xff]
  %v450 = vld [vmem:[%s1 + $0xaf8] sm:$0xff]
  %v451 = vld [vmem:[%s1 + $0xb00] sm:$0xff]
  %v452 = vld [vmem:[%s1 + $0xb08] sm:$0xff]
  %v453 = vld [vmem:[%s1 + $0xb10] sm:$0xff]
  %v454 = vld [vmem:[%s1 + $0xb18] sm:$0xff]
  %v455 = vld [vmem:[%s1 + $0xb20] sm:$0xff]
  %v456 = vld [vmem:[%s1 + $0xb28] sm:$0xff]
  %v457 = vld [vmem:[%s1 + $0xb30] sm:$0xff]
  %v458 = vld [vmem:[%s1 + $0xb38] sm:$0xff]
  %v459 = vld [vmem:[%s1 + $0xb40] sm:$0xff]
  %v460 = vld [vmem:[%s1 + $0xb48] sm:$0xff]
  %v461 = vld [vmem:[%s1 + $0xb50] sm:$0xff]
  %v462 = vld [vmem:[%s1 + $0xb58] sm:$0xff]
  %v463 = vld [vmem:[%s1 + $0xb60] sm:$0xff]
  %v464 = vld [vmem:[%s1 + $0xb68] sm:$0xff]
  %v465 = vld [vmem:[%s1 + $0xb70] sm:$0xff]
  %v466 = vld [vmem:[%s1 + $0xb78] sm:$0xff]
  %v467 = vld [vmem:[%s1 + $0xb80] sm:$0xff]
  %v468 = vld [vmem:[%s1 + $0xb88] sm:$0xff]
  %v469 = vld [vmem:[%s1 + $0xb90] sm:$0xff]
  %v470 = vld [vmem:[%s1 + $0xb98] sm:$0xff]
  %v471 = vld [vmem:[%s1 + $0xba0] sm:$0xff]
  %v472 = vld [vmem:[%s1 + $0xba8] sm:$0xff]
  %v473 = vld [vmem:[%s1 + $0xbb0] sm:$0xff]
  %v474 = vld [vmem:[%s1 + $0xbb8] sm:$0xff]
  %v475 = vld [vmem:[%s1 + $0xbc0] sm:$0xff]
  %v476 = vld [vmem:[%s1 + $0xbc8] sm:$0xff]
  %v477 = vld [vmem:[%s1 + $0xbd0] sm:$0xff]
  %v478 = vld [vmem:[%s1 + $0xbd8] sm:$0xff]
  %v479 = vld [vmem:[%s1 + $0xbe0] sm:$0xff]
  %v480 = vld [vmem:[%s1 + $0xbe8] sm:$0xff]
  %v481 = vld [vmem:[%s1 + $0xbf0] sm:$0xff]
  %v482 = vld [vmem:[%s1 + $0xbf8] sm:$0xff]
  %v483 = vld [vmem:[%s1 + $0xc00] sm:$0xff]
  %v484 = vld [vmem:[%s1 + $0xc08] sm:$0xff]
  %v485 = vld [vmem:[%s1 + $0xc10] sm:$0xff]
  %v486 = vld [vmem:[%s1 + $0xc18] sm:$0xff]
  %v487 = vld [vmem:[%s1 + $0xc20] sm:$0xff]
  %v488 = vld [vmem:[%s1 + $0xc28] sm:$0xff]
  %v489 = vld [vmem:[%s1 + $0xc30] sm:$0xff]
  %v490 = vld [vmem:[%s1 + $0xc38] sm:$0xff]
  %v491 = vld [vmem:[%s1 + $0xc40] sm:$0xff]
  %v492 = vld [vmem:[%s1 + $0xc48] sm:$0xff]
  %v493 = vld [vmem:[%s1 + $0xc50] sm:$0xff]
  %v494 = vld [vmem:[%s1 + $0xc58] sm:$0xff]
  %v495 = vld [vmem:[%s1 + $0xc60] sm:$0xff]
  %v496 = vld [vmem:[%s1 + $0xc68] sm:$0xff]
  %v497 = vld [vmem:[%s1 + $0xc70] sm:$0xff]
  %v498 = vld [vmem:[%s1 + $0xc78] sm:$0xff]
  %v499 = vld [vmem:[%s1 + $0xc80] sm:$0xff]
  %v500 = vld [vmem:[%s1 + $0xc88] sm:$0xff]
  %v501 = vld [vmem:[%s1 + $0xc90] sm:$0xff]
  %v502 = vld [vmem:[%s1 + $0xc98] sm:$0xff]
  %v503 = vld [vmem:[%s1 + $0xca0] sm:$0xff]
  %v504 = vld [vmem:[%s1 + $0xca8] sm:$0xff]
  %v505 = vld [vmem:[%s1 + $0xcb0] sm:$0xff]
  %v506 = vld [vmem:[%s1 + $0xcb8] sm:$0xff]
  %v507 = vld [vmem:[%s1 + $0xcc0] sm:$0xff]
  %v508 = vld [vmem:[%s1 + $0xcc8] sm:$0xff]
  %v509 = vld [vmem:[%s1 + $0xcd0] sm:$0xff]
  %v510 = vld [vmem:[%s1 + $0xcd8] sm:$0xff]
  %v511 = vld [vmem:[%s1 + $0xce0] sm:$0xff]
  %v512 = vld [vmem:[%s1 + $0xce8] sm:$0xff]
  %v513 = vld [vmem:[%s1 + $0xcf0] sm:$0xff]
  %v514 = vld [vmem:[%s1 + $0xcf8] sm:$0xff]
  %v515 = vld [vmem:[%s1 + $0xd00] sm:$0xff]
  %v516 = vld [vmem:[%s1 + $0xd08] sm:$0xff]
  %v517 = vld [vmem:[%s1 + $0xd10] sm:$0xff]
  %v518 = vld [vmem:[%s1 + $0xd18] sm:$0xff]
  %v519 = vld [vmem:[%s1 + $0xd20] sm:$0xff]
  %v520 = vld [vmem:[%s1 + $0xd28] sm:$0xff]
  %v521 = vld [vmem:[%s1 + $0xd30] sm:$0xff]
  %v522 = vld [vmem:[%s1 + $0xd38] sm:$0xff]
  %v523 = vld [vmem:[%s1 + $0xd40] sm:$0xff]
  %v524 = vld [vmem:[%s1 + $0xd48] sm:$0xff]
  %v525 = vld [vmem:[%s1 + $0xd50] sm:$0xff]
  %v526 = vld [vmem:[%s1 + $0xd58] sm:$0xff]
  %v527 = vld [vmem:[%s1 + $0xd60] sm:$0xff]
  %v528 = vld [vmem:[%s1 + $0xd68] sm:$0xff]
  %v529 = vld [vmem:[%s1 + $0xd70] sm:$0xff]
  %v530 = vld [vmem:[%s1 + $0xd78] sm:$0xff]
  %v531 = vld [vmem:[%s1 + $0xd80] sm:$0xff]
  %v532 = vld [vmem:[%s1 + $0xd88] sm:$0xff]
  %v533 = vld [vmem:[%s1 + $0xd90] sm:$0xff]
  %v534 = vld [vmem:[%s1 + $0xd98] sm:$0xff]
  %v535 = vld [vmem:[%s1 + $0xda0] sm:$0xff]
  %v536 = vld [vmem:[%s1 + $0xda8] sm:$0xff]
  %v537 = vld [vmem:[%s1 + $0xdb0] sm:$0xff]
  %v538 = vld [vmem:[%s1 + $0xdb8] sm:$0xff]
  %v539 = vld [vmem:[%s1 + $0xdc0] sm:$0xff]
  %v540 = vld [vmem:[%s1 + $0xdc8] sm:$0xff]
  %v541 = vld [vmem:[%s1 + $0xdd0] sm:$0xff]
  %v542 = vld [vmem:[%s1 + $0xdd8] sm:$0xff]
  %v543 = vld [vmem:[%s1 + $0xde0] sm:$0xff]
  %v544 = vld [vmem:[%s1 + $0xde8] sm:$0xff]
  %v545 = vld [vmem:[%s1 + $0xdf0] sm:$0xff]
  %v546 = vld [vmem:[%s1 + $0xdf8] sm:$0xff]
  %v547 = vld [vmem:[%s1 + $0xe00] sm:$0xff]
  %v548 = vld [vmem:[%s1 + $0xe08] sm:$0xff]
  %v549 = vld [vmem:[%s1 + $0xe10] sm:$0xff]
  %v550 = vld [vmem:[%s1 + $0xe18] sm:$0xff]
  %v551 = vld [vmem:[%s1 + $0xe20] sm:$0xff]
  %v552 = vld [vmem:[%s1 + $0xe28] sm:$0xff]
  %v553 = vld [vmem:[%s1 + $0xe30] sm:$0xff]
  %v554 = vld [vmem:[%s1 + $0xe38] sm:$0xff]
  %v555 = vld [vmem:[%s1 + $0xe40] sm:$0xff]
  %v556 = vld [vmem:[%s1 + $0xe48] sm:$0xff]
  %v557 = vld [vmem:[%s1 + $0xe50] sm:$0xff]
  %v558 = vld [vmem:[%s1 + $0xe58] sm:$0xff]
  %v559 = vld [vmem:[%s1 + $0xe60] sm:$0xff]
  %v560 = vld [vmem:[%s1 + $0xe68] sm:$0xff]
  %v561 = vld [vmem:[%s1 + $0xe70] sm:$0xff]
  %v562 = vld [vmem:[%s1 + $0xe78] sm:$0xff]
  %v563 = vld [vmem:[%s1 + $0xe80] sm:$0xff]
  %v564 = vld [vmem:[%s1 + $0xe88] sm:$0xff]
  %v565 = vld [vmem:[%s1 + $0xe90] sm:$0xff]
  %v566 = vld [vmem:[%s1 + $0xe98] sm:$0xff]
  %v567 = vld [vmem:[%s1 + $0xea0] sm:$0xff]
  %v568 = vld [vmem:[%s1 + $0xea8] sm:$0xff]
  %v569 = vld [vmem:[%s1 + $0xeb0] sm:$0xff]
  %v570 = vld [vmem:[%s1 + $0xeb8] sm:$0xff]
  %v571 = vld [vmem:[%s1 + $0xec0] sm:$0xff]
  %v572 = vld [vmem:[%s1 + $0xec8] sm:$0xff]
  %v573 = vld [vmem:[%s1 + $0xed0] sm:$0xff]
  %v574 = vld [vmem:[%s1 + $0xed8] sm:$0xff]
  %v575 = vld [vmem:[%s1 + $0xee0] sm:$0xff]
  %v576 = vld [vmem:[%s1 + $0xee8] sm:$0xff]
  %v577 = vld [vmem:[%s1 + $0xef0] sm:$0xff]
  %v578 = vld [vmem:[%s1 + $0xef8] sm:$0xff]
  %v579 = vld [vmem:[%s1 + $0xf00] sm:$0xff]
  %v580 = vld [vmem:[%s1 + $0xf08] sm:$0xff]
  %v581 = vld [vmem:[%s1 + $0xf10] sm:$0xff]
  %v582 = vld [vmem:[%s1 + $0xf18] sm:$0xff]
  %v583 = vld [vmem:[%s1 + $0xf20] sm:$0xff]
  %v584 = vld [vmem:[%s1 + $0xf28] sm:$0xff]
  %v585 = vld [vmem:[%s1 + $0xf30] sm:$0xff]
  %v586 = vld [vmem:[%s1 + $0xf38] sm:$0xff]
  %v587 = vld [vmem:[%s1 + $0xf40] sm:$0xff]
  %v588 = vld [vmem:[%s1 + $0xf48] sm:$0xff]
  %v589 = vld [vmem:[%s1 + $0xf50] sm:$0xff]
  %v590 = vld [vmem:[%s1 + $0xf58] sm:$0xff]
  %v591 = vld [vmem:[%s1 + $0xf60] sm:$0xff]
  %v592 = vld [vmem:[%s1 + $0xf68] sm:$0xff]
  %v593 = vld [vmem:[%s1 + $0xf70] sm:$0xff]
  %v594 = vld [vmem:[%s1 + $0xf78] sm:$0xff]
  %v595 = vld [vmem:[%s1 + $0xf80] sm:$0xff]
  %v596 = vld [vmem:[%s1 + $0xf88] sm:$0xff]
  %v597 = vld [vmem:[%s1 + $0xf90] sm:$0xff]
  %v598 = vld [vmem:[%s1 + $0xf98] sm:$0xff]
  %v599 = vld [vmem:[%s1 + $0xfa0] sm:$0xff]
  %v600 = vld [vmem:[%s1 + $0xfa8] sm:$0xff]
  %v601 = vld [vmem:[%s1 + $0xfb0] sm:$0xff]
  %v602 = vld [vmem:[%s1 + $0xfb8] sm:$0xff]
  %v603 = vld [vmem:[%s1 + $0xfc0] sm:$0xff]
  %v604 = vld [vmem:[%s1 + $0xfc8] sm:$0xff]
  %v605 = vld [vmem:[%s1 + $0xfd0] sm:$0xff]
  %v606 = vld [vmem:[%s1 + $0xfd8] sm:$0xff]
  %v607 = vld [vmem:[%s1 + $0xfe0] sm:$0xff]
  %v608 = vld [vmem:[%s1 + $0xfe8] sm:$0xff]
  %v609 = vld [vmem:[%s1 + $0xff0] sm:$0xff]
  %v610 = vld [vmem:[%s1 + $0xff8] sm:$0xff]
  %v611 = vld [vmem:[%s2] sm:$0xff]
  %v613 = vlaneseq
  %v614 = vshrl.u32 %v613, 7
  %v615 = vsub.s32 0, %v614
  %v616 = vrot.slane %v611, %v615
  %v617 = vlaneseq
  %v618 = vshrl.u32 %v617, 7
  %v619 = vsub.s32 1, %v618
  %v620 = vrot.slane %v611, %v619
  %v621 = vlaneseq
  %v622 = vshrl.u32 %v621, 7
  %v623 = vsub.s32 2, %v622
  %v624 = vrot.slane %v611, %v623
  %v625 = vlaneseq
  %v626 = vshrl.u32 %v625, 7
  %v627 = vsub.s32 3, %v626
  %v628 = vrot.slane %v611, %v627
  %v629 = vlaneseq
  %v630 = vshrl.u32 %v629, 7
  %v631 = vsub.s32 4, %v630
  %v632 = vrot.slane %v611, %v631
  %v633 = vlaneseq
  %v634 = vshrl.u32 %v633, 7
  %v635 = vsub.s32 5, %v634
  %v636 = vrot.slane %v611, %v635
  %v637 = vlaneseq
  %v638 = vshrl.u32 %v637, 7
  %v639 = vsub.s32 6, %v638
  %v640 = vrot.slane %v611, %v639
  %v641 = vlaneseq
  %v642 = vshrl.u32 %v641, 7
  %v643 = vsub.s32 7, %v642
  %v644 = vrot.slane %v611, %v643
  %v669 = vunpack.c.l.b16 %v83
  %v670 = vunpack.c.h.b16 %v83
  %v671 = vunpack.c.l.b16 %v84
  %v672 = vunpack.c.h.b16 %v84
  %v673 = vunpack.c.l.b16 %v85
  %v674 = vunpack.c.h.b16 %v85
  %v675 = vunpack.c.l.b16 %v86
  %v676 = vunpack.c.h.b16 %v86
  %v677 = vunpack.c.l.b16 %v87
  %v678 = vunpack.c.h.b16 %v87
  %v679 = vunpack.c.l.b16 %v88
  %v680 = vunpack.c.h.b16 %v88
  %v681 = vunpack.c.l.b16 %v89
  %v682 = vunpack.c.h.b16 %v89
  %v683 = vunpack.c.l.b16 %v90
  %v684 = vunpack.c.h.b16 %v90
  %v685 = vunpack.c.l.b16 %v91
  %v686 = vunpack.c.h.b16 %v91
  %v687 = vunpack.c.l.b16 %v92
  %v688 = vunpack.c.h.b16 %v92
  %v689 = vunpack.c.l.b16 %v93
  %v690 = vunpack.c.h.b16 %v93
  %v691 = vunpack.c.l.b16 %v94
  %v692 = vunpack.c.h.b16 %v94
  %v693 = vunpack.c.l.b16 %v95
  %v694 = vunpack.c.h.b16 %v95
  %v695 = vunpack.c.l.b16 %v96
  %v696 = vunpack.c.h.b16 %v96
  %v697 = vunpack.c.l.b16 %v97
  %v698 = vunpack.c.h.b16 %v97
  %v699 = vunpack.c.l.b16 %v98
  %v700 = vunpack.c.h.b16 %v98
  %v701 = vpack.c.b16 %v677, %v669
  %v702 = vpack.c.b16 %v678, %v670
  %v703 = vpack.c.b16 %v679, %v671
  %v704 = vpack.c.b16 %v680, %v672
  %v705 = vpack.c.b16 %v681, %v673
  %v706 = vpack.c.b16 %v682, %v674
  %v707 = vpack.c.b16 %v683, %v675
  %v708 = vpack.c.b16 %v684, %v676
  %v709 = vpack.c.b16 %v693, %v685
  %v710 = vpack.c.b16 %v694, %v686
  %v711 = vpack.c.b16 %v695, %v687
  %v712 = vpack.c.b16 %v696, %v688
  %v713 = vpack.c.b16 %v697, %v689
  %v714 = vpack.c.b16 %v698, %v690
  %v715 = vpack.c.b16 %v699, %v691
  %v716 = vpack.c.b16 %v700, %v692
  %v1245 = vunpack.c.l.b16 %v99
  %v1246 = vunpack.c.h.b16 %v99
  %v1247 = vunpack.c.l.b16 %v100
  %v1248 = vunpack.c.h.b16 %v100
  %v1249 = vunpack.c.l.b16 %v101
  %v1250 = vunpack.c.h.b16 %v101
  %v1251 = vunpack.c.l.b16 %v102
  %v1252 = vunpack.c.h.b16 %v102
  %v1253 = vunpack.c.l.b16 %v103
  %v1254 = vunpack.c.h.b16 %v103
  %v1255 = vunpack.c.l.b16 %v104
  %v1256 = vunpack.c.h.b16 %v104
  %v1257 = vunpack.c.l.b16 %v105
  %v1258 = vunpack.c.h.b16 %v105
  %v1259 = vunpack.c.l.b16 %v106
  %v1260 = vunpack.c.h.b16 %v106
  %v1261 = vunpack.c.l.b16 %v107
  %v1262 = vunpack.c.h.b16 %v107
  %v1263 = vunpack.c.l.b16 %v108
  %v1264 = vunpack.c.h.b16 %v108
  %v1265 = vunpack.c.l.b16 %v109
  %v1266 = vunpack.c.h.b16 %v109
  %v1267 = vunpack.c.l.b16 %v110
  %v1268 = vunpack.c.h.b16 %v110
  %v1269 = vunpack.c.l.b16 %v111
  %v1270 = vunpack.c.h.b16 %v111
  %v1271 = vunpack.c.l.b16 %v112
  %v1272 = vunpack.c.h.b16 %v112
  %v1273 = vunpack.c.l.b16 %v113
  %v1274 = vunpack.c.h.b16 %v113
  %v1275 = vunpack.c.l.b16 %v114
  %v1276 = vunpack.c.h.b16 %v114
  %v1277 = vunpack.c.l.b16 %v115
  %v1278 = vunpack.c.h.b16 %v115
  %v1279 = vunpack.c.l.b16 %v116
  %v1280 = vunpack.c.h.b16 %v116
  %v1281 = vunpack.c.l.b16 %v117
  %v1282 = vunpack.c.h.b16 %v117
  %v1283 = vunpack.c.l.b16 %v118
  %v1284 = vunpack.c.h.b16 %v118
  %v1285 = vunpack.c.l.b16 %v119
  %v1286 = vunpack.c.h.b16 %v119
  %v1287 = vunpack.c.l.b16 %v120
  %v1288 = vunpack.c.h.b16 %v120
  %v1289 = vunpack.c.l.b16 %v121
  %v1290 = vunpack.c.h.b16 %v121
  %v1291 = vunpack.c.l.b16 %v122
  %v1292 = vunpack.c.h.b16 %v122
  %v1293 = vunpack.c.l.b16 %v123
  %v1294 = vunpack.c.h.b16 %v123
  %v1295 = vunpack.c.l.b16 %v124
  %v1296 = vunpack.c.h.b16 %v124
  %v1297 = vunpack.c.l.b16 %v125
  %v1298 = vunpack.c.h.b16 %v125
  %v1299 = vunpack.c.l.b16 %v126
  %v1300 = vunpack.c.h.b16 %v126
  %v1301 = vunpack.c.l.b16 %v127
  %v1302 = vunpack.c.h.b16 %v127
  %v1303 = vunpack.c.l.b16 %v128
  %v1304 = vunpack.c.h.b16 %v128
  %v1305 = vunpack.c.l.b16 %v129
  %v1306 = vunpack.c.h.b16 %v129
  %v1307 = vunpack.c.l.b16 %v130
  %v1308 = vunpack.c.h.b16 %v130
  %v1309 = vunpack.c.l.b16 %v131
  %v1310 = vunpack.c.h.b16 %v131
  %v1311 = vunpack.c.l.b16 %v132
  %v1312 = vunpack.c.h.b16 %v132
  %v1313 = vunpack.c.l.b16 %v133
  %v1314 = vunpack.c.h.b16 %v133
  %v1315 = vunpack.c.l.b16 %v134
  %v1316 = vunpack.c.h.b16 %v134
  %v1317 = vunpack.c.l.b16 %v135
  %v1318 = vunpack.c.h.b16 %v135
  %v1319 = vunpack.c.l.b16 %v136
  %v1320 = vunpack.c.h.b16 %v136
  %v1321 = vunpack.c.l.b16 %v137
  %v1322 = vunpack.c.h.b16 %v137
  %v1323 = vunpack.c.l.b16 %v138
  %v1324 = vunpack.c.h.b16 %v138
  %v1325 = vunpack.c.l.b16 %v139
  %v1326 = vunpack.c.h.b16 %v139
  %v1327 = vunpack.c.l.b16 %v140
  %v1328 = vunpack.c.h.b16 %v140
  %v1329 = vunpack.c.l.b16 %v141
  %v1330 = vunpack.c.h.b16 %v141
  %v1331 = vunpack.c.l.b16 %v142
  %v1332 = vunpack.c.h.b16 %v142
  %v1333 = vunpack.c.l.b16 %v143
  %v1334 = vunpack.c.h.b16 %v143
  %v1335 = vunpack.c.l.b16 %v144
  %v1336 = vunpack.c.h.b16 %v144
  %v1337 = vunpack.c.l.b16 %v145
  %v1338 = vunpack.c.h.b16 %v145
  %v1339 = vunpack.c.l.b16 %v146
  %v1340 = vunpack.c.h.b16 %v146
  %v1341 = vunpack.c.l.b16 %v147
  %v1342 = vunpack.c.h.b16 %v147
  %v1343 = vunpack.c.l.b16 %v148
  %v1344 = vunpack.c.h.b16 %v148
  %v1345 = vunpack.c.l.b16 %v149
  %v1346 = vunpack.c.h.b16 %v149
  %v1347 = vunpack.c.l.b16 %v150
  %v1348 = vunpack.c.h.b16 %v150
  %v1349 = vunpack.c.l.b16 %v151
  %v1350 = vunpack.c.h.b16 %v151
  %v1351 = vunpack.c.l.b16 %v152
  %v1352 = vunpack.c.h.b16 %v152
  %v1353 = vunpack.c.l.b16 %v153
  %v1354 = vunpack.c.h.b16 %v153
  %v1355 = vunpack.c.l.b16 %v154
  %v1356 = vunpack.c.h.b16 %v154
  %v1357 = vunpack.c.l.b16 %v155
  %v1358 = vunpack.c.h.b16 %v155
  %v1359 = vunpack.c.l.b16 %v156
  %v1360 = vunpack.c.h.b16 %v156
  %v1361 = vunpack.c.l.b16 %v157
  %v1362 = vunpack.c.h.b16 %v157
  %v1363 = vunpack.c.l.b16 %v158
  %v1364 = vunpack.c.h.b16 %v158
  %v1365 = vunpack.c.l.b16 %v159
  %v1366 = vunpack.c.h.b16 %v159
  %v1367 = vunpack.c.l.b16 %v160
  %v1368 = vunpack.c.h.b16 %v160
  %v1369 = vunpack.c.l.b16 %v161
  %v1370 = vunpack.c.h.b16 %v161
  %v1371 = vunpack.c.l.b16 %v162
  %v1372 = vunpack.c.h.b16 %v162
  %v1373 = vunpack.c.l.b16 %v163
  %v1374 = vunpack.c.h.b16 %v163
  %v1375 = vunpack.c.l.b16 %v164
  %v1376 = vunpack.c.h.b16 %v164
  %v1377 = vunpack.c.l.b16 %v165
  %v1378 = vunpack.c.h.b16 %v165
  %v1379 = vunpack.c.l.b16 %v166
  %v1380 = vunpack.c.h.b16 %v166
  %v1381 = vunpack.c.l.b16 %v167
  %v1382 = vunpack.c.h.b16 %v167
  %v1383 = vunpack.c.l.b16 %v168
  %v1384 = vunpack.c.h.b16 %v168
  %v1385 = vunpack.c.l.b16 %v169
  %v1386 = vunpack.c.h.b16 %v169
  %v1387 = vunpack.c.l.b16 %v170
  %v1388 = vunpack.c.h.b16 %v170
  %v1389 = vunpack.c.l.b16 %v171
  %v1390 = vunpack.c.h.b16 %v171
  %v1391 = vunpack.c.l.b16 %v172
  %v1392 = vunpack.c.h.b16 %v172
  %v1393 = vunpack.c.l.b16 %v173
  %v1394 = vunpack.c.h.b16 %v173
  %v1395 = vunpack.c.l.b16 %v174
  %v1396 = vunpack.c.h.b16 %v174
  %v1397 = vunpack.c.l.b16 %v175
  %v1398 = vunpack.c.h.b16 %v175
  %v1399 = vunpack.c.l.b16 %v176
  %v1400 = vunpack.c.h.b16 %v176
  %v1401 = vunpack.c.l.b16 %v177
  %v1402 = vunpack.c.h.b16 %v177
  %v1403 = vunpack.c.l.b16 %v178
  %v1404 = vunpack.c.h.b16 %v178
  %v1405 = vunpack.c.l.b16 %v179
  %v1406 = vunpack.c.h.b16 %v179
  %v1407 = vunpack.c.l.b16 %v180
  %v1408 = vunpack.c.h.b16 %v180
  %v1409 = vunpack.c.l.b16 %v181
  %v1410 = vunpack.c.h.b16 %v181
  %v1411 = vunpack.c.l.b16 %v182
  %v1412 = vunpack.c.h.b16 %v182
  %v1413 = vunpack.c.l.b16 %v183
  %v1414 = vunpack.c.h.b16 %v183
  %v1415 = vunpack.c.l.b16 %v184
  %v1416 = vunpack.c.h.b16 %v184
  %v1417 = vunpack.c.l.b16 %v185
  %v1418 = vunpack.c.h.b16 %v185
  %v1419 = vunpack.c.l.b16 %v186
  %v1420 = vunpack.c.h.b16 %v186
  %v1421 = vunpack.c.l.b16 %v187
  %v1422 = vunpack.c.h.b16 %v187
  %v1423 = vunpack.c.l.b16 %v188
  %v1424 = vunpack.c.h.b16 %v188
  %v1425 = vunpack.c.l.b16 %v189
  %v1426 = vunpack.c.h.b16 %v189
  %v1427 = vunpack.c.l.b16 %v190
  %v1428 = vunpack.c.h.b16 %v190
  %v1429 = vunpack.c.l.b16 %v191
  %v1430 = vunpack.c.h.b16 %v191
  %v1431 = vunpack.c.l.b16 %v192
  %v1432 = vunpack.c.h.b16 %v192
  %v1433 = vunpack.c.l.b16 %v193
  %v1434 = vunpack.c.h.b16 %v193
  %v1435 = vunpack.c.l.b16 %v194
  %v1436 = vunpack.c.h.b16 %v194
  %v1437 = vunpack.c.l.b16 %v195
  %v1438 = vunpack.c.h.b16 %v195
  %v1439 = vunpack.c.l.b16 %v196
  %v1440 = vunpack.c.h.b16 %v196
  %v1441 = vunpack.c.l.b16 %v197
  %v1442 = vunpack.c.h.b16 %v197
  %v1443 = vunpack.c.l.b16 %v198
  %v1444 = vunpack.c.h.b16 %v198
  %v1445 = vunpack.c.l.b16 %v199
  %v1446 = vunpack.c.h.b16 %v199
  %v1447 = vunpack.c.l.b16 %v200
  %v1448 = vunpack.c.h.b16 %v200
  %v1449 = vunpack.c.l.b16 %v201
  %v1450 = vunpack.c.h.b16 %v201
  %v1451 = vunpack.c.l.b16 %v202
  %v1452 = vunpack.c.h.b16 %v202
  %v1453 = vunpack.c.l.b16 %v203
  %v1454 = vunpack.c.h.b16 %v203
  %v1455 = vunpack.c.l.b16 %v204
  %v1456 = vunpack.c.h.b16 %v204
  %v1457 = vunpack.c.l.b16 %v205
  %v1458 = vunpack.c.h.b16 %v205
  %v1459 = vunpack.c.l.b16 %v206
  %v1460 = vunpack.c.h.b16 %v206
  %v1461 = vunpack.c.l.b16 %v207
  %v1462 = vunpack.c.h.b16 %v207
  %v1463 = vunpack.c.l.b16 %v208
  %v1464 = vunpack.c.h.b16 %v208
  %v1465 = vunpack.c.l.b16 %v209
  %v1466 = vunpack.c.h.b16 %v209
  %v1467 = vunpack.c.l.b16 %v210
  %v1468 = vunpack.c.h.b16 %v210
  %v1469 = vunpack.c.l.b16 %v211
  %v1470 = vunpack.c.h.b16 %v211
  %v1471 = vunpack.c.l.b16 %v212
  %v1472 = vunpack.c.h.b16 %v212
  %v1473 = vunpack.c.l.b16 %v213
  %v1474 = vunpack.c.h.b16 %v213
  %v1475 = vunpack.c.l.b16 %v214
  %v1476 = vunpack.c.h.b16 %v214
  %v1477 = vunpack.c.l.b16 %v215
  %v1478 = vunpack.c.h.b16 %v215
  %v1479 = vunpack.c.l.b16 %v216
  %v1480 = vunpack.c.h.b16 %v216
  %v1481 = vunpack.c.l.b16 %v217
  %v1482 = vunpack.c.h.b16 %v217
  %v1483 = vunpack.c.l.b16 %v218
  %v1484 = vunpack.c.h.b16 %v218
  %v1485 = vunpack.c.l.b16 %v219
  %v1486 = vunpack.c.h.b16 %v219
  %v1487 = vunpack.c.l.b16 %v220
  %v1488 = vunpack.c.h.b16 %v220
  %v1489 = vunpack.c.l.b16 %v221
  %v1490 = vunpack.c.h.b16 %v221
  %v1491 = vunpack.c.l.b16 %v222
  %v1492 = vunpack.c.h.b16 %v222
  %v1493 = vunpack.c.l.b16 %v223
  %v1494 = vunpack.c.h.b16 %v223
  %v1495 = vunpack.c.l.b16 %v224
  %v1496 = vunpack.c.h.b16 %v224
  %v1497 = vunpack.c.l.b16 %v225
  %v1498 = vunpack.c.h.b16 %v225
  %v1499 = vunpack.c.l.b16 %v226
  %v1500 = vunpack.c.h.b16 %v226
  %v1501 = vunpack.c.l.b16 %v227
  %v1502 = vunpack.c.h.b16 %v227
  %v1503 = vunpack.c.l.b16 %v228
  %v1504 = vunpack.c.h.b16 %v228
  %v1505 = vunpack.c.l.b16 %v229
  %v1506 = vunpack.c.h.b16 %v229
  %v1507 = vunpack.c.l.b16 %v230
  %v1508 = vunpack.c.h.b16 %v230
  %v1509 = vunpack.c.l.b16 %v231
  %v1510 = vunpack.c.h.b16 %v231
  %v1511 = vunpack.c.l.b16 %v232
  %v1512 = vunpack.c.h.b16 %v232
  %v1513 = vunpack.c.l.b16 %v233
  %v1514 = vunpack.c.h.b16 %v233
  %v1515 = vunpack.c.l.b16 %v234
  %v1516 = vunpack.c.h.b16 %v234
  %v1517 = vunpack.c.l.b16 %v235
  %v1518 = vunpack.c.h.b16 %v235
  %v1519 = vunpack.c.l.b16 %v236
  %v1520 = vunpack.c.h.b16 %v236
  %v1521 = vunpack.c.l.b16 %v237
  %v1522 = vunpack.c.h.b16 %v237
  %v1523 = vunpack.c.l.b16 %v238
  %v1524 = vunpack.c.h.b16 %v238
  %v1525 = vunpack.c.l.b16 %v239
  %v1526 = vunpack.c.h.b16 %v239
  %v1527 = vunpack.c.l.b16 %v240
  %v1528 = vunpack.c.h.b16 %v240
  %v1529 = vunpack.c.l.b16 %v241
  %v1530 = vunpack.c.h.b16 %v241
  %v1531 = vunpack.c.l.b16 %v242
  %v1532 = vunpack.c.h.b16 %v242
  %v1533 = vunpack.c.l.b16 %v243
  %v1534 = vunpack.c.h.b16 %v243
  %v1535 = vunpack.c.l.b16 %v244
  %v1536 = vunpack.c.h.b16 %v244
  %v1537 = vunpack.c.l.b16 %v245
  %v1538 = vunpack.c.h.b16 %v245
  %v1539 = vunpack.c.l.b16 %v246
  %v1540 = vunpack.c.h.b16 %v246
  %v1541 = vunpack.c.l.b16 %v247
  %v1542 = vunpack.c.h.b16 %v247
  %v1543 = vunpack.c.l.b16 %v248
  %v1544 = vunpack.c.h.b16 %v248
  %v1545 = vunpack.c.l.b16 %v249
  %v1546 = vunpack.c.h.b16 %v249
  %v1547 = vunpack.c.l.b16 %v250
  %v1548 = vunpack.c.h.b16 %v250
  %v1549 = vunpack.c.l.b16 %v251
  %v1550 = vunpack.c.h.b16 %v251
  %v1551 = vunpack.c.l.b16 %v252
  %v1552 = vunpack.c.h.b16 %v252
  %v1553 = vunpack.c.l.b16 %v253
  %v1554 = vunpack.c.h.b16 %v253
  %v1555 = vunpack.c.l.b16 %v254
  %v1556 = vunpack.c.h.b16 %v254
  %v1557 = vunpack.c.l.b16 %v255
  %v1558 = vunpack.c.h.b16 %v255
  %v1559 = vunpack.c.l.b16 %v256
  %v1560 = vunpack.c.h.b16 %v256
  %v1561 = vunpack.c.l.b16 %v257
  %v1562 = vunpack.c.h.b16 %v257
  %v1563 = vunpack.c.l.b16 %v258
  %v1564 = vunpack.c.h.b16 %v258
  %v1565 = vunpack.c.l.b16 %v259
  %v1566 = vunpack.c.h.b16 %v259
  %v1567 = vunpack.c.l.b16 %v260
  %v1568 = vunpack.c.h.b16 %v260
  %v1569 = vunpack.c.l.b16 %v261
  %v1570 = vunpack.c.h.b16 %v261
  %v1571 = vunpack.c.l.b16 %v262
  %v1572 = vunpack.c.h.b16 %v262
  %v1573 = vunpack.c.l.b16 %v263
  %v1574 = vunpack.c.h.b16 %v263
  %v1575 = vunpack.c.l.b16 %v264
  %v1576 = vunpack.c.h.b16 %v264
  %v1577 = vunpack.c.l.b16 %v265
  %v1578 = vunpack.c.h.b16 %v265
  %v1579 = vunpack.c.l.b16 %v266
  %v1580 = vunpack.c.h.b16 %v266
  %v1581 = vunpack.c.l.b16 %v267
  %v1582 = vunpack.c.h.b16 %v267
  %v1583 = vunpack.c.l.b16 %v268
  %v1584 = vunpack.c.h.b16 %v268
  %v1585 = vunpack.c.l.b16 %v269
  %v1586 = vunpack.c.h.b16 %v269
  %v1587 = vunpack.c.l.b16 %v270
  %v1588 = vunpack.c.h.b16 %v270
  %v1589 = vunpack.c.l.b16 %v271
  %v1590 = vunpack.c.h.b16 %v271
  %v1591 = vunpack.c.l.b16 %v272
  %v1592 = vunpack.c.h.b16 %v272
  %v1593 = vunpack.c.l.b16 %v273
  %v1594 = vunpack.c.h.b16 %v273
  %v1595 = vunpack.c.l.b16 %v274
  %v1596 = vunpack.c.h.b16 %v274
  %v1597 = vunpack.c.l.b16 %v275
  %v1598 = vunpack.c.h.b16 %v275
  %v1599 = vunpack.c.l.b16 %v276
  %v1600 = vunpack.c.h.b16 %v276
  %v1601 = vunpack.c.l.b16 %v277
  %v1602 = vunpack.c.h.b16 %v277
  %v1603 = vunpack.c.l.b16 %v278
  %v1604 = vunpack.c.h.b16 %v278
  %v1605 = vunpack.c.l.b16 %v279
  %v1606 = vunpack.c.h.b16 %v279
  %v1607 = vunpack.c.l.b16 %v280
  %v1608 = vunpack.c.h.b16 %v280
  %v1609 = vunpack.c.l.b16 %v281
  %v1610 = vunpack.c.h.b16 %v281
  %v1611 = vunpack.c.l.b16 %v282
  %v1612 = vunpack.c.h.b16 %v282
  %v1613 = vunpack.c.l.b16 %v283
  %v1614 = vunpack.c.h.b16 %v283
  %v1615 = vunpack.c.l.b16 %v284
  %v1616 = vunpack.c.h.b16 %v284
  %v1617 = vunpack.c.l.b16 %v285
  %v1618 = vunpack.c.h.b16 %v285
  %v1619 = vunpack.c.l.b16 %v286
  %v1620 = vunpack.c.h.b16 %v286
  %v1621 = vunpack.c.l.b16 %v287
  %v1622 = vunpack.c.h.b16 %v287
  %v1623 = vunpack.c.l.b16 %v288
  %v1624 = vunpack.c.h.b16 %v288
  %v1625 = vunpack.c.l.b16 %v289
  %v1626 = vunpack.c.h.b16 %v289
  %v1627 = vunpack.c.l.b16 %v290
  %v1628 = vunpack.c.h.b16 %v290
  %v1629 = vunpack.c.l.b16 %v291
  %v1630 = vunpack.c.h.b16 %v291
  %v1631 = vunpack.c.l.b16 %v292
  %v1632 = vunpack.c.h.b16 %v292
  %v1633 = vunpack.c.l.b16 %v293
  %v1634 = vunpack.c.h.b16 %v293
  %v1635 = vunpack.c.l.b16 %v294
  %v1636 = vunpack.c.h.b16 %v294
  %v1637 = vunpack.c.l.b16 %v295
  %v1638 = vunpack.c.h.b16 %v295
  %v1639 = vunpack.c.l.b16 %v296
  %v1640 = vunpack.c.h.b16 %v296
  %v1641 = vunpack.c.l.b16 %v297
  %v1642 = vunpack.c.h.b16 %v297
  %v1643 = vunpack.c.l.b16 %v298
  %v1644 = vunpack.c.h.b16 %v298
  %v1645 = vunpack.c.l.b16 %v299
  %v1646 = vunpack.c.h.b16 %v299
  %v1647 = vunpack.c.l.b16 %v300
  %v1648 = vunpack.c.h.b16 %v300
  %v1649 = vunpack.c.l.b16 %v301
  %v1650 = vunpack.c.h.b16 %v301
  %v1651 = vunpack.c.l.b16 %v302
  %v1652 = vunpack.c.h.b16 %v302
  %v1653 = vunpack.c.l.b16 %v303
  %v1654 = vunpack.c.h.b16 %v303
  %v1655 = vunpack.c.l.b16 %v304
  %v1656 = vunpack.c.h.b16 %v304
  %v1657 = vunpack.c.l.b16 %v305
  %v1658 = vunpack.c.h.b16 %v305
  %v1659 = vunpack.c.l.b16 %v306
  %v1660 = vunpack.c.h.b16 %v306
  %v1661 = vunpack.c.l.b16 %v307
  %v1662 = vunpack.c.h.b16 %v307
  %v1663 = vunpack.c.l.b16 %v308
  %v1664 = vunpack.c.h.b16 %v308
  %v1665 = vunpack.c.l.b16 %v309
  %v1666 = vunpack.c.h.b16 %v309
  %v1667 = vunpack.c.l.b16 %v310
  %v1668 = vunpack.c.h.b16 %v310
  %v1669 = vunpack.c.l.b16 %v311
  %v1670 = vunpack.c.h.b16 %v311
  %v1671 = vunpack.c.l.b16 %v312
  %v1672 = vunpack.c.h.b16 %v312
  %v1673 = vunpack.c.l.b16 %v313
  %v1674 = vunpack.c.h.b16 %v313
  %v1675 = vunpack.c.l.b16 %v314
  %v1676 = vunpack.c.h.b16 %v314
  %v1677 = vunpack.c.l.b16 %v315
  %v1678 = vunpack.c.h.b16 %v315
  %v1679 = vunpack.c.l.b16 %v316
  %v1680 = vunpack.c.h.b16 %v316
  %v1681 = vunpack.c.l.b16 %v317
  %v1682 = vunpack.c.h.b16 %v317
  %v1683 = vunpack.c.l.b16 %v318
  %v1684 = vunpack.c.h.b16 %v318
  %v1685 = vunpack.c.l.b16 %v319
  %v1686 = vunpack.c.h.b16 %v319
  %v1687 = vunpack.c.l.b16 %v320
  %v1688 = vunpack.c.h.b16 %v320
  %v1689 = vunpack.c.l.b16 %v321
  %v1690 = vunpack.c.h.b16 %v321
  %v1691 = vunpack.c.l.b16 %v322
  %v1692 = vunpack.c.h.b16 %v322
  %v1693 = vunpack.c.l.b16 %v323
  %v1694 = vunpack.c.h.b16 %v323
  %v1695 = vunpack.c.l.b16 %v324
  %v1696 = vunpack.c.h.b16 %v324
  %v1697 = vunpack.c.l.b16 %v325
  %v1698 = vunpack.c.h.b16 %v325
  %v1699 = vunpack.c.l.b16 %v326
  %v1700 = vunpack.c.h.b16 %v326
  %v1701 = vunpack.c.l.b16 %v327
  %v1702 = vunpack.c.h.b16 %v327
  %v1703 = vunpack.c.l.b16 %v328
  %v1704 = vunpack.c.h.b16 %v328
  %v1705 = vunpack.c.l.b16 %v329
  %v1706 = vunpack.c.h.b16 %v329
  %v1707 = vunpack.c.l.b16 %v330
  %v1708 = vunpack.c.h.b16 %v330
  %v1709 = vunpack.c.l.b16 %v331
  %v1710 = vunpack.c.h.b16 %v331
  %v1711 = vunpack.c.l.b16 %v332
  %v1712 = vunpack.c.h.b16 %v332
  %v1713 = vunpack.c.l.b16 %v333
  %v1714 = vunpack.c.h.b16 %v333
  %v1715 = vunpack.c.l.b16 %v334
  %v1716 = vunpack.c.h.b16 %v334
  %v1717 = vunpack.c.l.b16 %v335
  %v1718 = vunpack.c.h.b16 %v335
  %v1719 = vunpack.c.l.b16 %v336
  %v1720 = vunpack.c.h.b16 %v336
  %v1721 = vunpack.c.l.b16 %v337
  %v1722 = vunpack.c.h.b16 %v337
  %v1723 = vunpack.c.l.b16 %v338
  %v1724 = vunpack.c.h.b16 %v338
  %v1725 = vunpack.c.l.b16 %v339
  %v1726 = vunpack.c.h.b16 %v339
  %v1727 = vunpack.c.l.b16 %v340
  %v1728 = vunpack.c.h.b16 %v340
  %v1729 = vunpack.c.l.b16 %v341
  %v1730 = vunpack.c.h.b16 %v341
  %v1731 = vunpack.c.l.b16 %v342
  %v1732 = vunpack.c.h.b16 %v342
  %v1733 = vunpack.c.l.b16 %v343
  %v1734 = vunpack.c.h.b16 %v343
  %v1735 = vunpack.c.l.b16 %v344
  %v1736 = vunpack.c.h.b16 %v344
  %v1737 = vunpack.c.l.b16 %v345
  %v1738 = vunpack.c.h.b16 %v345
  %v1739 = vunpack.c.l.b16 %v346
  %v1740 = vunpack.c.h.b16 %v346
  %v1741 = vunpack.c.l.b16 %v347
  %v1742 = vunpack.c.h.b16 %v347
  %v1743 = vunpack.c.l.b16 %v348
  %v1744 = vunpack.c.h.b16 %v348
  %v1745 = vunpack.c.l.b16 %v349
  %v1746 = vunpack.c.h.b16 %v349
  %v1747 = vunpack.c.l.b16 %v350
  %v1748 = vunpack.c.h.b16 %v350
  %v1749 = vunpack.c.l.b16 %v351
  %v1750 = vunpack.c.h.b16 %v351
  %v1751 = vunpack.c.l.b16 %v352
  %v1752 = vunpack.c.h.b16 %v352
  %v1753 = vunpack.c.l.b16 %v353
  %v1754 = vunpack.c.h.b16 %v353
  %v1755 = vunpack.c.l.b16 %v354
  %v1756 = vunpack.c.h.b16 %v354
  %v1757 = vunpack.c.l.b16 %v355
  %v1758 = vunpack.c.h.b16 %v355
  %v1759 = vunpack.c.l.b16 %v356
  %v1760 = vunpack.c.h.b16 %v356
  %v1761 = vunpack.c.l.b16 %v357
  %v1762 = vunpack.c.h.b16 %v357
  %v1763 = vunpack.c.l.b16 %v358
  %v1764 = vunpack.c.h.b16 %v358
  %v1765 = vunpack.c.l.b16 %v359
  %v1766 = vunpack.c.h.b16 %v359
  %v1767 = vunpack.c.l.b16 %v360
  %v1768 = vunpack.c.h.b16 %v360
  %v1769 = vunpack.c.l.b16 %v361
  %v1770 = vunpack.c.h.b16 %v361
  %v1771 = vunpack.c.l.b16 %v362
  %v1772 = vunpack.c.h.b16 %v362
  %v1773 = vunpack.c.l.b16 %v363
  %v1774 = vunpack.c.h.b16 %v363
  %v1775 = vunpack.c.l.b16 %v364
  %v1776 = vunpack.c.h.b16 %v364
  %v1777 = vunpack.c.l.b16 %v365
  %v1778 = vunpack.c.h.b16 %v365
  %v1779 = vunpack.c.l.b16 %v366
  %v1780 = vunpack.c.h.b16 %v366
  %v1781 = vunpack.c.l.b16 %v367
  %v1782 = vunpack.c.h.b16 %v367
  %v1783 = vunpack.c.l.b16 %v368
  %v1784 = vunpack.c.h.b16 %v368
  %v1785 = vunpack.c.l.b16 %v369
  %v1786 = vunpack.c.h.b16 %v369
  %v1787 = vunpack.c.l.b16 %v370
  %v1788 = vunpack.c.h.b16 %v370
  %v1789 = vunpack.c.l.b16 %v371
  %v1790 = vunpack.c.h.b16 %v371
  %v1791 = vunpack.c.l.b16 %v372
  %v1792 = vunpack.c.h.b16 %v372
  %v1793 = vunpack.c.l.b16 %v373
  %v1794 = vunpack.c.h.b16 %v373
  %v1795 = vunpack.c.l.b16 %v374
  %v1796 = vunpack.c.h.b16 %v374
  %v1797 = vunpack.c.l.b16 %v375
  %v1798 = vunpack.c.h.b16 %v375
  %v1799 = vunpack.c.l.b16 %v376
  %v1800 = vunpack.c.h.b16 %v376
  %v1801 = vunpack.c.l.b16 %v377
  %v1802 = vunpack.c.h.b16 %v377
  %v1803 = vunpack.c.l.b16 %v378
  %v1804 = vunpack.c.h.b16 %v378
  %v1805 = vunpack.c.l.b16 %v379
  %v1806 = vunpack.c.h.b16 %v379
  %v1807 = vunpack.c.l.b16 %v380
  %v1808 = vunpack.c.h.b16 %v380
  %v1809 = vunpack.c.l.b16 %v381
  %v1810 = vunpack.c.h.b16 %v381
  %v1811 = vunpack.c.l.b16 %v382
  %v1812 = vunpack.c.h.b16 %v382
  %v1813 = vunpack.c.l.b16 %v383
  %v1814 = vunpack.c.h.b16 %v383
  %v1815 = vunpack.c.l.b16 %v384
  %v1816 = vunpack.c.h.b16 %v384
  %v1817 = vunpack.c.l.b16 %v385
  %v1818 = vunpack.c.h.b16 %v385
  %v1819 = vunpack.c.l.b16 %v386
  %v1820 = vunpack.c.h.b16 %v386
  %v1821 = vunpack.c.l.b16 %v387
  %v1822 = vunpack.c.h.b16 %v387
  %v1823 = vunpack.c.l.b16 %v388
  %v1824 = vunpack.c.h.b16 %v388
  %v1825 = vunpack.c.l.b16 %v389
  %v1826 = vunpack.c.h.b16 %v389
  %v1827 = vunpack.c.l.b16 %v390
  %v1828 = vunpack.c.h.b16 %v390
  %v1829 = vunpack.c.l.b16 %v391
  %v1830 = vunpack.c.h.b16 %v391
  %v1831 = vunpack.c.l.b16 %v392
  %v1832 = vunpack.c.h.b16 %v392
  %v1833 = vunpack.c.l.b16 %v393
  %v1834 = vunpack.c.h.b16 %v393
  %v1835 = vunpack.c.l.b16 %v394
  %v1836 = vunpack.c.h.b16 %v394
  %v1837 = vunpack.c.l.b16 %v395
  %v1838 = vunpack.c.h.b16 %v395
  %v1839 = vunpack.c.l.b16 %v396
  %v1840 = vunpack.c.h.b16 %v396
  %v1841 = vunpack.c.l.b16 %v397
  %v1842 = vunpack.c.h.b16 %v397
  %v1843 = vunpack.c.l.b16 %v398
  %v1844 = vunpack.c.h.b16 %v398
  %v1845 = vunpack.c.l.b16 %v399
  %v1846 = vunpack.c.h.b16 %v399
  %v1847 = vunpack.c.l.b16 %v400
  %v1848 = vunpack.c.h.b16 %v400
  %v1849 = vunpack.c.l.b16 %v401
  %v1850 = vunpack.c.h.b16 %v401
  %v1851 = vunpack.c.l.b16 %v402
  %v1852 = vunpack.c.h.b16 %v402
  %v1853 = vunpack.c.l.b16 %v403
  %v1854 = vunpack.c.h.b16 %v403
  %v1855 = vunpack.c.l.b16 %v404
  %v1856 = vunpack.c.h.b16 %v404
  %v1857 = vunpack.c.l.b16 %v405
  %v1858 = vunpack.c.h.b16 %v405
  %v1859 = vunpack.c.l.b16 %v406
  %v1860 = vunpack.c.h.b16 %v406
  %v1861 = vunpack.c.l.b16 %v407
  %v1862 = vunpack.c.h.b16 %v407
  %v1863 = vunpack.c.l.b16 %v408
  %v1864 = vunpack.c.h.b16 %v408
  %v1865 = vunpack.c.l.b16 %v409
  %v1866 = vunpack.c.h.b16 %v409
  %v1867 = vunpack.c.l.b16 %v410
  %v1868 = vunpack.c.h.b16 %v410
  %v1869 = vunpack.c.l.b16 %v411
  %v1870 = vunpack.c.h.b16 %v411
  %v1871 = vunpack.c.l.b16 %v412
  %v1872 = vunpack.c.h.b16 %v412
  %v1873 = vunpack.c.l.b16 %v413
  %v1874 = vunpack.c.h.b16 %v413
  %v1875 = vunpack.c.l.b16 %v414
  %v1876 = vunpack.c.h.b16 %v414
  %v1877 = vunpack.c.l.b16 %v415
  %v1878 = vunpack.c.h.b16 %v415
  %v1879 = vunpack.c.l.b16 %v416
  %v1880 = vunpack.c.h.b16 %v416
  %v1881 = vunpack.c.l.b16 %v417
  %v1882 = vunpack.c.h.b16 %v417
  %v1883 = vunpack.c.l.b16 %v418
  %v1884 = vunpack.c.h.b16 %v418
  %v1885 = vunpack.c.l.b16 %v419
  %v1886 = vunpack.c.h.b16 %v419
  %v1887 = vunpack.c.l.b16 %v420
  %v1888 = vunpack.c.h.b16 %v420
  %v1889 = vunpack.c.l.b16 %v421
  %v1890 = vunpack.c.h.b16 %v421
  %v1891 = vunpack.c.l.b16 %v422
  %v1892 = vunpack.c.h.b16 %v422
  %v1893 = vunpack.c.l.b16 %v423
  %v1894 = vunpack.c.h.b16 %v423
  %v1895 = vunpack.c.l.b16 %v424
  %v1896 = vunpack.c.h.b16 %v424
  %v1897 = vunpack.c.l.b16 %v425
  %v1898 = vunpack.c.h.b16 %v425
  %v1899 = vunpack.c.l.b16 %v426
  %v1900 = vunpack.c.h.b16 %v426
  %v1901 = vunpack.c.l.b16 %v427
  %v1902 = vunpack.c.h.b16 %v427
  %v1903 = vunpack.c.l.b16 %v428
  %v1904 = vunpack.c.h.b16 %v428
  %v1905 = vunpack.c.l.b16 %v429
  %v1906 = vunpack.c.h.b16 %v429
  %v1907 = vunpack.c.l.b16 %v430
  %v1908 = vunpack.c.h.b16 %v430
  %v1909 = vunpack.c.l.b16 %v431
  %v1910 = vunpack.c.h.b16 %v431
  %v1911 = vunpack.c.l.b16 %v432
  %v1912 = vunpack.c.h.b16 %v432
  %v1913 = vunpack.c.l.b16 %v433
  %v1914 = vunpack.c.h.b16 %v433
  %v1915 = vunpack.c.l.b16 %v434
  %v1916 = vunpack.c.h.b16 %v434
  %v1917 = vunpack.c.l.b16 %v435
  %v1918 = vunpack.c.h.b16 %v435
  %v1919 = vunpack.c.l.b16 %v436
  %v1920 = vunpack.c.h.b16 %v436
  %v1921 = vunpack.c.l.b16 %v437
  %v1922 = vunpack.c.h.b16 %v437
  %v1923 = vunpack.c.l.b16 %v438
  %v1924 = vunpack.c.h.b16 %v438
  %v1925 = vunpack.c.l.b16 %v439
  %v1926 = vunpack.c.h.b16 %v439
  %v1927 = vunpack.c.l.b16 %v440
  %v1928 = vunpack.c.h.b16 %v440
  %v1929 = vunpack.c.l.b16 %v441
  %v1930 = vunpack.c.h.b16 %v441
  %v1931 = vunpack.c.l.b16 %v442
  %v1932 = vunpack.c.h.b16 %v442
  %v1933 = vunpack.c.l.b16 %v443
  %v1934 = vunpack.c.h.b16 %v443
  %v1935 = vunpack.c.l.b16 %v444
  %v1936 = vunpack.c.h.b16 %v444
  %v1937 = vunpack.c.l.b16 %v445
  %v1938 = vunpack.c.h.b16 %v445
  %v1939 = vunpack.c.l.b16 %v446
  %v1940 = vunpack.c.h.b16 %v446
  %v1941 = vunpack.c.l.b16 %v447
  %v1942 = vunpack.c.h.b16 %v447
  %v1943 = vunpack.c.l.b16 %v448
  %v1944 = vunpack.c.h.b16 %v448
  %v1945 = vunpack.c.l.b16 %v449
  %v1946 = vunpack.c.h.b16 %v449
  %v1947 = vunpack.c.l.b16 %v450
  %v1948 = vunpack.c.h.b16 %v450
  %v1949 = vunpack.c.l.b16 %v451
  %v1950 = vunpack.c.h.b16 %v451
  %v1951 = vunpack.c.l.b16 %v452
  %v1952 = vunpack.c.h.b16 %v452
  %v1953 = vunpack.c.l.b16 %v453
  %v1954 = vunpack.c.h.b16 %v453
  %v1955 = vunpack.c.l.b16 %v454
  %v1956 = vunpack.c.h.b16 %v454
  %v1957 = vunpack.c.l.b16 %v455
  %v1958 = vunpack.c.h.b16 %v455
  %v1959 = vunpack.c.l.b16 %v456
  %v1960 = vunpack.c.h.b16 %v456
  %v1961 = vunpack.c.l.b16 %v457
  %v1962 = vunpack.c.h.b16 %v457
  %v1963 = vunpack.c.l.b16 %v458
  %v1964 = vunpack.c.h.b16 %v458
  %v1965 = vunpack.c.l.b16 %v459
  %v1966 = vunpack.c.h.b16 %v459
  %v1967 = vunpack.c.l.b16 %v460
  %v1968 = vunpack.c.h.b16 %v460
  %v1969 = vunpack.c.l.b16 %v461
  %v1970 = vunpack.c.h.b16 %v461
  %v1971 = vunpack.c.l.b16 %v462
  %v1972 = vunpack.c.h.b16 %v462
  %v1973 = vunpack.c.l.b16 %v463
  %v1974 = vunpack.c.h.b16 %v463
  %v1975 = vunpack.c.l.b16 %v464
  %v1976 = vunpack.c.h.b16 %v464
  %v1977 = vunpack.c.l.b16 %v465
  %v1978 = vunpack.c.h.b16 %v465
  %v1979 = vunpack.c.l.b16 %v466
  %v1980 = vunpack.c.h.b16 %v466
  %v1981 = vunpack.c.l.b16 %v467
  %v1982 = vunpack.c.h.b16 %v467
  %v1983 = vunpack.c.l.b16 %v468
  %v1984 = vunpack.c.h.b16 %v468
  %v1985 = vunpack.c.l.b16 %v469
  %v1986 = vunpack.c.h.b16 %v469
  %v1987 = vunpack.c.l.b16 %v470
  %v1988 = vunpack.c.h.b16 %v470
  %v1989 = vunpack.c.l.b16 %v471
  %v1990 = vunpack.c.h.b16 %v471
  %v1991 = vunpack.c.l.b16 %v472
  %v1992 = vunpack.c.h.b16 %v472
  %v1993 = vunpack.c.l.b16 %v473
  %v1994 = vunpack.c.h.b16 %v473
  %v1995 = vunpack.c.l.b16 %v474
  %v1996 = vunpack.c.h.b16 %v474
  %v1997 = vunpack.c.l.b16 %v475
  %v1998 = vunpack.c.h.b16 %v475
  %v1999 = vunpack.c.l.b16 %v476
  %v2000 = vunpack.c.h.b16 %v476
  %v2001 = vunpack.c.l.b16 %v477
  %v2002 = vunpack.c.h.b16 %v477
  %v2003 = vunpack.c.l.b16 %v478
  %v2004 = vunpack.c.h.b16 %v478
  %v2005 = vunpack.c.l.b16 %v479
  %v2006 = vunpack.c.h.b16 %v479
  %v2007 = vunpack.c.l.b16 %v480
  %v2008 = vunpack.c.h.b16 %v480
  %v2009 = vunpack.c.l.b16 %v481
  %v2010 = vunpack.c.h.b16 %v481
  %v2011 = vunpack.c.l.b16 %v482
  %v2012 = vunpack.c.h.b16 %v482
  %v2013 = vunpack.c.l.b16 %v483
  %v2014 = vunpack.c.h.b16 %v483
  %v2015 = vunpack.c.l.b16 %v484
  %v2016 = vunpack.c.h.b16 %v484
  %v2017 = vunpack.c.l.b16 %v485
  %v2018 = vunpack.c.h.b16 %v485
  %v2019 = vunpack.c.l.b16 %v486
  %v2020 = vunpack.c.h.b16 %v486
  %v2021 = vunpack.c.l.b16 %v487
  %v2022 = vunpack.c.h.b16 %v487
  %v2023 = vunpack.c.l.b16 %v488
  %v2024 = vunpack.c.h.b16 %v488
  %v2025 = vunpack.c.l.b16 %v489
  %v2026 = vunpack.c.h.b16 %v489
  %v2027 = vunpack.c.l.b16 %v490
  %v2028 = vunpack.c.h.b16 %v490
  %v2029 = vunpack.c.l.b16 %v491
  %v2030 = vunpack.c.h.b16 %v491
  %v2031 = vunpack.c.l.b16 %v492
  %v2032 = vunpack.c.h.b16 %v492
  %v2033 = vunpack.c.l.b16 %v493
  %v2034 = vunpack.c.h.b16 %v493
  %v2035 = vunpack.c.l.b16 %v494
  %v2036 = vunpack.c.h.b16 %v494
  %v2037 = vunpack.c.l.b16 %v495
  %v2038 = vunpack.c.h.b16 %v495
  %v2039 = vunpack.c.l.b16 %v496
  %v2040 = vunpack.c.h.b16 %v496
  %v2041 = vunpack.c.l.b16 %v497
  %v2042 = vunpack.c.h.b16 %v497
  %v2043 = vunpack.c.l.b16 %v498
  %v2044 = vunpack.c.h.b16 %v498
  %v2045 = vunpack.c.l.b16 %v499
  %v2046 = vunpack.c.h.b16 %v499
  %v2047 = vunpack.c.l.b16 %v500
  %v2048 = vunpack.c.h.b16 %v500
  %v2049 = vunpack.c.l.b16 %v501
  %v2050 = vunpack.c.h.b16 %v501
  %v2051 = vunpack.c.l.b16 %v502
  %v2052 = vunpack.c.h.b16 %v502
  %v2053 = vunpack.c.l.b16 %v503
  %v2054 = vunpack.c.h.b16 %v503
  %v2055 = vunpack.c.l.b16 %v504
  %v2056 = vunpack.c.h.b16 %v504
  %v2057 = vunpack.c.l.b16 %v505
  %v2058 = vunpack.c.h.b16 %v505
  %v2059 = vunpack.c.l.b16 %v506
  %v2060 = vunpack.c.h.b16 %v506
  %v2061 = vunpack.c.l.b16 %v507
  %v2062 = vunpack.c.h.b16 %v507
  %v2063 = vunpack.c.l.b16 %v508
  %v2064 = vunpack.c.h.b16 %v508
  %v2065 = vunpack.c.l.b16 %v509
  %v2066 = vunpack.c.h.b16 %v509
  %v2067 = vunpack.c.l.b16 %v510
  %v2068 = vunpack.c.h.b16 %v510
  %v2069 = vunpack.c.l.b16 %v511
  %v2070 = vunpack.c.h.b16 %v511
  %v2071 = vunpack.c.l.b16 %v512
  %v2072 = vunpack.c.h.b16 %v512
  %v2073 = vunpack.c.l.b16 %v513
  %v2074 = vunpack.c.h.b16 %v513
  %v2075 = vunpack.c.l.b16 %v514
  %v2076 = vunpack.c.h.b16 %v514
  %v2077 = vunpack.c.l.b16 %v515
  %v2078 = vunpack.c.h.b16 %v515
  %v2079 = vunpack.c.l.b16 %v516
  %v2080 = vunpack.c.h.b16 %v516
  %v2081 = vunpack.c.l.b16 %v517
  %v2082 = vunpack.c.h.b16 %v517
  %v2083 = vunpack.c.l.b16 %v518
  %v2084 = vunpack.c.h.b16 %v518
  %v2085 = vunpack.c.l.b16 %v519
  %v2086 = vunpack.c.h.b16 %v519
  %v2087 = vunpack.c.l.b16 %v520
  %v2088 = vunpack.c.h.b16 %v520
  %v2089 = vunpack.c.l.b16 %v521
  %v2090 = vunpack.c.h.b16 %v521
  %v2091 = vunpack.c.l.b16 %v522
  %v2092 = vunpack.c.h.b16 %v522
  %v2093 = vunpack.c.l.b16 %v523
  %v2094 = vunpack.c.h.b16 %v523
  %v2095 = vunpack.c.l.b16 %v524
  %v2096 = vunpack.c.h.b16 %v524
  %v2097 = vunpack.c.l.b16 %v525
  %v2098 = vunpack.c.h.b16 %v525
  %v2099 = vunpack.c.l.b16 %v526
  %v2100 = vunpack.c.h.b16 %v526
  %v2101 = vunpack.c.l.b16 %v527
  %v2102 = vunpack.c.h.b16 %v527
  %v2103 = vunpack.c.l.b16 %v528
  %v2104 = vunpack.c.h.b16 %v528
  %v2105 = vunpack.c.l.b16 %v529
  %v2106 = vunpack.c.h.b16 %v529
  %v2107 = vunpack.c.l.b16 %v530
  %v2108 = vunpack.c.h.b16 %v530
  %v2109 = vunpack.c.l.b16 %v531
  %v2110 = vunpack.c.h.b16 %v531
  %v2111 = vunpack.c.l.b16 %v532
  %v2112 = vunpack.c.h.b16 %v532
  %v2113 = vunpack.c.l.b16 %v533
  %v2114 = vunpack.c.h.b16 %v533
  %v2115 = vunpack.c.l.b16 %v534
  %v2116 = vunpack.c.h.b16 %v534
  %v2117 = vunpack.c.l.b16 %v535
  %v2118 = vunpack.c.h.b16 %v535
  %v2119 = vunpack.c.l.b16 %v536
  %v2120 = vunpack.c.h.b16 %v536
  %v2121 = vunpack.c.l.b16 %v537
  %v2122 = vunpack.c.h.b16 %v537
  %v2123 = vunpack.c.l.b16 %v538
  %v2124 = vunpack.c.h.b16 %v538
  %v2125 = vunpack.c.l.b16 %v539
  %v2126 = vunpack.c.h.b16 %v539
  %v2127 = vunpack.c.l.b16 %v540
  %v2128 = vunpack.c.h.b16 %v540
  %v2129 = vunpack.c.l.b16 %v541
  %v2130 = vunpack.c.h.b16 %v541
  %v2131 = vunpack.c.l.b16 %v542
  %v2132 = vunpack.c.h.b16 %v542
  %v2133 = vunpack.c.l.b16 %v543
  %v2134 = vunpack.c.h.b16 %v543
  %v2135 = vunpack.c.l.b16 %v544
  %v2136 = vunpack.c.h.b16 %v544
  %v2137 = vunpack.c.l.b16 %v545
  %v2138 = vunpack.c.h.b16 %v545
  %v2139 = vunpack.c.l.b16 %v546
  %v2140 = vunpack.c.h.b16 %v546
  %v2141 = vunpack.c.l.b16 %v547
  %v2142 = vunpack.c.h.b16 %v547
  %v2143 = vunpack.c.l.b16 %v548
  %v2144 = vunpack.c.h.b16 %v548
  %v2145 = vunpack.c.l.b16 %v549
  %v2146 = vunpack.c.h.b16 %v549
  %v2147 = vunpack.c.l.b16 %v550
  %v2148 = vunpack.c.h.b16 %v550
  %v2149 = vunpack.c.l.b16 %v551
  %v2150 = vunpack.c.h.b16 %v551
  %v2151 = vunpack.c.l.b16 %v552
  %v2152 = vunpack.c.h.b16 %v552
  %v2153 = vunpack.c.l.b16 %v553
  %v2154 = vunpack.c.h.b16 %v553
  %v2155 = vunpack.c.l.b16 %v554
  %v2156 = vunpack.c.h.b16 %v554
  %v2157 = vunpack.c.l.b16 %v555
  %v2158 = vunpack.c.h.b16 %v555
  %v2159 = vunpack.c.l.b16 %v556
  %v2160 = vunpack.c.h.b16 %v556
  %v2161 = vunpack.c.l.b16 %v557
  %v2162 = vunpack.c.h.b16 %v557
  %v2163 = vunpack.c.l.b16 %v558
  %v2164 = vunpack.c.h.b16 %v558
  %v2165 = vunpack.c.l.b16 %v559
  %v2166 = vunpack.c.h.b16 %v559
  %v2167 = vunpack.c.l.b16 %v560
  %v2168 = vunpack.c.h.b16 %v560
  %v2169 = vunpack.c.l.b16 %v561
  %v2170 = vunpack.c.h.b16 %v561
  %v2171 = vunpack.c.l.b16 %v562
  %v2172 = vunpack.c.h.b16 %v562
  %v2173 = vunpack.c.l.b16 %v563
  %v2174 = vunpack.c.h.b16 %v563
  %v2175 = vunpack.c.l.b16 %v564
  %v2176 = vunpack.c.h.b16 %v564
  %v2177 = vunpack.c.l.b16 %v565
  %v2178 = vunpack.c.h.b16 %v565
  %v2179 = vunpack.c.l.b16 %v566
  %v2180 = vunpack.c.h.b16 %v566
  %v2181 = vunpack.c.l.b16 %v567
  %v2182 = vunpack.c.h.b16 %v567
  %v2183 = vunpack.c.l.b16 %v568
  %v2184 = vunpack.c.h.b16 %v568
  %v2185 = vunpack.c.l.b16 %v569
  %v2186 = vunpack.c.h.b16 %v569
  %v2187 = vunpack.c.l.b16 %v570
  %v2188 = vunpack.c.h.b16 %v570
  %v2189 = vunpack.c.l.b16 %v571
  %v2190 = vunpack.c.h.b16 %v571
  %v2191 = vunpack.c.l.b16 %v572
  %v2192 = vunpack.c.h.b16 %v572
  %v2193 = vunpack.c.l.b16 %v573
  %v2194 = vunpack.c.h.b16 %v573
  %v2195 = vunpack.c.l.b16 %v574
  %v2196 = vunpack.c.h.b16 %v574
  %v2197 = vunpack.c.l.b16 %v575
  %v2198 = vunpack.c.h.b16 %v575
  %v2199 = vunpack.c.l.b16 %v576
  %v2200 = vunpack.c.h.b16 %v576
  %v2201 = vunpack.c.l.b16 %v577
  %v2202 = vunpack.c.h.b16 %v577
  %v2203 = vunpack.c.l.b16 %v578
  %v2204 = vunpack.c.h.b16 %v578
  %v2205 = vunpack.c.l.b16 %v579
  %v2206 = vunpack.c.h.b16 %v579
  %v2207 = vunpack.c.l.b16 %v580
  %v2208 = vunpack.c.h.b16 %v580
  %v2209 = vunpack.c.l.b16 %v581
  %v2210 = vunpack.c.h.b16 %v581
  %v2211 = vunpack.c.l.b16 %v582
  %v2212 = vunpack.c.h.b16 %v582
  %v2213 = vunpack.c.l.b16 %v583
  %v2214 = vunpack.c.h.b16 %v583
  %v2215 = vunpack.c.l.b16 %v584
  %v2216 = vunpack.c.h.b16 %v584
  %v2217 = vunpack.c.l.b16 %v585
  %v2218 = vunpack.c.h.b16 %v585
  %v2219 = vunpack.c.l.b16 %v586
  %v2220 = vunpack.c.h.b16 %v586
  %v2221 = vunpack.c.l.b16 %v587
  %v2222 = vunpack.c.h.b16 %v587
  %v2223 = vunpack.c.l.b16 %v588
  %v2224 = vunpack.c.h.b16 %v588
  %v2225 = vunpack.c.l.b16 %v589
  %v2226 = vunpack.c.h.b16 %v589
  %v2227 = vunpack.c.l.b16 %v590
  %v2228 = vunpack.c.h.b16 %v590
  %v2229 = vunpack.c.l.b16 %v591
  %v2230 = vunpack.c.h.b16 %v591
  %v2231 = vunpack.c.l.b16 %v592
  %v2232 = vunpack.c.h.b16 %v592
  %v2233 = vunpack.c.l.b16 %v593
  %v2234 = vunpack.c.h.b16 %v593
  %v2235 = vunpack.c.l.b16 %v594
  %v2236 = vunpack.c.h.b16 %v594
  %v2237 = vunpack.c.l.b16 %v595
  %v2238 = vunpack.c.h.b16 %v595
  %v2239 = vunpack.c.l.b16 %v596
  %v2240 = vunpack.c.h.b16 %v596
  %v2241 = vunpack.c.l.b16 %v597
  %v2242 = vunpack.c.h.b16 %v597
  %v2243 = vunpack.c.l.b16 %v598
  %v2244 = vunpack.c.h.b16 %v598
  %v2245 = vunpack.c.l.b16 %v599
  %v2246 = vunpack.c.h.b16 %v599
  %v2247 = vunpack.c.l.b16 %v600
  %v2248 = vunpack.c.h.b16 %v600
  %v2249 = vunpack.c.l.b16 %v601
  %v2250 = vunpack.c.h.b16 %v601
  %v2251 = vunpack.c.l.b16 %v602
  %v2252 = vunpack.c.h.b16 %v602
  %v2253 = vunpack.c.l.b16 %v603
  %v2254 = vunpack.c.h.b16 %v603
  %v2255 = vunpack.c.l.b16 %v604
  %v2256 = vunpack.c.h.b16 %v604
  %v2257 = vunpack.c.l.b16 %v605
  %v2258 = vunpack.c.h.b16 %v605
  %v2259 = vunpack.c.l.b16 %v606
  %v2260 = vunpack.c.h.b16 %v606
  %v2261 = vunpack.c.l.b16 %v607
  %v2262 = vunpack.c.h.b16 %v607
  %v2263 = vunpack.c.l.b16 %v608
  %v2264 = vunpack.c.h.b16 %v608
  %v2265 = vunpack.c.l.b16 %v609
  %v2266 = vunpack.c.h.b16 %v609
  %v2267 = vunpack.c.l.b16 %v610
  %v2268 = vunpack.c.h.b16 %v610
  %v2269 = vpack.c.b16 %v1253, %v1245
  %v2270 = vpack.c.b16 %v1254, %v1246
  %v2271 = vpack.c.b16 %v1255, %v1247
  %v2272 = vpack.c.b16 %v1256, %v1248
  %v2273 = vpack.c.b16 %v1257, %v1249
  %v2274 = vpack.c.b16 %v1258, %v1250
  %v2275 = vpack.c.b16 %v1259, %v1251
  %v2276 = vpack.c.b16 %v1260, %v1252
  %v2277 = vpack.c.b16 %v1269, %v1261
  %v2278 = vpack.c.b16 %v1270, %v1262
  %v2279 = vpack.c.b16 %v1271, %v1263
  %v2280 = vpack.c.b16 %v1272, %v1264
  %v2281 = vpack.c.b16 %v1273, %v1265
  %v2282 = vpack.c.b16 %v1274, %v1266
  %v2283 = vpack.c.b16 %v1275, %v1267
  %v2284 = vpack.c.b16 %v1276, %v1268
  %v2285 = vpack.c.b16 %v1285, %v1277
  %v2286 = vpack.c.b16 %v1286, %v1278
  %v2287 = vpack.c.b16 %v1287, %v1279
  %v2288 = vpack.c.b16 %v1288, %v1280
  %v2289 = vpack.c.b16 %v1289, %v1281
  %v2290 = vpack.c.b16 %v1290, %v1282
  %v2291 = vpack.c.b16 %v1291, %v1283
  %v2292 = vpack.c.b16 %v1292, %v1284
  %v2293 = vpack.c.b16 %v1301, %v1293
  %v2294 = vpack.c.b16 %v1302, %v1294
  %v2295 = vpack.c.b16 %v1303, %v1295
  %v2296 = vpack.c.b16 %v1304, %v1296
  %v2297 = vpack.c.b16 %v1305, %v1297
  %v2298 = vpack.c.b16 %v1306, %v1298
  %v2299 = vpack.c.b16 %v1307, %v1299
  %v2300 = vpack.c.b16 %v1308, %v1300
  %v2301 = vpack.c.b16 %v1317, %v1309
  %v2302 = vpack.c.b16 %v1318, %v1310
  %v2303 = vpack.c.b16 %v1319, %v1311
  %v2304 = vpack.c.b16 %v1320, %v1312
  %v2305 = vpack.c.b16 %v1321, %v1313
  %v2306 = vpack.c.b16 %v1322, %v1314
  %v2307 = vpack.c.b16 %v1323, %v1315
  %v2308 = vpack.c.b16 %v1324, %v1316
  %v2309 = vpack.c.b16 %v1333, %v1325
  %v2310 = vpack.c.b16 %v1334, %v1326
  %v2311 = vpack.c.b16 %v1335, %v1327
  %v2312 = vpack.c.b16 %v1336, %v1328
  %v2313 = vpack.c.b16 %v1337, %v1329
  %v2314 = vpack.c.b16 %v1338, %v1330
  %v2315 = vpack.c.b16 %v1339, %v1331
  %v2316 = vpack.c.b16 %v1340, %v1332
  %v2317 = vpack.c.b16 %v1349, %v1341
  %v2318 = vpack.c.b16 %v1350, %v1342
  %v2319 = vpack.c.b16 %v1351, %v1343
  %v2320 = vpack.c.b16 %v1352, %v1344
  %v2321 = vpack.c.b16 %v1353, %v1345
  %v2322 = vpack.c.b16 %v1354, %v1346
  %v2323 = vpack.c.b16 %v1355, %v1347
  %v2324 = vpack.c.b16 %v1356, %v1348
  %v2325 = vpack.c.b16 %v1365, %v1357
  %v2326 = vpack.c.b16 %v1366, %v1358
  %v2327 = vpack.c.b16 %v1367, %v1359
  %v2328 = vpack.c.b16 %v1368, %v1360
  %v2329 = vpack.c.b16 %v1369, %v1361
  %v2330 = vpack.c.b16 %v1370, %v1362
  %v2331 = vpack.c.b16 %v1371, %v1363
  %v2332 = vpack.c.b16 %v1372, %v1364
  %v2333 = vpack.c.b16 %v1381, %v1373
  %v2334 = vpack.c.b16 %v1382, %v1374
  %v2335 = vpack.c.b16 %v1383, %v1375
  %v2336 = vpack.c.b16 %v1384, %v1376
  %v2337 = vpack.c.b16 %v1385, %v1377
  %v2338 = vpack.c.b16 %v1386, %v1378
  %v2339 = vpack.c.b16 %v1387, %v1379
  %v2340 = vpack.c.b16 %v1388, %v1380
  %v2341 = vpack.c.b16 %v1397, %v1389
  %v2342 = vpack.c.b16 %v1398, %v1390
  %v2343 = vpack.c.b16 %v1399, %v1391
  %v2344 = vpack.c.b16 %v1400, %v1392
  %v2345 = vpack.c.b16 %v1401, %v1393
  %v2346 = vpack.c.b16 %v1402, %v1394
  %v2347 = vpack.c.b16 %v1403, %v1395
  %v2348 = vpack.c.b16 %v1404, %v1396
  %v2349 = vpack.c.b16 %v1413, %v1405
  %v2350 = vpack.c.b16 %v1414, %v1406
  %v2351 = vpack.c.b16 %v1415, %v1407
  %v2352 = vpack.c.b16 %v1416, %v1408
  %v2353 = vpack.c.b16 %v1417, %v1409
  %v2354 = vpack.c.b16 %v1418, %v1410
  %v2355 = vpack.c.b16 %v1419, %v1411
  %v2356 = vpack.c.b16 %v1420, %v1412
  %v2357 = vpack.c.b16 %v1429, %v1421
  %v2358 = vpack.c.b16 %v1430, %v1422
  %v2359 = vpack.c.b16 %v1431, %v1423
  %v2360 = vpack.c.b16 %v1432, %v1424
  %v2361 = vpack.c.b16 %v1433, %v1425
  %v2362 = vpack.c.b16 %v1434, %v1426
  %v2363 = vpack.c.b16 %v1435, %v1427
  %v2364 = vpack.c.b16 %v1436, %v1428
  %v2365 = vpack.c.b16 %v1445, %v1437
  %v2366 = vpack.c.b16 %v1446, %v1438
  %v2367 = vpack.c.b16 %v1447, %v1439
  %v2368 = vpack.c.b16 %v1448, %v1440
  %v2369 = vpack.c.b16 %v1449, %v1441
  %v2370 = vpack.c.b16 %v1450, %v1442
  %v2371 = vpack.c.b16 %v1451, %v1443
  %v2372 = vpack.c.b16 %v1452, %v1444
  %v2373 = vpack.c.b16 %v1461, %v1453
  %v2374 = vpack.c.b16 %v1462, %v1454
  %v2375 = vpack.c.b16 %v1463, %v1455
  %v2376 = vpack.c.b16 %v1464, %v1456
  %v2377 = vpack.c.b16 %v1465, %v1457
  %v2378 = vpack.c.b16 %v1466, %v1458
  %v2379 = vpack.c.b16 %v1467, %v1459
  %v2380 = vpack.c.b16 %v1468, %v1460
  %v2381 = vpack.c.b16 %v1477, %v1469
  %v2382 = vpack.c.b16 %v1478, %v1470
  %v2383 = vpack.c.b16 %v1479, %v1471
  %v2384 = vpack.c.b16 %v1480, %v1472
  %v2385 = vpack.c.b16 %v1481, %v1473
  %v2386 = vpack.c.b16 %v1482, %v1474
  %v2387 = vpack.c.b16 %v1483, %v1475
  %v2388 = vpack.c.b16 %v1484, %v1476
  %v2389 = vpack.c.b16 %v1493, %v1485
  %v2390 = vpack.c.b16 %v1494, %v1486
  %v2391 = vpack.c.b16 %v1495, %v1487
  %v2392 = vpack.c.b16 %v1496, %v1488
  %v2393 = vpack.c.b16 %v1497, %v1489
  %v2394 = vpack.c.b16 %v1498, %v1490
  %v2395 = vpack.c.b16 %v1499, %v1491
  %v2396 = vpack.c.b16 %v1500, %v1492
  %v2397 = vpack.c.b16 %v1509, %v1501
  %v2398 = vpack.c.b16 %v1510, %v1502
  %v2399 = vpack.c.b16 %v1511, %v1503
  %v2400 = vpack.c.b16 %v1512, %v1504
  %v2401 = vpack.c.b16 %v1513, %v1505
  %v2402 = vpack.c.b16 %v1514, %v1506
  %v2403 = vpack.c.b16 %v1515, %v1507
  %v2404 = vpack.c.b16 %v1516, %v1508
  %v2405 = vpack.c.b16 %v1525, %v1517
  %v2406 = vpack.c.b16 %v1526, %v1518
  %v2407 = vpack.c.b16 %v1527, %v1519
  %v2408 = vpack.c.b16 %v1528, %v1520
  %v2409 = vpack.c.b16 %v1529, %v1521
  %v2410 = vpack.c.b16 %v1530, %v1522
  %v2411 = vpack.c.b16 %v1531, %v1523
  %v2412 = vpack.c.b16 %v1532, %v1524
  %v2413 = vpack.c.b16 %v1541, %v1533
  %v2414 = vpack.c.b16 %v1542, %v1534
  %v2415 = vpack.c.b16 %v1543, %v1535
  %v2416 = vpack.c.b16 %v1544, %v1536
  %v2417 = vpack.c.b16 %v1545, %v1537
  %v2418 = vpack.c.b16 %v1546, %v1538
  %v2419 = vpack.c.b16 %v1547, %v1539
  %v2420 = vpack.c.b16 %v1548, %v1540
  %v2421 = vpack.c.b16 %v1557, %v1549
  %v2422 = vpack.c.b16 %v1558, %v1550
  %v2423 = vpack.c.b16 %v1559, %v1551
  %v2424 = vpack.c.b16 %v1560, %v1552
  %v2425 = vpack.c.b16 %v1561, %v1553
  %v2426 = vpack.c.b16 %v1562, %v1554
  %v2427 = vpack.c.b16 %v1563, %v1555
  %v2428 = vpack.c.b16 %v1564, %v1556
  %v2429 = vpack.c.b16 %v1573, %v1565
  %v2430 = vpack.c.b16 %v1574, %v1566
  %v2431 = vpack.c.b16 %v1575, %v1567
  %v2432 = vpack.c.b16 %v1576, %v1568
  %v2433 = vpack.c.b16 %v1577, %v1569
  %v2434 = vpack.c.b16 %v1578, %v1570
  %v2435 = vpack.c.b16 %v1579, %v1571
  %v2436 = vpack.c.b16 %v1580, %v1572
  %v2437 = vpack.c.b16 %v1589, %v1581
  %v2438 = vpack.c.b16 %v1590, %v1582
  %v2439 = vpack.c.b16 %v1591, %v1583
  %v2440 = vpack.c.b16 %v1592, %v1584
  %v2441 = vpack.c.b16 %v1593, %v1585
  %v2442 = vpack.c.b16 %v1594, %v1586
  %v2443 = vpack.c.b16 %v1595, %v1587
  %v2444 = vpack.c.b16 %v1596, %v1588
  %v2445 = vpack.c.b16 %v1605, %v1597
  %v2446 = vpack.c.b16 %v1606, %v1598
  %v2447 = vpack.c.b16 %v1607, %v1599
  %v2448 = vpack.c.b16 %v1608, %v1600
  %v2449 = vpack.c.b16 %v1609, %v1601
  %v2450 = vpack.c.b16 %v1610, %v1602
  %v2451 = vpack.c.b16 %v1611, %v1603
  %v2452 = vpack.c.b16 %v1612, %v1604
  %v2453 = vpack.c.b16 %v1621, %v1613
  %v2454 = vpack.c.b16 %v1622, %v1614
  %v2455 = vpack.c.b16 %v1623, %v1615
  %v2456 = vpack.c.b16 %v1624, %v1616
  %v2457 = vpack.c.b16 %v1625, %v1617
  %v2458 = vpack.c.b16 %v1626, %v1618
  %v2459 = vpack.c.b16 %v1627, %v1619
  %v2460 = vpack.c.b16 %v1628, %v1620
  %v2461 = vpack.c.b16 %v1637, %v1629
  %v2462 = vpack.c.b16 %v1638, %v1630
  %v2463 = vpack.c.b16 %v1639, %v1631
  %v2464 = vpack.c.b16 %v1640, %v1632
  %v2465 = vpack.c.b16 %v1641, %v1633
  %v2466 = vpack.c.b16 %v1642, %v1634
  %v2467 = vpack.c.b16 %v1643, %v1635
  %v2468 = vpack.c.b16 %v1644, %v1636
  %v2469 = vpack.c.b16 %v1653, %v1645
  %v2470 = vpack.c.b16 %v1654, %v1646
  %v2471 = vpack.c.b16 %v1655, %v1647
  %v2472 = vpack.c.b16 %v1656, %v1648
  %v2473 = vpack.c.b16 %v1657, %v1649
  %v2474 = vpack.c.b16 %v1658, %v1650
  %v2475 = vpack.c.b16 %v1659, %v1651
  %v2476 = vpack.c.b16 %v1660, %v1652
  %v2477 = vpack.c.b16 %v1669, %v1661
  %v2478 = vpack.c.b16 %v1670, %v1662
  %v2479 = vpack.c.b16 %v1671, %v1663
  %v2480 = vpack.c.b16 %v1672, %v1664
  %v2481 = vpack.c.b16 %v1673, %v1665
  %v2482 = vpack.c.b16 %v1674, %v1666
  %v2483 = vpack.c.b16 %v1675, %v1667
  %v2484 = vpack.c.b16 %v1676, %v1668
  %v2485 = vpack.c.b16 %v1685, %v1677
  %v2486 = vpack.c.b16 %v1686, %v1678
  %v2487 = vpack.c.b16 %v1687, %v1679
  %v2488 = vpack.c.b16 %v1688, %v1680
  %v2489 = vpack.c.b16 %v1689, %v1681
  %v2490 = vpack.c.b16 %v1690, %v1682
  %v2491 = vpack.c.b16 %v1691, %v1683
  %v2492 = vpack.c.b16 %v1692, %v1684
  %v2493 = vpack.c.b16 %v1701, %v1693
  %v2494 = vpack.c.b16 %v1702, %v1694
  %v2495 = vpack.c.b16 %v1703, %v1695
  %v2496 = vpack.c.b16 %v1704, %v1696
  %v2497 = vpack.c.b16 %v1705, %v1697
  %v2498 = vpack.c.b16 %v1706, %v1698
  %v2499 = vpack.c.b16 %v1707, %v1699
  %v2500 = vpack.c.b16 %v1708, %v1700
  %v2501 = vpack.c.b16 %v1717, %v1709
  %v2502 = vpack.c.b16 %v1718, %v1710
  %v2503 = vpack.c.b16 %v1719, %v1711
  %v2504 = vpack.c.b16 %v1720, %v1712
  %v2505 = vpack.c.b16 %v1721, %v1713
  %v2506 = vpack.c.b16 %v1722, %v1714
  %v2507 = vpack.c.b16 %v1723, %v1715
  %v2508 = vpack.c.b16 %v1724, %v1716
  %v2509 = vpack.c.b16 %v1733, %v1725
  %v2510 = vpack.c.b16 %v1734, %v1726
  %v2511 = vpack.c.b16 %v1735, %v1727
  %v2512 = vpack.c.b16 %v1736, %v1728
  %v2513 = vpack.c.b16 %v1737, %v1729
  %v2514 = vpack.c.b16 %v1738, %v1730
  %v2515 = vpack.c.b16 %v1739, %v1731
  %v2516 = vpack.c.b16 %v1740, %v1732
  %v2517 = vpack.c.b16 %v1749, %v1741
  %v2518 = vpack.c.b16 %v1750, %v1742
  %v2519 = vpack.c.b16 %v1751, %v1743
  %v2520 = vpack.c.b16 %v1752, %v1744
  %v2521 = vpack.c.b16 %v1753, %v1745
  %v2522 = vpack.c.b16 %v1754, %v1746
  %v2523 = vpack.c.b16 %v1755, %v1747
  %v2524 = vpack.c.b16 %v1756, %v1748
  %v2525 = vpack.c.b16 %v1765, %v1757
  %v2526 = vpack.c.b16 %v1766, %v1758
  %v2527 = vpack.c.b16 %v1767, %v1759
  %v2528 = vpack.c.b16 %v1768, %v1760
  %v2529 = vpack.c.b16 %v1769, %v1761
  %v2530 = vpack.c.b16 %v1770, %v1762
  %v2531 = vpack.c.b16 %v1771, %v1763
  %v2532 = vpack.c.b16 %v1772, %v1764
  %v2533 = vpack.c.b16 %v1781, %v1773
  %v2534 = vpack.c.b16 %v1782, %v1774
  %v2535 = vpack.c.b16 %v1783, %v1775
  %v2536 = vpack.c.b16 %v1784, %v1776
  %v2537 = vpack.c.b16 %v1785, %v1777
  %v2538 = vpack.c.b16 %v1786, %v1778
  %v2539 = vpack.c.b16 %v1787, %v1779
  %v2540 = vpack.c.b16 %v1788, %v1780
  %v2541 = vpack.c.b16 %v1797, %v1789
  %v2542 = vpack.c.b16 %v1798, %v1790
  %v2543 = vpack.c.b16 %v1799, %v1791
  %v2544 = vpack.c.b16 %v1800, %v1792
  %v2545 = vpack.c.b16 %v1801, %v1793
  %v2546 = vpack.c.b16 %v1802, %v1794
  %v2547 = vpack.c.b16 %v1803, %v1795
  %v2548 = vpack.c.b16 %v1804, %v1796
  %v2549 = vpack.c.b16 %v1813, %v1805
  %v2550 = vpack.c.b16 %v1814, %v1806
  %v2551 = vpack.c.b16 %v1815, %v1807
  %v2552 = vpack.c.b16 %v1816, %v1808
  %v2553 = vpack.c.b16 %v1817, %v1809
  %v2554 = vpack.c.b16 %v1818, %v1810
  %v2555 = vpack.c.b16 %v1819, %v1811
  %v2556 = vpack.c.b16 %v1820, %v1812
  %v2557 = vpack.c.b16 %v1829, %v1821
  %v2558 = vpack.c.b16 %v1830, %v1822
  %v2559 = vpack.c.b16 %v1831, %v1823
  %v2560 = vpack.c.b16 %v1832, %v1824
  %v2561 = vpack.c.b16 %v1833, %v1825
  %v2562 = vpack.c.b16 %v1834, %v1826
  %v2563 = vpack.c.b16 %v1835, %v1827
  %v2564 = vpack.c.b16 %v1836, %v1828
  %v2565 = vpack.c.b16 %v1845, %v1837
  %v2566 = vpack.c.b16 %v1846, %v1838
  %v2567 = vpack.c.b16 %v1847, %v1839
  %v2568 = vpack.c.b16 %v1848, %v1840
  %v2569 = vpack.c.b16 %v1849, %v1841
  %v2570 = vpack.c.b16 %v1850, %v1842
  %v2571 = vpack.c.b16 %v1851, %v1843
  %v2572 = vpack.c.b16 %v1852, %v1844
  %v2573 = vpack.c.b16 %v1861, %v1853
  %v2574 = vpack.c.b16 %v1862, %v1854
  %v2575 = vpack.c.b16 %v1863, %v1855
  %v2576 = vpack.c.b16 %v1864, %v1856
  %v2577 = vpack.c.b16 %v1865, %v1857
  %v2578 = vpack.c.b16 %v1866, %v1858
  %v2579 = vpack.c.b16 %v1867, %v1859
  %v2580 = vpack.c.b16 %v1868, %v1860
  %v2581 = vpack.c.b16 %v1877, %v1869
  %v2582 = vpack.c.b16 %v1878, %v1870
  %v2583 = vpack.c.b16 %v1879, %v1871
  %v2584 = vpack.c.b16 %v1880, %v1872
  %v2585 = vpack.c.b16 %v1881, %v1873
  %v2586 = vpack.c.b16 %v1882, %v1874
  %v2587 = vpack.c.b16 %v1883, %v1875
  %v2588 = vpack.c.b16 %v1884, %v1876
  %v2589 = vpack.c.b16 %v1893, %v1885
  %v2590 = vpack.c.b16 %v1894, %v1886
  %v2591 = vpack.c.b16 %v1895, %v1887
  %v2592 = vpack.c.b16 %v1896, %v1888
  %v2593 = vpack.c.b16 %v1897, %v1889
  %v2594 = vpack.c.b16 %v1898, %v1890
  %v2595 = vpack.c.b16 %v1899, %v1891
  %v2596 = vpack.c.b16 %v1900, %v1892
  %v2597 = vpack.c.b16 %v1909, %v1901
  %v2598 = vpack.c.b16 %v1910, %v1902
  %v2599 = vpack.c.b16 %v1911, %v1903
  %v2600 = vpack.c.b16 %v1912, %v1904
  %v2601 = vpack.c.b16 %v1913, %v1905
  %v2602 = vpack.c.b16 %v1914, %v1906
  %v2603 = vpack.c.b16 %v1915, %v1907
  %v2604 = vpack.c.b16 %v1916, %v1908
  %v2605 = vpack.c.b16 %v1925, %v1917
  %v2606 = vpack.c.b16 %v1926, %v1918
  %v2607 = vpack.c.b16 %v1927, %v1919
  %v2608 = vpack.c.b16 %v1928, %v1920
  %v2609 = vpack.c.b16 %v1929, %v1921
  %v2610 = vpack.c.b16 %v1930, %v1922
  %v2611 = vpack.c.b16 %v1931, %v1923
  %v2612 = vpack.c.b16 %v1932, %v1924
  %v2613 = vpack.c.b16 %v1941, %v1933
  %v2614 = vpack.c.b16 %v1942, %v1934
  %v2615 = vpack.c.b16 %v1943, %v1935
  %v2616 = vpack.c.b16 %v1944, %v1936
  %v2617 = vpack.c.b16 %v1945, %v1937
  %v2618 = vpack.c.b16 %v1946, %v1938
  %v2619 = vpack.c.b16 %v1947, %v1939
  %v2620 = vpack.c.b16 %v1948, %v1940
  %v2621 = vpack.c.b16 %v1957, %v1949
  %v2622 = vpack.c.b16 %v1958, %v1950
  %v2623 = vpack.c.b16 %v1959, %v1951
  %v2624 = vpack.c.b16 %v1960, %v1952
  %v2625 = vpack.c.b16 %v1961, %v1953
  %v2626 = vpack.c.b16 %v1962, %v1954
  %v2627 = vpack.c.b16 %v1963, %v1955
  %v2628 = vpack.c.b16 %v1964, %v1956
  %v2629 = vpack.c.b16 %v1973, %v1965
  %v2630 = vpack.c.b16 %v1974, %v1966
  %v2631 = vpack.c.b16 %v1975, %v1967
  %v2632 = vpack.c.b16 %v1976, %v1968
  %v2633 = vpack.c.b16 %v1977, %v1969
  %v2634 = vpack.c.b16 %v1978, %v1970
  %v2635 = vpack.c.b16 %v1979, %v1971
  %v2636 = vpack.c.b16 %v1980, %v1972
  %v2637 = vpack.c.b16 %v1989, %v1981
  %v2638 = vpack.c.b16 %v1990, %v1982
  %v2639 = vpack.c.b16 %v1991, %v1983
  %v2640 = vpack.c.b16 %v1992, %v1984
  %v2641 = vpack.c.b16 %v1993, %v1985
  %v2642 = vpack.c.b16 %v1994, %v1986
  %v2643 = vpack.c.b16 %v1995, %v1987
  %v2644 = vpack.c.b16 %v1996, %v1988
  %v2645 = vpack.c.b16 %v2005, %v1997
  %v2646 = vpack.c.b16 %v2006, %v1998
  %v2647 = vpack.c.b16 %v2007, %v1999
  %v2648 = vpack.c.b16 %v2008, %v2000
  %v2649 = vpack.c.b16 %v2009, %v2001
  %v2650 = vpack.c.b16 %v2010, %v2002
  %v2651 = vpack.c.b16 %v2011, %v2003
  %v2652 = vpack.c.b16 %v2012, %v2004
  %v2653 = vpack.c.b16 %v2021, %v2013
  %v2654 = vpack.c.b16 %v2022, %v2014
  %v2655 = vpack.c.b16 %v2023, %v2015
  %v2656 = vpack.c.b16 %v2024, %v2016
  %v2657 = vpack.c.b16 %v2025, %v2017
  %v2658 = vpack.c.b16 %v2026, %v2018
  %v2659 = vpack.c.b16 %v2027, %v2019
  %v2660 = vpack.c.b16 %v2028, %v2020
  %v2661 = vpack.c.b16 %v2037, %v2029
  %v2662 = vpack.c.b16 %v2038, %v2030
  %v2663 = vpack.c.b16 %v2039, %v2031
  %v2664 = vpack.c.b16 %v2040, %v2032
  %v2665 = vpack.c.b16 %v2041, %v2033
  %v2666 = vpack.c.b16 %v2042, %v2034
  %v2667 = vpack.c.b16 %v2043, %v2035
  %v2668 = vpack.c.b16 %v2044, %v2036
  %v2669 = vpack.c.b16 %v2053, %v2045
  %v2670 = vpack.c.b16 %v2054, %v2046
  %v2671 = vpack.c.b16 %v2055, %v2047
  %v2672 = vpack.c.b16 %v2056, %v2048
  %v2673 = vpack.c.b16 %v2057, %v2049
  %v2674 = vpack.c.b16 %v2058, %v2050
  %v2675 = vpack.c.b16 %v2059, %v2051
  %v2676 = vpack.c.b16 %v2060, %v2052
  %v2677 = vpack.c.b16 %v2069, %v2061
  %v2678 = vpack.c.b16 %v2070, %v2062
  %v2679 = vpack.c.b16 %v2071, %v2063
  %v2680 = vpack.c.b16 %v2072, %v2064
  %v2681 = vpack.c.b16 %v2073, %v2065
  %v2682 = vpack.c.b16 %v2074, %v2066
  %v2683 = vpack.c.b16 %v2075, %v2067
  %v2684 = vpack.c.b16 %v2076, %v2068
  %v2685 = vpack.c.b16 %v2085, %v2077
  %v2686 = vpack.c.b16 %v2086, %v2078
  %v2687 = vpack.c.b16 %v2087, %v2079
  %v2688 = vpack.c.b16 %v2088, %v2080
  %v2689 = vpack.c.b16 %v2089, %v2081
  %v2690 = vpack.c.b16 %v2090, %v2082
  %v2691 = vpack.c.b16 %v2091, %v2083
  %v2692 = vpack.c.b16 %v2092, %v2084
  %v2693 = vpack.c.b16 %v2101, %v2093
  %v2694 = vpack.c.b16 %v2102, %v2094
  %v2695 = vpack.c.b16 %v2103, %v2095
  %v2696 = vpack.c.b16 %v2104, %v2096
  %v2697 = vpack.c.b16 %v2105, %v2097
  %v2698 = vpack.c.b16 %v2106, %v2098
  %v2699 = vpack.c.b16 %v2107, %v2099
  %v2700 = vpack.c.b16 %v2108, %v2100
  %v2701 = vpack.c.b16 %v2117, %v2109
  %v2702 = vpack.c.b16 %v2118, %v2110
  %v2703 = vpack.c.b16 %v2119, %v2111
  %v2704 = vpack.c.b16 %v2120, %v2112
  %v2705 = vpack.c.b16 %v2121, %v2113
  %v2706 = vpack.c.b16 %v2122, %v2114
  %v2707 = vpack.c.b16 %v2123, %v2115
  %v2708 = vpack.c.b16 %v2124, %v2116
  %v2709 = vpack.c.b16 %v2133, %v2125
  %v2710 = vpack.c.b16 %v2134, %v2126
  %v2711 = vpack.c.b16 %v2135, %v2127
  %v2712 = vpack.c.b16 %v2136, %v2128
  %v2713 = vpack.c.b16 %v2137, %v2129
  %v2714 = vpack.c.b16 %v2138, %v2130
  %v2715 = vpack.c.b16 %v2139, %v2131
  %v2716 = vpack.c.b16 %v2140, %v2132
  %v2717 = vpack.c.b16 %v2149, %v2141
  %v2718 = vpack.c.b16 %v2150, %v2142
  %v2719 = vpack.c.b16 %v2151, %v2143
  %v2720 = vpack.c.b16 %v2152, %v2144
  %v2721 = vpack.c.b16 %v2153, %v2145
  %v2722 = vpack.c.b16 %v2154, %v2146
  %v2723 = vpack.c.b16 %v2155, %v2147
  %v2724 = vpack.c.b16 %v2156, %v2148
  %v2725 = vpack.c.b16 %v2165, %v2157
  %v2726 = vpack.c.b16 %v2166, %v2158
  %v2727 = vpack.c.b16 %v2167, %v2159
  %v2728 = vpack.c.b16 %v2168, %v2160
  %v2729 = vpack.c.b16 %v2169, %v2161
  %v2730 = vpack.c.b16 %v2170, %v2162
  %v2731 = vpack.c.b16 %v2171, %v2163
  %v2732 = vpack.c.b16 %v2172, %v2164
  %v2733 = vpack.c.b16 %v2181, %v2173
  %v2734 = vpack.c.b16 %v2182, %v2174
  %v2735 = vpack.c.b16 %v2183, %v2175
  %v2736 = vpack.c.b16 %v2184, %v2176
  %v2737 = vpack.c.b16 %v2185, %v2177
  %v2738 = vpack.c.b16 %v2186, %v2178
  %v2739 = vpack.c.b16 %v2187, %v2179
  %v2740 = vpack.c.b16 %v2188, %v2180
  %v2741 = vpack.c.b16 %v2197, %v2189
  %v2742 = vpack.c.b16 %v2198, %v2190
  %v2743 = vpack.c.b16 %v2199, %v2191
  %v2744 = vpack.c.b16 %v2200, %v2192
  %v2745 = vpack.c.b16 %v2201, %v2193
  %v2746 = vpack.c.b16 %v2202, %v2194
  %v2747 = vpack.c.b16 %v2203, %v2195
  %v2748 = vpack.c.b16 %v2204, %v2196
  %v2749 = vpack.c.b16 %v2213, %v2205
  %v2750 = vpack.c.b16 %v2214, %v2206
  %v2751 = vpack.c.b16 %v2215, %v2207
  %v2752 = vpack.c.b16 %v2216, %v2208
  %v2753 = vpack.c.b16 %v2217, %v2209
  %v2754 = vpack.c.b16 %v2218, %v2210
  %v2755 = vpack.c.b16 %v2219, %v2211
  %v2756 = vpack.c.b16 %v2220, %v2212
  %v2757 = vpack.c.b16 %v2229, %v2221
  %v2758 = vpack.c.b16 %v2230, %v2222
  %v2759 = vpack.c.b16 %v2231, %v2223
  %v2760 = vpack.c.b16 %v2232, %v2224
  %v2761 = vpack.c.b16 %v2233, %v2225
  %v2762 = vpack.c.b16 %v2234, %v2226
  %v2763 = vpack.c.b16 %v2235, %v2227
  %v2764 = vpack.c.b16 %v2236, %v2228
  %v2765 = vpack.c.b16 %v2245, %v2237
  %v2766 = vpack.c.b16 %v2246, %v2238
  %v2767 = vpack.c.b16 %v2247, %v2239
  %v2768 = vpack.c.b16 %v2248, %v2240
  %v2769 = vpack.c.b16 %v2249, %v2241
  %v2770 = vpack.c.b16 %v2250, %v2242
  %v2771 = vpack.c.b16 %v2251, %v2243
  %v2772 = vpack.c.b16 %v2252, %v2244
  %v2773 = vpack.c.b16 %v2261, %v2253
  %v2774 = vpack.c.b16 %v2262, %v2254
  %v2775 = vpack.c.b16 %v2263, %v2255
  %v2776 = vpack.c.b16 %v2264, %v2256
  %v2777 = vpack.c.b16 %v2265, %v2257
  %v2778 = vpack.c.b16 %v2266, %v2258
  %v2779 = vpack.c.b16 %v2267, %v2259
  %v2780 = vpack.c.b16 %v2268, %v2260
  %3293 = vmatprep.subr.bf16.mxu0 %v2270
  %3294 = vmatpush1.bf16.msra.mxu0 %v2269
  %3295 = vmatprep.subr.bf16.mxu0 %v2278
  %3296 = vmatpush1.bf16.msra.mxu0 %v2277
  %3297 = vmatprep.subr.bf16.mxu0 %v2286
  %3298 = vmatpush1.bf16.msra.mxu0 %v2285
  %3299 = vmatprep.subr.bf16.mxu0 %v2294
  %3300 = vmatpush1.bf16.msra.mxu0 %v2293
  %3301 = vmatprep.subr.bf16.mxu0 %v2302
  %3302 = vmatpush1.bf16.msra.mxu0 %v2301
  %3303 = vmatprep.subr.bf16.mxu0 %v2310
  %3304 = vmatpush1.bf16.msra.mxu0 %v2309
  %3305 = vmatprep.subr.bf16.mxu0 %v2318
  %3306 = vmatpush1.bf16.msra.mxu0 %v2317
  %3307 = vmatprep.subr.bf16.mxu0 %v2326
  %3308 = vmatpush1.bf16.msra.mxu0 %v2325
  %3309 = vmatprep.subr.bf16.mxu0 %v2334
  %3310 = vmatpush1.bf16.msra.mxu0 %v2333
  %3311 = vmatprep.subr.bf16.mxu0 %v2342
  %3312 = vmatpush1.bf16.msra.mxu0 %v2341
  %3313 = vmatprep.subr.bf16.mxu0 %v2350
  %3314 = vmatpush1.bf16.msra.mxu0 %v2349
  %3315 = vmatprep.subr.bf16.mxu0 %v2358
  %3316 = vmatpush1.bf16.msra.mxu0 %v2357
  %3317 = vmatprep.subr.bf16.mxu0 %v2366
  %3318 = vmatpush1.bf16.msra.mxu0 %v2365
  %3319 = vmatprep.subr.bf16.mxu0 %v2374
  %3320 = vmatpush1.bf16.msra.mxu0 %v2373
  %3321 = vmatprep.subr.bf16.mxu0 %v2382
  %3322 = vmatpush1.bf16.msra.mxu0 %v2381
  %3323 = vmatprep.subr.bf16.mxu0 %v2390
  %3324 = vmatpush1.bf16.msra.mxu0 %v2389
  %3325 = vmatprep.mubr.bf16.mxu0 %v702
  %3326 = vmatmul.mubr.bf16.gmra.mrb[0].mxu0 %v701
  %v3327 = vpop.f32.mrb[0].mxu0
  %v3328 = vadd.f32 %v616, %v3327
  %v3329 = vpop.f32.mrb[0].mxu0
  %v3330 = vadd.f32 %v620, %v3329
  %v3331 = vpop.f32.mrb[0].mxu0
  %v3332 = vadd.f32 %v616, %v3331
  %v3333 = vpop.f32.mrb[0].mxu0
  %v3334 = vadd.f32 %v620, %v3333
  %3335 = vmatprep.mubr.bf16.mxu0 %v710
  %3336 = vmatmul.mubr.bf16.gmra.mrb[0].mxu0 %v709
  %v3337 = vpop.f32.mrb[0].mxu0
  %v3338 = vadd.f32 %v616, %v3337
  %v3339 = vpop.f32.mrb[0].mxu0
  %v3340 = vadd.f32 %v620, %v3339
  %v3341 = vpop.f32.mrb[0].mxu0
  %v3342 = vadd.f32 %v616, %v3341
  %v3343 = vpop.f32.mrb[0].mxu0
  %v3344 = vadd.f32 %v620, %v3343
  %3345 = vdwg.mxu0
  %3346 = vmatprep.subr.bf16.mxu0 %v2398
  %3347 = vmatpush1.bf16.msra.mxu0 %v2397
  %3348 = vmatprep.subr.bf16.mxu0 %v2406
  %3349 = vmatpush1.bf16.msra.mxu0 %v2405
  %3350 = vmatprep.subr.bf16.mxu0 %v2414
  %3351 = vmatpush1.bf16.msra.mxu0 %v2413
  %3352 = vmatprep.subr.bf16.mxu0 %v2422
  %3353 = vmatpush1.bf16.msra.mxu0 %v2421
  %3354 = vmatprep.subr.bf16.mxu0 %v2430
  %3355 = vmatpush1.bf16.msra.mxu0 %v2429
  %3356 = vmatprep.subr.bf16.mxu0 %v2438
  %3357 = vmatpush1.bf16.msra.mxu0 %v2437
  %3358 = vmatprep.subr.bf16.mxu0 %v2446
  %3359 = vmatpush1.bf16.msra.mxu0 %v2445
  %3360 = vmatprep.subr.bf16.mxu0 %v2454
  %3361 = vmatpush1.bf16.msra.mxu0 %v2453
  %3362 = vmatprep.subr.bf16.mxu0 %v2462
  %3363 = vmatpush1.bf16.msra.mxu0 %v2461
  %3364 = vmatprep.subr.bf16.mxu0 %v2470
  %3365 = vmatpush1.bf16.msra.mxu0 %v2469
  %3366 = vmatprep.subr.bf16.mxu0 %v2478
  %3367 = vmatpush1.bf16.msra.mxu0 %v2477
  %3368 = vmatprep.subr.bf16.mxu0 %v2486
  %3369 = vmatpush1.bf16.msra.mxu0 %v2485
  %3370 = vmatprep.subr.bf16.mxu0 %v2494
  %3371 = vmatpush1.bf16.msra.mxu0 %v2493
  %3372 = vmatprep.subr.bf16.mxu0 %v2502
  %3373 = vmatpush1.bf16.msra.mxu0 %v2501
  %3374 = vmatprep.subr.bf16.mxu0 %v2510
  %3375 = vmatpush1.bf16.msra.mxu0 %v2509
  %3376 = vmatprep.subr.bf16.mxu0 %v2518
  %3377 = vmatpush1.bf16.msra.mxu0 %v2517
  %3378 = vmatprep.mubr.bf16.mxu0 %v704
  %3379 = vmatmul.mubr.bf16.gmra.mrb[0].mxu0 %v703
  %v3380 = vpop.f32.mrb[0].mxu0
  %v3381 = vadd.f32 %v3328, %v3380
  %v3382 = vpop.f32.mrb[0].mxu0
  %v3383 = vadd.f32 %v3330, %v3382
  %v3384 = vpop.f32.mrb[0].mxu0
  %v3385 = vadd.f32 %v3332, %v3384
  %v3386 = vpop.f32.mrb[0].mxu0
  %v3387 = vadd.f32 %v3334, %v3386
  %3388 = vmatprep.mubr.bf16.mxu0 %v712
  %3389 = vmatmul.mubr.bf16.gmra.mrb[0].mxu0 %v711
  %v3390 = vpop.f32.mrb[0].mxu0
  %v3391 = vadd.f32 %v3338, %v3390
  %v3392 = vpop.f32.mrb[0].mxu0
  %v3393 = vadd.f32 %v3340, %v3392
  %v3394 = vpop.f32.mrb[0].mxu0
  %v3395 = vadd.f32 %v3342, %v3394
  %v3396 = vpop.f32.mrb[0].mxu0
  %v3397 = vadd.f32 %v3344, %v3396
  %3398 = vdwg.mxu0
  %3399 = vmatprep.subr.bf16.mxu0 %v2526
  %3400 = vmatpush1.bf16.msra.mxu0 %v2525
  %3401 = vmatprep.subr.bf16.mxu0 %v2534
  %3402 = vmatpush1.bf16.msra.mxu0 %v2533
  %3403 = vmatprep.subr.bf16.mxu0 %v2542
  %3404 = vmatpush1.bf16.msra.mxu0 %v2541
  %3405 = vmatprep.subr.bf16.mxu0 %v2550
  %3406 = vmatpush1.bf16.msra.mxu0 %v2549
  %3407 = vmatprep.subr.bf16.mxu0 %v2558
  %3408 = vmatpush1.bf16.msra.mxu0 %v2557
  %3409 = vmatprep.subr.bf16.mxu0 %v2566
  %3410 = vmatpush1.bf16.msra.mxu0 %v2565
  %3411 = vmatprep.subr.bf16.mxu0 %v2574
  %3412 = vmatpush1.bf16.msra.mxu0 %v2573
  %3413 = vmatprep.subr.bf16.mxu0 %v2582
  %3414 = vmatpush1.bf16.msra.mxu0 %v2581
  %3415 = vmatprep.subr.bf16.mxu0 %v2590
  %3416 = vmatpush1.bf16.msra.mxu0 %v2589
  %3417 = vmatprep.subr.bf16.mxu0 %v2598
  %3418 = vmatpush1.bf16.msra.mxu0 %v2597
  %3419 = vmatprep.subr.bf16.mxu0 %v2606
  %3420 = vmatpush1.bf16.msra.mxu0 %v2605
  %3421 = vmatprep.subr.bf16.mxu0 %v2614
  %3422 = vmatpush1.bf16.msra.mxu0 %v2613
  %3423 = vmatprep.subr.bf16.mxu0 %v2622
  %3424 = vmatpush1.bf16.msra.mxu0 %v2621
  %3425 = vmatprep.subr.bf16.mxu0 %v2630
  %3426 = vmatpush1.bf16.msra.mxu0 %v2629
  %3427 = vmatprep.subr.bf16.mxu0 %v2638
  %3428 = vmatpush1.bf16.msra.mxu0 %v2637
  %3429 = vmatprep.subr.bf16.mxu0 %v2646
  %3430 = vmatpush1.bf16.msra.mxu0 %v2645
  %3431 = vmatprep.mubr.bf16.mxu0 %v706
  %3432 = vmatmul.mubr.bf16.gmra.mrb[0].mxu0 %v705
  %v3433 = vpop.f32.mrb[0].mxu0
  %v3434 = vadd.f32 %v3381, %v3433
  %v3435 = vpop.f32.mrb[0].mxu0
  %v3436 = vadd.f32 %v3383, %v3435
  %v3437 = vpop.f32.mrb[0].mxu0
  %v3438 = vadd.f32 %v3385, %v3437
  %v3439 = vpop.f32.mrb[0].mxu0
  %v3440 = vadd.f32 %v3387, %v3439
  %3441 = vmatprep.mubr.bf16.mxu0 %v714
  %3442 = vmatmul.mubr.bf16.gmra.mrb[0].mxu0 %v713
  %v3443 = vpop.f32.mrb[0].mxu0
  %v3444 = vadd.f32 %v3391, %v3443
  %v3445 = vpop.f32.mrb[0].mxu0
  %v3446 = vadd.f32 %v3393, %v3445
  %v3447 = vpop.f32.mrb[0].mxu0
  %v3448 = vadd.f32 %v3395, %v3447
  %v3449 = vpop.f32.mrb[0].mxu0
  %v3450 = vadd.f32 %v3397, %v3449
  %3451 = vdwg.mxu0
  %3452 = vmatprep.subr.bf16.mxu0 %v2654
  %3453 = vmatpush1.bf16.msra.mxu0 %v2653
  %3454 = vmatprep.subr.bf16.mxu0 %v2662
  %3455 = vmatpush1.bf16.msra.mxu0 %v2661
  %3456 = vmatprep.subr.bf16.mxu0 %v2670
  %3457 = vmatpush1.bf16.msra.mxu0 %v2669
  %3458 = vmatprep.subr.bf16.mxu0 %v2678
  %3459 = vmatpush1.bf16.msra.mxu0 %v2677
  %3460 = vmatprep.subr.bf16.mxu0 %v2686
  %3461 = vmatpush1.bf16.msra.mxu0 %v2685
  %3462 = vmatprep.subr.bf16.mxu0 %v2694
  %3463 = vmatpush1.bf16.msra.mxu0 %v2693
  %3464 = vmatprep.subr.bf16.mxu0 %v2702
  %3465 = vmatpush1.bf16.msra.mxu0 %v2701
  %3466 = vmatprep.subr.bf16.mxu0 %v2710
  %3467 = vmatpush1.bf16.msra.mxu0 %v2709
  %3468 = vmatprep.subr.bf16.mxu0 %v2718
  %3469 = vmatpush1.bf16.msra.mxu0 %v2717
  %3470 = vmatprep.subr.bf16.mxu0 %v2726
  %3471 = vmatpush1.bf16.msra.mxu0 %v2725
  %3472 = vmatprep.subr.bf16.mxu0 %v2734
  %3473 = vmatpush1.bf16.msra.mxu0 %v2733
  %3474 = vmatprep.subr.bf16.mxu0 %v2742
  %3475 = vmatpush1.bf16.msra.mxu0 %v2741
  %3476 = vmatprep.subr.bf16.mxu0 %v2750
  %3477 = vmatpush1.bf16.msra.mxu0 %v2749
  %3478 = vmatprep.subr.bf16.mxu0 %v2758
  %3479 = vmatpush1.bf16.msra.mxu0 %v2757
  %3480 = vmatprep.subr.bf16.mxu0 %v2766
  %3481 = vmatpush1.bf16.msra.mxu0 %v2765
  %3482 = vmatprep.subr.bf16.mxu0 %v2774
  %3483 = vmatpush1.bf16.msra.mxu0 %v2773
  %3484 = vmatprep.mubr.bf16.mxu0 %v708
  %3485 = vmatmul.mubr.bf16.gmra.mrb[0].mxu0 %v707
  %v3486 = vpop.f32.mrb[0].mxu0
  %v3487 = vadd.f32 %v3434, %v3486
  %v3488 = vpop.f32.mrb[0].mxu0
  %v3489 = vadd.f32 %v3436, %v3488
  %v3490 = vpop.f32.mrb[0].mxu0
  %v3491 = vadd.f32 %v3438, %v3490
  %v3492 = vpop.f32.mrb[0].mxu0
  %v3493 = vadd.f32 %v3440, %v3492
  %3494 = vmatprep.mubr.bf16.mxu0 %v716
  %3495 = vmatmul.mubr.bf16.gmra.mrb[0].mxu0 %v715
  %v3496 = vpop.f32.mrb[0].mxu0
  %v3497 = vadd.f32 %v3444, %v3496
  %v3498 = vpop.f32.mrb[0].mxu0
  %v3499 = vadd.f32 %v3446, %v3498
  %v3500 = vpop.f32.mrb[0].mxu0
  %v3501 = vadd.f32 %v3448, %v3500
  %v3502 = vpop.f32.mrb[0].mxu0
  %v3503 = vadd.f32 %v3450, %v3502
  %3504 = vdwg.mxu0
  %3505 = vmatprep.subr.bf16.mxu0 %v2272
  %3506 = vmatpush1.bf16.msra.mxu0 %v2271
  %3507 = vmatprep.subr.bf16.mxu0 %v2280
  %3508 = vmatpush1.bf16.msra.mxu0 %v2279
  %3509 = vmatprep.subr.bf16.mxu0 %v2288
  %3510 = vmatpush1.bf16.msra.mxu0 %v2287
  %3511 = vmatprep.subr.bf16.mxu0 %v2296
  %3512 = vmatpush1.bf16.msra.mxu0 %v2295
  %3513 = vmatprep.subr.bf16.mxu0 %v2304
  %3514 = vmatpush1.bf16.msra.mxu0 %v2303
  %3515 = vmatprep.subr.bf16.mxu0 %v2312
  %3516 = vmatpush1.bf16.msra.mxu0 %v2311
  %3517 = vmatprep.subr.bf16.mxu0 %v2320
  %3518 = vmatpush1.bf16.msra.mxu0 %v2319
  %3519 = vmatprep.subr.bf16.mxu0 %v2328
  %3520 = vmatpush1.bf16.msra.mxu0 %v2327
  %3521 = vmatprep.subr.bf16.mxu0 %v2336
  %3522 = vmatpush1.bf16.msra.mxu0 %v2335
  %3523 = vmatprep.subr.bf16.mxu0 %v2344
  %3524 = vmatpush1.bf16.msra.mxu0 %v2343
  %3525 = vmatprep.subr.bf16.mxu0 %v2352
  %3526 = vmatpush1.bf16.msra.mxu0 %v2351
  %3527 = vmatprep.subr.bf16.mxu0 %v2360
  %3528 = vmatpush1.bf16.msra.mxu0 %v2359
  %3529 = vmatprep.subr.bf16.mxu0 %v2368
  %3530 = vmatpush1.bf16.msra.mxu0 %v2367
  %3531 = vmatprep.subr.bf16.mxu0 %v2376
  %3532 = vmatpush1.bf16.msra.mxu0 %v2375
  %3533 = vmatprep.subr.bf16.mxu0 %v2384
  %3534 = vmatpush1.bf16.msra.mxu0 %v2383
  %3535 = vmatprep.subr.bf16.mxu0 %v2392
  %3536 = vmatpush1.bf16.msra.mxu0 %v2391
  %3537 = vmatprep.mubr.bf16.mxu0 %v702
  %3538 = vmatmul.mubr.bf16.gmra.mrb[0].mxu0 %v701
  %v3539 = vpop.f32.mrb[0].mxu0
  %v3540 = vadd.f32 %v624, %v3539
  %v3541 = vpop.f32.mrb[0].mxu0
  %v3542 = vadd.f32 %v628, %v3541
  %v3543 = vpop.f32.mrb[0].mxu0
  %v3544 = vadd.f32 %v624, %v3543
  %v3545 = vpop.f32.mrb[0].mxu0
  %v3546 = vadd.f32 %v628, %v3545
  %3547 = vmatprep.mubr.bf16.mxu0 %v710
  %3548 = vmatmul.mubr.bf16.gmra.mrb[0].mxu0 %v709
  %v3549 = vpop.f32.mrb[0].mxu0
  %v3550 = vadd.f32 %v624, %v3549
  %v3551 = vpop.f32.mrb[0].mxu0
  %v3552 = vadd.f32 %v628, %v3551
  %v3553 = vpop.f32.mrb[0].mxu0
  %v3554 = vadd.f32 %v624, %v3553
  %v3555 = vpop.f32.mrb[0].mxu0
  %v3556 = vadd.f32 %v628, %v3555
  %3557 = vdwg.mxu0
  %3558 = vmatprep.subr.bf16.mxu0 %v2400
  %3559 = vmatpush1.bf16.msra.mxu0 %v2399
  %3560 = vmatprep.subr.bf16.mxu0 %v2408
  %3561 = vmatpush1.bf16.msra.mxu0 %v2407
  %3562 = vmatprep.subr.bf16.mxu0 %v2416
  %3563 = vmatpush1.bf16.msra.mxu0 %v2415
  %3564 = vmatprep.subr.bf16.mxu0 %v2424
  %3565 = vmatpush1.bf16.msra.mxu0 %v2423
  %3566 = vmatprep.subr.bf16.mxu0 %v2432
  %3567 = vmatpush1.bf16.msra.mxu0 %v2431
  %3568 = vmatprep.subr.bf16.mxu0 %v2440
  %3569 = vmatpush1.bf16.msra.mxu0 %v2439
  %3570 = vmatprep.subr.bf16.mxu0 %v2448
  %3571 = vmatpush1.bf16.msra.mxu0 %v2447
  %3572 = vmatprep.subr.bf16.mxu0 %v2456
  %3573 = vmatpush1.bf16.msra.mxu0 %v2455
  %3574 = vmatprep.subr.bf16.mxu0 %v2464
  %3575 = vmatpush1.bf16.msra.mxu0 %v2463
  %3576 = vmatprep.subr.bf16.mxu0 %v2472
  %3577 = vmatpush1.bf16.msra.mxu0 %v2471
  %3578 = vmatprep.subr.bf16.mxu0 %v2480
  %3579 = vmatpush1.bf16.msra.mxu0 %v2479
  %3580 = vmatprep.subr.bf16.mxu0 %v2488
  %3581 = vmatpush1.bf16.msra.mxu0 %v2487
  %3582 = vmatprep.subr.bf16.mxu0 %v2496
  %3583 = vmatpush1.bf16.msra.mxu0 %v2495
  %3584 = vmatprep.subr.bf16.mxu0 %v2504
  %3585 = vmatpush1.bf16.msra.mxu0 %v2503
  %3586 = vmatprep.subr.bf16.mxu0 %v2512
  %3587 = vmatpush1.bf16.msra.mxu0 %v2511
  %3588 = vmatprep.subr.bf16.mxu0 %v2520
  %3589 = vmatpush1.bf16.msra.mxu0 %v2519
  %3590 = vmatprep.mubr.bf16.mxu0 %v704
  %3591 = vmatmul.mubr.bf16.gmra.mrb[0].mxu0 %v703
  %v3592 = vpop.f32.mrb[0].mxu0
  %v3593 = vadd.f32 %v3540, %v3592
  %v3594 = vpop.f32.mrb[0].mxu0
  %v3595 = vadd.f32 %v3542, %v3594
  %v3596 = vpop.f32.mrb[0].mxu0
  %v3597 = vadd.f32 %v3544, %v3596
  %v3598 = vpop.f32.mrb[0].mxu0
  %v3599 = vadd.f32 %v3546, %v3598
  %3600 = vmatprep.mubr.bf16.mxu0 %v712
  %3601 = vmatmul.mubr.bf16.gmra.mrb[0].mxu0 %v711
  %v3602 = vpop.f32.mrb[0].mxu0
  %v3603 = vadd.f32 %v3550, %v3602
  %v3604 = vpop.f32.mrb[0].mxu0
  %v3605 = vadd.f32 %v3552, %v3604
  %v3606 = vpop.f32.mrb[0].mxu0
  %v3607 = vadd.f32 %v3554, %v3606
  %v3608 = vpop.f32.mrb[0].mxu0
  %v3609 = vadd.f32 %v3556, %v3608
  %3610 = vdwg.mxu0
  %3611 = vmatprep.subr.bf16.mxu0 %v2528
  %3612 = vmatpush1.bf16.msra.mxu0 %v2527
  %3613 = vmatprep.subr.bf16.mxu0 %v2536
  %3614 = vmatpush1.bf16.msra.mxu0 %v2535
  %3615 = vmatprep.subr.bf16.mxu0 %v2544
  %3616 = vmatpush1.bf16.msra.mxu0 %v2543
  %3617 = vmatprep.subr.bf16.mxu0 %v2552
  %3618 = vmatpush1.bf16.msra.mxu0 %v2551
  %3619 = vmatprep.subr.bf16.mxu0 %v2560
  %3620 = vmatpush1.bf16.msra.mxu0 %v2559
  %3621 = vmatprep.subr.bf16.mxu0 %v2568
  %3622 = vmatpush1.bf16.msra.mxu0 %v2567
  %3623 = vmatprep.subr.bf16.mxu0 %v2576
  %3624 = vmatpush1.bf16.msra.mxu0 %v2575
  %3625 = vmatprep.subr.bf16.mxu0 %v2584
  %3626 = vmatpush1.bf16.msra.mxu0 %v2583
  %3627 = vmatprep.subr.bf16.mxu0 %v2592
  %3628 = vmatpush1.bf16.msra.mxu0 %v2591
  %3629 = vmatprep.subr.bf16.mxu0 %v2600
  %3630 = vmatpush1.bf16.msra.mxu0 %v2599
  %3631 = vmatprep.subr.bf16.mxu0 %v2608
  %3632 = vmatpush1.bf16.msra.mxu0 %v2607
  %3633 = vmatprep.subr.bf16.mxu0 %v2616
  %3634 = vmatpush1.bf16.msra.mxu0 %v2615
  %3635 = vmatprep.subr.bf16.mxu0 %v2624
  %3636 = vmatpush1.bf16.msra.mxu0 %v2623
  %3637 = vmatprep.subr.bf16.mxu0 %v2632
  %3638 = vmatpush1.bf16.msra.mxu0 %v2631
  %3639 = vmatprep.subr.bf16.mxu0 %v2640
  %3640 = vmatpush1.bf16.msra.mxu0 %v2639
  %3641 = vmatprep.subr.bf16.mxu0 %v2648
  %3642 = vmatpush1.bf16.msra.mxu0 %v2647
  %3643 = vmatprep.mubr.bf16.mxu0 %v706
  %3644 = vmatmul.mubr.bf16.gmra.mrb[0].mxu0 %v705
  %v3645 = vpop.f32.mrb[0].mxu0
  %v3646 = vadd.f32 %v3593, %v3645
  %v3647 = vpop.f32.mrb[0].mxu0
  %v3648 = vadd.f32 %v3595, %v3647
  %v3649 = vpop.f32.mrb[0].mxu0
  %v3650 = vadd.f32 %v3597, %v3649
  %v3651 = vpop.f32.mrb[0].mxu0
  %v3652 = vadd.f32 %v3599, %v3651
  %3653 = vmatprep.mubr.bf16.mxu0 %v714
  %3654 = vmatmul.mubr.bf16.gmra.mrb[0].mxu0 %v713
  %v3655 = vpop.f32.mrb[0].mxu0
  %v3656 = vadd.f32 %v3603, %v3655
  %v3657 = vpop.f32.mrb[0].mxu0
  %v3658 = vadd.f32 %v3605, %v3657
  %v3659 = vpop.f32.mrb[0].mxu0
  %v3660 = vadd.f32 %v3607, %v3659
  %v3661 = vpop.f32.mrb[0].mxu0
  %v3662 = vadd.f32 %v3609, %v3661
  %3663 = vdwg.mxu0
  %3664 = vmatprep.subr.bf16.mxu0 %v2656
  %3665 = vmatpush1.bf16.msra.mxu0 %v2655
  %3666 = vmatprep.subr.bf16.mxu0 %v2664
  %3667 = vmatpush1.bf16.msra.mxu0 %v2663
  %3668 = vmatprep.subr.bf16.mxu0 %v2672
  %3669 = vmatpush1.bf16.msra.mxu0 %v2671
  %3670 = vmatprep.subr.bf16.mxu0 %v2680
  %3671 = vmatpush1.bf16.msra.mxu0 %v2679
  %3672 = vmatprep.subr.bf16.mxu0 %v2688
  %3673 = vmatpush1.bf16.msra.mxu0 %v2687
  %3674 = vmatprep.subr.bf16.mxu0 %v2696
  %3675 = vmatpush1.bf16.msra.mxu0 %v2695
  %3676 = vmatprep.subr.bf16.mxu0 %v2704
  %3677 = vmatpush1.bf16.msra.mxu0 %v2703
  %3678 = vmatprep.subr.bf16.mxu0 %v2712
  %3679 = vmatpush1.bf16.msra.mxu0 %v2711
  %3680 = vmatprep.subr.bf16.mxu0 %v2720
  %3681 = vmatpush1.bf16.msra.mxu0 %v2719
  %3682 = vmatprep.subr.bf16.mxu0 %v2728
  %3683 = vmatpush1.bf16.msra.mxu0 %v2727
  %3684 = vmatprep.subr.bf16.mxu0 %v2736
  %3685 = vmatpush1.bf16.msra.mxu0 %v2735
  %3686 = vmatprep.subr.bf16.mxu0 %v2744
  %3687 = vmatpush1.bf16.msra.mxu0 %v2743
  %3688 = vmatprep.subr.bf16.mxu0 %v2752
  %3689 = vmatpush1.bf16.msra.mxu0 %v2751
  %3690 = vmatprep.subr.bf16.mxu0 %v2760
  %3691 = vmatpush1.bf16.msra.mxu0 %v2759
  %3692 = vmatprep.subr.bf16.mxu0 %v2768
  %3693 = vmatpush1.bf16.msra.mxu0 %v2767
  %3694 = vmatprep.subr.bf16.mxu0 %v2776
  %3695 = vmatpush1.bf16.msra.mxu0 %v2775
  %3696 = vmatprep.mubr.bf16.mxu0 %v708
  %3697 = vmatmul.mubr.bf16.gmra.mrb[0].mxu0 %v707
  %v3698 = vpop.f32.mrb[0].mxu0
  %v3699 = vadd.f32 %v3646, %v3698
  %v3700 = vpop.f32.mrb[0].mxu0
  %v3701 = vadd.f32 %v3648, %v3700
  %v3702 = vpop.f32.mrb[0].mxu0
  %v3703 = vadd.f32 %v3650, %v3702
  %v3704 = vpop.f32.mrb[0].mxu0
  %v3705 = vadd.f32 %v3652, %v3704
  %3706 = vmatprep.mubr.bf16.mxu0 %v716
  %3707 = vmatmul.mubr.bf16.gmra.mrb[0].mxu0 %v715
  %v3708 = vpop.f32.mrb[0].mxu0
  %v3709 = vadd.f32 %v3656, %v3708
  %v3710 = vpop.f32.mrb[0].mxu0
  %v3711 = vadd.f32 %v3658, %v3710
  %v3712 = vpop.f32.mrb[0].mxu0
  %v3713 = vadd.f32 %v3660, %v3712
  %v3714 = vpop.f32.mrb[0].mxu0
  %v3715 = vadd.f32 %v3662, %v3714
  %3716 = vdwg.mxu0
  %3717 = vmatprep.subr.bf16.mxu0 %v2274
  %3718 = vmatpush1.bf16.msra.mxu0 %v2273
  %3719 = vmatprep.subr.bf16.mxu0 %v2282
  %3720 = vmatpush1.bf16.msra.mxu0 %v2281
  %3721 = vmatprep.subr.bf16.mxu0 %v2290
  %3722 = vmatpush1.bf16.msra.mxu0 %v2289
  %3723 = vmatprep.subr.bf16.mxu0 %v2298
  %3724 = vmatpush1.bf16.msra.mxu0 %v2297
  %3725 = vmatprep.subr.bf16.mxu0 %v2306
  %3726 = vmatpush1.bf16.msra.mxu0 %v2305
  %3727 = vmatprep.subr.bf16.mxu0 %v2314
  %3728 = vmatpush1.bf16.msra.mxu0 %v2313
  %3729 = vmatprep.subr.bf16.mxu0 %v2322
  %3730 = vmatpush1.bf16.msra.mxu0 %v2321
  %3731 = vmatprep.subr.bf16.mxu0 %v2330
  %3732 = vmatpush1.bf16.msra.mxu0 %v2329
  %3733 = vmatprep.subr.bf16.mxu0 %v2338
  %3734 = vmatpush1.bf16.msra.mxu0 %v2337
  %3735 = vmatprep.subr.bf16.mxu0 %v2346
  %3736 = vmatpush1.bf16.msra.mxu0 %v2345
  %3737 = vmatprep.subr.bf16.mxu0 %v2354
  %3738 = vmatpush1.bf16.msra.mxu0 %v2353
  %3739 = vmatprep.subr.bf16.mxu0 %v2362
  %3740 = vmatpush1.bf16.msra.mxu0 %v2361
  %3741 = vmatprep.subr.bf16.mxu0 %v2370
  %3742 = vmatpush1.bf16.msra.mxu0 %v2369
  %3743 = vmatprep.subr.bf16.mxu0 %v2378
  %3744 = vmatpush1.bf16.msra.mxu0 %v2377
  %3745 = vmatprep.subr.bf16.mxu0 %v2386
  %3746 = vmatpush1.bf16.msra.mxu0 %v2385
  %3747 = vmatprep.subr.bf16.mxu0 %v2394
  %3748 = vmatpush1.bf16.msra.mxu0 %v2393
  %3749 = vmatprep.mubr.bf16.mxu0 %v702
  %3750 = vmatmul.mubr.bf16.gmra.mrb[0].mxu0 %v701
  %v3751 = vpop.f32.mrb[0].mxu0
  %v3752 = vadd.f32 %v632, %v3751
  %v3753 = vpop.f32.mrb[0].mxu0
  %v3754 = vadd.f32 %v636, %v3753
  %v3755 = vpop.f32.mrb[0].mxu0
  %v3756 = vadd.f32 %v632, %v3755
  %v3757 = vpop.f32.mrb[0].mxu0
  %v3758 = vadd.f32 %v636, %v3757
  %3759 = vmatprep.mubr.bf16.mxu0 %v710
  %3760 = vmatmul.mubr.bf16.gmra.mrb[0].mxu0 %v709
  %v3761 = vpop.f32.mrb[0].mxu0
  %v3762 = vadd.f32 %v632, %v3761
  %v3763 = vpop.f32.mrb[0].mxu0
  %v3764 = vadd.f32 %v636, %v3763
  %v3765 = vpop.f32.mrb[0].mxu0
  %v3766 = vadd.f32 %v632, %v3765
  %v3767 = vpop.f32.mrb[0].mxu0
  %v3768 = vadd.f32 %v636, %v3767
  %3769 = vdwg.mxu0
  %3770 = vmatprep.subr.bf16.mxu0 %v2402
  %3771 = vmatpush1.bf16.msra.mxu0 %v2401
  %3772 = vmatprep.subr.bf16.mxu0 %v2410
  %3773 = vmatpush1.bf16.msra.mxu0 %v2409
  %3774 = vmatprep.subr.bf16.mxu0 %v2418
  %3775 = vmatpush1.bf16.msra.mxu0 %v2417
  %3776 = vmatprep.subr.bf16.mxu0 %v2426
  %3777 = vmatpush1.bf16.msra.mxu0 %v2425
  %3778 = vmatprep.subr.bf16.mxu0 %v2434
  %3779 = vmatpush1.bf16.msra.mxu0 %v2433
  %3780 = vmatprep.subr.bf16.mxu0 %v2442
  %3781 = vmatpush1.bf16.msra.mxu0 %v2441
  %3782 = vmatprep.subr.bf16.mxu0 %v2450
  %3783 = vmatpush1.bf16.msra.mxu0 %v2449
  %3784 = vmatprep.subr.bf16.mxu0 %v2458
  %3785 = vmatpush1.bf16.msra.mxu0 %v2457
  %3786 = vmatprep.subr.bf16.mxu0 %v2466
  %3787 = vmatpush1.bf16.msra.mxu0 %v2465
  %3788 = vmatprep.subr.bf16.mxu0 %v2474
  %3789 = vmatpush1.bf16.msra.mxu0 %v2473
  %3790 = vmatprep.subr.bf16.mxu0 %v2482
  %3791 = vmatpush1.bf16.msra.mxu0 %v2481
  %3792 = vmatprep.subr.bf16.mxu0 %v2490
  %3793 = vmatpush1.bf16.msra.mxu0 %v2489
  %3794 = vmatprep.subr.bf16.mxu0 %v2498
  %3795 = vmatpush1.bf16.msra.mxu0 %v2497
  %3796 = vmatprep.subr.bf16.mxu0 %v2506
  %3797 = vmatpush1.bf16.msra.mxu0 %v2505
  %3798 = vmatprep.subr.bf16.mxu0 %v2514
  %3799 = vmatpush1.bf16.msra.mxu0 %v2513
  %3800 = vmatprep.subr.bf16.mxu0 %v2522
  %3801 = vmatpush1.bf16.msra.mxu0 %v2521
  %3802 = vmatprep.mubr.bf16.mxu0 %v704
  %3803 = vmatmul.mubr.bf16.gmra.mrb[0].mxu0 %v703
  %v3804 = vpop.f32.mrb[0].mxu0
  %v3805 = vadd.f32 %v3752, %v3804
  %v3806 = vpop.f32.mrb[0].mxu0
  %v3807 = vadd.f32 %v3754, %v3806
  %v3808 = vpop.f32.mrb[0].mxu0
  %v3809 = vadd.f32 %v3756, %v3808
  %v3810 = vpop.f32.mrb[0].mxu0
  %v3811 = vadd.f32 %v3758, %v3810
  %3812 = vmatprep.mubr.bf16.mxu0 %v712
  %3813 = vmatmul.mubr.bf16.gmra.mrb[0].mxu0 %v711
  %v3814 = vpop.f32.mrb[0].mxu0
  %v3815 = vadd.f32 %v3762, %v3814
  %v3816 = vpop.f32.mrb[0].mxu0
  %v3817 = vadd.f32 %v3764, %v3816
  %v3818 = vpop.f32.mrb[0].mxu0
  %v3819 = vadd.f32 %v3766, %v3818
  %v3820 = vpop.f32.mrb[0].mxu0
  %v3821 = vadd.f32 %v3768, %v3820
  %3822 = vdwg.mxu0
  %3823 = vmatprep.subr.bf16.mxu0 %v2530
  %3824 = vmatpush1.bf16.msra.mxu0 %v2529
  %3825 = vmatprep.subr.bf16.mxu0 %v2538
  %3826 = vmatpush1.bf16.msra.mxu0 %v2537
  %3827 = vmatprep.subr.bf16.mxu0 %v2546
  %3828 = vmatpush1.bf16.msra.mxu0 %v2545
  %3829 = vmatprep.subr.bf16.mxu0 %v2554
  %3830 = vmatpush1.bf16.msra.mxu0 %v2553
  %3831 = vmatprep.subr.bf16.mxu0 %v2562
  %3832 = vmatpush1.bf16.msra.mxu0 %v2561
  %3833 = vmatprep.subr.bf16.mxu0 %v2570
  %3834 = vmatpush1.bf16.msra.mxu0 %v2569
  %3835 = vmatprep.subr.bf16.mxu0 %v2578
  %3836 = vmatpush1.bf16.msra.mxu0 %v2577
  %3837 = vmatprep.subr.bf16.mxu0 %v2586
  %3838 = vmatpush1.bf16.msra.mxu0 %v2585
  %3839 = vmatprep.subr.bf16.mxu0 %v2594
  %3840 = vmatpush1.bf16.msra.mxu0 %v2593
  %3841 = vmatprep.subr.bf16.mxu0 %v2602
  %3842 = vmatpush1.bf16.msra.mxu0 %v2601
  %3843 = vmatprep.subr.bf16.mxu0 %v2610
  %3844 = vmatpush1.bf16.msra.mxu0 %v2609
  %3845 = vmatprep.subr.bf16.mxu0 %v2618
  %3846 = vmatpush1.bf16.msra.mxu0 %v2617
  %3847 = vmatprep.subr.bf16.mxu0 %v2626
  %3848 = vmatpush1.bf16.msra.mxu0 %v2625
  %3849 = vmatprep.subr.bf16.mxu0 %v2634
  %3850 = vmatpush1.bf16.msra.mxu0 %v2633
  %3851 = vmatprep.subr.bf16.mxu0 %v2642
  %3852 = vmatpush1.bf16.msra.mxu0 %v2641
  %3853 = vmatprep.subr.bf16.mxu0 %v2650
  %3854 = vmatpush1.bf16.msra.mxu0 %v2649
  %3855 = vmatprep.mubr.bf16.mxu0 %v706
  %3856 = vmatmul.mubr.bf16.gmra.mrb[0].mxu0 %v705
  %v3857 = vpop.f32.mrb[0].mxu0
  %v3858 = vadd.f32 %v3805, %v3857
  %v3859 = vpop.f32.mrb[0].mxu0
  %v3860 = vadd.f32 %v3807, %v3859
  %v3861 = vpop.f32.mrb[0].mxu0
  %v3862 = vadd.f32 %v3809, %v3861
  %v3863 = vpop.f32.mrb[0].mxu0
  %v3864 = vadd.f32 %v3811, %v3863
  %3865 = vmatprep.mubr.bf16.mxu0 %v714
  %3866 = vmatmul.mubr.bf16.gmra.mrb[0].mxu0 %v713
  %v3867 = vpop.f32.mrb[0].mxu0
  %v3868 = vadd.f32 %v3815, %v3867
  %v3869 = vpop.f32.mrb[0].mxu0
  %v3870 = vadd.f32 %v3817, %v3869
  %v3871 = vpop.f32.mrb[0].mxu0
  %v3872 = vadd.f32 %v3819, %v3871
  %v3873 = vpop.f32.mrb[0].mxu0
  %v3874 = vadd.f32 %v3821, %v3873
  %3875 = vdwg.mxu0
  %3876 = vmatprep.subr.bf16.mxu0 %v2658
  %3877 = vmatpush1.bf16.msra.mxu0 %v2657
  %3878 = vmatprep.subr.bf16.mxu0 %v2666
  %3879 = vmatpush1.bf16.msra.mxu0 %v2665
  %3880 = vmatprep.subr.bf16.mxu0 %v2674
  %3881 = vmatpush1.bf16.msra.mxu0 %v2673
  %3882 = vmatprep.subr.bf16.mxu0 %v2682
  %3883 = vmatpush1.bf16.msra.mxu0 %v2681
  %3884 = vmatprep.subr.bf16.mxu0 %v2690
  %3885 = vmatpush1.bf16.msra.mxu0 %v2689
  %3886 = vmatprep.subr.bf16.mxu0 %v2698
  %3887 = vmatpush1.bf16.msra.mxu0 %v2697
  %3888 = vmatprep.subr.bf16.mxu0 %v2706
  %3889 = vmatpush1.bf16.msra.mxu0 %v2705
  %3890 = vmatprep.subr.bf16.mxu0 %v2714
  %3891 = vmatpush1.bf16.msra.mxu0 %v2713
  %3892 = vmatprep.subr.bf16.mxu0 %v2722
  %3893 = vmatpush1.bf16.msra.mxu0 %v2721
  %3894 = vmatprep.subr.bf16.mxu0 %v2730
  %3895 = vmatpush1.bf16.msra.mxu0 %v2729
  %3896 = vmatprep.subr.bf16.mxu0 %v2738
  %3897 = vmatpush1.bf16.msra.mxu0 %v2737
  %3898 = vmatprep.subr.bf16.mxu0 %v2746
  %3899 = vmatpush1.bf16.msra.mxu0 %v2745
  %3900 = vmatprep.subr.bf16.mxu0 %v2754
  %3901 = vmatpush1.bf16.msra.mxu0 %v2753
  %3902 = vmatprep.subr.bf16.mxu0 %v2762
  %3903 = vmatpush1.bf16.msra.mxu0 %v2761
  %3904 = vmatprep.subr.bf16.mxu0 %v2770
  %3905 = vmatpush1.bf16.msra.mxu0 %v2769
  %3906 = vmatprep.subr.bf16.mxu0 %v2778
  %3907 = vmatpush1.bf16.msra.mxu0 %v2777
  %3908 = vmatprep.mubr.bf16.mxu0 %v708
  %3909 = vmatmul.mubr.bf16.gmra.mrb[0].mxu0 %v707
  %v3910 = vpop.f32.mrb[0].mxu0
  %v3911 = vadd.f32 %v3858, %v3910
  %v3912 = vpop.f32.mrb[0].mxu0
  %v3913 = vadd.f32 %v3860, %v3912
  %v3914 = vpop.f32.mrb[0].mxu0
  %v3915 = vadd.f32 %v3862, %v3914
  %v3916 = vpop.f32.mrb[0].mxu0
  %v3917 = vadd.f32 %v3864, %v3916
  %3918 = vmatprep.mubr.bf16.mxu0 %v716
  %3919 = vmatmul.mubr.bf16.gmra.mrb[0].mxu0 %v715
  %v3920 = vpop.f32.mrb[0].mxu0
  %v3921 = vadd.f32 %v3868, %v3920
  %v3922 = vpop.f32.mrb[0].mxu0
  %v3923 = vadd.f32 %v3870, %v3922
  %v3924 = vpop.f32.mrb[0].mxu0
  %v3925 = vadd.f32 %v3872, %v3924
  %v3926 = vpop.f32.mrb[0].mxu0
  %v3927 = vadd.f32 %v3874, %v3926
  %3928 = vdwg.mxu0
  %3929 = vmatprep.subr.bf16.mxu0 %v2276
  %3930 = vmatpush1.bf16.msra.mxu0 %v2275
  %3931 = vmatprep.subr.bf16.mxu0 %v2284
  %3932 = vmatpush1.bf16.msra.mxu0 %v2283
  %3933 = vmatprep.subr.bf16.mxu0 %v2292
  %3934 = vmatpush1.bf16.msra.mxu0 %v2291
  %3935 = vmatprep.subr.bf16.mxu0 %v2300
  %3936 = vmatpush1.bf16.msra.mxu0 %v2299
  %3937 = vmatprep.subr.bf16.mxu0 %v2308
  %3938 = vmatpush1.bf16.msra.mxu0 %v2307
  %3939 = vmatprep.subr.bf16.mxu0 %v2316
  %3940 = vmatpush1.bf16.msra.mxu0 %v2315
  %3941 = vmatprep.subr.bf16.mxu0 %v2324
  %3942 = vmatpush1.bf16.msra.mxu0 %v2323
  %3943 = vmatprep.subr.bf16.mxu0 %v2332
  %3944 = vmatpush1.bf16.msra.mxu0 %v2331
  %3945 = vmatprep.subr.bf16.mxu0 %v2340
  %3946 = vmatpush1.bf16.msra.mxu0 %v2339
  %3947 = vmatprep.subr.bf16.mxu0 %v2348
  %3948 = vmatpush1.bf16.msra.mxu0 %v2347
  %3949 = vmatprep.subr.bf16.mxu0 %v2356
  %3950 = vmatpush1.bf16.msra.mxu0 %v2355
  %3951 = vmatprep.subr.bf16.mxu0 %v2364
  %3952 = vmatpush1.bf16.msra.mxu0 %v2363
  %3953 = vmatprep.subr.bf16.mxu0 %v2372
  %3954 = vmatpush1.bf16.msra.mxu0 %v2371
  %3955 = vmatprep.subr.bf16.mxu0 %v2380
  %3956 = vmatpush1.bf16.msra.mxu0 %v2379
  %3957 = vmatprep.subr.bf16.mxu0 %v2388
  %3958 = vmatpush1.bf16.msra.mxu0 %v2387
  %3959 = vmatprep.subr.bf16.mxu0 %v2396
  %3960 = vmatpush1.bf16.msra.mxu0 %v2395
  %3961 = vmatprep.mubr.bf16.mxu0 %v702
  %3962 = vmatmul.mubr.bf16.gmra.mrb[0].mxu0 %v701
  %v3963 = vpop.f32.mrb[0].mxu0
  %v3964 = vadd.f32 %v640, %v3963
  %v3965 = vpop.f32.mrb[0].mxu0
  %v3966 = vadd.f32 %v644, %v3965
  %v3967 = vpop.f32.mrb[0].mxu0
  %v3968 = vadd.f32 %v640, %v3967
  %v3969 = vpop.f32.mrb[0].mxu0
  %v3970 = vadd.f32 %v644, %v3969
  %3971 = vmatprep.mubr.bf16.mxu0 %v710
  %3972 = vmatmul.mubr.bf16.gmra.mrb[0].mxu0 %v709
  %v3973 = vpop.f32.mrb[0].mxu0
  %v3974 = vadd.f32 %v640, %v3973
  %v3975 = vpop.f32.mrb[0].mxu0
  %v3976 = vadd.f32 %v644, %v3975
  %v3977 = vpop.f32.mrb[0].mxu0
  %v3978 = vadd.f32 %v640, %v3977
  %v3979 = vpop.f32.mrb[0].mxu0
  %v3980 = vadd.f32 %v644, %v3979
  %3981 = vdwg.mxu0
  %3982 = vmatprep.subr.bf16.mxu0 %v2404
  %3983 = vmatpush1.bf16.msra.mxu0 %v2403
  %3984 = vmatprep.subr.bf16.mxu0 %v2412
  %3985 = vmatpush1.bf16.msra.mxu0 %v2411
  %3986 = vmatprep.subr.bf16.mxu0 %v2420
  %3987 = vmatpush1.bf16.msra.mxu0 %v2419
  %3988 = vmatprep.subr.bf16.mxu0 %v2428
  %3989 = vmatpush1.bf16.msra.mxu0 %v2427
  %3990 = vmatprep.subr.bf16.mxu0 %v2436
  %3991 = vmatpush1.bf16.msra.mxu0 %v2435
  %3992 = vmatprep.subr.bf16.mxu0 %v2444
  %3993 = vmatpush1.bf16.msra.mxu0 %v2443
  %3994 = vmatprep.subr.bf16.mxu0 %v2452
  %3995 = vmatpush1.bf16.msra.mxu0 %v2451
  %3996 = vmatprep.subr.bf16.mxu0 %v2460
  %3997 = vmatpush1.bf16.msra.mxu0 %v2459
  %3998 = vmatprep.subr.bf16.mxu0 %v2468
  %3999 = vmatpush1.bf16.msra.mxu0 %v2467
  %4000 = vmatprep.subr.bf16.mxu0 %v2476
  %4001 = vmatpush1.bf16.msra.mxu0 %v2475
  %4002 = vmatprep.subr.bf16.mxu0 %v2484
  %4003 = vmatpush1.bf16.msra.mxu0 %v2483
  %4004 = vmatprep.subr.bf16.mxu0 %v2492
  %4005 = vmatpush1.bf16.msra.mxu0 %v2491
  %4006 = vmatprep.subr.bf16.mxu0 %v2500
  %4007 = vmatpush1.bf16.msra.mxu0 %v2499
  %4008 = vmatprep.subr.bf16.mxu0 %v2508
  %4009 = vmatpush1.bf16.msra.mxu0 %v2507
  %4010 = vmatprep.subr.bf16.mxu0 %v2516
  %4011 = vmatpush1.bf16.msra.mxu0 %v2515
  %4012 = vmatprep.subr.bf16.mxu0 %v2524
  %4013 = vmatpush1.bf16.msra.mxu0 %v2523
  %4014 = vmatprep.mubr.bf16.mxu0 %v704
  %4015 = vmatmul.mubr.bf16.gmra.mrb[0].mxu0 %v703
  %v4016 = vpop.f32.mrb[0].mxu0
  %v4017 = vadd.f32 %v3964, %v4016
  %v4018 = vpop.f32.mrb[0].mxu0
  %v4019 = vadd.f32 %v3966, %v4018
  %v4020 = vpop.f32.mrb[0].mxu0
  %v4021 = vadd.f32 %v3968, %v4020
  %v4022 = vpop.f32.mrb[0].mxu0
  %v4023 = vadd.f32 %v3970, %v4022
  %4024 = vmatprep.mubr.bf16.mxu0 %v712
  %4025 = vmatmul.mubr.bf16.gmra.mrb[0].mxu0 %v711
  %v4026 = vpop.f32.mrb[0].mxu0
  %v4027 = vadd.f32 %v3974, %v4026
  %v4028 = vpop.f32.mrb[0].mxu0
  %v4029 = vadd.f32 %v3976, %v4028
  %v4030 = vpop.f32.mrb[0].mxu0
  %v4031 = vadd.f32 %v3978, %v4030
  %v4032 = vpop.f32.mrb[0].mxu0
  %v4033 = vadd.f32 %v3980, %v4032
  %4034 = vdwg.mxu0
  %4035 = vmatprep.subr.bf16.mxu0 %v2532
  %4036 = vmatpush1.bf16.msra.mxu0 %v2531
  %4037 = vmatprep.subr.bf16.mxu0 %v2540
  %4038 = vmatpush1.bf16.msra.mxu0 %v2539
  %4039 = vmatprep.subr.bf16.mxu0 %v2548
  %4040 = vmatpush1.bf16.msra.mxu0 %v2547
  %4041 = vmatprep.subr.bf16.mxu0 %v2556
  %4042 = vmatpush1.bf16.msra.mxu0 %v2555
  %4043 = vmatprep.subr.bf16.mxu0 %v2564
  %4044 = vmatpush1.bf16.msra.mxu0 %v2563
  %4045 = vmatprep.subr.bf16.mxu0 %v2572
  %4046 = vmatpush1.bf16.msra.mxu0 %v2571
  %4047 = vmatprep.subr.bf16.mxu0 %v2580
  %4048 = vmatpush1.bf16.msra.mxu0 %v2579
  %4049 = vmatprep.subr.bf16.mxu0 %v2588
  %4050 = vmatpush1.bf16.msra.mxu0 %v2587
  %4051 = vmatprep.subr.bf16.mxu0 %v2596
  %4052 = vmatpush1.bf16.msra.mxu0 %v2595
  %4053 = vmatprep.subr.bf16.mxu0 %v2604
  %4054 = vmatpush1.bf16.msra.mxu0 %v2603
  %4055 = vmatprep.subr.bf16.mxu0 %v2612
  %4056 = vmatpush1.bf16.msra.mxu0 %v2611
  %4057 = vmatprep.subr.bf16.mxu0 %v2620
  %4058 = vmatpush1.bf16.msra.mxu0 %v2619
  %4059 = vmatprep.subr.bf16.mxu0 %v2628
  %4060 = vmatpush1.bf16.msra.mxu0 %v2627
  %4061 = vmatprep.subr.bf16.mxu0 %v2636
  %4062 = vmatpush1.bf16.msra.mxu0 %v2635
  %4063 = vmatprep.subr.bf16.mxu0 %v2644
  %4064 = vmatpush1.bf16.msra.mxu0 %v2643
  %4065 = vmatprep.subr.bf16.mxu0 %v2652
  %4066 = vmatpush1.bf16.msra.mxu0 %v2651
  %4067 = vmatprep.mubr.bf16.mxu0 %v706
  %4068 = vmatmul.mubr.bf16.gmra.mrb[0].mxu0 %v705
  %v4069 = vpop.f32.mrb[0].mxu0
  %v4070 = vadd.f32 %v4017, %v4069
  %v4071 = vpop.f32.mrb[0].mxu0
  %v4072 = vadd.f32 %v4019, %v4071
  %v4073 = vpop.f32.mrb[0].mxu0
  %v4074 = vadd.f32 %v4021, %v4073
  %v4075 = vpop.f32.mrb[0].mxu0
  %v4076 = vadd.f32 %v4023, %v4075
  %4077 = vmatprep.mubr.bf16.mxu0 %v714
  %4078 = vmatmul.mubr.bf16.gmra.mrb[0].mxu0 %v713
  %v4079 = vpop.f32.mrb[0].mxu0
  %v4080 = vadd.f32 %v4027, %v4079
  %v4081 = vpop.f32.mrb[0].mxu0
  %v4082 = vadd.f32 %v4029, %v4081
  %v4083 = vpop.f32.mrb[0].mxu0
  %v4084 = vadd.f32 %v4031, %v4083
  %v4085 = vpop.f32.mrb[0].mxu0
  %v4086 = vadd.f32 %v4033, %v4085
  %4087 = vdwg.mxu0
  %4088 = vmatprep.subr.bf16.mxu0 %v2660
  %4089 = vmatpush1.bf16.msra.mxu0 %v2659
  %4090 = vmatprep.subr.bf16.mxu0 %v2668
  %4091 = vmatpush1.bf16.msra.mxu0 %v2667
  %4092 = vmatprep.subr.bf16.mxu0 %v2676
  %4093 = vmatpush1.bf16.msra.mxu0 %v2675
  %4094 = vmatprep.subr.bf16.mxu0 %v2684
  %4095 = vmatpush1.bf16.msra.mxu0 %v2683
  %4096 = vmatprep.subr.bf16.mxu0 %v2692
  %4097 = vmatpush1.bf16.msra.mxu0 %v2691
  %4098 = vmatprep.subr.bf16.mxu0 %v2700
  %4099 = vmatpush1.bf16.msra.mxu0 %v2699
  %4100 = vmatprep.subr.bf16.mxu0 %v2708
  %4101 = vmatpush1.bf16.msra.mxu0 %v2707
  %4102 = vmatprep.subr.bf16.mxu0 %v2716
  %4103 = vmatpush1.bf16.msra.mxu0 %v2715
  %4104 = vmatprep.subr.bf16.mxu0 %v2724
  %4105 = vmatpush1.bf16.msra.mxu0 %v2723
  %4106 = vmatprep.subr.bf16.mxu0 %v2732
  %4107 = vmatpush1.bf16.msra.mxu0 %v2731
  %4108 = vmatprep.subr.bf16.mxu0 %v2740
  %4109 = vmatpush1.bf16.msra.mxu0 %v2739
  %4110 = vmatprep.subr.bf16.mxu0 %v2748
  %4111 = vmatpush1.bf16.msra.mxu0 %v2747
  %4112 = vmatprep.subr.bf16.mxu0 %v2756
  %4113 = vmatpush1.bf16.msra.mxu0 %v2755
  %4114 = vmatprep.subr.bf16.mxu0 %v2764
  %4115 = vmatpush1.bf16.msra.mxu0 %v2763
  %4116 = vmatprep.subr.bf16.mxu0 %v2772
  %4117 = vmatpush1.bf16.msra.mxu0 %v2771
  %4118 = vmatprep.subr.bf16.mxu0 %v2780
  %4119 = vmatpush1.bf16.msra.mxu0 %v2779
  %4120 = vmatprep.mubr.bf16.mxu0 %v708
  %4121 = vmatmul.mubr.bf16.gmra.mrb[0].mxu0 %v707
  %v4122 = vpop.f32.mrb[0].mxu0
  %v4123 = vadd.f32 %v4070, %v4122
  %v4124 = vpop.f32.mrb[0].mxu0
  %v4125 = vadd.f32 %v4072, %v4124
  %v4126 = vpop.f32.mrb[0].mxu0
  %v4127 = vadd.f32 %v4074, %v4126
  %v4128 = vpop.f32.mrb[0].mxu0
  %v4129 = vadd.f32 %v4076, %v4128
  %4130 = vmatprep.mubr.bf16.mxu0 %v716
  %4131 = vmatmul.mubr.bf16.gmra.mrb[0].mxu0 %v715
  %v4132 = vpop.f32.mrb[0].mxu0
  %v4133 = vadd.f32 %v4080, %v4132
  %v4134 = vpop.f32.mrb[0].mxu0
  %v4135 = vadd.f32 %v4082, %v4134
  %v4136 = vpop.f32.mrb[0].mxu0
  %v4137 = vadd.f32 %v4084, %v4136
  %v4138 = vpop.f32.mrb[0].mxu0
  %v4139 = vadd.f32 %v4086, %v4138
  %4140 = vdwg.mxu0
  %v4141 = vmax.f32 %v3487, 0.0
  %v4142 = vmax.f32 %v3489, 0.0
  %v4143 = vmax.f32 %v3699, 0.0
  %v4144 = vmax.f32 %v3701, 0.0
  %v4145 = vmax.f32 %v3911, 0.0
  %v4146 = vmax.f32 %v3913, 0.0
  %v4147 = vmax.f32 %v4123, 0.0
  %v4148 = vmax.f32 %v4125, 0.0
  %v4149 = vmax.f32 %v3491, 0.0
  %v4150 = vmax.f32 %v3493, 0.0
  %v4151 = vmax.f32 %v3703, 0.0
  %v4152 = vmax.f32 %v3705, 0.0
  %v4153 = vmax.f32 %v3915, 0.0
  %v4154 = vmax.f32 %v3917, 0.0
  %v4155 = vmax.f32 %v4127, 0.0
  %v4156 = vmax.f32 %v4129, 0.0
  %v4157 = vmax.f32 %v3497, 0.0
  %v4158 = vmax.f32 %v3499, 0.0
  %v4159 = vmax.f32 %v3709, 0.0
  %v4160 = vmax.f32 %v3711, 0.0
  %v4161 = vmax.f32 %v3921, 0.0
  %v4162 = vmax.f32 %v3923, 0.0
  %v4163 = vmax.f32 %v4133, 0.0
  %v4164 = vmax.f32 %v4135, 0.0
  %v4165 = vmax.f32 %v3501, 0.0
  %v4166 = vmax.f32 %v3503, 0.0
  %v4167 = vmax.f32 %v3713, 0.0
  %v4168 = vmax.f32 %v3715, 0.0
  %v4169 = vmax.f32 %v3925, 0.0
  %v4170 = vmax.f32 %v3927, 0.0
  %v4171 = vmax.f32 %v4137, 0.0
  %v4172 = vmax.f32 %v4139, 0.0
  %v4181 = vrot.slane %v4141, 7
  %v4182 = vrot.slane %v4142, 7
  %v4183 = vrot.slane %v4143, 7
  %v4184 = vrot.slane %v4144, 7
  %v4185 = vrot.slane %v4145, 7
  %v4186 = vrot.slane %v4146, 7
  %v4187 = vrot.slane %v4147, 7
  %v4188 = vrot.slane %v4148, 7
  %4197 = vst [vmem:[#allocation2 + $0x8] sm:$0xfe] %v4181
  %4198 = vst [vmem:[#allocation2 + $0x10] sm:$0xfe] %v4182
  %4199 = vst [vmem:[#allocation2 + $0x18] sm:$0xfe] %v4183
  %4200 = vst [vmem:[#allocation2 + $0x20] sm:$0xfe] %v4184
  %4201 = vst [vmem:[#allocation2 + $0x28] sm:$0xfe] %v4185
  %4202 = vst [vmem:[#allocation2 + $0x30] sm:$0xfe] %v4186
  %4203 = vst [vmem:[#allocation2 + $0x38] sm:$0xfe] %v4187
  %4204 = vst [vmem:[#allocation2 + $0x40] sm:$0xfe] %v4188
  %4205 = vst [vmem:[#allocation2 + $0x58] sm:$0x1] %v4181
  %4206 = vst [vmem:[#allocation2 + $0x60] sm:$0x1] %v4182
  %4207 = vst [vmem:[#allocation2 + $0x68] sm:$0x1] %v4183
  %4208 = vst [vmem:[#allocation2 + $0x70] sm:$0x1] %v4184
  %4209 = vst [vmem:[#allocation2 + $0x78] sm:$0x1] %v4185
  %4210 = vst [vmem:[#allocation2 + $0x80] sm:$0x1] %v4186
  %4211 = vst [vmem:[#allocation2 + $0x88] sm:$0x1] %v4187
  %4212 = vst [vmem:[#allocation2 + $0x90] sm:$0x1] %v4188
  %v4221 = vrot.slane %v4149, 5
  %v4222 = vrot.slane %v4150, 5
  %v4223 = vrot.slane %v4151, 5
  %v4224 = vrot.slane %v4152, 5
  %v4225 = vrot.slane %v4153, 5
  %v4226 = vrot.slane %v4154, 5
  %v4227 = vrot.slane %v4155, 5
  %v4228 = vrot.slane %v4156, 5
  %4237 = vst [vmem:[#allocation2 + $0x58] sm:$0xf8] %v4221
  %4238 = vst [vmem:[#allocation2 + $0x60] sm:$0xf8] %v4222
  %4239 = vst [vmem:[#allocation2 + $0x68] sm:$0xf8] %v4223
  %4240 = vst [vmem:[#allocation2 + $0x70] sm:$0xf8] %v4224
  %4241 = vst [vmem:[#allocation2 + $0x78] sm:$0xf8] %v4225
  %4242 = vst [vmem:[#allocation2 + $0x80] sm:$0xf8] %v4226
  %4243 = vst [vmem:[#allocation2 + $0x88] sm:$0xf8] %v4227
  %4244 = vst [vmem:[#allocation2 + $0x90] sm:$0xf8] %v4228
  %4245 = vst [vmem:[#allocation2 + $0xa8] sm:$0x7] %v4221
  %4246 = vst [vmem:[#allocation2 + $0xb0] sm:$0x7] %v4222
  %4247 = vst [vmem:[#allocation2 + $0xb8] sm:$0x7] %v4223
  %4248 = vst [vmem:[#allocation2 + $0xc0] sm:$0x7] %v4224
  %4249 = vst [vmem:[#allocation2 + $0xc8] sm:$0x7] %v4225
  %4250 = vst [vmem:[#allocation2 + $0xd0] sm:$0x7] %v4226
  %4251 = vst [vmem:[#allocation2 + $0xd8] sm:$0x7] %v4227
  %4252 = vst [vmem:[#allocation2 + $0xe0] sm:$0x7] %v4228
  %v4261 = vrot.slane %v4157, 7
  %v4262 = vrot.slane %v4158, 7
  %v4263 = vrot.slane %v4159, 7
  %v4264 = vrot.slane %v4160, 7
  %v4265 = vrot.slane %v4161, 7
  %v4266 = vrot.slane %v4162, 7
  %v4267 = vrot.slane %v4163, 7
  %v4268 = vrot.slane %v4164, 7
  %4277 = vst [vmem:[%s53 + $0x8] sm:$0xfe] %v4261
  %4278 = vst [vmem:[%s53 + $0x10] sm:$0xfe] %v4262
  %4279 = vst [vmem:[%s53 + $0x18] sm:$0xfe] %v4263
  %4280 = vst [vmem:[%s53 + $0x20] sm:$0xfe] %v4264
  %4281 = vst [vmem:[%s53 + $0x28] sm:$0xfe] %v4265
  %4282 = vst [vmem:[%s53 + $0x30] sm:$0xfe] %v4266
  %4283 = vst [vmem:[%s53 + $0x38] sm:$0xfe] %v4267
  %4284 = vst [vmem:[%s53 + $0x40] sm:$0xfe] %v4268
  %4285 = vst [vmem:[%s53 + $0x58] sm:$0x1] %v4261
  %4286 = vst [vmem:[%s53 + $0x60] sm:$0x1] %v4262
  %4287 = vst [vmem:[%s53 + $0x68] sm:$0x1] %v4263
  %4288 = vst [vmem:[%s53 + $0x70] sm:$0x1] %v4264
  %4289 = vst [vmem:[%s53 + $0x78] sm:$0x1] %v4265
  %4290 = vst [vmem:[%s53 + $0x80] sm:$0x1] %v4266
  %4291 = vst [vmem:[%s53 + $0x88] sm:$0x1] %v4267
  %4292 = vst [vmem:[%s53 + $0x90] sm:$0x1] %v4268
  %v4301 = vrot.slane %v4165, 5
  %v4302 = vrot.slane %v4166, 5
  %v4303 = vrot.slane %v4167, 5
  %v4304 = vrot.slane %v4168, 5
  %v4305 = vrot.slane %v4169, 5
  %v4306 = vrot.slane %v4170, 5
  %v4307 = vrot.slane %v4171, 5
  %v4308 = vrot.slane %v4172, 5
  %4317 = vst [vmem:[%s53 + $0x58] sm:$0xf8] %v4301
  %4318 = vst [vmem:[%s53 + $0x60] sm:$0xf8] %v4302
  %4319 = vst [vmem:[%s53 + $0x68] sm:$0xf8] %v4303
  %4320 = vst [vmem:[%s53 + $0x70] sm:$0xf8] %v4304
  %4321 = vst [vmem:[%s53 + $0x78] sm:$0xf8] %v4305
  %4322 = vst [vmem:[%s53 + $0x80] sm:$0xf8] %v4306
  %4323 = vst [vmem:[%s53 + $0x88] sm:$0xf8] %v4307
  %4324 = vst [vmem:[%s53 + $0x90] sm:$0xf8] %v4308
  %4325 = vst [vmem:[%s53 + $0xa8] sm:$0x7] %v4301
  %4326 = vst [vmem:[%s53 + $0xb0] sm:$0x7] %v4302
  %4327 = vst [vmem:[%s53 + $0xb8] sm:$0x7] %v4303
  %4328 = vst [vmem:[%s53 + $0xc0] sm:$0x7] %v4304
  %4329 = vst [vmem:[%s53 + $0xc8] sm:$0x7] %v4305
  %4330 = vst [vmem:[%s53 + $0xd0] sm:$0x7] %v4306
  %4331 = vst [vmem:[%s53 + $0xd8] sm:$0x7] %v4307
  %4332 = vst [vmem:[%s53 + $0xe0] sm:$0x7] %v4308
  %v4333 = vld [vmem:[#allocation2 + $0x8] sm:$0xfe]
  %v4334 = vld [vmem:[#allocation2 + $0x10] sm:$0xfe]
  %v4335 = vld [vmem:[#allocation2 + $0x18] sm:$0xfe]
  %v4336 = vld [vmem:[#allocation2 + $0x20] sm:$0xfe]
  %v4337 = vld [vmem:[#allocation2 + $0x28] sm:$0xfe]
  %v4338 = vld [vmem:[#allocation2 + $0x30] sm:$0xfe]
  %v4339 = vld [vmem:[#allocation2 + $0x38] sm:$0xfe]
  %v4340 = vld [vmem:[#allocation2 + $0x40] sm:$0xfe]
  %v4341 = vld [vmem:[#allocation2 + $0x58] sm:$0x1]
  %v4342 = vld [vmem:[#allocation2 + $0x60] sm:$0x1]
  %v4343 = vld [vmem:[#allocation2 + $0x68] sm:$0x1]
  %v4344 = vld [vmem:[#allocation2 + $0x70] sm:$0x1]
  %v4345 = vld [vmem:[#allocation2 + $0x78] sm:$0x1]
  %v4346 = vld [vmem:[#allocation2 + $0x80] sm:$0x1]
  %v4347 = vld [vmem:[#allocation2 + $0x88] sm:$0x1]
  %v4348 = vld [vmem:[#allocation2 + $0x90] sm:$0x1]
  %v4349 = vld [vmem:[#allocation2 + $0x50] sm:$0xfc]
  %v4350 = vld [vmem:[#allocation2 + $0x58] sm:$0xfc]
  %v4351 = vld [vmem:[#allocation2 + $0x60] sm:$0xfc]
  %v4352 = vld [vmem:[#allocation2 + $0x68] sm:$0xfc]
  %v4353 = vld [vmem:[#allocation2 + $0x70] sm:$0xfc]
  %v4354 = vld [vmem:[#allocation2 + $0x78] sm:$0xfc]
  %v4355 = vld [vmem:[#allocation2 + $0x80] sm:$0xfc]
  %v4356 = vld [vmem:[#allocation2 + $0x88] sm:$0xfc]
  %v4357 = vld [vmem:[#allocation2 + $0x90] sm:$0xfc]
  %v4358 = vld [vmem:[#allocation2 + $0xa0] sm:$0x3]
  %v4359 = vld [vmem:[#allocation2 + $0xa8] sm:$0x3]
  %v4360 = vld [vmem:[#allocation2 + $0xb0] sm:$0x3]
  %v4361 = vld [vmem:[#allocation2 + $0xb8] sm:$0x3]
  %v4362 = vld [vmem:[#allocation2 + $0xc0] sm:$0x3]
  %v4363 = vld [vmem:[#allocation2 + $0xc8] sm:$0x3]
  %v4364 = vld [vmem:[#allocation2 + $0xd0] sm:$0x3]
  %v4365 = vld [vmem:[#allocation2 + $0xd8] sm:$0x3]
  %v4366 = vld [vmem:[#allocation2 + $0xe0] sm:$0x3]
  %vm4385 = vcmask 1046528
  %v4386 = vrot.slane %v4349, 1
  %v4387 = vrot.slane %v4358, 1
  %v4388 = vsel %vm4385, %v4386, %v4387
  %v4389 = vrot.slane %v4350, 1
  %v4390 = vrot.slane %v4359, 1
  %v4391 = vsel %vm4385, %v4389, %v4390
  %v4392 = vrot.slane %v4351, 1
  %v4393 = vrot.slane %v4360, 1
  %v4394 = vsel %vm4385, %v4392, %v4393
  %v4395 = vrot.slane %v4352, 1
  %v4396 = vrot.slane %v4361, 1
  %v4397 = vsel %vm4385, %v4395, %v4396
  %v4398 = vrot.slane %v4353, 1
  %v4399 = vrot.slane %v4362, 1
  %v4400 = vsel %vm4385, %v4398, %v4399
  %v4401 = vrot.slane %v4354, 1
  %v4402 = vrot.slane %v4363, 1
  %v4403 = vsel %vm4385, %v4401, %v4402
  %v4404 = vrot.slane %v4355, 1
  %v4405 = vrot.slane %v4364, 1
  %v4406 = vsel %vm4385, %v4404, %v4405
  %v4407 = vrot.slane %v4356, 1
  %v4408 = vrot.slane %v4365, 1
  %v4409 = vsel %vm4385, %v4407, %v4408
  %v4410 = vrot.slane %v4357, 1
  %v4411 = vrot.slane %v4366, 1
  %v4412 = vsel %vm4385, %v4410, %v4411
  %4413 = vrot.lane.b32.xlu0 %v4388, 64
  %v4414 = vpop.permute.xlu0 %4413
  %4415 = vrot.lane.b32.xlu0 %v4391, 64
  %v4416 = vpop.permute.xlu0 %4415
  %4417 = vrot.lane.b32.xlu0 %v4394, 64
  %v4418 = vpop.permute.xlu0 %4417
  %4419 = vrot.lane.b32.xlu0 %v4397, 64
  %v4420 = vpop.permute.xlu0 %4419
  %4421 = vrot.lane.b32.xlu0 %v4400, 64
  %v4422 = vpop.permute.xlu0 %4421
  %4423 = vrot.lane.b32.xlu0 %v4403, 64
  %v4424 = vpop.permute.xlu0 %4423
  %4425 = vrot.lane.b32.xlu0 %v4406, 64
  %v4426 = vpop.permute.xlu0 %4425
  %4427 = vrot.lane.b32.xlu0 %v4409, 64
  %v4428 = vpop.permute.xlu0 %4427
  %4429 = vrot.lane.b32.xlu0 %v4412, 64
  %v4430 = vpop.permute.xlu0 %4429
  %4431 = vrot.lane.b32.xlu0 %v4387, 64
  %v4432 = vpop.permute.xlu0 %4431
  %4433 = vrot.lane.b32.xlu0 %v4390, 64
  %v4434 = vpop.permute.xlu0 %4433
  %4435 = vrot.lane.b32.xlu0 %v4393, 64
  %v4436 = vpop.permute.xlu0 %4435
  %4437 = vrot.lane.b32.xlu0 %v4396, 64
  %v4438 = vpop.permute.xlu0 %4437
  %4439 = vrot.lane.b32.xlu0 %v4399, 64
  %v4440 = vpop.permute.xlu0 %4439
  %4441 = vrot.lane.b32.xlu0 %v4402, 64
  %v4442 = vpop.permute.xlu0 %4441
  %4443 = vrot.lane.b32.xlu0 %v4405, 64
  %v4444 = vpop.permute.xlu0 %4443
  %4445 = vrot.lane.b32.xlu0 %v4408, 64
  %v4446 = vpop.permute.xlu0 %4445
  %4447 = vrot.lane.b32.xlu0 %v4411, 64
  %v4448 = vpop.permute.xlu0 %4447
  %vm4449 = vcmask 523264
  %v4450 = vsel %vm4449, %v4414, %v4416
  %v4451 = vsel %vm4449, %v4416, %v4418
  %v4452 = vsel %vm4449, %v4418, %v4420
  %v4453 = vsel %vm4449, %v4420, %v4422
  %v4454 = vsel %vm4449, %v4422, %v4424
  %v4455 = vsel %vm4449, %v4424, %v4426
  %v4456 = vsel %vm4449, %v4426, %v4428
  %v4457 = vsel %vm4449, %v4428, %v4430
  %v4458 = vsel %vm4449, %v4432, %v4434
  %v4459 = vsel %vm4449, %v4434, %v4436
  %v4460 = vsel %vm4449, %v4436, %v4438
  %v4461 = vsel %vm4449, %v4438, %v4440
  %v4462 = vsel %vm4449, %v4440, %v4442
  %v4463 = vsel %vm4449, %v4442, %v4444
  %v4464 = vsel %vm4449, %v4444, %v4446
  %v4465 = vsel %vm4449, %v4446, %v4448
  %v4482 = vmax.f32 %v4333, %v4450
  %v4483 = vmax.f32 %v4334, %v4451
  %v4484 = vmax.f32 %v4335, %v4452
  %v4485 = vmax.f32 %v4336, %v4453
  %v4486 = vmax.f32 %v4337, %v4454
  %v4487 = vmax.f32 %v4338, %v4455
  %v4488 = vmax.f32 %v4339, %v4456
  %v4489 = vmax.f32 %v4340, %v4457
  %v4490 = vmax.f32 %v4341, %v4458
  %v4491 = vmax.f32 %v4342, %v4459
  %v4492 = vmax.f32 %v4343, %v4460
  %v4493 = vmax.f32 %v4344, %v4461
  %v4494 = vmax.f32 %v4345, %v4462
  %v4495 = vmax.f32 %v4346, %v4463
  %v4496 = vmax.f32 %v4347, %v4464
  %v4497 = vmax.f32 %v4348, %v4465
  %v4514 = vmax.f32 %v4482, %v4391
  %v4515 = vmax.f32 %v4483, %v4394
  %v4516 = vmax.f32 %v4484, %v4397
  %v4517 = vmax.f32 %v4485, %v4400
  %v4518 = vmax.f32 %v4486, %v4403
  %v4519 = vmax.f32 %v4487, %v4406
  %v4520 = vmax.f32 %v4488, %v4409
  %v4521 = vmax.f32 %v4489, %v4412
  %v4522 = vmax.f32 %v4490, %v4390
  %v4523 = vmax.f32 %v4491, %v4393
  %v4524 = vmax.f32 %v4492, %v4396
  %v4525 = vmax.f32 %v4493, %v4399
  %v4526 = vmax.f32 %v4494, %v4402
  %v4527 = vmax.f32 %v4495, %v4405
  %v4528 = vmax.f32 %v4496, %v4408
  %v4529 = vmax.f32 %v4497, %v4411
  %v4530 = vld [vmem:[#allocation2 + $0x98] sm:$0xfc]
  %v4531 = vld [vmem:[#allocation2 + $0xe8] sm:$0x3]
  %v4534 = vrot.slane %v4530, 1
  %v4535 = vrot.slane %v4531, 1
  %v4536 = vsel %vm4385, %v4534, %v4535
  %4537 = vrot.lane.b32.xlu0 %v4536, 64
  %v4538 = vpop.permute.xlu0 %4537
  %4539 = vrot.lane.b32.xlu0 %v4535, 64
  %v4540 = vpop.permute.xlu0 %4539
  %v4541 = vsel %vm4449, %v4430, %v4538
  %v4542 = vsel %vm4449, %v4448, %v4540
  %v4545 = vmax.f32 %v4514, %v4451
  %v4546 = vmax.f32 %v4515, %v4452
  %v4547 = vmax.f32 %v4516, %v4453
  %v4548 = vmax.f32 %v4517, %v4454
  %v4549 = vmax.f32 %v4518, %v4455
  %v4550 = vmax.f32 %v4519, %v4456
  %v4551 = vmax.f32 %v4520, %v4457
  %v4552 = vmax.f32 %v4521, %v4541
  %v4553 = vmax.f32 %v4522, %v4459
  %v4554 = vmax.f32 %v4523, %v4460
  %v4555 = vmax.f32 %v4524, %v4461
  %v4556 = vmax.f32 %v4525, %v4462
  %v4557 = vmax.f32 %v4526, %v4463
  %v4558 = vmax.f32 %v4527, %v4464
  %v4559 = vmax.f32 %v4528, %v4465
  %v4560 = vmax.f32 %v4529, %v4542
  %v4561 = vld [vmem:[#allocation2] sm:$0xfe]
  %v4562 = vld [vmem:[#allocation2 + $0x50] sm:$0x1]
  %4581 = vrot.lane.b32.xlu0 %v4561, 64
  %v4582 = vpop.permute.xlu0 %4581
  %4583 = vrot.lane.b32.xlu0 %v4333, 64
  %v4584 = vpop.permute.xlu0 %4583
  %4585 = vrot.lane.b32.xlu0 %v4334, 64
  %v4586 = vpop.permute.xlu0 %4585
  %4587 = vrot.lane.b32.xlu0 %v4335, 64
  %v4588 = vpop.permute.xlu0 %4587
  %4589 = vrot.lane.b32.xlu0 %v4336, 64
  %v4590 = vpop.permute.xlu0 %4589
  %4591 = vrot.lane.b32.xlu0 %v4337, 64
  %v4592 = vpop.permute.xlu0 %4591
  %4593 = vrot.lane.b32.xlu0 %v4338, 64
  %v4594 = vpop.permute.xlu0 %4593
  %4595 = vrot.lane.b32.xlu0 %v4339, 64
  %v4596 = vpop.permute.xlu0 %4595
  %4597 = vrot.lane.b32.xlu0 %v4340, 64
  %v4598 = vpop.permute.xlu0 %4597
  %4599 = vrot.lane.b32.xlu0 %v4562, 64
  %v4600 = vpop.permute.xlu0 %4599
  %4601 = vrot.lane.b32.xlu0 %v4341, 64
  %v4602 = vpop.permute.xlu0 %4601
  %4603 = vrot.lane.b32.xlu0 %v4342, 64
  %v4604 = vpop.permute.xlu0 %4603
  %4605 = vrot.lane.b32.xlu0 %v4343, 64
  %v4606 = vpop.permute.xlu0 %4605
  %4607 = vrot.lane.b32.xlu0 %v4344, 64
  %v4608 = vpop.permute.xlu0 %4607
  %4609 = vrot.lane.b32.xlu0 %v4345, 64
  %v4610 = vpop.permute.xlu0 %4609
  %4611 = vrot.lane.b32.xlu0 %v4346, 64
  %v4612 = vpop.permute.xlu0 %4611
  %4613 = vrot.lane.b32.xlu0 %v4347, 64
  %v4614 = vpop.permute.xlu0 %4613
  %4615 = vrot.lane.b32.xlu0 %v4348, 64
  %v4616 = vpop.permute.xlu0 %4615
  %v4617 = vsel %vm4449, %v4582, %v4584
  %v4618 = vsel %vm4449, %v4584, %v4586
  %v4619 = vsel %vm4449, %v4586, %v4588
  %v4620 = vsel %vm4449, %v4588, %v4590
  %v4621 = vsel %vm4449, %v4590, %v4592
  %v4622 = vsel %vm4449, %v4592, %v4594
  %v4623 = vsel %vm4449, %v4594, %v4596
  %v4624 = vsel %vm4449, %v4596, %v4598
  %v4625 = vsel %vm4449, %v4600, %v4602
  %v4626 = vsel %vm4449, %v4602, %v4604
  %v4627 = vsel %vm4449, %v4604, %v4606
  %v4628 = vsel %vm4449, %v4606, %v4608
  %v4629 = vsel %vm4449, %v4608, %v4610
  %v4630 = vsel %vm4449, %v4610, %v4612
  %v4631 = vsel %vm4449, %v4612, %v4614
  %v4632 = vsel %vm4449, %v4614, %v4616
  %v4649 = vmax.f32 %v4545, %v4617
  %v4650 = vmax.f32 %v4546, %v4618
  %v4651 = vmax.f32 %v4547, %v4619
  %v4652 = vmax.f32 %v4548, %v4620
  %v4653 = vmax.f32 %v4549, %v4621
  %v4654 = vmax.f32 %v4550, %v4622
  %v4655 = vmax.f32 %v4551, %v4623
  %v4656 = vmax.f32 %v4552, %v4624
  %v4657 = vmax.f32 %v4553, %v4625
  %v4658 = vmax.f32 %v4554, %v4626
  %v4659 = vmax.f32 %v4555, %v4627
  %v4660 = vmax.f32 %v4556, %v4628
  %v4661 = vmax.f32 %v4557, %v4629
  %v4662 = vmax.f32 %v4558, %v4630
  %v4663 = vmax.f32 %v4559, %v4631
  %v4664 = vmax.f32 %v4560, %v4632
  %v4665 = vld [vmem:[#allocation2 + $0x48] sm:$0xfe]
  %v4666 = vld [vmem:[#allocation2 + $0x98] sm:$0x1]
  %4669 = vrot.lane.b32.xlu0 %v4665, 64
  %v4670 = vpop.permute.xlu0 %4669
  %4671 = vrot.lane.b32.xlu0 %v4666, 64
  %v4672 = vpop.permute.xlu0 %4671
  %v4673 = vsel %vm4449, %v4598, %v4670
  %v4674 = vsel %vm4449, %v4616, %v4672
  %v4677 = vmax.f32 %v4649, %v4618
  %v4678 = vmax.f32 %v4650, %v4619
  %v4679 = vmax.f32 %v4651, %v4620
  %v4680 = vmax.f32 %v4652, %v4621
  %v4681 = vmax.f32 %v4653, %v4622
  %v4682 = vmax.f32 %v4654, %v4623
  %v4683 = vmax.f32 %v4655, %v4624
  %v4684 = vmax.f32 %v4656, %v4673
  %v4685 = vmax.f32 %v4657, %v4626
  %v4686 = vmax.f32 %v4658, %v4627
  %v4687 = vmax.f32 %v4659, %v4628
  %v4688 = vmax.f32 %v4660, %v4629
  %v4689 = vmax.f32 %v4661, %v4630
  %v4690 = vmax.f32 %v4662, %v4631
  %v4691 = vmax.f32 %v4663, %v4632
  %v4692 = vmax.f32 %v4664, %v4674
  %v4693 = vld [vmem:[#allocation2 + $0x50] sm:$0xf8]
  %v4694 = vld [vmem:[#allocation2 + $0x58] sm:$0xf8]
  %v4695 = vld [vmem:[#allocation2 + $0x60] sm:$0xf8]
  %v4696 = vld [vmem:[#allocation2 + $0x68] sm:$0xf8]
  %v4697 = vld [vmem:[#allocation2 + $0x70] sm:$0xf8]
  %v4698 = vld [vmem:[#allocation2 + $0x78] sm:$0xf8]
  %v4699 = vld [vmem:[#allocation2 + $0x80] sm:$0xf8]
  %v4700 = vld [vmem:[#allocation2 + $0x88] sm:$0xf8]
  %v4701 = vld [vmem:[#allocation2 + $0x90] sm:$0xf8]
  %v4702 = vld [vmem:[#allocation2 + $0xa0] sm:$0x7]
  %v4703 = vld [vmem:[#allocation2 + $0xa8] sm:$0x7]
  %v4704 = vld [vmem:[#allocation2 + $0xb0] sm:$0x7]
  %v4705 = vld [vmem:[#allocation2 + $0xb8] sm:$0x7]
  %v4706 = vld [vmem:[#allocation2 + $0xc0] sm:$0x7]
  %v4707 = vld [vmem:[#allocation2 + $0xc8] sm:$0x7]
  %v4708 = vld [vmem:[#allocation2 + $0xd0] sm:$0x7]
  %v4709 = vld [vmem:[#allocation2 + $0xd8] sm:$0x7]
  %v4710 = vld [vmem:[#allocation2 + $0xe0] sm:$0x7]
  %vm4729 = vcmask 1045504
  %v4730 = vrot.slane %v4693, 2
  %v4731 = vrot.slane %v4702, 2
  %v4732 = vsel %vm4729, %v4730, %v4731
  %v4733 = vrot.slane %v4694, 2
  %v4734 = vrot.slane %v4703, 2
  %v4735 = vsel %vm4729, %v4733, %v4734
  %v4736 = vrot.slane %v4695, 2
  %v4737 = vrot.slane %v4704, 2
  %v4738 = vsel %vm4729, %v4736, %v4737
  %v4739 = vrot.slane %v4696, 2
  %v4740 = vrot.slane %v4705, 2
  %v4741 = vsel %vm4729, %v4739, %v4740
  %v4742 = vrot.slane %v4697, 2
  %v4743 = vrot.slane %v4706, 2
  %v4744 = vsel %vm4729, %v4742, %v4743
  %v4745 = vrot.slane %v4698, 2
  %v4746 = vrot.slane %v4707, 2
  %v4747 = vsel %vm4729, %v4745, %v4746
  %v4748 = vrot.slane %v4699, 2
  %v4749 = vrot.slane %v4708, 2
  %v4750 = vsel %vm4729, %v4748, %v4749
  %v4751 = vrot.slane %v4700, 2
  %v4752 = vrot.slane %v4709, 2
  %v4753 = vsel %vm4729, %v4751, %v4752
  %v4754 = vrot.slane %v4701, 2
  %v4755 = vrot.slane %v4710, 2
  %v4756 = vsel %vm4729, %v4754, %v4755
  %4757 = vrot.lane.b32.xlu0 %v4732, 64
  %v4758 = vpop.permute.xlu0 %4757
  %4759 = vrot.lane.b32.xlu0 %v4735, 64
  %v4760 = vpop.permute.xlu0 %4759
  %4761 = vrot.lane.b32.xlu0 %v4738, 64
  %v4762 = vpop.permute.xlu0 %4761
  %4763 = vrot.lane.b32.xlu0 %v4741, 64
  %v4764 = vpop.permute.xlu0 %4763
  %4765 = vrot.lane.b32.xlu0 %v4744, 64
  %v4766 = vpop.permute.xlu0 %4765
  %4767 = vrot.lane.b32.xlu0 %v4747, 64
  %v4768 = vpop.permute.xlu0 %4767
  %4769 = vrot.lane.b32.xlu0 %v4750, 64
  %v4770 = vpop.permute.xlu0 %4769
  %4771 = vrot.lane.b32.xlu0 %v4753, 64
  %v4772 = vpop.permute.xlu0 %4771
  %4773 = vrot.lane.b32.xlu0 %v4756, 64
  %v4774 = vpop.permute.xlu0 %4773
  %4775 = vrot.lane.b32.xlu0 %v4731, 64
  %v4776 = vpop.permute.xlu0 %4775
  %4777 = vrot.lane.b32.xlu0 %v4734, 64
  %v4778 = vpop.permute.xlu0 %4777
  %4779 = vrot.lane.b32.xlu0 %v4737, 64
  %v4780 = vpop.permute.xlu0 %4779
  %4781 = vrot.lane.b32.xlu0 %v4740, 64
  %v4782 = vpop.permute.xlu0 %4781
  %4783 = vrot.lane.b32.xlu0 %v4743, 64
  %v4784 = vpop.permute.xlu0 %4783
  %4785 = vrot.lane.b32.xlu0 %v4746, 64
  %v4786 = vpop.permute.xlu0 %4785
  %4787 = vrot.lane.b32.xlu0 %v4749, 64
  %v4788 = vpop.permute.xlu0 %4787
  %4789 = vrot.lane.b32.xlu0 %v4752, 64
  %v4790 = vpop.permute.xlu0 %4789
  %4791 = vrot.lane.b32.xlu0 %v4755, 64
  %v4792 = vpop.permute.xlu0 %4791
  %v4793 = vsel %vm4449, %v4758, %v4760
  %v4794 = vsel %vm4449, %v4760, %v4762
  %v4795 = vsel %vm4449, %v4762, %v4764
  %v4796 = vsel %vm4449, %v4764, %v4766
  %v4797 = vsel %vm4449, %v4766, %v4768
  %v4798 = vsel %vm4449, %v4768, %v4770
  %v4799 = vsel %vm4449, %v4770, %v4772
  %v4800 = vsel %vm4449, %v4772, %v4774
  %v4801 = vsel %vm4449, %v4776, %v4778
  %v4802 = vsel %vm4449, %v4778, %v4780
  %v4803 = vsel %vm4449, %v4780, %v4782
  %v4804 = vsel %vm4449, %v4782, %v4784
  %v4805 = vsel %vm4449, %v4784, %v4786
  %v4806 = vsel %vm4449, %v4786, %v4788
  %v4807 = vsel %vm4449, %v4788, %v4790
  %v4808 = vsel %vm4449, %v4790, %v4792
  %v4825 = vmax.f32 %v4677, %v4793
  %v4826 = vmax.f32 %v4678, %v4794
  %v4827 = vmax.f32 %v4679, %v4795
  %v4828 = vmax.f32 %v4680, %v4796
  %v4829 = vmax.f32 %v4681, %v4797
  %v4830 = vmax.f32 %v4682, %v4798
  %v4831 = vmax.f32 %v4683, %v4799
  %v4832 = vmax.f32 %v4684, %v4800
  %v4833 = vmax.f32 %v4685, %v4801
  %v4834 = vmax.f32 %v4686, %v4802
  %v4835 = vmax.f32 %v4687, %v4803
  %v4836 = vmax.f32 %v4688, %v4804
  %v4837 = vmax.f32 %v4689, %v4805
  %v4838 = vmax.f32 %v4690, %v4806
  %v4839 = vmax.f32 %v4691, %v4807
  %v4840 = vmax.f32 %v4692, %v4808
  %v4857 = vmax.f32 %v4825, %v4735
  %v4858 = vmax.f32 %v4826, %v4738
  %v4859 = vmax.f32 %v4827, %v4741
  %v4860 = vmax.f32 %v4828, %v4744
  %v4861 = vmax.f32 %v4829, %v4747
  %v4862 = vmax.f32 %v4830, %v4750
  %v4863 = vmax.f32 %v4831, %v4753
  %v4864 = vmax.f32 %v4832, %v4756
  %v4865 = vmax.f32 %v4833, %v4734
  %v4866 = vmax.f32 %v4834, %v4737
  %v4867 = vmax.f32 %v4835, %v4740
  %v4868 = vmax.f32 %v4836, %v4743
  %v4869 = vmax.f32 %v4837, %v4746
  %v4870 = vmax.f32 %v4838, %v4749
  %v4871 = vmax.f32 %v4839, %v4752
  %v4872 = vmax.f32 %v4840, %v4755
  %v4873 = vld [vmem:[#allocation2 + $0x98] sm:$0xf8]
  %v4874 = vld [vmem:[#allocation2 + $0xe8] sm:$0x7]
  %v4877 = vrot.slane %v4873, 2
  %v4878 = vrot.slane %v4874, 2
  %v4879 = vsel %vm4729, %v4877, %v4878
  %4880 = vrot.lane.b32.xlu0 %v4879, 64
  %v4881 = vpop.permute.xlu0 %4880
  %4882 = vrot.lane.b32.xlu0 %v4878, 64
  %v4883 = vpop.permute.xlu0 %4882
  %v4884 = vsel %vm4449, %v4774, %v4881
  %v4885 = vsel %vm4449, %v4792, %v4883
  %v4888 = vmax.f32 %v4857, %v4794
  %v4889 = vmax.f32 %v4858, %v4795
  %v4890 = vmax.f32 %v4859, %v4796
  %v4891 = vmax.f32 %v4860, %v4797
  %v4892 = vmax.f32 %v4861, %v4798
  %v4893 = vmax.f32 %v4862, %v4799
  %v4894 = vmax.f32 %v4863, %v4800
  %v4895 = vmax.f32 %v4864, %v4884
  %v4896 = vmax.f32 %v4865, %v4802
  %v4897 = vmax.f32 %v4866, %v4803
  %v4898 = vmax.f32 %v4867, %v4804
  %v4899 = vmax.f32 %v4868, %v4805
  %v4900 = vmax.f32 %v4869, %v4806
  %v4901 = vmax.f32 %v4870, %v4807
  %v4902 = vmax.f32 %v4871, %v4808
  %v4903 = vmax.f32 %v4872, %v4885
  %4904 = vst [vmem:[#allocation2 + $0x8] sm:$0xfe] %v4888
  %4905 = vst [vmem:[#allocation2 + $0x10] sm:$0xfe] %v4889
  %4906 = vst [vmem:[#allocation2 + $0x18] sm:$0xfe] %v4890
  %4907 = vst [vmem:[#allocation2 + $0x20] sm:$0xfe] %v4891
  %4908 = vst [vmem:[#allocation2 + $0x28] sm:$0xfe] %v4892
  %4909 = vst [vmem:[#allocation2 + $0x30] sm:$0xfe] %v4893
  %4910 = vst [vmem:[#allocation2 + $0x38] sm:$0xfe] %v4894
  %4911 = vst [vmem:[#allocation2 + $0x40] sm:$0xfe] %v4895
  %4912 = vst [vmem:[#allocation2 + $0x58] sm:$0x1] %v4896
  %4913 = vst [vmem:[#allocation2 + $0x60] sm:$0x1] %v4897
  %4914 = vst [vmem:[#allocation2 + $0x68] sm:$0x1] %v4898
  %4915 = vst [vmem:[#allocation2 + $0x70] sm:$0x1] %v4899
  %4916 = vst [vmem:[#allocation2 + $0x78] sm:$0x1] %v4900
  %4917 = vst [vmem:[#allocation2 + $0x80] sm:$0x1] %v4901
  %4918 = vst [vmem:[#allocation2 + $0x88] sm:$0x1] %v4902
  %4919 = vst [vmem:[#allocation2 + $0x90] sm:$0x1] %v4903
  %v4920 = vld [vmem:[#allocation2] sm:$0xff]
  %v4921 = vld [vmem:[#allocation2 + $0x8] sm:$0xff]
  %v4922 = vld [vmem:[#allocation2 + $0x10] sm:$0xff]
  %v4923 = vld [vmem:[#allocation2 + $0x18] sm:$0xff]
  %v4924 = vld [vmem:[#allocation2 + $0x20] sm:$0xff]
  %v4925 = vld [vmem:[#allocation2 + $0x28] sm:$0xff]
  %v4926 = vld [vmem:[#allocation2 + $0x30] sm:$0xff]
  %v4927 = vld [vmem:[#allocation2 + $0x38] sm:$0xff]
  %v4928 = vld [vmem:[%s3] ss:$8 sm:$0xf]
  %v4929 = vld [vmem:[%s3] ss:$8 sm:$0xf0]
  %v4930 = vor.u32 %v4928, %v4929
  %v4932 = vlaneseq
  %v4933 = vshrl.u32 %v4932, 7
  %v4934 = vsub.s32 0, %v4933
  %v4935 = vrot.slane %v4930, %v4934
  %v4936 = vlaneseq
  %v4937 = vshrl.u32 %v4936, 7
  %v4938 = vsub.s32 1, %v4937
  %v4939 = vrot.slane %v4930, %v4938
  %v4940 = vlaneseq
  %v4941 = vshrl.u32 %v4940, 7
  %v4942 = vsub.s32 2, %v4941
  %v4943 = vrot.slane %v4930, %v4942
  %v4944 = vlaneseq
  %v4945 = vshrl.u32 %v4944, 7
  %v4946 = vsub.s32 3, %v4945
  %v4947 = vrot.slane %v4930, %v4946
  %v4948 = vlaneseq
  %v4949 = vshrl.u32 %v4948, 7
  %v4950 = vsub.s32 4, %v4949
  %v4951 = vrot.slane %v4930, %v4950
  %v4952 = vlaneseq
  %v4953 = vshrl.u32 %v4952, 7
  %v4954 = vsub.s32 5, %v4953
  %v4955 = vrot.slane %v4930, %v4954
  %v4956 = vlaneseq
  %v4957 = vshrl.u32 %v4956, 7
  %v4958 = vsub.s32 6, %v4957
  %v4959 = vrot.slane %v4930, %v4958
  %v4960 = vlaneseq
  %v4961 = vshrl.u32 %v4960, 7
  %v4962 = vsub.s32 7, %v4961
  %v4963 = vrot.slane %v4930, %v4962
  %v4972 = vmul.f32 %v4920, %v4935
  %v4973 = vmul.f32 %v4921, %v4939
  %v4974 = vmul.f32 %v4922, %v4943
  %v4975 = vmul.f32 %v4923, %v4947
  %v4976 = vmul.f32 %v4924, %v4951
  %v4977 = vmul.f32 %v4925, %v4955
  %v4978 = vmul.f32 %v4926, %v4959
  %v4979 = vmul.f32 %v4927, %v4963
  %v4980 = vadd.f32 %v4972, 0.0
  %v4981 = vadd.f32 %v4973, 0.0
  %v4982 = vadd.f32 %v4974, 0.0
  %v4983 = vadd.f32 %v4975, 0.0
  %v4984 = vadd.f32 %v4976, 0.0
  %v4985 = vadd.f32 %v4977, 0.0
  %v4986 = vadd.f32 %v4978, 0.0
  %v4987 = vadd.f32 %v4979, 0.0
  %v4988 = vld [vmem:[#allocation2 + $0x40] sm:$0xff]
  %s4989 = scalar_lea.vmem %s3, 1
  %v4990 = vld [vmem:[%s4989] ss:$8 sm:$0xf]
  %v4991 = vld [vmem:[%s4989] ss:$8 sm:$0xf0]
  %v4992 = vor.u32 %v4990, %v4991
  %v4994 = vlaneseq
  %v4995 = vshrl.u32 %v4994, 7
  %v4996 = vsub.s32 0, %v4995
  %v4997 = vrot.slane %v4992, %v4996
  %v4998 = vlaneseq
  %v4999 = vshrl.u32 %v4998, 7
  %v5000 = vsub.s32 1, %v4999
  %v5001 = vrot.slane %v4992, %v5000
  %v5002 = vlaneseq
  %v5003 = vshrl.u32 %v5002, 7
  %v5004 = vsub.s32 2, %v5003
  %v5005 = vrot.slane %v4992, %v5004
  %v5006 = vlaneseq
  %v5007 = vshrl.u32 %v5006, 7
  %v5008 = vsub.s32 3, %v5007
  %v5009 = vrot.slane %v4992, %v5008
  %v5010 = vlaneseq
  %v5011 = vshrl.u32 %v5010, 7
  %v5012 = vsub.s32 4, %v5011
  %v5013 = vrot.slane %v4992, %v5012
  %v5014 = vlaneseq
  %v5015 = vshrl.u32 %v5014, 7
  %v5016 = vsub.s32 5, %v5015
  %v5017 = vrot.slane %v4992, %v5016
  %v5018 = vlaneseq
  %v5019 = vshrl.u32 %v5018, 7
  %v5020 = vsub.s32 6, %v5019
  %v5021 = vrot.slane %v4992, %v5020
  %v5022 = vlaneseq
  %v5023 = vshrl.u32 %v5022, 7
  %v5024 = vsub.s32 7, %v5023
  %v5025 = vrot.slane %v4992, %v5024
  %v5034 = vmul.f32 %v4921, %v4997
  %v5035 = vmul.f32 %v4922, %v5001
  %v5036 = vmul.f32 %v4923, %v5005
  %v5037 = vmul.f32 %v4924, %v5009
  %v5038 = vmul.f32 %v4925, %v5013
  %v5039 = vmul.f32 %v4926, %v5017
  %v5040 = vmul.f32 %v4927, %v5021
  %v5041 = vmul.f32 %v4988, %v5025
  %v5042 = vadd.f32 %v4980, %v5034
  %v5043 = vadd.f32 %v4981, %v5035
  %v5044 = vadd.f32 %v4982, %v5036
  %v5045 = vadd.f32 %v4983, %v5037
  %v5046 = vadd.f32 %v4984, %v5038
  %v5047 = vadd.f32 %v4985, %v5039
  %v5048 = vadd.f32 %v4986, %v5040
  %v5049 = vadd.f32 %v4987, %v5041
  %v5050 = vld [vmem:[#allocation2 + $0x48] sm:$0xff]
  %s5051 = scalar_lea.vmem %s3, 2
  %v5052 = vld [vmem:[%s5051] ss:$8 sm:$0xf]
  %v5053 = vld [vmem:[%s5051] ss:$8 sm:$0xf0]
  %v5054 = vor.u32 %v5052, %v5053
  %v5056 = vlaneseq
  %v5057 = vshrl.u32 %v5056, 7
  %v5058 = vsub.s32 0, %v5057
  %v5059 = vrot.slane %v5054, %v5058
  %v5060 = vlaneseq
  %v5061 = vshrl.u32 %v5060, 7
  %v5062 = vsub.s32 1, %v5061
  %v5063 = vrot.slane %v5054, %v5062
  %v5064 = vlaneseq
  %v5065 = vshrl.u32 %v5064, 7
  %v5066 = vsub.s32 2, %v5065
  %v5067 = vrot.slane %v5054, %v5066
  %v5068 = vlaneseq
  %v5069 = vshrl.u32 %v5068, 7
  %v5070 = vsub.s32 3, %v5069
  %v5071 = vrot.slane %v5054, %v5070
  %v5072 = vlaneseq
  %v5073 = vshrl.u32 %v5072, 7
  %v5074 = vsub.s32 4, %v5073
  %v5075 = vrot.slane %v5054, %v5074
  %v5076 = vlaneseq
  %v5077 = vshrl.u32 %v5076, 7
  %v5078 = vsub.s32 5, %v5077
  %v5079 = vrot.slane %v5054, %v5078
  %v5080 = vlaneseq
  %v5081 = vshrl.u32 %v5080, 7
  %v5082 = vsub.s32 6, %v5081
  %v5083 = vrot.slane %v5054, %v5082
  %v5084 = vlaneseq
  %v5085 = vshrl.u32 %v5084, 7
  %v5086 = vsub.s32 7, %v5085
  %v5087 = vrot.slane %v5054, %v5086
  %v5096 = vmul.f32 %v4922, %v5059
  %v5097 = vmul.f32 %v4923, %v5063
  %v5098 = vmul.f32 %v4924, %v5067
  %v5099 = vmul.f32 %v4925, %v5071
  %v5100 = vmul.f32 %v4926, %v5075
  %v5101 = vmul.f32 %v4927, %v5079
  %v5102 = vmul.f32 %v4988, %v5083
  %v5103 = vmul.f32 %v5050, %v5087
  %v5104 = vadd.f32 %v5042, %v5096
  %v5105 = vadd.f32 %v5043, %v5097
  %v5106 = vadd.f32 %v5044, %v5098
  %v5107 = vadd.f32 %v5045, %v5099
  %v5108 = vadd.f32 %v5046, %v5100
  %v5109 = vadd.f32 %v5047, %v5101
  %v5110 = vadd.f32 %v5048, %v5102
  %v5111 = vadd.f32 %v5049, %v5103
  %v5112 = vld [vmem:[#allocation2] sm:$0xfe]
  %v5113 = vld [vmem:[#allocation2 + $0x8] sm:$0xfe]
  %v5114 = vld [vmem:[#allocation2 + $0x10] sm:$0xfe]
  %v5115 = vld [vmem:[#allocation2 + $0x18] sm:$0xfe]
  %v5116 = vld [vmem:[#allocation2 + $0x20] sm:$0xfe]
  %v5117 = vld [vmem:[#allocation2 + $0x28] sm:$0xfe]
  %v5118 = vld [vmem:[#allocation2 + $0x30] sm:$0xfe]
  %v5119 = vld [vmem:[#allocation2 + $0x38] sm:$0xfe]
  %v5120 = vld [vmem:[#allocation2 + $0x50] sm:$0x1]
  %v5121 = vld [vmem:[#allocation2 + $0x58] sm:$0x1]
  %v5122 = vld [vmem:[#allocation2 + $0x60] sm:$0x1]
  %v5123 = vld [vmem:[#allocation2 + $0x68] sm:$0x1]
  %v5124 = vld [vmem:[#allocation2 + $0x70] sm:$0x1]
  %v5125 = vld [vmem:[#allocation2 + $0x78] sm:$0x1]
  %v5126 = vld [vmem:[#allocation2 + $0x80] sm:$0x1]
  %v5127 = vld [vmem:[#allocation2 + $0x88] sm:$0x1]
  %s5128 = scalar_lea.vmem %s3, 3
  %v5129 = vld [vmem:[%s5128] ss:$8 sm:$0xf]
  %v5130 = vld [vmem:[%s5128] ss:$8 sm:$0xf0]
  %v5131 = vor.u32 %v5129, %v5130
  %v5133 = vlaneseq
  %v5134 = vshrl.u32 %v5133, 7
  %v5135 = vsub.s32 0, %v5134
  %v5136 = vrot.slane %v5131, %v5135
  %v5137 = vlaneseq
  %v5138 = vshrl.u32 %v5137, 7
  %v5139 = vsub.s32 1, %v5138
  %v5140 = vrot.slane %v5131, %v5139
  %v5141 = vlaneseq
  %v5142 = vshrl.u32 %v5141, 7
  %v5143 = vsub.s32 2, %v5142
  %v5144 = vrot.slane %v5131, %v5143
  %v5145 = vlaneseq
  %v5146 = vshrl.u32 %v5145, 7
  %v5147 = vsub.s32 3, %v5146
  %v5148 = vrot.slane %v5131, %v5147
  %v5149 = vlaneseq
  %v5150 = vshrl.u32 %v5149, 7
  %v5151 = vsub.s32 4, %v5150
  %v5152 = vrot.slane %v5131, %v5151
  %v5153 = vlaneseq
  %v5154 = vshrl.u32 %v5153, 7
  %v5155 = vsub.s32 5, %v5154
  %v5156 = vrot.slane %v5131, %v5155
  %v5157 = vlaneseq
  %v5158 = vshrl.u32 %v5157, 7
  %v5159 = vsub.s32 6, %v5158
  %v5160 = vrot.slane %v5131, %v5159
  %v5161 = vlaneseq
  %v5162 = vshrl.u32 %v5161, 7
  %v5163 = vsub.s32 7, %v5162
  %v5164 = vrot.slane %v5131, %v5163
  %v5173 = vmul.f32 %v5112, %v5136
  %v5174 = vmul.f32 %v5113, %v5140
  %v5175 = vmul.f32 %v5114, %v5144
  %v5176 = vmul.f32 %v5115, %v5148
  %v5177 = vmul.f32 %v5116, %v5152
  %v5178 = vmul.f32 %v5117, %v5156
  %v5179 = vmul.f32 %v5118, %v5160
  %v5180 = vmul.f32 %v5119, %v5164
  %v5181 = vmul.f32 %v5120, %v5136
  %v5182 = vmul.f32 %v5121, %v5140
  %v5183 = vmul.f32 %v5122, %v5144
  %v5184 = vmul.f32 %v5123, %v5148
  %v5185 = vmul.f32 %v5124, %v5152
  %v5186 = vmul.f32 %v5125, %v5156
  %v5187 = vmul.f32 %v5126, %v5160
  %v5188 = vmul.f32 %v5127, %v5164
  %v5205 = vrot.slane %v5173, 1
  %v5206 = vrot.slane %v5181, 1
  %v5207 = vsel %vm4385, %v5205, %v5206
  %v5208 = vrot.slane %v5174, 1
  %v5209 = vrot.slane %v5182, 1
  %v5210 = vsel %vm4385, %v5208, %v5209
  %v5211 = vrot.slane %v5175, 1
  %v5212 = vrot.slane %v5183, 1
  %v5213 = vsel %vm4385, %v5211, %v5212
  %v5214 = vrot.slane %v5176, 1
  %v5215 = vrot.slane %v5184, 1
  %v5216 = vsel %vm4385, %v5214, %v5215
  %v5217 = vrot.slane %v5177, 1
  %v5218 = vrot.slane %v5185, 1
  %v5219 = vsel %vm4385, %v5217, %v5218
  %v5220 = vrot.slane %v5178, 1
  %v5221 = vrot.slane %v5186, 1
  %v5222 = vsel %vm4385, %v5220, %v5221
  %v5223 = vrot.slane %v5179, 1
  %v5224 = vrot.slane %v5187, 1
  %v5225 = vsel %vm4385, %v5223, %v5224
  %v5226 = vrot.slane %v5180, 1
  %v5227 = vrot.slane %v5188, 1
  %v5228 = vsel %vm4385, %v5226, %v5227
  %v5237 = vadd.f32 %v5104, %v5207
  %v5238 = vadd.f32 %v5105, %v5210
  %v5239 = vadd.f32 %v5106, %v5213
  %v5240 = vadd.f32 %v5107, %v5216
  %v5241 = vadd.f32 %v5108, %v5219
  %v5242 = vadd.f32 %v5109, %v5222
  %v5243 = vadd.f32 %v5110, %v5225
  %v5244 = vadd.f32 %v5111, %v5228
  %v5245 = vld [vmem:[#allocation2 + $0x40] sm:$0xfe]
  %v5246 = vld [vmem:[#allocation2 + $0x90] sm:$0x1]
  %s5247 = scalar_lea.vmem %s3, 4
  %v5248 = vld [vmem:[%s5247] ss:$8 sm:$0xf]
  %v5249 = vld [vmem:[%s5247] ss:$8 sm:$0xf0]
  %v5250 = vor.u32 %v5248, %v5249
  %v5252 = vlaneseq
  %v5253 = vshrl.u32 %v5252, 7
  %v5254 = vsub.s32 0, %v5253
  %v5255 = vrot.slane %v5250, %v5254
  %v5256 = vlaneseq
  %v5257 = vshrl.u32 %v5256, 7
  %v5258 = vsub.s32 1, %v5257
  %v5259 = vrot.slane %v5250, %v5258
  %v5260 = vlaneseq
  %v5261 = vshrl.u32 %v5260, 7
  %v5262 = vsub.s32 2, %v5261
  %v5263 = vrot.slane %v5250, %v5262
  %v5264 = vlaneseq
  %v5265 = vshrl.u32 %v5264, 7
  %v5266 = vsub.s32 3, %v5265
  %v5267 = vrot.slane %v5250, %v5266
  %v5268 = vlaneseq
  %v5269 = vshrl.u32 %v5268, 7
  %v5270 = vsub.s32 4, %v5269
  %v5271 = vrot.slane %v5250, %v5270
  %v5272 = vlaneseq
  %v5273 = vshrl.u32 %v5272, 7
  %v5274 = vsub.s32 5, %v5273
  %v5275 = vrot.slane %v5250, %v5274
  %v5276 = vlaneseq
  %v5277 = vshrl.u32 %v5276, 7
  %v5278 = vsub.s32 6, %v5277
  %v5279 = vrot.slane %v5250, %v5278
  %v5280 = vlaneseq
  %v5281 = vshrl.u32 %v5280, 7
  %v5282 = vsub.s32 7, %v5281
  %v5283 = vrot.slane %v5250, %v5282
  %v5292 = vmul.f32 %v5113, %v5255
  %v5293 = vmul.f32 %v5114, %v5259
  %v5294 = vmul.f32 %v5115, %v5263
  %v5295 = vmul.f32 %v5116, %v5267
  %v5296 = vmul.f32 %v5117, %v5271
  %v5297 = vmul.f32 %v5118, %v5275
  %v5298 = vmul.f32 %v5119, %v5279
  %v5299 = vmul.f32 %v5245, %v5283
  %v5300 = vmul.f32 %v5121, %v5255
  %v5301 = vmul.f32 %v5122, %v5259
  %v5302 = vmul.f32 %v5123, %v5263
  %v5303 = vmul.f32 %v5124, %v5267
  %v5304 = vmul.f32 %v5125, %v5271
  %v5305 = vmul.f32 %v5126, %v5275
  %v5306 = vmul.f32 %v5127, %v5279
  %v5307 = vmul.f32 %v5246, %v5283
  %v5324 = vrot.slane %v5292, 1
  %v5325 = vrot.slane %v5300, 1
  %v5326 = vsel %vm4385, %v5324, %v5325
  %v5327 = vrot.slane %v5293, 1
  %v5328 = vrot.slane %v5301, 1
  %v5329 = vsel %vm4385, %v5327, %v5328
  %v5330 = vrot.slane %v5294, 1
  %v5331 = vrot.slane %v5302, 1
  %v5332 = vsel %vm4385, %v5330, %v5331
  %v5333 = vrot.slane %v5295, 1
  %v5334 = vrot.slane %v5303, 1
  %v5335 = vsel %vm4385, %v5333, %v5334
  %v5336 = vrot.slane %v5296, 1
  %v5337 = vrot.slane %v5304, 1
  %v5338 = vsel %vm4385, %v5336, %v5337
  %v5339 = vrot.slane %v5297, 1
  %v5340 = vrot.slane %v5305, 1
  %v5341 = vsel %vm4385, %v5339, %v5340
  %v5342 = vrot.slane %v5298, 1
  %v5343 = vrot.slane %v5306, 1
  %v5344 = vsel %vm4385, %v5342, %v5343
  %v5345 = vrot.slane %v5299, 1
  %v5346 = vrot.slane %v5307, 1
  %v5347 = vsel %vm4385, %v5345, %v5346
  %v5356 = vadd.f32 %v5237, %v5326
  %v5357 = vadd.f32 %v5238, %v5329
  %v5358 = vadd.f32 %v5239, %v5332
  %v5359 = vadd.f32 %v5240, %v5335
  %v5360 = vadd.f32 %v5241, %v5338
  %v5361 = vadd.f32 %v5242, %v5341
  %v5362 = vadd.f32 %v5243, %v5344
  %v5363 = vadd.f32 %v5244, %v5347
  %v5364 = vld [vmem:[#allocation2 + $0x48] sm:$0xfe]
  %v5365 = vld [vmem:[#allocation2 + $0x98] sm:$0x1]
  %s5366 = scalar_lea.vmem %s3, 5
  %v5367 = vld [vmem:[%s5366] ss:$8 sm:$0xf]
  %v5368 = vld [vmem:[%s5366] ss:$8 sm:$0xf0]
  %v5369 = vor.u32 %v5367, %v5368
  %v5371 = vlaneseq
  %v5372 = vshrl.u32 %v5371, 7
  %v5373 = vsub.s32 0, %v5372
  %v5374 = vrot.slane %v5369, %v5373
  %v5375 = vlaneseq
  %v5376 = vshrl.u32 %v5375, 7
  %v5377 = vsub.s32 1, %v5376
  %v5378 = vrot.slane %v5369, %v5377
  %v5379 = vlaneseq
  %v5380 = vshrl.u32 %v5379, 7
  %v5381 = vsub.s32 2, %v5380
  %v5382 = vrot.slane %v5369, %v5381
  %v5383 = vlaneseq
  %v5384 = vshrl.u32 %v5383, 7
  %v5385 = vsub.s32 3, %v5384
  %v5386 = vrot.slane %v5369, %v5385
  %v5387 = vlaneseq
  %v5388 = vshrl.u32 %v5387, 7
  %v5389 = vsub.s32 4, %v5388
  %v5390 = vrot.slane %v5369, %v5389
  %v5391 = vlaneseq
  %v5392 = vshrl.u32 %v5391, 7
  %v5393 = vsub.s32 5, %v5392
  %v5394 = vrot.slane %v5369, %v5393
  %v5395 = vlaneseq
  %v5396 = vshrl.u32 %v5395, 7
  %v5397 = vsub.s32 6, %v5396
  %v5398 = vrot.slane %v5369, %v5397
  %v5399 = vlaneseq
  %v5400 = vshrl.u32 %v5399, 7
  %v5401 = vsub.s32 7, %v5400
  %v5402 = vrot.slane %v5369, %v5401
  %v5411 = vmul.f32 %v5114, %v5374
  %v5412 = vmul.f32 %v5115, %v5378
  %v5413 = vmul.f32 %v5116, %v5382
  %v5414 = vmul.f32 %v5117, %v5386
  %v5415 = vmul.f32 %v5118, %v5390
  %v5416 = vmul.f32 %v5119, %v5394
  %v5417 = vmul.f32 %v5245, %v5398
  %v5418 = vmul.f32 %v5364, %v5402
  %v5419 = vmul.f32 %v5122, %v5374
  %v5420 = vmul.f32 %v5123, %v5378
  %v5421 = vmul.f32 %v5124, %v5382
  %v5422 = vmul.f32 %v5125, %v5386
  %v5423 = vmul.f32 %v5126, %v5390
  %v5424 = vmul.f32 %v5127, %v5394
  %v5425 = vmul.f32 %v5246, %v5398
  %v5426 = vmul.f32 %v5365, %v5402
  %v5443 = vrot.slane %v5411, 1
  %v5444 = vrot.slane %v5419, 1
  %v5445 = vsel %vm4385, %v5443, %v5444
  %v5446 = vrot.slane %v5412, 1
  %v5447 = vrot.slane %v5420, 1
  %v5448 = vsel %vm4385, %v5446, %v5447
  %v5449 = vrot.slane %v5413, 1
  %v5450 = vrot.slane %v5421, 1
  %v5451 = vsel %vm4385, %v5449, %v5450
  %v5452 = vrot.slane %v5414, 1
  %v5453 = vrot.slane %v5422, 1
  %v5454 = vsel %vm4385, %v5452, %v5453
  %v5455 = vrot.slane %v5415, 1
  %v5456 = vrot.slane %v5423, 1
  %v5457 = vsel %vm4385, %v5455, %v5456
  %v5458 = vrot.slane %v5416, 1
  %v5459 = vrot.slane %v5424, 1
  %v5460 = vsel %vm4385, %v5458, %v5459
  %v5461 = vrot.slane %v5417, 1
  %v5462 = vrot.slane %v5425, 1
  %v5463 = vsel %vm4385, %v5461, %v5462
  %v5464 = vrot.slane %v5418, 1
  %v5465 = vrot.slane %v5426, 1
  %v5466 = vsel %vm4385, %v5464, %v5465
  %v5475 = vadd.f32 %v5356, %v5445
  %v5476 = vadd.f32 %v5357, %v5448
  %v5477 = vadd.f32 %v5358, %v5451
  %v5478 = vadd.f32 %v5359, %v5454
  %v5479 = vadd.f32 %v5360, %v5457
  %v5480 = vadd.f32 %v5361, %v5460
  %v5481 = vadd.f32 %v5362, %v5463
  %v5482 = vadd.f32 %v5363, %v5466
  %v5483 = vld [vmem:[#allocation2] sm:$0xfc]
  %v5484 = vld [vmem:[#allocation2 + $0x8] sm:$0xfc]
  %v5485 = vld [vmem:[#allocation2 + $0x10] sm:$0xfc]
  %v5486 = vld [vmem:[#allocation2 + $0x18] sm:$0xfc]
  %v5487 = vld [vmem:[#allocation2 + $0x20] sm:$0xfc]
  %v5488 = vld [vmem:[#allocation2 + $0x28] sm:$0xfc]
  %v5489 = vld [vmem:[#allocation2 + $0x30] sm:$0xfc]
  %v5490 = vld [vmem:[#allocation2 + $0x38] sm:$0xfc]
  %v5491 = vld [vmem:[#allocation2 + $0x50] sm:$0x3]
  %v5492 = vld [vmem:[#allocation2 + $0x58] sm:$0x3]
  %v5493 = vld [vmem:[#allocation2 + $0x60] sm:$0x3]
  %v5494 = vld [vmem:[#allocation2 + $0x68] sm:$0x3]
  %v5495 = vld [vmem:[#allocation2 + $0x70] sm:$0x3]
  %v5496 = vld [vmem:[#allocation2 + $0x78] sm:$0x3]
  %v5497 = vld [vmem:[#allocation2 + $0x80] sm:$0x3]
  %v5498 = vld [vmem:[#allocation2 + $0x88] sm:$0x3]
  %s5499 = scalar_lea.vmem %s3, 6
  %v5500 = vld [vmem:[%s5499] ss:$8 sm:$0xf]
  %v5501 = vld [vmem:[%s5499] ss:$8 sm:$0xf0]
  %v5502 = vor.u32 %v5500, %v5501
  %v5504 = vlaneseq
  %v5505 = vshrl.u32 %v5504, 7
  %v5506 = vsub.s32 0, %v5505
  %v5507 = vrot.slane %v5502, %v5506
  %v5508 = vlaneseq
  %v5509 = vshrl.u32 %v5508, 7
  %v5510 = vsub.s32 1, %v5509
  %v5511 = vrot.slane %v5502, %v5510
  %v5512 = vlaneseq
  %v5513 = vshrl.u32 %v5512, 7
  %v5514 = vsub.s32 2, %v5513
  %v5515 = vrot.slane %v5502, %v5514
  %v5516 = vlaneseq
  %v5517 = vshrl.u32 %v5516, 7
  %v5518 = vsub.s32 3, %v5517
  %v5519 = vrot.slane %v5502, %v5518
  %v5520 = vlaneseq
  %v5521 = vshrl.u32 %v5520, 7
  %v5522 = vsub.s32 4, %v5521
  %v5523 = vrot.slane %v5502, %v5522
  %v5524 = vlaneseq
  %v5525 = vshrl.u32 %v5524, 7
  %v5526 = vsub.s32 5, %v5525
  %v5527 = vrot.slane %v5502, %v5526
  %v5528 = vlaneseq
  %v5529 = vshrl.u32 %v5528, 7
  %v5530 = vsub.s32 6, %v5529
  %v5531 = vrot.slane %v5502, %v5530
  %v5532 = vlaneseq
  %v5533 = vshrl.u32 %v5532, 7
  %v5534 = vsub.s32 7, %v5533
  %v5535 = vrot.slane %v5502, %v5534
  %v5544 = vmul.f32 %v5483, %v5507
  %v5545 = vmul.f32 %v5484, %v5511
  %v5546 = vmul.f32 %v5485, %v5515
  %v5547 = vmul.f32 %v5486, %v5519
  %v5548 = vmul.f32 %v5487, %v5523
  %v5549 = vmul.f32 %v5488, %v5527
  %v5550 = vmul.f32 %v5489, %v5531
  %v5551 = vmul.f32 %v5490, %v5535
  %v5552 = vmul.f32 %v5491, %v5507
  %v5553 = vmul.f32 %v5492, %v5511
  %v5554 = vmul.f32 %v5493, %v5515
  %v5555 = vmul.f32 %v5494, %v5519
  %v5556 = vmul.f32 %v5495, %v5523
  %v5557 = vmul.f32 %v5496, %v5527
  %v5558 = vmul.f32 %v5497, %v5531
  %v5559 = vmul.f32 %v5498, %v5535
  %v5576 = vrot.slane %v5544, 2
  %v5577 = vrot.slane %v5552, 2
  %v5578 = vsel %vm4729, %v5576, %v5577
  %v5579 = vrot.slane %v5545, 2
  %v5580 = vrot.slane %v5553, 2
  %v5581 = vsel %vm4729, %v5579, %v5580
  %v5582 = vrot.slane %v5546, 2
  %v5583 = vrot.slane %v5554, 2
  %v5584 = vsel %vm4729, %v5582, %v5583
  %v5585 = vrot.slane %v5547, 2
  %v5586 = vrot.slane %v5555, 2
  %v5587 = vsel %vm4729, %v5585, %v5586
  %v5588 = vrot.slane %v5548, 2
  %v5589 = vrot.slane %v5556, 2
  %v5590 = vsel %vm4729, %v5588, %v5589
  %v5591 = vrot.slane %v5549, 2
  %v5592 = vrot.slane %v5557, 2
  %v5593 = vsel %vm4729, %v5591, %v5592
  %v5594 = vrot.slane %v5550, 2
  %v5595 = vrot.slane %v5558, 2
  %v5596 = vsel %vm4729, %v5594, %v5595
  %v5597 = vrot.slane %v5551, 2
  %v5598 = vrot.slane %v5559, 2
  %v5599 = vsel %vm4729, %v5597, %v5598
  %v5608 = vadd.f32 %v5475, %v5578
  %v5609 = vadd.f32 %v5476, %v5581
  %v5610 = vadd.f32 %v5477, %v5584
  %v5611 = vadd.f32 %v5478, %v5587
  %v5612 = vadd.f32 %v5479, %v5590
  %v5613 = vadd.f32 %v5480, %v5593
  %v5614 = vadd.f32 %v5481, %v5596
  %v5615 = vadd.f32 %v5482, %v5599
  %v5616 = vld [vmem:[#allocation2 + $0x40] sm:$0xfc]
  %v5617 = vld [vmem:[#allocation2 + $0x90] sm:$0x3]
  %s5618 = scalar_lea.vmem %s3, 7
  %v5619 = vld [vmem:[%s5618] ss:$8 sm:$0xf]
  %v5620 = vld [vmem:[%s5618] ss:$8 sm:$0xf0]
  %v5621 = vor.u32 %v5619, %v5620
  %v5623 = vlaneseq
  %v5624 = vshrl.u32 %v5623, 7
  %v5625 = vsub.s32 0, %v5624
  %v5626 = vrot.slane %v5621, %v5625
  %v5627 = vlaneseq
  %v5628 = vshrl.u32 %v5627, 7
  %v5629 = vsub.s32 1, %v5628
  %v5630 = vrot.slane %v5621, %v5629
  %v5631 = vlaneseq
  %v5632 = vshrl.u32 %v5631, 7
  %v5633 = vsub.s32 2, %v5632
  %v5634 = vrot.slane %v5621, %v5633
  %v5635 = vlaneseq
  %v5636 = vshrl.u32 %v5635, 7
  %v5637 = vsub.s32 3, %v5636
  %v5638 = vrot.slane %v5621, %v5637
  %v5639 = vlaneseq
  %v5640 = vshrl.u32 %v5639, 7
  %v5641 = vsub.s32 4, %v5640
  %v5642 = vrot.slane %v5621, %v5641
  %v5643 = vlaneseq
  %v5644 = vshrl.u32 %v5643, 7
  %v5645 = vsub.s32 5, %v5644
  %v5646 = vrot.slane %v5621, %v5645
  %v5647 = vlaneseq
  %v5648 = vshrl.u32 %v5647, 7
  %v5649 = vsub.s32 6, %v5648
  %v5650 = vrot.slane %v5621, %v5649
  %v5651 = vlaneseq
  %v5652 = vshrl.u32 %v5651, 7
  %v5653 = vsub.s32 7, %v5652
  %v5654 = vrot.slane %v5621, %v5653
  %v5663 = vmul.f32 %v5484, %v5626
  %v5664 = vmul.f32 %v5485, %v5630
  %v5665 = vmul.f32 %v5486, %v5634
  %v5666 = vmul.f32 %v5487, %v5638
  %v5667 = vmul.f32 %v5488, %v5642
  %v5668 = vmul.f32 %v5489, %v5646
  %v5669 = vmul.f32 %v5490, %v5650
  %v5670 = vmul.f32 %v5616, %v5654
  %v5671 = vmul.f32 %v5492, %v5626
  %v5672 = vmul.f32 %v5493, %v5630
  %v5673 = vmul.f32 %v5494, %v5634
  %v5674 = vmul.f32 %v5495, %v5638
  %v5675 = vmul.f32 %v5496, %v5642
  %v5676 = vmul.f32 %v5497, %v5646
  %v5677 = vmul.f32 %v5498, %v5650
  %v5678 = vmul.f32 %v5617, %v5654
  %v5695 = vrot.slane %v5663, 2
  %v5696 = vrot.slane %v5671, 2
  %v5697 = vsel %vm4729, %v5695, %v5696
  %v5698 = vrot.slane %v5664, 2
  %v5699 = vrot.slane %v5672, 2
  %v5700 = vsel %vm4729, %v5698, %v5699
  %v5701 = vrot.slane %v5665, 2
  %v5702 = vrot.slane %v5673, 2
  %v5703 = vsel %vm4729, %v5701, %v5702
  %v5704 = vrot.slane %v5666, 2
  %v5705 = vrot.slane %v5674, 2
  %v5706 = vsel %vm4729, %v5704, %v5705
  %v5707 = vrot.slane %v5667, 2
  %v5708 = vrot.slane %v5675, 2
  %v5709 = vsel %vm4729, %v5707, %v5708
  %v5710 = vrot.slane %v5668, 2
  %v5711 = vrot.slane %v5676, 2
  %v5712 = vsel %vm4729, %v5710, %v5711
  %v5713 = vrot.slane %v5669, 2
  %v5714 = vrot.slane %v5677, 2
  %v5715 = vsel %vm4729, %v5713, %v5714
  %v5716 = vrot.slane %v5670, 2
  %v5717 = vrot.slane %v5678, 2
  %v5718 = vsel %vm4729, %v5716, %v5717
  %v5727 = vadd.f32 %v5608, %v5697
  %v5728 = vadd.f32 %v5609, %v5700
  %v5729 = vadd.f32 %v5610, %v5703
  %v5730 = vadd.f32 %v5611, %v5706
  %v5731 = vadd.f32 %v5612, %v5709
  %v5732 = vadd.f32 %v5613, %v5712
  %v5733 = vadd.f32 %v5614, %v5715
  %v5734 = vadd.f32 %v5615, %v5718
  %v5735 = vld [vmem:[#allocation2 + $0x48] sm:$0xfc]
  %v5736 = vld [vmem:[#allocation2 + $0x98] sm:$0x3]
  %s5737 = scalar_lea.vmem %s3, 64
  %v5738 = vld [vmem:[%s5737] ss:$8 sm:$0xf]
  %v5739 = vld [vmem:[%s5737] ss:$8 sm:$0xf0]
  %v5740 = vor.u32 %v5738, %v5739
  %v5742 = vlaneseq
  %v5743 = vshrl.u32 %v5742, 7
  %v5744 = vsub.s32 0, %v5743
  %v5745 = vrot.slane %v5740, %v5744
  %v5746 = vlaneseq
  %v5747 = vshrl.u32 %v5746, 7
  %v5748 = vsub.s32 1, %v5747
  %v5749 = vrot.slane %v5740, %v5748
  %v5750 = vlaneseq
  %v5751 = vshrl.u32 %v5750, 7
  %v5752 = vsub.s32 2, %v5751
  %v5753 = vrot.slane %v5740, %v5752
  %v5754 = vlaneseq
  %v5755 = vshrl.u32 %v5754, 7
  %v5756 = vsub.s32 3, %v5755
  %v5757 = vrot.slane %v5740, %v5756
  %v5758 = vlaneseq
  %v5759 = vshrl.u32 %v5758, 7
  %v5760 = vsub.s32 4, %v5759
  %v5761 = vrot.slane %v5740, %v5760
  %v5762 = vlaneseq
  %v5763 = vshrl.u32 %v5762, 7
  %v5764 = vsub.s32 5, %v5763
  %v5765 = vrot.slane %v5740, %v5764
  %v5766 = vlaneseq
  %v5767 = vshrl.u32 %v5766, 7
  %v5768 = vsub.s32 6, %v5767
  %v5769 = vrot.slane %v5740, %v5768
  %v5770 = vlaneseq
  %v5771 = vshrl.u32 %v5770, 7
  %v5772 = vsub.s32 7, %v5771
  %v5773 = vrot.slane %v5740, %v5772
  %v5782 = vmul.f32 %v5485, %v5745
  %v5783 = vmul.f32 %v5486, %v5749
  %v5784 = vmul.f32 %v5487, %v5753
  %v5785 = vmul.f32 %v5488, %v5757
  %v5786 = vmul.f32 %v5489, %v5761
  %v5787 = vmul.f32 %v5490, %v5765
  %v5788 = vmul.f32 %v5616, %v5769
  %v5789 = vmul.f32 %v5735, %v5773
  %v5790 = vmul.f32 %v5493, %v5745
  %v5791 = vmul.f32 %v5494, %v5749
  %v5792 = vmul.f32 %v5495, %v5753
  %v5793 = vmul.f32 %v5496, %v5757
  %v5794 = vmul.f32 %v5497, %v5761
  %v5795 = vmul.f32 %v5498, %v5765
  %v5796 = vmul.f32 %v5617, %v5769
  %v5797 = vmul.f32 %v5736, %v5773
  %v5814 = vrot.slane %v5782, 2
  %v5815 = vrot.slane %v5790, 2
  %v5816 = vsel %vm4729, %v5814, %v5815
  %v5817 = vrot.slane %v5783, 2
  %v5818 = vrot.slane %v5791, 2
  %v5819 = vsel %vm4729, %v5817, %v5818
  %v5820 = vrot.slane %v5784, 2
  %v5821 = vrot.slane %v5792, 2
  %v5822 = vsel %vm4729, %v5820, %v5821
  %v5823 = vrot.slane %v5785, 2
  %v5824 = vrot.slane %v5793, 2
  %v5825 = vsel %vm4729, %v5823, %v5824
  %v5826 = vrot.slane %v5786, 2
  %v5827 = vrot.slane %v5794, 2
  %v5828 = vsel %vm4729, %v5826, %v5827
  %v5829 = vrot.slane %v5787, 2
  %v5830 = vrot.slane %v5795, 2
  %v5831 = vsel %vm4729, %v5829, %v5830
  %v5832 = vrot.slane %v5788, 2
  %v5833 = vrot.slane %v5796, 2
  %v5834 = vsel %vm4729, %v5832, %v5833
  %v5835 = vrot.slane %v5789, 2
  %v5836 = vrot.slane %v5797, 2
  %v5837 = vsel %vm4729, %v5835, %v5836
  %v5846 = vadd.f32 %v5727, %v5816
  %v5847 = vadd.f32 %v5728, %v5819
  %v5848 = vadd.f32 %v5729, %v5822
  %v5849 = vadd.f32 %v5730, %v5825
  %v5850 = vadd.f32 %v5731, %v5828
  %v5851 = vadd.f32 %v5732, %v5831
  %v5852 = vadd.f32 %v5733, %v5834
  %v5853 = vadd.f32 %v5734, %v5837
  %v5854 = vld [vmem:[%s4] sm:$0xff]
  %v5856 = vlaneseq
  %v5857 = vshrl.u32 %v5856, 7
  %v5858 = vsub.s32 0, %v5857
  %v5859 = vrot.slane %v5854, %v5858
  %v5860 = vlaneseq
  %v5861 = vshrl.u32 %v5860, 7
  %v5862 = vsub.s32 1, %v5861
  %v5863 = vrot.slane %v5854, %v5862
  %v5864 = vlaneseq
  %v5865 = vshrl.u32 %v5864, 7
  %v5866 = vsub.s32 2, %v5865
  %v5867 = vrot.slane %v5854, %v5866
  %v5868 = vlaneseq
  %v5869 = vshrl.u32 %v5868, 7
  %v5870 = vsub.s32 3, %v5869
  %v5871 = vrot.slane %v5854, %v5870
  %v5872 = vlaneseq
  %v5873 = vshrl.u32 %v5872, 7
  %v5874 = vsub.s32 4, %v5873
  %v5875 = vrot.slane %v5854, %v5874
  %v5876 = vlaneseq
  %v5877 = vshrl.u32 %v5876, 7
  %v5878 = vsub.s32 5, %v5877
  %v5879 = vrot.slane %v5854, %v5878
  %v5880 = vlaneseq
  %v5881 = vshrl.u32 %v5880, 7
  %v5882 = vsub.s32 6, %v5881
  %v5883 = vrot.slane %v5854, %v5882
  %v5884 = vlaneseq
  %v5885 = vshrl.u32 %v5884, 7
  %v5886 = vsub.s32 7, %v5885
  %v5887 = vrot.slane %v5854, %v5886
  %v5896 = vadd.f32 %v5846, %v5859
  %v5897 = vadd.f32 %v5847, %v5863
  %v5898 = vadd.f32 %v5848, %v5867
  %v5899 = vadd.f32 %v5849, %v5871
  %v5900 = vadd.f32 %v5850, %v5875
  %v5901 = vadd.f32 %v5851, %v5879
  %v5902 = vadd.f32 %v5852, %v5883
  %v5903 = vadd.f32 %v5853, %v5887
  %v5904 = vxor.u32 %v5896, 2147483648
  %v5905 = vxor.u32 %v5897, 2147483648
  %v5906 = vxor.u32 %v5898, 2147483648
  %v5907 = vxor.u32 %v5899, 2147483648
  %v5908 = vxor.u32 %v5900, 2147483648
  %v5909 = vxor.u32 %v5901, 2147483648
  %v5910 = vxor.u32 %v5902, 2147483648
  %v5911 = vxor.u32 %v5903, 2147483648
  %v5912 = vmul.f32 %v5904, 1.442695
  %v5913 = vpow.pop %v5912
  %v5914 = vmul.f32 %v5905, 1.442695
  %v5915 = vpow.pop %v5914
  %v5916 = vmul.f32 %v5906, 1.442695
  %v5917 = vpow.pop %v5916
  %v5918 = vmul.f32 %v5907, 1.442695
  %v5919 = vpow.pop %v5918
  %v5920 = vmul.f32 %v5908, 1.442695
  %v5921 = vpow.pop %v5920
  %v5922 = vmul.f32 %v5909, 1.442695
  %v5923 = vpow.pop %v5922
  %v5924 = vmul.f32 %v5910, 1.442695
  %v5925 = vpow.pop %v5924
  %v5926 = vmul.f32 %v5911, 1.442695
  %v5927 = vpow.pop %v5926
  %v5928 = vadd.f32 %v5913, 1.0
  %v5929 = vadd.f32 %v5915, 1.0
  %v5930 = vadd.f32 %v5917, 1.0
  %v5931 = vadd.f32 %v5919, 1.0
  %v5932 = vadd.f32 %v5921, 1.0
  %v5933 = vadd.f32 %v5923, 1.0
  %v5934 = vadd.f32 %v5925, 1.0
  %v5935 = vadd.f32 %v5927, 1.0
  %v5936 = vrcp.pop %v5928
  %v5937 = vmul.f32 1.0, %v5936
  %v5938 = vrcp.pop %v5929
  %v5939 = vmul.f32 1.0, %v5938
  %v5940 = vrcp.pop %v5930
  %v5941 = vmul.f32 1.0, %v5940
  %v5942 = vrcp.pop %v5931
  %v5943 = vmul.f32 1.0, %v5942
  %v5944 = vrcp.pop %v5932
  %v5945 = vmul.f32 1.0, %v5944
  %v5946 = vrcp.pop %v5933
  %v5947 = vmul.f32 1.0, %v5946
  %v5948 = vrcp.pop %v5934
  %v5949 = vmul.f32 1.0, %v5948
  %v5950 = vrcp.pop %v5935
  %v5951 = vmul.f32 1.0, %v5950
  %v5960 = vrot.slane %v5937, 7
  %v5961 = vrot.slane %v5939, 7
  %v5962 = vrot.slane %v5941, 7
  %v5963 = vrot.slane %v5943, 7
  %v5964 = vrot.slane %v5945, 7
  %v5965 = vrot.slane %v5947, 7
  %v5966 = vrot.slane %v5949, 7
  %v5967 = vrot.slane %v5951, 7
  %v5976 = vmul.f32 %v4888, %v5960
  %v5977 = vmul.f32 %v4889, %v5961
  %v5978 = vmul.f32 %v4890, %v5962
  %v5979 = vmul.f32 %v4891, %v5963
  %v5980 = vmul.f32 %v4892, %v5964
  %v5981 = vmul.f32 %v4893, %v5965
  %v5982 = vmul.f32 %v4894, %v5966
  %v5983 = vmul.f32 %v4895, %v5967
  %v5984 = vmul.f32 %v4896, %v5960
  %v5985 = vmul.f32 %v4897, %v5961
  %v5986 = vmul.f32 %v4898, %v5962
  %v5987 = vmul.f32 %v4899, %v5963
  %v5988 = vmul.f32 %v4900, %v5964
  %v5989 = vmul.f32 %v4901, %v5965
  %v5990 = vmul.f32 %v4902, %v5966
  %v5991 = vmul.f32 %v4903, %v5967
  %v6008 = vrot.slane %v5976, 1
  %v6009 = vrot.slane %v5984, 1
  %v6010 = vsel %vm4385, %v6008, %v6009
  %v6011 = vrot.slane %v5977, 1
  %v6012 = vrot.slane %v5985, 1
  %v6013 = vsel %vm4385, %v6011, %v6012
  %v6014 = vrot.slane %v5978, 1
  %v6015 = vrot.slane %v5986, 1
  %v6016 = vsel %vm4385, %v6014, %v6015
  %v6017 = vrot.slane %v5979, 1
  %v6018 = vrot.slane %v5987, 1
  %v6019 = vsel %vm4385, %v6017, %v6018
  %v6020 = vrot.slane %v5980, 1
  %v6021 = vrot.slane %v5988, 1
  %v6022 = vsel %vm4385, %v6020, %v6021
  %v6023 = vrot.slane %v5981, 1
  %v6024 = vrot.slane %v5989, 1
  %v6025 = vsel %vm4385, %v6023, %v6024
  %v6026 = vrot.slane %v5982, 1
  %v6027 = vrot.slane %v5990, 1
  %v6028 = vsel %vm4385, %v6026, %v6027
  %v6029 = vrot.slane %v5983, 1
  %v6030 = vrot.slane %v5991, 1
  %v6031 = vsel %vm4385, %v6029, %v6030
  %6040 = vst [vmem:[%s5] sm:$0xff] %v6010
  %6041 = vst [vmem:[%s5 + $0x8] sm:$0xff] %v6013
  %6042 = vst [vmem:[%s5 + $0x10] sm:$0xff] %v6016
  %6043 = vst [vmem:[%s5 + $0x18] sm:$0xff] %v6019
  %6044 = vst [vmem:[%s5 + $0x20] sm:$0xff] %v6022
  %6045 = vst [vmem:[%s5 + $0x28] sm:$0xff] %v6025
  %6046 = vst [vmem:[%s5 + $0x30] sm:$0xff] %v6028
  %6047 = vst [vmem:[%s5 + $0x38] sm:$0xff] %v6031
  %v6048 = vld [vmem:[%s53 + $0x8] sm:$0xfe]
  %v6049 = vld [vmem:[%s53 + $0x10] sm:$0xfe]
  %v6050 = vld [vmem:[%s53 + $0x18] sm:$0xfe]
  %v6051 = vld [vmem:[%s53 + $0x20] sm:$0xfe]
  %v6052 = vld [vmem:[%s53 + $0x28] sm:$0xfe]
  %v6053 = vld [vmem:[%s53 + $0x30] sm:$0xfe]
  %v6054 = vld [vmem:[%s53 + $0x38] sm:$0xfe]
  %v6055 = vld [vmem:[%s53 + $0x40] sm:$0xfe]
  %v6056 = vld [vmem:[%s53 + $0x58] sm:$0x1]
  %v6057 = vld [vmem:[%s53 + $0x60] sm:$0x1]
  %v6058 = vld [vmem:[%s53 + $0x68] sm:$0x1]
  %v6059 = vld [vmem:[%s53 + $0x70] sm:$0x1]
  %v6060 = vld [vmem:[%s53 + $0x78] sm:$0x1]
  %v6061 = vld [vmem:[%s53 + $0x80] sm:$0x1]
  %v6062 = vld [vmem:[%s53 + $0x88] sm:$0x1]
  %v6063 = vld [vmem:[%s53 + $0x90] sm:$0x1]
  %v6064 = vld [vmem:[%s53 + $0x50] sm:$0xfc]
  %v6065 = vld [vmem:[%s53 + $0x58] sm:$0xfc]
  %v6066 = vld [vmem:[%s53 + $0x60] sm:$0xfc]
  %v6067 = vld [vmem:[%s53 + $0x68] sm:$0xfc]
  %v6068 = vld [vmem:[%s53 + $0x70] sm:$0xfc]
  %v6069 = vld [vmem:[%s53 + $0x78] sm:$0xfc]
  %v6070 = vld [vmem:[%s53 + $0x80] sm:$0xfc]
  %v6071 = vld [vmem:[%s53 + $0x88] sm:$0xfc]
  %v6072 = vld [vmem:[%s53 + $0x90] sm:$0xfc]
  %v6073 = vld [vmem:[%s53 + $0xa0] sm:$0x3]
  %v6074 = vld [vmem:[%s53 + $0xa8] sm:$0x3]
  %v6075 = vld [vmem:[%s53 + $0xb0] sm:$0x3]
  %v6076 = vld [vmem:[%s53 + $0xb8] sm:$0x3]
  %v6077 = vld [vmem:[%s53 + $0xc0] sm:$0x3]
  %v6078 = vld [vmem:[%s53 + $0xc8] sm:$0x3]
  %v6079 = vld [vmem:[%s53 + $0xd0] sm:$0x3]
  %v6080 = vld [vmem:[%s53 + $0xd8] sm:$0x3]
  %v6081 = vld [vmem:[%s53 + $0xe0] sm:$0x3]
  %v6100 = vrot.slane %v6064, 1
  %v6101 = vrot.slane %v6073, 1
  %v6102 = vsel %vm4385, %v6100, %v6101
  %v6103 = vrot.slane %v6065, 1
  %v6104 = vrot.slane %v6074, 1
  %v6105 = vsel %vm4385, %v6103, %v6104
  %v6106 = vrot.slane %v6066, 1
  %v6107 = vrot.slane %v6075, 1
  %v6108 = vsel %vm4385, %v6106, %v6107
  %v6109 = vrot.slane %v6067, 1
  %v6110 = vrot.slane %v6076, 1
  %v6111 = vsel %vm4385, %v6109, %v6110
  %v6112 = vrot.slane %v6068, 1
  %v6113 = vrot.slane %v6077, 1
  %v6114 = vsel %vm4385, %v6112, %v6113
  %v6115 = vrot.slane %v6069, 1
  %v6116 = vrot.slane %v6078, 1
  %v6117 = vsel %vm4385, %v6115, %v6116
  %v6118 = vrot.slane %v6070, 1
  %v6119 = vrot.slane %v6079, 1
  %v6120 = vsel %vm4385, %v6118, %v6119
  %v6121 = vrot.slane %v6071, 1
  %v6122 = vrot.slane %v6080, 1
  %v6123 = vsel %vm4385, %v6121, %v6122
  %v6124 = vrot.slane %v6072, 1
  %v6125 = vrot.slane %v6081, 1
  %v6126 = vsel %vm4385, %v6124, %v6125
  %6127 = vrot.lane.b32.xlu0 %v6102, 64
  %v6128 = vpop.permute.xlu0 %6127
  %6129 = vrot.lane.b32.xlu0 %v6105, 64
  %v6130 = vpop.permute.xlu0 %6129
  %6131 = vrot.lane.b32.xlu0 %v6108, 64
  %v6132 = vpop.permute.xlu0 %6131
  %6133 = vrot.lane.b32.xlu0 %v6111, 64
  %v6134 = vpop.permute.xlu0 %6133
  %6135 = vrot.lane.b32.xlu0 %v6114, 64
  %v6136 = vpop.permute.xlu0 %6135
  %6137 = vrot.lane.b32.xlu0 %v6117, 64
  %v6138 = vpop.permute.xlu0 %6137
  %6139 = vrot.lane.b32.xlu0 %v6120, 64
  %v6140 = vpop.permute.xlu0 %6139
  %6141 = vrot.lane.b32.xlu0 %v6123, 64
  %v6142 = vpop.permute.xlu0 %6141
  %6143 = vrot.lane.b32.xlu0 %v6126, 64
  %v6144 = vpop.permute.xlu0 %6143
  %6145 = vrot.lane.b32.xlu0 %v6101, 64
  %v6146 = vpop.permute.xlu0 %6145
  %6147 = vrot.lane.b32.xlu0 %v6104, 64
  %v6148 = vpop.permute.xlu0 %6147
  %6149 = vrot.lane.b32.xlu0 %v6107, 64
  %v6150 = vpop.permute.xlu0 %6149
  %6151 = vrot.lane.b32.xlu0 %v6110, 64
  %v6152 = vpop.permute.xlu0 %6151
  %6153 = vrot.lane.b32.xlu0 %v6113, 64
  %v6154 = vpop.permute.xlu0 %6153
  %6155 = vrot.lane.b32.xlu0 %v6116, 64
  %v6156 = vpop.permute.xlu0 %6155
  %6157 = vrot.lane.b32.xlu0 %v6119, 64
  %v6158 = vpop.permute.xlu0 %6157
  %6159 = vrot.lane.b32.xlu0 %v6122, 64
  %v6160 = vpop.permute.xlu0 %6159
  %6161 = vrot.lane.b32.xlu0 %v6125, 64
  %v6162 = vpop.permute.xlu0 %6161
  %v6163 = vsel %vm4449, %v6128, %v6130
  %v6164 = vsel %vm4449, %v6130, %v6132
  %v6165 = vsel %vm4449, %v6132, %v6134
  %v6166 = vsel %vm4449, %v6134, %v6136
  %v6167 = vsel %vm4449, %v6136, %v6138
  %v6168 = vsel %vm4449, %v6138, %v6140
  %v6169 = vsel %vm4449, %v6140, %v6142
  %v6170 = vsel %vm4449, %v6142, %v6144
  %v6171 = vsel %vm4449, %v6146, %v6148
  %v6172 = vsel %vm4449, %v6148, %v6150
  %v6173 = vsel %vm4449, %v6150, %v6152
  %v6174 = vsel %vm4449, %v6152, %v6154
  %v6175 = vsel %vm4449, %v6154, %v6156
  %v6176 = vsel %vm4449, %v6156, %v6158
  %v6177 = vsel %vm4449, %v6158, %v6160
  %v6178 = vsel %vm4449, %v6160, %v6162
  %v6195 = vmax.f32 %v6048, %v6163
  %v6196 = vmax.f32 %v6049, %v6164
  %v6197 = vmax.f32 %v6050, %v6165
  %v6198 = vmax.f32 %v6051, %v6166
  %v6199 = vmax.f32 %v6052, %v6167
  %v6200 = vmax.f32 %v6053, %v6168
  %v6201 = vmax.f32 %v6054, %v6169
  %v6202 = vmax.f32 %v6055, %v6170
  %v6203 = vmax.f32 %v6056, %v6171
  %v6204 = vmax.f32 %v6057, %v6172
  %v6205 = vmax.f32 %v6058, %v6173
  %v6206 = vmax.f32 %v6059, %v6174
  %v6207 = vmax.f32 %v6060, %v6175
  %v6208 = vmax.f32 %v6061, %v6176
  %v6209 = vmax.f32 %v6062, %v6177
  %v6210 = vmax.f32 %v6063, %v6178
  %v6227 = vmax.f32 %v6195, %v6105
  %v6228 = vmax.f32 %v6196, %v6108
  %v6229 = vmax.f32 %v6197, %v6111
  %v6230 = vmax.f32 %v6198, %v6114
  %v6231 = vmax.f32 %v6199, %v6117
  %v6232 = vmax.f32 %v6200, %v6120
  %v6233 = vmax.f32 %v6201, %v6123
  %v6234 = vmax.f32 %v6202, %v6126
  %v6235 = vmax.f32 %v6203, %v6104
  %v6236 = vmax.f32 %v6204, %v6107
  %v6237 = vmax.f32 %v6205, %v6110
  %v6238 = vmax.f32 %v6206, %v6113
  %v6239 = vmax.f32 %v6207, %v6116
  %v6240 = vmax.f32 %v6208, %v6119
  %v6241 = vmax.f32 %v6209, %v6122
  %v6242 = vmax.f32 %v6210, %v6125
  %v6243 = vld [vmem:[%s53 + $0x98] sm:$0xfc]
  %v6244 = vld [vmem:[%s53 + $0xe8] sm:$0x3]
  %v6247 = vrot.slane %v6243, 1
  %v6248 = vrot.slane %v6244, 1
  %v6249 = vsel %vm4385, %v6247, %v6248
  %6250 = vrot.lane.b32.xlu0 %v6249, 64
  %v6251 = vpop.permute.xlu0 %6250
  %6252 = vrot.lane.b32.xlu0 %v6248, 64
  %v6253 = vpop.permute.xlu0 %6252
  %v6254 = vsel %vm4449, %v6144, %v6251
  %v6255 = vsel %vm4449, %v6162, %v6253
  %v6258 = vmax.f32 %v6227, %v6164
  %v6259 = vmax.f32 %v6228, %v6165
  %v6260 = vmax.f32 %v6229, %v6166
  %v6261 = vmax.f32 %v6230, %v6167
  %v6262 = vmax.f32 %v6231, %v6168
  %v6263 = vmax.f32 %v6232, %v6169
  %v6264 = vmax.f32 %v6233, %v6170
  %v6265 = vmax.f32 %v6234, %v6254
  %v6266 = vmax.f32 %v6235, %v6172
  %v6267 = vmax.f32 %v6236, %v6173
  %v6268 = vmax.f32 %v6237, %v6174
  %v6269 = vmax.f32 %v6238, %v6175
  %v6270 = vmax.f32 %v6239, %v6176
  %v6271 = vmax.f32 %v6240, %v6177
  %v6272 = vmax.f32 %v6241, %v6178
  %v6273 = vmax.f32 %v6242, %v6255
  %v6274 = vld [vmem:[%s53] sm:$0xfe]
  %v6275 = vld [vmem:[%s53 + $0x50] sm:$0x1]
  %6294 = vrot.lane.b32.xlu0 %v6274, 64
  %v6295 = vpop.permute.xlu0 %6294
  %6296 = vrot.lane.b32.xlu0 %v6048, 64
  %v6297 = vpop.permute.xlu0 %6296
  %6298 = vrot.lane.b32.xlu0 %v6049, 64
  %v6299 = vpop.permute.xlu0 %6298
  %6300 = vrot.lane.b32.xlu0 %v6050, 64
  %v6301 = vpop.permute.xlu0 %6300
  %6302 = vrot.lane.b32.xlu0 %v6051, 64
  %v6303 = vpop.permute.xlu0 %6302
  %6304 = vrot.lane.b32.xlu0 %v6052, 64
  %v6305 = vpop.permute.xlu0 %6304
  %6306 = vrot.lane.b32.xlu0 %v6053, 64
  %v6307 = vpop.permute.xlu0 %6306
  %6308 = vrot.lane.b32.xlu0 %v6054, 64
  %v6309 = vpop.permute.xlu0 %6308
  %6310 = vrot.lane.b32.xlu0 %v6055, 64
  %v6311 = vpop.permute.xlu0 %6310
  %6312 = vrot.lane.b32.xlu0 %v6275, 64
  %v6313 = vpop.permute.xlu0 %6312
  %6314 = vrot.lane.b32.xlu0 %v6056, 64
  %v6315 = vpop.permute.xlu0 %6314
  %6316 = vrot.lane.b32.xlu0 %v6057, 64
  %v6317 = vpop.permute.xlu0 %6316
  %6318 = vrot.lane.b32.xlu0 %v6058, 64
  %v6319 = vpop.permute.xlu0 %6318
  %6320 = vrot.lane.b32.xlu0 %v6059, 64
  %v6321 = vpop.permute.xlu0 %6320
  %6322 = vrot.lane.b32.xlu0 %v6060, 64
  %v6323 = vpop.permute.xlu0 %6322
  %6324 = vrot.lane.b32.xlu0 %v6061, 64
  %v6325 = vpop.permute.xlu0 %6324
  %6326 = vrot.lane.b32.xlu0 %v6062, 64
  %v6327 = vpop.permute.xlu0 %6326
  %6328 = vrot.lane.b32.xlu0 %v6063, 64
  %v6329 = vpop.permute.xlu0 %6328
  %v6330 = vsel %vm4449, %v6295, %v6297
  %v6331 = vsel %vm4449, %v6297, %v6299
  %v6332 = vsel %vm4449, %v6299, %v6301
  %v6333 = vsel %vm4449, %v6301, %v6303
  %v6334 = vsel %vm4449, %v6303, %v6305
  %v6335 = vsel %vm4449, %v6305, %v6307
  %v6336 = vsel %vm4449, %v6307, %v6309
  %v6337 = vsel %vm4449, %v6309, %v6311
  %v6338 = vsel %vm4449, %v6313, %v6315
  %v6339 = vsel %vm4449, %v6315, %v6317
  %v6340 = vsel %vm4449, %v6317, %v6319
  %v6341 = vsel %vm4449, %v6319, %v6321
  %v6342 = vsel %vm4449, %v6321, %v6323
  %v6343 = vsel %vm4449, %v6323, %v6325
  %v6344 = vsel %vm4449, %v6325, %v6327
  %v6345 = vsel %vm4449, %v6327, %v6329
  %v6362 = vmax.f32 %v6258, %v6330
  %v6363 = vmax.f32 %v6259, %v6331
  %v6364 = vmax.f32 %v6260, %v6332
  %v6365 = vmax.f32 %v6261, %v6333
  %v6366 = vmax.f32 %v6262, %v6334
  %v6367 = vmax.f32 %v6263, %v6335
  %v6368 = vmax.f32 %v6264, %v6336
  %v6369 = vmax.f32 %v6265, %v6337
  %v6370 = vmax.f32 %v6266, %v6338
  %v6371 = vmax.f32 %v6267, %v6339
  %v6372 = vmax.f32 %v6268, %v6340
  %v6373 = vmax.f32 %v6269, %v6341
  %v6374 = vmax.f32 %v6270, %v6342
  %v6375 = vmax.f32 %v6271, %v6343
  %v6376 = vmax.f32 %v6272, %v6344
  %v6377 = vmax.f32 %v6273, %v6345
  %v6378 = vld [vmem:[%s53 + $0x48] sm:$0xfe]
  %v6379 = vld [vmem:[%s53 + $0x98] sm:$0x1]
  %6382 = vrot.lane.b32.xlu0 %v6378, 64
  %v6383 = vpop.permute.xlu0 %6382
  %6384 = vrot.lane.b32.xlu0 %v6379, 64
  %v6385 = vpop.permute.xlu0 %6384
  %v6386 = vsel %vm4449, %v6311, %v6383
  %v6387 = vsel %vm4449, %v6329, %v6385
  %v6390 = vmax.f32 %v6362, %v6331
  %v6391 = vmax.f32 %v6363, %v6332
  %v6392 = vmax.f32 %v6364, %v6333
  %v6393 = vmax.f32 %v6365, %v6334
  %v6394 = vmax.f32 %v6366, %v6335
  %v6395 = vmax.f32 %v6367, %v6336
  %v6396 = vmax.f32 %v6368, %v6337
  %v6397 = vmax.f32 %v6369, %v6386
  %v6398 = vmax.f32 %v6370, %v6339
  %v6399 = vmax.f32 %v6371, %v6340
  %v6400 = vmax.f32 %v6372, %v6341
  %v6401 = vmax.f32 %v6373, %v6342
  %v6402 = vmax.f32 %v6374, %v6343
  %v6403 = vmax.f32 %v6375, %v6344
  %v6404 = vmax.f32 %v6376, %v6345
  %v6405 = vmax.f32 %v6377, %v6387
  %v6406 = vld [vmem:[%s53 + $0x50] sm:$0xf8]
  %v6407 = vld [vmem:[%s53 + $0x58] sm:$0xf8]
  %v6408 = vld [vmem:[%s53 + $0x60] sm:$0xf8]
  %v6409 = vld [vmem:[%s53 + $0x68] sm:$0xf8]
  %v6410 = vld [vmem:[%s53 + $0x70] sm:$0xf8]
  %v6411 = vld [vmem:[%s53 + $0x78] sm:$0xf8]
  %v6412 = vld [vmem:[%s53 + $0x80] sm:$0xf8]
  %v6413 = vld [vmem:[%s53 + $0x88] sm:$0xf8]
  %v6414 = vld [vmem:[%s53 + $0x90] sm:$0xf8]
  %v6415 = vld [vmem:[%s53 + $0xa0] sm:$0x7]
  %v6416 = vld [vmem:[%s53 + $0xa8] sm:$0x7]
  %v6417 = vld [vmem:[%s53 + $0xb0] sm:$0x7]
  %v6418 = vld [vmem:[%s53 + $0xb8] sm:$0x7]
  %v6419 = vld [vmem:[%s53 + $0xc0] sm:$0x7]
  %v6420 = vld [vmem:[%s53 + $0xc8] sm:$0x7]
  %v6421 = vld [vmem:[%s53 + $0xd0] sm:$0x7]
  %v6422 = vld [vmem:[%s53 + $0xd8] sm:$0x7]
  %v6423 = vld [vmem:[%s53 + $0xe0] sm:$0x7]
  %v6442 = vrot.slane %v6406, 2
  %v6443 = vrot.slane %v6415, 2
  %v6444 = vsel %vm4729, %v6442, %v6443
  %v6445 = vrot.slane %v6407, 2
  %v6446 = vrot.slane %v6416, 2
  %v6447 = vsel %vm4729, %v6445, %v6446
  %v6448 = vrot.slane %v6408, 2
  %v6449 = vrot.slane %v6417, 2
  %v6450 = vsel %vm4729, %v6448, %v6449
  %v6451 = vrot.slane %v6409, 2
  %v6452 = vrot.slane %v6418, 2
  %v6453 = vsel %vm4729, %v6451, %v6452
  %v6454 = vrot.slane %v6410, 2
  %v6455 = vrot.slane %v6419, 2
  %v6456 = vsel %vm4729, %v6454, %v6455
  %v6457 = vrot.slane %v6411, 2
  %v6458 = vrot.slane %v6420, 2
  %v6459 = vsel %vm4729, %v6457, %v6458
  %v6460 = vrot.slane %v6412, 2
  %v6461 = vrot.slane %v6421, 2
  %v6462 = vsel %vm4729, %v6460, %v6461
  %v6463 = vrot.slane %v6413, 2
  %v6464 = vrot.slane %v6422, 2
  %v6465 = vsel %vm4729, %v6463, %v6464
  %v6466 = vrot.slane %v6414, 2
  %v6467 = vrot.slane %v6423, 2
  %v6468 = vsel %vm4729, %v6466, %v6467
  %6469 = vrot.lane.b32.xlu0 %v6444, 64
  %v6470 = vpop.permute.xlu0 %6469
  %6471 = vrot.lane.b32.xlu0 %v6447, 64
  %v6472 = vpop.permute.xlu0 %6471
  %6473 = vrot.lane.b32.xlu0 %v6450, 64
  %v6474 = vpop.permute.xlu0 %6473
  %6475 = vrot.lane.b32.xlu0 %v6453, 64
  %v6476 = vpop.permute.xlu0 %6475
  %6477 = vrot.lane.b32.xlu0 %v6456, 64
  %v6478 = vpop.permute.xlu0 %6477
  %6479 = vrot.lane.b32.xlu0 %v6459, 64
  %v6480 = vpop.permute.xlu0 %6479
  %6481 = vrot.lane.b32.xlu0 %v6462, 64
  %v6482 = vpop.permute.xlu0 %6481
  %6483 = vrot.lane.b32.xlu0 %v6465, 64
  %v6484 = vpop.permute.xlu0 %6483
  %6485 = vrot.lane.b32.xlu0 %v6468, 64
  %v6486 = vpop.permute.xlu0 %6485
  %6487 = vrot.lane.b32.xlu0 %v6443, 64
  %v6488 = vpop.permute.xlu0 %6487
  %6489 = vrot.lane.b32.xlu0 %v6446, 64
  %v6490 = vpop.permute.xlu0 %6489
  %6491 = vrot.lane.b32.xlu0 %v6449, 64
  %v6492 = vpop.permute.xlu0 %6491
  %6493 = vrot.lane.b32.xlu0 %v6452, 64
  %v6494 = vpop.permute.xlu0 %6493
  %6495 = vrot.lane.b32.xlu0 %v6455, 64
  %v6496 = vpop.permute.xlu0 %6495
  %6497 = vrot.lane.b32.xlu0 %v6458, 64
  %v6498 = vpop.permute.xlu0 %6497
  %6499 = vrot.lane.b32.xlu0 %v6461, 64
  %v6500 = vpop.permute.xlu0 %6499
  %6501 = vrot.lane.b32.xlu0 %v6464, 64
  %v6502 = vpop.permute.xlu0 %6501
  %6503 = vrot.lane.b32.xlu0 %v6467, 64
  %v6504 = vpop.permute.xlu0 %6503
  %v6505 = vsel %vm4449, %v6470, %v6472
  %v6506 = vsel %vm4449, %v6472, %v6474
  %v6507 = vsel %vm4449, %v6474, %v6476
  %v6508 = vsel %vm4449, %v6476, %v6478
  %v6509 = vsel %vm4449, %v6478, %v6480
  %v6510 = vsel %vm4449, %v6480, %v6482
  %v6511 = vsel %vm4449, %v6482, %v6484
  %v6512 = vsel %vm4449, %v6484, %v6486
  %v6513 = vsel %vm4449, %v6488, %v6490
  %v6514 = vsel %vm4449, %v6490, %v6492
  %v6515 = vsel %vm4449, %v6492, %v6494
  %v6516 = vsel %vm4449, %v6494, %v6496
  %v6517 = vsel %vm4449, %v6496, %v6498
  %v6518 = vsel %vm4449, %v6498, %v6500
  %v6519 = vsel %vm4449, %v6500, %v6502
  %v6520 = vsel %vm4449, %v6502, %v6504
  %v6537 = vmax.f32 %v6390, %v6505
  %v6538 = vmax.f32 %v6391, %v6506
  %v6539 = vmax.f32 %v6392, %v6507
  %v6540 = vmax.f32 %v6393, %v6508
  %v6541 = vmax.f32 %v6394, %v6509
  %v6542 = vmax.f32 %v6395, %v6510
  %v6543 = vmax.f32 %v6396, %v6511
  %v6544 = vmax.f32 %v6397, %v6512
  %v6545 = vmax.f32 %v6398, %v6513
  %v6546 = vmax.f32 %v6399, %v6514
  %v6547 = vmax.f32 %v6400, %v6515
  %v6548 = vmax.f32 %v6401, %v6516
  %v6549 = vmax.f32 %v6402, %v6517
  %v6550 = vmax.f32 %v6403, %v6518
  %v6551 = vmax.f32 %v6404, %v6519
  %v6552 = vmax.f32 %v6405, %v6520
  %v6569 = vmax.f32 %v6537, %v6447
  %v6570 = vmax.f32 %v6538, %v6450
  %v6571 = vmax.f32 %v6539, %v6453
  %v6572 = vmax.f32 %v6540, %v6456
  %v6573 = vmax.f32 %v6541, %v6459
  %v6574 = vmax.f32 %v6542, %v6462
  %v6575 = vmax.f32 %v6543, %v6465
  %v6576 = vmax.f32 %v6544, %v6468
  %v6577 = vmax.f32 %v6545, %v6446
  %v6578 = vmax.f32 %v6546, %v6449
  %v6579 = vmax.f32 %v6547, %v6452
  %v6580 = vmax.f32 %v6548, %v6455
  %v6581 = vmax.f32 %v6549, %v6458
  %v6582 = vmax.f32 %v6550, %v6461
  %v6583 = vmax.f32 %v6551, %v6464
  %v6584 = vmax.f32 %v6552, %v6467
  %v6585 = vld [vmem:[%s53 + $0x98] sm:$0xf8]
  %v6586 = vld [vmem:[%s53 + $0xe8] sm:$0x7]
  %v6589 = vrot.slane %v6585, 2
  %v6590 = vrot.slane %v6586, 2
  %v6591 = vsel %vm4729, %v6589, %v6590
  %6592 = vrot.lane.b32.xlu0 %v6591, 64
  %v6593 = vpop.permute.xlu0 %6592
  %6594 = vrot.lane.b32.xlu0 %v6590, 64
  %v6595 = vpop.permute.xlu0 %6594
  %v6596 = vsel %vm4449, %v6486, %v6593
  %v6597 = vsel %vm4449, %v6504, %v6595
  %v6600 = vmax.f32 %v6569, %v6506
  %v6601 = vmax.f32 %v6570, %v6507
  %v6602 = vmax.f32 %v6571, %v6508
  %v6603 = vmax.f32 %v6572, %v6509
  %v6604 = vmax.f32 %v6573, %v6510
  %v6605 = vmax.f32 %v6574, %v6511
  %v6606 = vmax.f32 %v6575, %v6512
  %v6607 = vmax.f32 %v6576, %v6596
  %v6608 = vmax.f32 %v6577, %v6514
  %v6609 = vmax.f32 %v6578, %v6515
  %v6610 = vmax.f32 %v6579, %v6516
  %v6611 = vmax.f32 %v6580, %v6517
  %v6612 = vmax.f32 %v6581, %v6518
  %v6613 = vmax.f32 %v6582, %v6519
  %v6614 = vmax.f32 %v6583, %v6520
  %v6615 = vmax.f32 %v6584, %v6597
  %6616 = vst [vmem:[%s53 + $0x8] sm:$0xfe] %v6600
  %6617 = vst [vmem:[%s53 + $0x10] sm:$0xfe] %v6601
  %6618 = vst [vmem:[%s53 + $0x18] sm:$0xfe] %v6602
  %6619 = vst [vmem:[%s53 + $0x20] sm:$0xfe] %v6603
  %6620 = vst [vmem:[%s53 + $0x28] sm:$0xfe] %v6604
  %6621 = vst [vmem:[%s53 + $0x30] sm:$0xfe] %v6605
  %6622 = vst [vmem:[%s53 + $0x38] sm:$0xfe] %v6606
  %6623 = vst [vmem:[%s53 + $0x40] sm:$0xfe] %v6607
  %6624 = vst [vmem:[%s53 + $0x58] sm:$0x1] %v6608
  %6625 = vst [vmem:[%s53 + $0x60] sm:$0x1] %v6609
  %6626 = vst [vmem:[%s53 + $0x68] sm:$0x1] %v6610
  %6627 = vst [vmem:[%s53 + $0x70] sm:$0x1] %v6611
  %6628 = vst [vmem:[%s53 + $0x78] sm:$0x1] %v6612
  %6629 = vst [vmem:[%s53 + $0x80] sm:$0x1] %v6613
  %6630 = vst [vmem:[%s53 + $0x88] sm:$0x1] %v6614
  %6631 = vst [vmem:[%s53 + $0x90] sm:$0x1] %v6615
  %v6632 = vld [vmem:[%s53] sm:$0xff]
  %v6633 = vld [vmem:[%s53 + $0x8] sm:$0xff]
  %v6634 = vld [vmem:[%s53 + $0x10] sm:$0xff]
  %v6635 = vld [vmem:[%s53 + $0x18] sm:$0xff]
  %v6636 = vld [vmem:[%s53 + $0x20] sm:$0xff]
  %v6637 = vld [vmem:[%s53 + $0x28] sm:$0xff]
  %v6638 = vld [vmem:[%s53 + $0x30] sm:$0xff]
  %v6639 = vld [vmem:[%s53 + $0x38] sm:$0xff]
  %v6640 = vld [vmem:[%s3] ss:$8 sm:$0xf]
  %v6641 = vld [vmem:[%s3] ss:$8 sm:$0xf0]
  %v6642 = vor.u32 %v6640, %v6641
  %v6644 = vlaneseq
  %v6645 = vshrl.u32 %v6644, 7
  %v6646 = vsub.s32 0, %v6645
  %v6647 = vrot.slane %v6642, %v6646
  %v6648 = vlaneseq
  %v6649 = vshrl.u32 %v6648, 7
  %v6650 = vsub.s32 1, %v6649
  %v6651 = vrot.slane %v6642, %v6650
  %v6652 = vlaneseq
  %v6653 = vshrl.u32 %v6652, 7
  %v6654 = vsub.s32 2, %v6653
  %v6655 = vrot.slane %v6642, %v6654
  %v6656 = vlaneseq
  %v6657 = vshrl.u32 %v6656, 7
  %v6658 = vsub.s32 3, %v6657
  %v6659 = vrot.slane %v6642, %v6658
  %v6660 = vlaneseq
  %v6661 = vshrl.u32 %v6660, 7
  %v6662 = vsub.s32 4, %v6661
  %v6663 = vrot.slane %v6642, %v6662
  %v6664 = vlaneseq
  %v6665 = vshrl.u32 %v6664, 7
  %v6666 = vsub.s32 5, %v6665
  %v6667 = vrot.slane %v6642, %v6666
  %v6668 = vlaneseq
  %v6669 = vshrl.u32 %v6668, 7
  %v6670 = vsub.s32 6, %v6669
  %v6671 = vrot.slane %v6642, %v6670
  %v6672 = vlaneseq
  %v6673 = vshrl.u32 %v6672, 7
  %v6674 = vsub.s32 7, %v6673
  %v6675 = vrot.slane %v6642, %v6674
  %v6684 = vmul.f32 %v6632, %v6647
  %v6685 = vmul.f32 %v6633, %v6651
  %v6686 = vmul.f32 %v6634, %v6655
  %v6687 = vmul.f32 %v6635, %v6659
  %v6688 = vmul.f32 %v6636, %v6663
  %v6689 = vmul.f32 %v6637, %v6667
  %v6690 = vmul.f32 %v6638, %v6671
  %v6691 = vmul.f32 %v6639, %v6675
  %v6692 = vadd.f32 %v6684, 0.0
  %v6693 = vadd.f32 %v6685, 0.0
  %v6694 = vadd.f32 %v6686, 0.0
  %v6695 = vadd.f32 %v6687, 0.0
  %v6696 = vadd.f32 %v6688, 0.0
  %v6697 = vadd.f32 %v6689, 0.0
  %v6698 = vadd.f32 %v6690, 0.0
  %v6699 = vadd.f32 %v6691, 0.0
  %v6700 = vld [vmem:[%s53 + $0x40] sm:$0xff]
  %v6701 = vld [vmem:[%s4989] ss:$8 sm:$0xf]
  %v6702 = vld [vmem:[%s4989] ss:$8 sm:$0xf0]
  %v6703 = vor.u32 %v6701, %v6702
  %v6705 = vlaneseq
  %v6706 = vshrl.u32 %v6705, 7
  %v6707 = vsub.s32 0, %v6706
  %v6708 = vrot.slane %v6703, %v6707
  %v6709 = vlaneseq
  %v6710 = vshrl.u32 %v6709, 7
  %v6711 = vsub.s32 1, %v6710
  %v6712 = vrot.slane %v6703, %v6711
  %v6713 = vlaneseq
  %v6714 = vshrl.u32 %v6713, 7
  %v6715 = vsub.s32 2, %v6714
  %v6716 = vrot.slane %v6703, %v6715
  %v6717 = vlaneseq
  %v6718 = vshrl.u32 %v6717, 7
  %v6719 = vsub.s32 3, %v6718
  %v6720 = vrot.slane %v6703, %v6719
  %v6721 = vlaneseq
  %v6722 = vshrl.u32 %v6721, 7
  %v6723 = vsub.s32 4, %v6722
  %v6724 = vrot.slane %v6703, %v6723
  %v6725 = vlaneseq
  %v6726 = vshrl.u32 %v6725, 7
  %v6727 = vsub.s32 5, %v6726
  %v6728 = vrot.slane %v6703, %v6727
  %v6729 = vlaneseq
  %v6730 = vshrl.u32 %v6729, 7
  %v6731 = vsub.s32 6, %v6730
  %v6732 = vrot.slane %v6703, %v6731
  %v6733 = vlaneseq
  %v6734 = vshrl.u32 %v6733, 7
  %v6735 = vsub.s32 7, %v6734
  %v6736 = vrot.slane %v6703, %v6735
  %v6745 = vmul.f32 %v6633, %v6708
  %v6746 = vmul.f32 %v6634, %v6712
  %v6747 = vmul.f32 %v6635, %v6716
  %v6748 = vmul.f32 %v6636, %v6720
  %v6749 = vmul.f32 %v6637, %v6724
  %v6750 = vmul.f32 %v6638, %v6728
  %v6751 = vmul.f32 %v6639, %v6732
  %v6752 = vmul.f32 %v6700, %v6736
  %v6753 = vadd.f32 %v6692, %v6745
  %v6754 = vadd.f32 %v6693, %v6746
  %v6755 = vadd.f32 %v6694, %v6747
  %v6756 = vadd.f32 %v6695, %v6748
  %v6757 = vadd.f32 %v6696, %v6749
  %v6758 = vadd.f32 %v6697, %v6750
  %v6759 = vadd.f32 %v6698, %v6751
  %v6760 = vadd.f32 %v6699, %v6752
  %v6761 = vld [vmem:[%s53 + $0x48] sm:$0xff]
  %v6762 = vld [vmem:[%s5051] ss:$8 sm:$0xf]
  %v6763 = vld [vmem:[%s5051] ss:$8 sm:$0xf0]
  %v6764 = vor.u32 %v6762, %v6763
  %v6766 = vlaneseq
  %v6767 = vshrl.u32 %v6766, 7
  %v6768 = vsub.s32 0, %v6767
  %v6769 = vrot.slane %v6764, %v6768
  %v6770 = vlaneseq
  %v6771 = vshrl.u32 %v6770, 7
  %v6772 = vsub.s32 1, %v6771
  %v6773 = vrot.slane %v6764, %v6772
  %v6774 = vlaneseq
  %v6775 = vshrl.u32 %v6774, 7
  %v6776 = vsub.s32 2, %v6775
  %v6777 = vrot.slane %v6764, %v6776
  %v6778 = vlaneseq
  %v6779 = vshrl.u32 %v6778, 7
  %v6780 = vsub.s32 3, %v6779
  %v6781 = vrot.slane %v6764, %v6780
  %v6782 = vlaneseq
  %v6783 = vshrl.u32 %v6782, 7
  %v6784 = vsub.s32 4, %v6783
  %v6785 = vrot.slane %v6764, %v6784
  %v6786 = vlaneseq
  %v6787 = vshrl.u32 %v6786, 7
  %v6788 = vsub.s32 5, %v6787
  %v6789 = vrot.slane %v6764, %v6788
  %v6790 = vlaneseq
  %v6791 = vshrl.u32 %v6790, 7
  %v6792 = vsub.s32 6, %v6791
  %v6793 = vrot.slane %v6764, %v6792
  %v6794 = vlaneseq
  %v6795 = vshrl.u32 %v6794, 7
  %v6796 = vsub.s32 7, %v6795
  %v6797 = vrot.slane %v6764, %v6796
  %v6806 = vmul.f32 %v6634, %v6769
  %v6807 = vmul.f32 %v6635, %v6773
  %v6808 = vmul.f32 %v6636, %v6777
  %v6809 = vmul.f32 %v6637, %v6781
  %v6810 = vmul.f32 %v6638, %v6785
  %v6811 = vmul.f32 %v6639, %v6789
  %v6812 = vmul.f32 %v6700, %v6793
  %v6813 = vmul.f32 %v6761, %v6797
  %v6814 = vadd.f32 %v6753, %v6806
  %v6815 = vadd.f32 %v6754, %v6807
  %v6816 = vadd.f32 %v6755, %v6808
  %v6817 = vadd.f32 %v6756, %v6809
  %v6818 = vadd.f32 %v6757, %v6810
  %v6819 = vadd.f32 %v6758, %v6811
  %v6820 = vadd.f32 %v6759, %v6812
  %v6821 = vadd.f32 %v6760, %v6813
  %v6822 = vld [vmem:[%s53] sm:$0xfe]
  %v6823 = vld [vmem:[%s53 + $0x8] sm:$0xfe]
  %v6824 = vld [vmem:[%s53 + $0x10] sm:$0xfe]
  %v6825 = vld [vmem:[%s53 + $0x18] sm:$0xfe]
  %v6826 = vld [vmem:[%s53 + $0x20] sm:$0xfe]
  %v6827 = vld [vmem:[%s53 + $0x28] sm:$0xfe]
  %v6828 = vld [vmem:[%s53 + $0x30] sm:$0xfe]
  %v6829 = vld [vmem:[%s53 + $0x38] sm:$0xfe]
  %v6830 = vld [vmem:[%s53 + $0x50] sm:$0x1]
  %v6831 = vld [vmem:[%s53 + $0x58] sm:$0x1]
  %v6832 = vld [vmem:[%s53 + $0x60] sm:$0x1]
  %v6833 = vld [vmem:[%s53 + $0x68] sm:$0x1]
  %v6834 = vld [vmem:[%s53 + $0x70] sm:$0x1]
  %v6835 = vld [vmem:[%s53 + $0x78] sm:$0x1]
  %v6836 = vld [vmem:[%s53 + $0x80] sm:$0x1]
  %v6837 = vld [vmem:[%s53 + $0x88] sm:$0x1]
  %v6838 = vld [vmem:[%s5128] ss:$8 sm:$0xf]
  %v6839 = vld [vmem:[%s5128] ss:$8 sm:$0xf0]
  %v6840 = vor.u32 %v6838, %v6839
  %v6842 = vlaneseq
  %v6843 = vshrl.u32 %v6842, 7
  %v6844 = vsub.s32 0, %v6843
  %v6845 = vrot.slane %v6840, %v6844
  %v6846 = vlaneseq
  %v6847 = vshrl.u32 %v6846, 7
  %v6848 = vsub.s32 1, %v6847
  %v6849 = vrot.slane %v6840, %v6848
  %v6850 = vlaneseq
  %v6851 = vshrl.u32 %v6850, 7
  %v6852 = vsub.s32 2, %v6851
  %v6853 = vrot.slane %v6840, %v6852
  %v6854 = vlaneseq
  %v6855 = vshrl.u32 %v6854, 7
  %v6856 = vsub.s32 3, %v6855
  %v6857 = vrot.slane %v6840, %v6856
  %v6858 = vlaneseq
  %v6859 = vshrl.u32 %v6858, 7
  %v6860 = vsub.s32 4, %v6859
  %v6861 = vrot.slane %v6840, %v6860
  %v6862 = vlaneseq
  %v6863 = vshrl.u32 %v6862, 7
  %v6864 = vsub.s32 5, %v6863
  %v6865 = vrot.slane %v6840, %v6864
  %v6866 = vlaneseq
  %v6867 = vshrl.u32 %v6866, 7
  %v6868 = vsub.s32 6, %v6867
  %v6869 = vrot.slane %v6840, %v6868
  %v6870 = vlaneseq
  %v6871 = vshrl.u32 %v6870, 7
  %v6872 = vsub.s32 7, %v6871
  %v6873 = vrot.slane %v6840, %v6872
  %v6882 = vmul.f32 %v6822, %v6845
  %v6883 = vmul.f32 %v6823, %v6849
  %v6884 = vmul.f32 %v6824, %v6853
  %v6885 = vmul.f32 %v6825, %v6857
  %v6886 = vmul.f32 %v6826, %v6861
  %v6887 = vmul.f32 %v6827, %v6865
  %v6888 = vmul.f32 %v6828, %v6869
  %v6889 = vmul.f32 %v6829, %v6873
  %v6890 = vmul.f32 %v6830, %v6845
  %v6891 = vmul.f32 %v6831, %v6849
  %v6892 = vmul.f32 %v6832, %v6853
  %v6893 = vmul.f32 %v6833, %v6857
  %v6894 = vmul.f32 %v6834, %v6861
  %v6895 = vmul.f32 %v6835, %v6865
  %v6896 = vmul.f32 %v6836, %v6869
  %v6897 = vmul.f32 %v6837, %v6873
  %v6914 = vrot.slane %v6882, 1
  %v6915 = vrot.slane %v6890, 1
  %v6916 = vsel %vm4385, %v6914, %v6915
  %v6917 = vrot.slane %v6883, 1
  %v6918 = vrot.slane %v6891, 1
  %v6919 = vsel %vm4385, %v6917, %v6918
  %v6920 = vrot.slane %v6884, 1
  %v6921 = vrot.slane %v6892, 1
  %v6922 = vsel %vm4385, %v6920, %v6921
  %v6923 = vrot.slane %v6885, 1
  %v6924 = vrot.slane %v6893, 1
  %v6925 = vsel %vm4385, %v6923, %v6924
  %v6926 = vrot.slane %v6886, 1
  %v6927 = vrot.slane %v6894, 1
  %v6928 = vsel %vm4385, %v6926, %v6927
  %v6929 = vrot.slane %v6887, 1
  %v6930 = vrot.slane %v6895, 1
  %v6931 = vsel %vm4385, %v6929, %v6930
  %v6932 = vrot.slane %v6888, 1
  %v6933 = vrot.slane %v6896, 1
  %v6934 = vsel %vm4385, %v6932, %v6933
  %v6935 = vrot.slane %v6889, 1
  %v6936 = vrot.slane %v6897, 1
  %v6937 = vsel %vm4385, %v6935, %v6936
  %v6946 = vadd.f32 %v6814, %v6916
  %v6947 = vadd.f32 %v6815, %v6919
  %v6948 = vadd.f32 %v6816, %v6922
  %v6949 = vadd.f32 %v6817, %v6925
  %v6950 = vadd.f32 %v6818, %v6928
  %v6951 = vadd.f32 %v6819, %v6931
  %v6952 = vadd.f32 %v6820, %v6934
  %v6953 = vadd.f32 %v6821, %v6937
  %v6954 = vld [vmem:[%s53 + $0x40] sm:$0xfe]
  %v6955 = vld [vmem:[%s53 + $0x90] sm:$0x1]
  %v6956 = vld [vmem:[%s5247] ss:$8 sm:$0xf]
  %v6957 = vld [vmem:[%s5247] ss:$8 sm:$0xf0]
  %v6958 = vor.u32 %v6956, %v6957
  %v6960 = vlaneseq
  %v6961 = vshrl.u32 %v6960, 7
  %v6962 = vsub.s32 0, %v6961
  %v6963 = vrot.slane %v6958, %v6962
  %v6964 = vlaneseq
  %v6965 = vshrl.u32 %v6964, 7
  %v6966 = vsub.s32 1, %v6965
  %v6967 = vrot.slane %v6958, %v6966
  %v6968 = vlaneseq
  %v6969 = vshrl.u32 %v6968, 7
  %v6970 = vsub.s32 2, %v6969
  %v6971 = vrot.slane %v6958, %v6970
  %v6972 = vlaneseq
  %v6973 = vshrl.u32 %v6972, 7
  %v6974 = vsub.s32 3, %v6973
  %v6975 = vrot.slane %v6958, %v6974
  %v6976 = vlaneseq
  %v6977 = vshrl.u32 %v6976, 7
  %v6978 = vsub.s32 4, %v6977
  %v6979 = vrot.slane %v6958, %v6978
  %v6980 = vlaneseq
  %v6981 = vshrl.u32 %v6980, 7
  %v6982 = vsub.s32 5, %v6981
  %v6983 = vrot.slane %v6958, %v6982
  %v6984 = vlaneseq
  %v6985 = vshrl.u32 %v6984, 7
  %v6986 = vsub.s32 6, %v6985
  %v6987 = vrot.slane %v6958, %v6986
  %v6988 = vlaneseq
  %v6989 = vshrl.u32 %v6988, 7
  %v6990 = vsub.s32 7, %v6989
  %v6991 = vrot.slane %v6958, %v6990
  %v7000 = vmul.f32 %v6823, %v6963
  %v7001 = vmul.f32 %v6824, %v6967
  %v7002 = vmul.f32 %v6825, %v6971
  %v7003 = vmul.f32 %v6826, %v6975
  %v7004 = vmul.f32 %v6827, %v6979
  %v7005 = vmul.f32 %v6828, %v6983
  %v7006 = vmul.f32 %v6829, %v6987
  %v7007 = vmul.f32 %v6954, %v6991
  %v7008 = vmul.f32 %v6831, %v6963
  %v7009 = vmul.f32 %v6832, %v6967
  %v7010 = vmul.f32 %v6833, %v6971
  %v7011 = vmul.f32 %v6834, %v6975
  %v7012 = vmul.f32 %v6835, %v6979
  %v7013 = vmul.f32 %v6836, %v6983
  %v7014 = vmul.f32 %v6837, %v6987
  %v7015 = vmul.f32 %v6955, %v6991
  %v7032 = vrot.slane %v7000, 1
  %v7033 = vrot.slane %v7008, 1
  %v7034 = vsel %vm4385, %v7032, %v7033
  %v7035 = vrot.slane %v7001, 1
  %v7036 = vrot.slane %v7009, 1
  %v7037 = vsel %vm4385, %v7035, %v7036
  %v7038 = vrot.slane %v7002, 1
  %v7039 = vrot.slane %v7010, 1
  %v7040 = vsel %vm4385, %v7038, %v7039
  %v7041 = vrot.slane %v7003, 1
  %v7042 = vrot.slane %v7011, 1
  %v7043 = vsel %vm4385, %v7041, %v7042
  %v7044 = vrot.slane %v7004, 1
  %v7045 = vrot.slane %v7012, 1
  %v7046 = vsel %vm4385, %v7044, %v7045
  %v7047 = vrot.slane %v7005, 1
  %v7048 = vrot.slane %v7013, 1
  %v7049 = vsel %vm4385, %v7047, %v7048
  %v7050 = vrot.slane %v7006, 1
  %v7051 = vrot.slane %v7014, 1
  %v7052 = vsel %vm4385, %v7050, %v7051
  %v7053 = vrot.slane %v7007, 1
  %v7054 = vrot.slane %v7015, 1
  %v7055 = vsel %vm4385, %v7053, %v7054
  %v7064 = vadd.f32 %v6946, %v7034
  %v7065 = vadd.f32 %v6947, %v7037
  %v7066 = vadd.f32 %v6948, %v7040
  %v7067 = vadd.f32 %v6949, %v7043
  %v7068 = vadd.f32 %v6950, %v7046
  %v7069 = vadd.f32 %v6951, %v7049
  %v7070 = vadd.f32 %v6952, %v7052
  %v7071 = vadd.f32 %v6953, %v7055
  %v7072 = vld [vmem:[%s53 + $0x48] sm:$0xfe]
  %v7073 = vld [vmem:[%s53 + $0x98] sm:$0x1]
  %v7074 = vld [vmem:[%s5366] ss:$8 sm:$0xf]
  %v7075 = vld [vmem:[%s5366] ss:$8 sm:$0xf0]
  %v7076 = vor.u32 %v7074, %v7075
  %v7078 = vlaneseq
  %v7079 = vshrl.u32 %v7078, 7
  %v7080 = vsub.s32 0, %v7079
  %v7081 = vrot.slane %v7076, %v7080
  %v7082 = vlaneseq
  %v7083 = vshrl.u32 %v7082, 7
  %v7084 = vsub.s32 1, %v7083
  %v7085 = vrot.slane %v7076, %v7084
  %v7086 = vlaneseq
  %v7087 = vshrl.u32 %v7086, 7
  %v7088 = vsub.s32 2, %v7087
  %v7089 = vrot.slane %v7076, %v7088
  %v7090 = vlaneseq
  %v7091 = vshrl.u32 %v7090, 7
  %v7092 = vsub.s32 3, %v7091
  %v7093 = vrot.slane %v7076, %v7092
  %v7094 = vlaneseq
  %v7095 = vshrl.u32 %v7094, 7
  %v7096 = vsub.s32 4, %v7095
  %v7097 = vrot.slane %v7076, %v7096
  %v7098 = vlaneseq
  %v7099 = vshrl.u32 %v7098, 7
  %v7100 = vsub.s32 5, %v7099
  %v7101 = vrot.slane %v7076, %v7100
  %v7102 = vlaneseq
  %v7103 = vshrl.u32 %v7102, 7
  %v7104 = vsub.s32 6, %v7103
  %v7105 = vrot.slane %v7076, %v7104
  %v7106 = vlaneseq
  %v7107 = vshrl.u32 %v7106, 7
  %v7108 = vsub.s32 7, %v7107
  %v7109 = vrot.slane %v7076, %v7108
  %v7118 = vmul.f32 %v6824, %v7081
  %v7119 = vmul.f32 %v6825, %v7085
  %v7120 = vmul.f32 %v6826, %v7089
  %v7121 = vmul.f32 %v6827, %v7093
  %v7122 = vmul.f32 %v6828, %v7097
  %v7123 = vmul.f32 %v6829, %v7101
  %v7124 = vmul.f32 %v6954, %v7105
  %v7125 = vmul.f32 %v7072, %v7109
  %v7126 = vmul.f32 %v6832, %v7081
  %v7127 = vmul.f32 %v6833, %v7085
  %v7128 = vmul.f32 %v6834, %v7089
  %v7129 = vmul.f32 %v6835, %v7093
  %v7130 = vmul.f32 %v6836, %v7097
  %v7131 = vmul.f32 %v6837, %v7101
  %v7132 = vmul.f32 %v6955, %v7105
  %v7133 = vmul.f32 %v7073, %v7109
  %v7150 = vrot.slane %v7118, 1
  %v7151 = vrot.slane %v7126, 1
  %v7152 = vsel %vm4385, %v7150, %v7151
  %v7153 = vrot.slane %v7119, 1
  %v7154 = vrot.slane %v7127, 1
  %v7155 = vsel %vm4385, %v7153, %v7154
  %v7156 = vrot.slane %v7120, 1
  %v7157 = vrot.slane %v7128, 1
  %v7158 = vsel %vm4385, %v7156, %v7157
  %v7159 = vrot.slane %v7121, 1
  %v7160 = vrot.slane %v7129, 1
  %v7161 = vsel %vm4385, %v7159, %v7160
  %v7162 = vrot.slane %v7122, 1
  %v7163 = vrot.slane %v7130, 1
  %v7164 = vsel %vm4385, %v7162, %v7163
  %v7165 = vrot.slane %v7123, 1
  %v7166 = vrot.slane %v7131, 1
  %v7167 = vsel %vm4385, %v7165, %v7166
  %v7168 = vrot.slane %v7124, 1
  %v7169 = vrot.slane %v7132, 1
  %v7170 = vsel %vm4385, %v7168, %v7169
  %v7171 = vrot.slane %v7125, 1
  %v7172 = vrot.slane %v7133, 1
  %v7173 = vsel %vm4385, %v7171, %v7172
  %v7182 = vadd.f32 %v7064, %v7152
  %v7183 = vadd.f32 %v7065, %v7155
  %v7184 = vadd.f32 %v7066, %v7158
  %v7185 = vadd.f32 %v7067, %v7161
  %v7186 = vadd.f32 %v7068, %v7164
  %v7187 = vadd.f32 %v7069, %v7167
  %v7188 = vadd.f32 %v7070, %v7170
  %v7189 = vadd.f32 %v7071, %v7173
  %v7190 = vld [vmem:[%s53] sm:$0xfc]
  %v7191 = vld [vmem:[%s53 + $0x8] sm:$0xfc]
  %v7192 = vld [vmem:[%s53 + $0x10] sm:$0xfc]
  %v7193 = vld [vmem:[%s53 + $0x18] sm:$0xfc]
  %v7194 = vld [vmem:[%s53 + $0x20] sm:$0xfc]
  %v7195 = vld [vmem:[%s53 + $0x28] sm:$0xfc]
  %v7196 = vld [vmem:[%s53 + $0x30] sm:$0xfc]
  %v7197 = vld [vmem:[%s53 + $0x38] sm:$0xfc]
  %v7198 = vld [vmem:[%s53 + $0x50] sm:$0x3]
  %v7199 = vld [vmem:[%s53 + $0x58] sm:$0x3]
  %v7200 = vld [vmem:[%s53 + $0x60] sm:$0x3]
  %v7201 = vld [vmem:[%s53 + $0x68] sm:$0x3]
  %v7202 = vld [vmem:[%s53 + $0x70] sm:$0x3]
  %v7203 = vld [vmem:[%s53 + $0x78] sm:$0x3]
  %v7204 = vld [vmem:[%s53 + $0x80] sm:$0x3]
  %v7205 = vld [vmem:[%s53 + $0x88] sm:$0x3]
  %v7206 = vld [vmem:[%s5499] ss:$8 sm:$0xf]
  %v7207 = vld [vmem:[%s5499] ss:$8 sm:$0xf0]
  %v7208 = vor.u32 %v7206, %v7207
  %v7210 = vlaneseq
  %v7211 = vshrl.u32 %v7210, 7
  %v7212 = vsub.s32 0, %v7211
  %v7213 = vrot.slane %v7208, %v7212
  %v7214 = vlaneseq
  %v7215 = vshrl.u32 %v7214, 7
  %v7216 = vsub.s32 1, %v7215
  %v7217 = vrot.slane %v7208, %v7216
  %v7218 = vlaneseq
  %v7219 = vshrl.u32 %v7218, 7
  %v7220 = vsub.s32 2, %v7219
  %v7221 = vrot.slane %v7208, %v7220
  %v7222 = vlaneseq
  %v7223 = vshrl.u32 %v7222, 7
  %v7224 = vsub.s32 3, %v7223
  %v7225 = vrot.slane %v7208, %v7224
  %v7226 = vlaneseq
  %v7227 = vshrl.u32 %v7226, 7
  %v7228 = vsub.s32 4, %v7227
  %v7229 = vrot.slane %v7208, %v7228
  %v7230 = vlaneseq
  %v7231 = vshrl.u32 %v7230, 7
  %v7232 = vsub.s32 5, %v7231
  %v7233 = vrot.slane %v7208, %v7232
  %v7234 = vlaneseq
  %v7235 = vshrl.u32 %v7234, 7
  %v7236 = vsub.s32 6, %v7235
  %v7237 = vrot.slane %v7208, %v7236
  %v7238 = vlaneseq
  %v7239 = vshrl.u32 %v7238, 7
  %v7240 = vsub.s32 7, %v7239
  %v7241 = vrot.slane %v7208, %v7240
  %v7250 = vmul.f32 %v7190, %v7213
  %v7251 = vmul.f32 %v7191, %v7217
  %v7252 = vmul.f32 %v7192, %v7221
  %v7253 = vmul.f32 %v7193, %v7225
  %v7254 = vmul.f32 %v7194, %v7229
  %v7255 = vmul.f32 %v7195, %v7233
  %v7256 = vmul.f32 %v7196, %v7237
  %v7257 = vmul.f32 %v7197, %v7241
  %v7258 = vmul.f32 %v7198, %v7213
  %v7259 = vmul.f32 %v7199, %v7217
  %v7260 = vmul.f32 %v7200, %v7221
  %v7261 = vmul.f32 %v7201, %v7225
  %v7262 = vmul.f32 %v7202, %v7229
  %v7263 = vmul.f32 %v7203, %v7233
  %v7264 = vmul.f32 %v7204, %v7237
  %v7265 = vmul.f32 %v7205, %v7241
  %v7282 = vrot.slane %v7250, 2
  %v7283 = vrot.slane %v7258, 2
  %v7284 = vsel %vm4729, %v7282, %v7283
  %v7285 = vrot.slane %v7251, 2
  %v7286 = vrot.slane %v7259, 2
  %v7287 = vsel %vm4729, %v7285, %v7286
  %v7288 = vrot.slane %v7252, 2
  %v7289 = vrot.slane %v7260, 2
  %v7290 = vsel %vm4729, %v7288, %v7289
  %v7291 = vrot.slane %v7253, 2
  %v7292 = vrot.slane %v7261, 2
  %v7293 = vsel %vm4729, %v7291, %v7292
  %v7294 = vrot.slane %v7254, 2
  %v7295 = vrot.slane %v7262, 2
  %v7296 = vsel %vm4729, %v7294, %v7295
  %v7297 = vrot.slane %v7255, 2
  %v7298 = vrot.slane %v7263, 2
  %v7299 = vsel %vm4729, %v7297, %v7298
  %v7300 = vrot.slane %v7256, 2
  %v7301 = vrot.slane %v7264, 2
  %v7302 = vsel %vm4729, %v7300, %v7301
  %v7303 = vrot.slane %v7257, 2
  %v7304 = vrot.slane %v7265, 2
  %v7305 = vsel %vm4729, %v7303, %v7304
  %v7314 = vadd.f32 %v7182, %v7284
  %v7315 = vadd.f32 %v7183, %v7287
  %v7316 = vadd.f32 %v7184, %v7290
  %v7317 = vadd.f32 %v7185, %v7293
  %v7318 = vadd.f32 %v7186, %v7296
  %v7319 = vadd.f32 %v7187, %v7299
  %v7320 = vadd.f32 %v7188, %v7302
  %v7321 = vadd.f32 %v7189, %v7305
  %v7322 = vld [vmem:[%s53 + $0x40] sm:$0xfc]
  %v7323 = vld [vmem:[%s53 + $0x90] sm:$0x3]
  %v7324 = vld [vmem:[%s5618] ss:$8 sm:$0xf]
  %v7325 = vld [vmem:[%s5618] ss:$8 sm:$0xf0]
  %v7326 = vor.u32 %v7324, %v7325
  %v7328 = vlaneseq
  %v7329 = vshrl.u32 %v7328, 7
  %v7330 = vsub.s32 0, %v7329
  %v7331 = vrot.slane %v7326, %v7330
  %v7332 = vlaneseq
  %v7333 = vshrl.u32 %v7332, 7
  %v7334 = vsub.s32 1, %v7333
  %v7335 = vrot.slane %v7326, %v7334
  %v7336 = vlaneseq
  %v7337 = vshrl.u32 %v7336, 7
  %v7338 = vsub.s32 2, %v7337
  %v7339 = vrot.slane %v7326, %v7338
  %v7340 = vlaneseq
  %v7341 = vshrl.u32 %v7340, 7
  %v7342 = vsub.s32 3, %v7341
  %v7343 = vrot.slane %v7326, %v7342
  %v7344 = vlaneseq
  %v7345 = vshrl.u32 %v7344, 7
  %v7346 = vsub.s32 4, %v7345
  %v7347 = vrot.slane %v7326, %v7346
  %v7348 = vlaneseq
  %v7349 = vshrl.u32 %v7348, 7
  %v7350 = vsub.s32 5, %v7349
  %v7351 = vrot.slane %v7326, %v7350
  %v7352 = vlaneseq
  %v7353 = vshrl.u32 %v7352, 7
  %v7354 = vsub.s32 6, %v7353
  %v7355 = vrot.slane %v7326, %v7354
  %v7356 = vlaneseq
  %v7357 = vshrl.u32 %v7356, 7
  %v7358 = vsub.s32 7, %v7357
  %v7359 = vrot.slane %v7326, %v7358
  %v7368 = vmul.f32 %v7191, %v7331
  %v7369 = vmul.f32 %v7192, %v7335
  %v7370 = vmul.f32 %v7193, %v7339
  %v7371 = vmul.f32 %v7194, %v7343
  %v7372 = vmul.f32 %v7195, %v7347
  %v7373 = vmul.f32 %v7196, %v7351
  %v7374 = vmul.f32 %v7197, %v7355
  %v7375 = vmul.f32 %v7322, %v7359
  %v7376 = vmul.f32 %v7199, %v7331
  %v7377 = vmul.f32 %v7200, %v7335
  %v7378 = vmul.f32 %v7201, %v7339
  %v7379 = vmul.f32 %v7202, %v7343
  %v7380 = vmul.f32 %v7203, %v7347
  %v7381 = vmul.f32 %v7204, %v7351
  %v7382 = vmul.f32 %v7205, %v7355
  %v7383 = vmul.f32 %v7323, %v7359
  %v7400 = vrot.slane %v7368, 2
  %v7401 = vrot.slane %v7376, 2
  %v7402 = vsel %vm4729, %v7400, %v7401
  %v7403 = vrot.slane %v7369, 2
  %v7404 = vrot.slane %v7377, 2
  %v7405 = vsel %vm4729, %v7403, %v7404
  %v7406 = vrot.slane %v7370, 2
  %v7407 = vrot.slane %v7378, 2
  %v7408 = vsel %vm4729, %v7406, %v7407
  %v7409 = vrot.slane %v7371, 2
  %v7410 = vrot.slane %v7379, 2
  %v7411 = vsel %vm4729, %v7409, %v7410
  %v7412 = vrot.slane %v7372, 2
  %v7413 = vrot.slane %v7380, 2
  %v7414 = vsel %vm4729, %v7412, %v7413
  %v7415 = vrot.slane %v7373, 2
  %v7416 = vrot.slane %v7381, 2
  %v7417 = vsel %vm4729, %v7415, %v7416
  %v7418 = vrot.slane %v7374, 2
  %v7419 = vrot.slane %v7382, 2
  %v7420 = vsel %vm4729, %v7418, %v7419
  %v7421 = vrot.slane %v7375, 2
  %v7422 = vrot.slane %v7383, 2
  %v7423 = vsel %vm4729, %v7421, %v7422
  %v7432 = vadd.f32 %v7314, %v7402
  %v7433 = vadd.f32 %v7315, %v7405
  %v7434 = vadd.f32 %v7316, %v7408
  %v7435 = vadd.f32 %v7317, %v7411
  %v7436 = vadd.f32 %v7318, %v7414
  %v7437 = vadd.f32 %v7319, %v7417
  %v7438 = vadd.f32 %v7320, %v7420
  %v7439 = vadd.f32 %v7321, %v7423
  %v7440 = vld [vmem:[%s53 + $0x48] sm:$0xfc]
  %v7441 = vld [vmem:[%s53 + $0x98] sm:$0x3]
  %v7442 = vld [vmem:[%s5737] ss:$8 sm:$0xf]
  %v7443 = vld [vmem:[%s5737] ss:$8 sm:$0xf0]
  %v7444 = vor.u32 %v7442, %v7443
  %v7446 = vlaneseq
  %v7447 = vshrl.u32 %v7446, 7
  %v7448 = vsub.s32 0, %v7447
  %v7449 = vrot.slane %v7444, %v7448
  %v7450 = vlaneseq
  %v7451 = vshrl.u32 %v7450, 7
  %v7452 = vsub.s32 1, %v7451
  %v7453 = vrot.slane %v7444, %v7452
  %v7454 = vlaneseq
  %v7455 = vshrl.u32 %v7454, 7
  %v7456 = vsub.s32 2, %v7455
  %v7457 = vrot.slane %v7444, %v7456
  %v7458 = vlaneseq
  %v7459 = vshrl.u32 %v7458, 7
  %v7460 = vsub.s32 3, %v7459
  %v7461 = vrot.slane %v7444, %v7460
  %v7462 = vlaneseq
  %v7463 = vshrl.u32 %v7462, 7
  %v7464 = vsub.s32 4, %v7463
  %v7465 = vrot.slane %v7444, %v7464
  %v7466 = vlaneseq
  %v7467 = vshrl.u32 %v7466, 7
  %v7468 = vsub.s32 5, %v7467
  %v7469 = vrot.slane %v7444, %v7468
  %v7470 = vlaneseq
  %v7471 = vshrl.u32 %v7470, 7
  %v7472 = vsub.s32 6, %v7471
  %v7473 = vrot.slane %v7444, %v7472
  %v7474 = vlaneseq
  %v7475 = vshrl.u32 %v7474, 7
  %v7476 = vsub.s32 7, %v7475
  %v7477 = vrot.slane %v7444, %v7476
  %v7486 = vmul.f32 %v7192, %v7449
  %v7487 = vmul.f32 %v7193, %v7453
  %v7488 = vmul.f32 %v7194, %v7457
  %v7489 = vmul.f32 %v7195, %v7461
  %v7490 = vmul.f32 %v7196, %v7465
  %v7491 = vmul.f32 %v7197, %v7469
  %v7492 = vmul.f32 %v7322, %v7473
  %v7493 = vmul.f32 %v7440, %v7477
  %v7494 = vmul.f32 %v7200, %v7449
  %v7495 = vmul.f32 %v7201, %v7453
  %v7496 = vmul.f32 %v7202, %v7457
  %v7497 = vmul.f32 %v7203, %v7461
  %v7498 = vmul.f32 %v7204, %v7465
  %v7499 = vmul.f32 %v7205, %v7469
  %v7500 = vmul.f32 %v7323, %v7473
  %v7501 = vmul.f32 %v7441, %v7477
  %v7518 = vrot.slane %v7486, 2
  %v7519 = vrot.slane %v7494, 2
  %v7520 = vsel %vm4729, %v7518, %v7519
  %v7521 = vrot.slane %v7487, 2
  %v7522 = vrot.slane %v7495, 2
  %v7523 = vsel %vm4729, %v7521, %v7522
  %v7524 = vrot.slane %v7488, 2
  %v7525 = vrot.slane %v7496, 2
  %v7526 = vsel %vm4729, %v7524, %v7525
  %v7527 = vrot.slane %v7489, 2
  %v7528 = vrot.slane %v7497, 2
  %v7529 = vsel %vm4729, %v7527, %v7528
  %v7530 = vrot.slane %v7490, 2
  %v7531 = vrot.slane %v7498, 2
  %v7532 = vsel %vm4729, %v7530, %v7531
  %v7533 = vrot.slane %v7491, 2
  %v7534 = vrot.slane %v7499, 2
  %v7535 = vsel %vm4729, %v7533, %v7534
  %v7536 = vrot.slane %v7492, 2
  %v7537 = vrot.slane %v7500, 2
  %v7538 = vsel %vm4729, %v7536, %v7537
  %v7539 = vrot.slane %v7493, 2
  %v7540 = vrot.slane %v7501, 2
  %v7541 = vsel %vm4729, %v7539, %v7540
  %v7550 = vadd.f32 %v7432, %v7520
  %v7551 = vadd.f32 %v7433, %v7523
  %v7552 = vadd.f32 %v7434, %v7526
  %v7553 = vadd.f32 %v7435, %v7529
  %v7554 = vadd.f32 %v7436, %v7532
  %v7555 = vadd.f32 %v7437, %v7535
  %v7556 = vadd.f32 %v7438, %v7538
  %v7557 = vadd.f32 %v7439, %v7541
  %v7558 = vld [vmem:[%s4] sm:$0xff]
  %v7560 = vlaneseq
  %v7561 = vshrl.u32 %v7560, 7
  %v7562 = vsub.s32 0, %v7561
  %v7563 = vrot.slane %v7558, %v7562
  %v7564 = vlaneseq
  %v7565 = vshrl.u32 %v7564, 7
  %v7566 = vsub.s32 1, %v7565
  %v7567 = vrot.slane %v7558, %v7566
  %v7568 = vlaneseq
  %v7569 = vshrl.u32 %v7568, 7
  %v7570 = vsub.s32 2, %v7569
  %v7571 = vrot.slane %v7558, %v7570
  %v7572 = vlaneseq
  %v7573 = vshrl.u32 %v7572, 7
  %v7574 = vsub.s32 3, %v7573
  %v7575 = vrot.slane %v7558, %v7574
  %v7576 = vlaneseq
  %v7577 = vshrl.u32 %v7576, 7
  %v7578 = vsub.s32 4, %v7577
  %v7579 = vrot.slane %v7558, %v7578
  %v7580 = vlaneseq
  %v7581 = vshrl.u32 %v7580, 7
  %v7582 = vsub.s32 5, %v7581
  %v7583 = vrot.slane %v7558, %v7582
  %v7584 = vlaneseq
  %v7585 = vshrl.u32 %v7584, 7
  %v7586 = vsub.s32 6, %v7585
  %v7587 = vrot.slane %v7558, %v7586
  %v7588 = vlaneseq
  %v7589 = vshrl.u32 %v7588, 7
  %v7590 = vsub.s32 7, %v7589
  %v7591 = vrot.slane %v7558, %v7590
  %v7600 = vadd.f32 %v7550, %v7563
  %v7601 = vadd.f32 %v7551, %v7567
  %v7602 = vadd.f32 %v7552, %v7571
  %v7603 = vadd.f32 %v7553, %v7575
  %v7604 = vadd.f32 %v7554, %v7579
  %v7605 = vadd.f32 %v7555, %v7583
  %v7606 = vadd.f32 %v7556, %v7587
  %v7607 = vadd.f32 %v7557, %v7591
  %v7608 = vxor.u32 %v7600, 2147483648
  %v7609 = vxor.u32 %v7601, 2147483648
  %v7610 = vxor.u32 %v7602, 2147483648
  %v7611 = vxor.u32 %v7603, 2147483648
  %v7612 = vxor.u32 %v7604, 2147483648
  %v7613 = vxor.u32 %v7605, 2147483648
  %v7614 = vxor.u32 %v7606, 2147483648
  %v7615 = vxor.u32 %v7607, 2147483648
  %v7616 = vmul.f32 %v7608, 1.442695
  %v7617 = vpow.pop %v7616
  %v7618 = vmul.f32 %v7609, 1.442695
  %v7619 = vpow.pop %v7618
  %v7620 = vmul.f32 %v7610, 1.442695
  %v7621 = vpow.pop %v7620
  %v7622 = vmul.f32 %v7611, 1.442695
  %v7623 = vpow.pop %v7622
  %v7624 = vmul.f32 %v7612, 1.442695
  %v7625 = vpow.pop %v7624
  %v7626 = vmul.f32 %v7613, 1.442695
  %v7627 = vpow.pop %v7626
  %v7628 = vmul.f32 %v7614, 1.442695
  %v7629 = vpow.pop %v7628
  %v7630 = vmul.f32 %v7615, 1.442695
  %v7631 = vpow.pop %v7630
  %v7632 = vadd.f32 %v7617, 1.0
  %v7633 = vadd.f32 %v7619, 1.0
  %v7634 = vadd.f32 %v7621, 1.0
  %v7635 = vadd.f32 %v7623, 1.0
  %v7636 = vadd.f32 %v7625, 1.0
  %v7637 = vadd.f32 %v7627, 1.0
  %v7638 = vadd.f32 %v7629, 1.0
  %v7639 = vadd.f32 %v7631, 1.0
  %v7640 = vrcp.pop %v7632
  %v7641 = vmul.f32 1.0, %v7640
  %v7642 = vrcp.pop %v7633
  %v7643 = vmul.f32 1.0, %v7642
  %v7644 = vrcp.pop %v7634
  %v7645 = vmul.f32 1.0, %v7644
  %v7646 = vrcp.pop %v7635
  %v7647 = vmul.f32 1.0, %v7646
  %v7648 = vrcp.pop %v7636
  %v7649 = vmul.f32 1.0, %v7648
  %v7650 = vrcp.pop %v7637
  %v7651 = vmul.f32 1.0, %v7650
  %v7652 = vrcp.pop %v7638
  %v7653 = vmul.f32 1.0, %v7652
  %v7654 = vrcp.pop %v7639
  %v7655 = vmul.f32 1.0, %v7654
  %v7664 = vrot.slane %v7641, 7
  %v7665 = vrot.slane %v7643, 7
  %v7666 = vrot.slane %v7645, 7
  %v7667 = vrot.slane %v7647, 7
  %v7668 = vrot.slane %v7649, 7
  %v7669 = vrot.slane %v7651, 7
  %v7670 = vrot.slane %v7653, 7
  %v7671 = vrot.slane %v7655, 7
  %v7680 = vmul.f32 %v6600, %v7664
  %v7681 = vmul.f32 %v6601, %v7665
  %v7682 = vmul.f32 %v6602, %v7666
  %v7683 = vmul.f32 %v6603, %v7667
  %v7684 = vmul.f32 %v6604, %v7668
  %v7685 = vmul.f32 %v6605, %v7669
  %v7686 = vmul.f32 %v6606, %v7670
  %v7687 = vmul.f32 %v6607, %v7671
  %v7688 = vmul.f32 %v6608, %v7664
  %v7689 = vmul.f32 %v6609, %v7665
  %v7690 = vmul.f32 %v6610, %v7666
  %v7691 = vmul.f32 %v6611, %v7667
  %v7692 = vmul.f32 %v6612, %v7668
  %v7693 = vmul.f32 %v6613, %v7669
  %v7694 = vmul.f32 %v6614, %v7670
  %v7695 = vmul.f32 %v6615, %v7671
  %v7712 = vrot.slane %v7680, 1
  %v7713 = vrot.slane %v7688, 1
  %v7714 = vsel %vm4385, %v7712, %v7713
  %v7715 = vrot.slane %v7681, 1
  %v7716 = vrot.slane %v7689, 1
  %v7717 = vsel %vm4385, %v7715, %v7716
  %v7718 = vrot.slane %v7682, 1
  %v7719 = vrot.slane %v7690, 1
  %v7720 = vsel %vm4385, %v7718, %v7719
  %v7721 = vrot.slane %v7683, 1
  %v7722 = vrot.slane %v7691, 1
  %v7723 = vsel %vm4385, %v7721, %v7722
  %v7724 = vrot.slane %v7684, 1
  %v7725 = vrot.slane %v7692, 1
  %v7726 = vsel %vm4385, %v7724, %v7725
  %v7727 = vrot.slane %v7685, 1
  %v7728 = vrot.slane %v7693, 1
  %v7729 = vsel %vm4385, %v7727, %v7728
  %v7730 = vrot.slane %v7686, 1
  %v7731 = vrot.slane %v7694, 1
  %v7732 = vsel %vm4385, %v7730, %v7731
  %v7733 = vrot.slane %v7687, 1
  %v7734 = vrot.slane %v7695, 1
  %v7735 = vsel %vm4385, %v7733, %v7734
  %s7744 = scalar_lea.vmem %s5, 64
  %7745 = vst [vmem:[%s7744] sm:$0xff] %v7714
  %7746 = vst [vmem:[%s7744 + $0x8] sm:$0xff] %v7717
  %7747 = vst [vmem:[%s7744 + $0x10] sm:$0xff] %v7720
  %7748 = vst [vmem:[%s7744 + $0x18] sm:$0xff] %v7723
  %7749 = vst [vmem:[%s7744 + $0x20] sm:$0xff] %v7726
  %7750 = vst [vmem:[%s7744 + $0x28] sm:$0xff] %v7729
  %7751 = vst [vmem:[%s7744 + $0x30] sm:$0xff] %v7732
  %7752 = vst [vmem:[%s7744 + $0x38] sm:$0xff] %v7735
  // Predicated region
  $region22: #{stem_forward_pallas.1} parent=0 // pred_check
    _
  $region23: #{stem_forward_pallas.1} parent=0 // pred_check_branch
    %7754 = sbr.rel (0) target = $region25
  $region24: #{stem_forward_pallas.1} parent=0 // pred_region
    _
  $region25: #{stem_forward_pallas.1} parent=0 // pred_fallthru
    _
  // Predicated region
  $region26: #{stem_forward_pallas.1} parent=0 // pred_check
    _
  $region27: #{stem_forward_pallas.1} parent=0 // pred_check_branch
    %7756 = sbr.rel (0) target = $region29
  $region28: #{stem_forward_pallas.1} parent=0 // pred_region
    _
  $region29: #{stem_forward_pallas.1} parent=0 // pred_fallthru
    _

</llo_original>
